<compile_context>
chip_gen: v5e
topology: v5e:2x2
jax: 0.10.0
libtpu: 0.0.40
codegen_flags: <defaults>
</compile_context>

<pallas_src>
import functools

import jax
import jax.numpy as jnp
from jax.experimental import pallas as pl
from jax.experimental.pallas import tpu as pltpu


HIDDEN = 512
RESHAPED = 64 * 9 * 9          # 5184
LANES = 128
FC_K_PAD = 5376                # round_up(5184, 128): single full-K block, 3.7% pad


def _round_up(x, m):
    return (x + m - 1) // m * m


# ------------------------- conv GEMM Pallas kernel -------------------------- #

def _gemm_bias_act_kernel(x_ref, w_ref, b_ref, o_ref, *, apply_relu):
    acc = jnp.dot(x_ref[...], w_ref[...], preferred_element_type=jnp.float32)
    acc = acc + b_ref[...]                    # b is [1, N] -> broadcast over M
    if apply_relu:
        acc = jnp.maximum(acc, 0.0)
    o_ref[...] = acc.astype(o_ref.dtype)


def _choose_m_tile(m):
    """Pad M to a multiple of 8 and pick a tile giving an even tile count,
    so the 'parallel' grid splits cleanly across v7x's two TensorCores."""
    mp = _round_up(m, 16)            # even number of 8-row sublane groups
    if mp // 2 <= 1024:
        return mp, mp // 2           # exactly two tiles -> one per TensorCore
    tm = 512
    return _round_up(mp, 2 * tm), tm


def gemm_bias_act(x, w, b, *, apply_relu):
    """y = relu?(x[M,K] @ w[K,N] + b[1,N]); M tiled + 'parallel', N lane-dense.

    Returns the M-padded result [Mp, N]; caller slices.
    """
    m, k = x.shape
    k2, n = w.shape
    assert k == k2 and n % LANES == 0 and b.shape == (1, n)
    mp, tm = _choose_m_tile(m)
    if mp != m:
        x = jnp.pad(x, ((0, mp - m), (0, 0)))
    kernel = functools.partial(_gemm_bias_act_kernel, apply_relu=apply_relu)
    return pl.pallas_call(
        kernel,
        out_shape=jax.ShapeDtypeStruct((mp, n), jnp.float32),
        grid=(mp // tm,),
        in_specs=[
            pl.BlockSpec((tm, k), lambda i: (i, 0)),
            pl.BlockSpec((k, n), lambda i: (0, 0)),
            pl.BlockSpec((1, n), lambda i: (0, 0)),
        ],
        out_specs=pl.BlockSpec((tm, n), lambda i: (i, 0)),
        compiler_params=pltpu.CompilerParams(
            dimension_semantics=("parallel",)),
    )(x, w, b)


# ---------------------- fused fc1(+ReLU)+fc2 Pallas kernel ------------------- #

def _fused_fc_kernel(x_ref, w1_ref, b1_ref, w2_ref, b2_ref, o_ref):
    h = jnp.maximum(
        jnp.dot(x_ref[...], w1_ref[...], preferred_element_type=jnp.float32)
        + b1_ref[...], 0.0)                                        # fc1 + ReLU
    out = jnp.dot(h, w2_ref[...], preferred_element_type=jnp.float32)   # fc2
    # fc2 bias must be added exactly once (by the first hidden split only).
    b2_scale = jnp.where(pl.program_id(0) == 0, 1.0, 0.0)
    o_ref[...] = (out + b2_scale * b2_ref[...]).astype(o_ref.dtype)


def fused_fc(x, w1, b1, w2, b2, *, splits=1):
    """relu(x @ w1 + b1) @ w2 (+ b2) in a single pallas_call.

    The hidden dim is split across `splits` parallel grid steps (2 on v7x so
    each TensorCore streams only half of w1).  w1: [K1p, H], w2: [H, N2p].
    Returns partial slabs [splits, Mp, N2p]; caller sums over axis 0 and slices.
    """
    m, k = x.shape
    k1p, hid = w1.shape
    hid2, n2p = w2.shape
    assert hid == hid2 and hid % splits == 0
    assert n2p % LANES == 0 and k1p % LANES == 0 and k1p >= k
    h_split = hid // splits
    mp = _round_up(m, 8)
    tm = mp if mp <= 256 else 256
    mp = _round_up(mp, tm)
    if mp != m or k1p != k:
        x = jnp.pad(x, ((0, mp - m), (0, k1p - k)))
    return pl.pallas_call(
        _fused_fc_kernel,
        out_shape=jax.ShapeDtypeStruct((splits, mp, n2p), jnp.float32),
        grid=(splits, mp // tm),
        in_specs=[
            pl.BlockSpec((tm, k1p), lambda hh, i: (i, 0)),
            # Single full-K weight block; don't double-buffer the ~11 MB slab.
            pl.BlockSpec((k1p, h_split), lambda hh, i: (0, hh),
                         pipeline_mode=pl.Buffered(1)),
            pl.BlockSpec((1, h_split), lambda hh, i: (0, hh)),
            pl.BlockSpec((h_split, n2p), lambda hh, i: (hh, 0)),
            pl.BlockSpec((1, n2p), lambda hh, i: (0, 0)),
        ],
        out_specs=pl.BlockSpec((None, tm, n2p), lambda hh, i: (hh, i, 0)),
        compiler_params=pltpu.CompilerParams(
            dimension_semantics=("parallel", "parallel")),
    )(x, w1, b1, w2, b2)


# ------------------------------ conv via GEMM ------------------------------- #

def _im2col(x_nhwc, ksize, stride):
    """VALID-conv patch extraction as pure data movement (strided slices).

    Returns [B, OH, OW, ksize*ksize*C] with features ordered (KH, KW, C).
    """
    b, h, w, c = x_nhwc.shape
    oh = (h - ksize) // stride + 1
    ow = (w - ksize) // stride + 1
    cols = []
    for dy in range(ksize):
        for dx in range(ksize):
            cols.append(jax.lax.slice(
                x_nhwc,
                (0, dy, dx, 0),
                (b, dy + (oh - 1) * stride + 1, dx + (ow - 1) * stride + 1, c),
                (1, stride, stride, 1)))
    return jnp.concatenate(cols, axis=-1)


def conv2d_relu(x_nhwc, w_mat, b_row, *, ksize, stride, out_c):
    """VALID conv (PyTorch Conv2d, no padding) + ReLU as im2col + Pallas GEMM."""
    patches = _im2col(x_nhwc, ksize, stride)
    batch, oh, ow, k = patches.shape
    m = batch * oh * ow
    y = gemm_bias_act(patches.reshape(m, k), w_mat, b_row, apply_relu=True)
    return y[:m, :out_c].reshape(batch, oh, ow, out_c)


# ----------------------------------- DQN ------------------------------------ #

def dqn_init(key, actions, frames):
    """PyTorch-style uniform(-1/sqrt(fan_in), 1/sqrt(fan_in)) init (torch layout)."""
    ks = jax.random.split(key, 10)

    def u(k, shape, fan_in):
        bound = 1.0 / (fan_in ** 0.5)
        return jax.random.uniform(k, shape, jnp.float32, -bound, bound)

    return {
        "conv1_w": u(ks[0], (32, frames, 8, 8), frames * 8 * 8),
        "conv1_b": u(ks[1], (32,), frames * 8 * 8),
        "conv2_w": u(ks[2], (64, 32, 4, 4), 32 * 4 * 4),
        "conv2_b": u(ks[3], (64,), 32 * 4 * 4),
        "conv3_w": u(ks[4], (64, 64, 3, 3), 64 * 3 * 3),
        "conv3_b": u(ks[5], (64,), 64 * 3 * 3),
        "fc1_w": u(ks[6], (HIDDEN, RESHAPED), RESHAPED),
        "fc1_b": u(ks[7], (HIDDEN,), RESHAPED),
        "fc2_w": u(ks[8], (actions, HIDDEN), HIDDEN),
        "fc2_b": u(ks[9], (actions,), HIDDEN),
    }


def prepare_params(params):
    """One-time layout prep: [K,N] weights, 128-padded N, permuted fc1 rows."""
    def conv_mat(w, b):
        out_c, in_c, kh, kw = w.shape
        # (out_c, in_c, kh, kw) -> (kh, kw, in_c, out_c) -> [kh*kw*in_c, out_c]
        # so rows match _im2col's (KH, KW, C) patch-feature order.
        w_mat = jnp.transpose(w, (2, 3, 1, 0)).reshape(kh * kw * in_c, out_c)
        n_pad = _round_up(out_c, LANES)
        w_mat = jnp.pad(w_mat, ((0, 0), (0, n_pad - out_c)))
        b_row = jnp.pad(b, (0, n_pad - out_c)).reshape(1, n_pad)
        return w_mat, b_row

    c1w, c1b = conv_mat(params["conv1_w"], params["conv1_b"])
    c2w, c2b = conv_mat(params["conv2_w"], params["conv2_b"])
    c3w, c3b = conv_mat(params["conv3_w"], params["conv3_b"])

    # fc1: torch weight [512, 5184] with K flattened in (C=64, H=9, W=9) order.
    # Reorder rows to (H, W, C) so the NHWC conv3 output flattens directly,
    # transpose to [K, N], and zero-pad K only up to the 128-lane multiple 5376.
    w1 = params["fc1_w"].reshape(HIDDEN, 64, 9, 9)
    w1 = jnp.transpose(w1, (2, 3, 1, 0)).reshape(RESHAPED, HIDDEN)
    w1 = jnp.pad(w1, ((0, FC_K_PAD - RESHAPED), (0, 0)))
    b1 = params["fc1_b"].reshape(1, HIDDEN)

    actions = params["fc2_w"].shape[0]
    n2p = _round_up(actions, LANES)
    w2 = jnp.pad(jnp.transpose(params["fc2_w"]), ((0, 0), (0, n2p - actions)))
    b2 = jnp.pad(params["fc2_b"], (0, n2p - actions)).reshape(1, n2p)

    return {"c1w": c1w, "c1b": c1b, "c2w": c2w, "c2b": c2b,
            "c3w": c3w, "c3b": c3b, "w1": w1, "b1": b1, "w2": w2, "b2": b2}


def default_fc_splits():
    """Split the fc hidden dim across 2 parallel steps only on v7x (2 TCs/chip)."""
    try:
        kind = jax.devices()[0].device_kind.lower()
    except Exception:
        return 1
    return 2 if ("v7" in kind or "7x" in kind) else 1


@functools.partial(jax.jit, static_argnames=("actions", "fc_splits"))
def dqn_forward(prep, x_nchw, *, actions, fc_splits=1):
    """x_nchw: [B, frames, 100, 100] float32 -> [B, actions]."""
    batch = x_nchw.shape[0]
    x = jnp.transpose(x_nchw, (0, 2, 3, 1))                      # NCHW -> NHWC
    x = conv2d_relu(x, prep["c1w"], prep["c1b"], ksize=8, stride=4, out_c=32)
    x = conv2d_relu(x, prep["c2w"], prep["c2b"], ksize=4, stride=2, out_c=64)
    x = conv2d_relu(x, prep["c3w"], prep["c3b"], ksize=3, stride=1, out_c=64)
    feat = x.reshape(batch, RESHAPED)        # (H,W,C) flatten; fc1 rows permuted
    slabs = fused_fc(feat, prep["w1"], prep["b1"], prep["w2"], prep["b2"],
                     splits=fc_splits)
    q = slabs[0] if fc_splits == 1 else jnp.sum(slabs, axis=0)
    return q[:batch, :actions]


# ----------------------------- pure-JAX reference ---------------------------- #

def dqn_forward_ref(params, x):
    def conv(x, w, b, s):
        y = jax.lax.conv_general_dilated(
            x, w, (s, s), "VALID", dimension_numbers=("NCHW", "OIHW", "NCHW"))
        return jax.nn.relu(y + b[None, :, None, None])

    x = conv(x, params["conv1_w"], params["conv1_b"], 4)
    x = conv(x, params["conv2_w"], params["conv2_b"], 2)
    x = conv(x, params["conv3_w"], params["conv3_b"], 1)
    x = x.reshape(x.shape[0], RESHAPED)
    x = jax.nn.relu(x @ params["fc1_w"].T + params["fc1_b"])
    return x @ params["fc2_w"].T + params["fc2_b"]


# ----------------------------------- main ------------------------------------ #

if __name__ == "__main__":
    actions, frames, batch = 6, 4, 2
    key = jax.random.PRNGKey(0)
    k_param, k_x = jax.random.split(key)

    params = dqn_init(k_param, actions, frames)
    prep = prepare_params(params)                    # one-time layout prep
    x = jax.random.uniform(k_x, (batch, frames, 100, 100), jnp.float32)

    fc_splits = default_fc_splits()
    out = jax.block_until_ready(
        dqn_forward(prep, x, actions=actions, fc_splits=fc_splits))
    ref = jax.block_until_ready(jax.jit(dqn_forward_ref)(params, x))

    assert out.shape == (batch, actions), out.shape
    max_err = float(jnp.max(jnp.abs(out - ref)))
    assert jnp.allclose(out, ref, atol=1e-3, rtol=1e-3), max_err
    print("KERNEL_OK")
</pallas_src>

<mosaic_0001>
module attributes {stable_mosaic.version = 11 : i64} {
  func.func @_gemm_bias_act_kernel(%arg0: i32, %arg1: memref<576x256xf32, #tpu.memory_space<vmem>>, %arg2: memref<256x128xf32, #tpu.memory_space<vmem>>, %arg3: memref<1x128xf32, #tpu.memory_space<vmem>>, %arg4: memref<576x128xf32, #tpu.memory_space<vmem>>) attributes {dimension_semantics = [#tpu.dimension_semantics<parallel>], iteration_bounds = array<i64: 2>, scalar_prefetch = 0 : i64, scratch_operands = 0 : i64, tpu.core_type = #tpu.core_type<tc>, window_params = [{transform_indices = @transform_0, window_bounds = array<i64: 576, 256>}, {pipeline_mode = #tpu.pipeline_mode<synchronous>, transform_indices = @transform_1, window_bounds = array<i64: 256, 128>}, {pipeline_mode = #tpu.pipeline_mode<synchronous>, transform_indices = @transform_2, window_bounds = array<i64: 1, 128>}, {transform_indices = @transform_3, window_bounds = array<i64: 576, 128>}]} {
    %c0 = arith.constant 0 : index
    %c0_0 = arith.constant 0 : index
    %0 = vector.load %arg1[%c0, %c0_0] : memref<576x256xf32, #tpu.memory_space<vmem>>, vector<576x256xf32>
    %c0_1 = arith.constant 0 : index
    %c0_2 = arith.constant 0 : index
    %1 = vector.load %arg2[%c0_1, %c0_2] : memref<256x128xf32, #tpu.memory_space<vmem>>, vector<256x128xf32>
    %cst = arith.constant dense<0.000000e+00> : vector<576x128xf32>
    %2 = tpu.matmul %0, %1, %cst {dimension_numbers = #tpu.dot_dimension_numbers<[1], [0], [0], [1], [0, 0, 1, 1], [], []>} : vector<576x256xf32>, vector<256x128xf32>, vector<576x128xf32> -> vector<576x128xf32>
    %c0_3 = arith.constant 0 : index
    %c0_4 = arith.constant 0 : index
    %3 = vector.load %arg3[%c0_3, %c0_4] : memref<1x128xf32, #tpu.memory_space<vmem>>, vector<1x128xf32>
    %4 = vector.broadcast %3 : vector<1x128xf32> to vector<576x128xf32>
    %5 = arith.addf %2, %4 : vector<576x128xf32>
    %cst_5 = arith.constant 0.000000e+00 : f32
    %6 = vector.broadcast %cst_5 : f32 to vector<576x128xf32>
    %7 = arith.maximumf %5, %6 : vector<576x128xf32>
    %c0_6 = arith.constant 0 : index
    %c0_7 = arith.constant 0 : index
    %8 = vector.load %arg4[%c0_6, %c0_7] : memref<576x128xf32, #tpu.memory_space<vmem>>, vector<576x128xf32>
    tpu.vector_store %arg4[%c0_6, %c0_7], %7 {strides = array<i32>} : memref<576x128xf32, #tpu.memory_space<vmem>>, vector<576x128xf32>,
    return
  }
  func.func @transform_0(%arg0: i32) -> (i32, i32) {
    %c0_i32 = arith.constant 0 : i32
    %c0_i32_0 = arith.constant 0 : i32
    return %arg0, %c0_i32 : i32, i32
  }
  func.func @transform_1(%arg0: i32) -> (i32, i32) {
    %c0_i32 = arith.constant 0 : i32
    %c0_i32_0 = arith.constant 0 : i32
    %c0_i32_1 = arith.constant 0 : i32
    return %c0_i32, %c0_i32_0 : i32, i32
  }
  func.func @transform_2(%arg0: i32) -> (i32, i32) {
    %c0_i32 = arith.constant 0 : i32
    %c0_i32_0 = arith.constant 0 : i32
    %c0_i32_1 = arith.constant 0 : i32
    return %c0_i32, %c0_i32_0 : i32, i32
  }
  func.func @transform_3(%arg0: i32) -> (i32, i32) {
    %c0_i32 = arith.constant 0 : i32
    %c0_i32_0 = arith.constant 0 : i32
    return %arg0, %c0_i32 : i32, i32
  }
}

module attributes {stable_mosaic.version = 11 : i64} {
  func.func @_gemm_bias_act_kernel(%arg0: i32, %arg1: memref<128x512xf32, #tpu.memory_space<vmem>>, %arg2: memref<512x128xf32, #tpu.memory_space<vmem>>, %arg3: memref<1x128xf32, #tpu.memory_space<vmem>>, %arg4: memref<128x128xf32, #tpu.memory_space<vmem>>) attributes {dimension_semantics = [#tpu.dimension_semantics<parallel>], iteration_bounds = array<i64: 2>, scalar_prefetch = 0 : i64, scratch_operands = 0 : i64, tpu.core_type = #tpu.core_type<tc>, window_params = [{transform_indices = @transform_0, window_bounds = array<i64: 128, 512>}, {pipeline_mode = #tpu.pipeline_mode<synchronous>, transform_indices = @transform_1, window_bounds = array<i64: 512, 128>}, {pipeline_mode = #tpu.pipeline_mode<synchronous>, transform_indices = @transform_2, window_bounds = array<i64: 1, 128>}, {transform_indices = @transform_3, window_bounds = array<i64: 128, 128>}]} {
    %c0 = arith.constant 0 : index
    %c0_0 = arith.constant 0 : index
    %0 = vector.load %arg1[%c0, %c0_0] : memref<128x512xf32, #tpu.memory_space<vmem>>, vector<128x512xf32>
    %c0_1 = arith.constant 0 : index
    %c0_2 = arith.constant 0 : index
    %1 = vector.load %arg2[%c0_1, %c0_2] : memref<512x128xf32, #tpu.memory_space<vmem>>, vector<512x128xf32>
    %cst = arith.constant dense<0.000000e+00> : vector<128x128xf32>
    %2 = tpu.matmul %0, %1, %cst {dimension_numbers = #tpu.dot_dimension_numbers<[1], [0], [0], [1], [0, 0, 1, 1], [], []>} : vector<128x512xf32>, vector<512x128xf32>, vector<128x128xf32> -> vector<128x128xf32>
    %c0_3 = arith.constant 0 : index
    %c0_4 = arith.constant 0 : index
    %3 = vector.load %arg3[%c0_3, %c0_4] : memref<1x128xf32, #tpu.memory_space<vmem>>, vector<1x128xf32>
    %4 = vector.broadcast %3 : vector<1x128xf32> to vector<128x128xf32>
    %5 = arith.addf %2, %4 : vector<128x128xf32>
    %cst_5 = arith.constant 0.000000e+00 : f32
    %6 = vector.broadcast %cst_5 : f32 to vector<128x128xf32>
    %7 = arith.maximumf %5, %6 : vector<128x128xf32>
    %c0_6 = arith.constant 0 : index
    %c0_7 = arith.constant 0 : index
    %8 = vector.load %arg4[%c0_6, %c0_7] : memref<128x128xf32, #tpu.memory_space<vmem>>, vector<128x128xf32>
    tpu.vector_store %arg4[%c0_6, %c0_7], %7 {strides = array<i32>} : memref<128x128xf32, #tpu.memory_space<vmem>>, vector<128x128xf32>,
    return
  }
  func.func @transform_0(%arg0: i32) -> (i32, i32) {
    %c0_i32 = arith.constant 0 : i32
    %c0_i32_0 = arith.constant 0 : i32
    return %arg0, %c0_i32 : i32, i32
  }
  func.func @transform_1(%arg0: i32) -> (i32, i32) {
    %c0_i32 = arith.constant 0 : i32
    %c0_i32_0 = arith.constant 0 : i32
    %c0_i32_1 = arith.constant 0 : i32
    return %c0_i32, %c0_i32_0 : i32, i32
  }
  func.func @transform_2(%arg0: i32) -> (i32, i32) {
    %c0_i32 = arith.constant 0 : i32
    %c0_i32_0 = arith.constant 0 : i32
    %c0_i32_1 = arith.constant 0 : i32
    return %c0_i32, %c0_i32_0 : i32, i32
  }
  func.func @transform_3(%arg0: i32) -> (i32, i32) {
    %c0_i32 = arith.constant 0 : i32
    %c0_i32_0 = arith.constant 0 : i32
    return %arg0, %c0_i32 : i32, i32
  }
}

module attributes {stable_mosaic.version = 11 : i64} {
  func.func @_gemm_bias_act_kernel(%arg0: i32, %arg1: memref<88x576xf32, #tpu.memory_space<vmem>>, %arg2: memref<576x128xf32, #tpu.memory_space<vmem>>, %arg3: memref<1x128xf32, #tpu.memory_space<vmem>>, %arg4: memref<88x128xf32, #tpu.memory_space<vmem>>) attributes {dimension_semantics = [#tpu.dimension_semantics<parallel>], iteration_bounds = array<i64: 2>, scalar_prefetch = 0 : i64, scratch_operands = 0 : i64, tpu.core_type = #tpu.core_type<tc>, window_params = [{transform_indices = @transform_0, window_bounds = array<i64: 88, 576>}, {pipeline_mode = #tpu.pipeline_mode<synchronous>, transform_indices = @transform_1, window_bounds = array<i64: 576, 128>}, {pipeline_mode = #tpu.pipeline_mode<synchronous>, transform_indices = @transform_2, window_bounds = array<i64: 1, 128>}, {transform_indices = @transform_3, window_bounds = array<i64: 88, 128>}]} {
    %c0 = arith.constant 0 : index
    %c0_0 = arith.constant 0 : index
    %0 = vector.load %arg1[%c0, %c0_0] : memref<88x576xf32, #tpu.memory_space<vmem>>, vector<88x576xf32>
    %c0_1 = arith.constant 0 : index
    %c0_2 = arith.constant 0 : index
    %1 = vector.load %arg2[%c0_1, %c0_2] : memref<576x128xf32, #tpu.memory_space<vmem>>, vector<576x128xf32>
    %cst = arith.constant dense<0.000000e+00> : vector<88x128xf32>
    %2 = tpu.matmul %0, %1, %cst {dimension_numbers = #tpu.dot_dimension_numbers<[1], [0], [0], [1], [0, 0, 1, 1], [], []>} : vector<88x576xf32>, vector<576x128xf32>, vector<88x128xf32> -> vector<88x128xf32>
    %c0_3 = arith.constant 0 : index
    %c0_4 = arith.constant 0 : index
    %3 = vector.load %arg3[%c0_3, %c0_4] : memref<1x128xf32, #tpu.memory_space<vmem>>, vector<1x128xf32>
    %4 = vector.broadcast %3 : vector<1x128xf32> to vector<88x128xf32>
    %5 = arith.addf %2, %4 : vector<88x128xf32>
    %cst_5 = arith.constant 0.000000e+00 : f32
    %6 = vector.broadcast %cst_5 : f32 to vector<88x128xf32>
    %7 = arith.maximumf %5, %6 : vector<88x128xf32>
    %c0_6 = arith.constant 0 : index
    %c0_7 = arith.constant 0 : index
    %8 = vector.load %arg4[%c0_6, %c0_7] : memref<88x128xf32, #tpu.memory_space<vmem>>, vector<88x128xf32>
    tpu.vector_store %arg4[%c0_6, %c0_7], %7 {strides = array<i32>} : memref<88x128xf32, #tpu.memory_space<vmem>>, vector<88x128xf32>,
    return
  }
  func.func @transform_0(%arg0: i32) -> (i32, i32) {
    %c0_i32 = arith.constant 0 : i32
    %c0_i32_0 = arith.constant 0 : i32
    return %arg0, %c0_i32 : i32, i32
  }
  func.func @transform_1(%arg0: i32) -> (i32, i32) {
    %c0_i32 = arith.constant 0 : i32
    %c0_i32_0 = arith.constant 0 : i32
    %c0_i32_1 = arith.constant 0 : i32
    return %c0_i32, %c0_i32_0 : i32, i32
  }
  func.func @transform_2(%arg0: i32) -> (i32, i32) {
    %c0_i32 = arith.constant 0 : i32
    %c0_i32_0 = arith.constant 0 : i32
    %c0_i32_1 = arith.constant 0 : i32
    return %c0_i32, %c0_i32_0 : i32, i32
  }
  func.func @transform_3(%arg0: i32) -> (i32, i32) {
    %c0_i32 = arith.constant 0 : i32
    %c0_i32_0 = arith.constant 0 : i32
    return %arg0, %c0_i32 : i32, i32
  }
}

module attributes {stable_mosaic.version = 11 : i64} {
  func.func @_fused_fc_kernel(%arg0: i32, %arg1: i32, %arg2: memref<8x5376xf32, #tpu.memory_space<vmem>>, %arg3: memref<5376x512xf32, #tpu.memory_space<vmem>>, %arg4: memref<1x512xf32, #tpu.memory_space<vmem>>, %arg5: memref<512x128xf32, #tpu.memory_space<vmem>>, %arg6: memref<1x128xf32, #tpu.memory_space<vmem>>, %arg7: memref<1x8x128xf32, #tpu.memory_space<vmem>>) attributes {dimension_semantics = [#tpu.dimension_semantics<parallel>, #tpu.dimension_semantics<parallel>], iteration_bounds = array<i64: 1, 1>, scalar_prefetch = 0 : i64, scratch_operands = 0 : i64, tpu.core_type = #tpu.core_type<tc>, window_params = [{transform_indices = @transform_0, window_bounds = array<i64: 8, 5376>}, {pipeline_mode = #tpu.pipeline_mode<synchronous>, transform_indices = @transform_1, window_bounds = array<i64: 5376, 512>}, {transform_indices = @transform_2, window_bounds = array<i64: 1, 512>}, {transform_indices = @transform_3, window_bounds = array<i64: 512, 128>}, {pipeline_mode = #tpu.pipeline_mode<synchronous>, transform_indices = @transform_4, window_bounds = array<i64: 1, 128>}, {transform_indices = @transform_5, window_bounds = array<i64: 1, 8, 128>}]} {
    %c0 = arith.constant 0 : index
    %c0_0 = arith.constant 0 : index
    %0 = vector.load %arg2[%c0, %c0_0] : memref<8x5376xf32, #tpu.memory_space<vmem>>, vector<8x5376xf32>
    %c0_1 = arith.constant 0 : index
    %c0_2 = arith.constant 0 : index
    %1 = vector.load %arg3[%c0_1, %c0_2] : memref<5376x512xf32, #tpu.memory_space<vmem>>, vector<5376x512xf32>
    %cst = arith.constant dense<0.000000e+00> : vector<8x512xf32>
    %2 = tpu.matmul %0, %1, %cst {dimension_numbers = #tpu.dot_dimension_numbers<[1], [0], [0], [1], [0, 0, 1, 1], [], []>} : vector<8x5376xf32>, vector<5376x512xf32>, vector<8x512xf32> -> vector<8x512xf32>
    %c0_3 = arith.constant 0 : index
    %c0_4 = arith.constant 0 : index
    %3 = vector.load %arg4[%c0_3, %c0_4] : memref<1x512xf32, #tpu.memory_space<vmem>>, vector<1x512xf32>
    %4 = vector.broadcast %3 : vector<1x512xf32> to vector<8x512xf32>
    %5 = arith.addf %2, %4 : vector<8x512xf32>
    %cst_5 = arith.constant 0.000000e+00 : f32
    %6 = vector.broadcast %cst_5 : f32 to vector<8x512xf32>
    %7 = arith.maximumf %5, %6 : vector<8x512xf32>
    %c0_6 = arith.constant 0 : index
    %c0_7 = arith.constant 0 : index
    %8 = vector.load %arg5[%c0_6, %c0_7] : memref<512x128xf32, #tpu.memory_space<vmem>>, vector<512x128xf32>
    %cst_8 = arith.constant dense<0.000000e+00> : vector<8x128xf32>
    %9 = tpu.matmul %7, %8, %cst_8 {dimension_numbers = #tpu.dot_dimension_numbers<[1], [0], [0], [1], [0, 0, 1, 1], [], []>} : vector<8x512xf32>, vector<512x128xf32>, vector<8x128xf32> -> vector<8x128xf32>
    %c0_i32 = arith.constant 0 : i32
    %10 = arith.cmpi eq, %arg0, %c0_i32 : i32
    %cst_9 = arith.constant 1.000000e+00 : f32
    %cst_10 = arith.constant 0.000000e+00 : f32
    %11 = arith.select %10, %cst_9, %cst_10 : f32
    %c0_11 = arith.constant 0 : index
    %c0_12 = arith.constant 0 : index
    %12 = vector.load %arg6[%c0_11, %c0_12] : memref<1x128xf32, #tpu.memory_space<vmem>>, vector<1x128xf32>
    %13 = vector.broadcast %11 : f32 to vector<1x128xf32>
    %14 = arith.mulf %13, %12 : vector<1x128xf32>
    %15 = vector.broadcast %14 : vector<1x128xf32> to vector<8x128xf32>
    %16 = arith.addf %9, %15 : vector<8x128xf32>
    %c0_13 = arith.constant 0 : index
    %c0_14 = arith.constant 0 : index
    %c0_15 = arith.constant 0 : index
    %17 = vector.load %arg7[%c0_13, %c0_14, %c0_15] : memref<1x8x128xf32, #tpu.memory_space<vmem>>, vector<1x8x128xf32>
    %18 = vector.shape_cast %17 : vector<1x8x128xf32> to vector<8x128xf32>
    %19 = vector.shape_cast %16 : vector<8x128xf32> to vector<1x8x128xf32>
    tpu.vector_store %arg7[%c0_13, %c0_14, %c0_15], %19 {strides = array<i32>} : memref<1x8x128xf32, #tpu.memory_space<vmem>>, vector<1x8x128xf32>,
    return
  }
  func.func @transform_0(%arg0: i32, %arg1: i32) -> (i32, i32) {
    %c0_i32 = arith.constant 0 : i32
    %c0_i32_0 = arith.constant 0 : i32
    return %arg1, %c0_i32 : i32, i32
  }
  func.func @transform_1(%arg0: i32, %arg1: i32) -> (i32, i32) {
    %c0_i32 = arith.constant 0 : i32
    %c0_i32_0 = arith.constant 0 : i32
    return %c0_i32, %arg0 : i32, i32
  }
  func.func @transform_2(%arg0: i32, %arg1: i32) -> (i32, i32) {
    %c0_i32 = arith.constant 0 : i32
    %c0_i32_0 = arith.constant 0 : i32
    return %c0_i32, %arg0 : i32, i32
  }
  func.func @transform_3(%arg0: i32, %arg1: i32) -> (i32, i32) {
    %c0_i32 = arith.constant 0 : i32
    %c0_i32_0 = arith.constant 0 : i32
    return %arg0, %c0_i32 : i32, i32
  }
  func.func @transform_4(%arg0: i32, %arg1: i32) -> (i32, i32) {
    %c0_i32 = arith.constant 0 : i32
    %c0_i32_0 = arith.constant 0 : i32
    %c0_i32_1 = arith.constant 0 : i32
    return %c0_i32, %c0_i32_0 : i32, i32
  }
  func.func @transform_5(%arg0: i32, %arg1: i32) -> (i32, i32, i32) {
    %c0_i32 = arith.constant 0 : i32
    %c0_i32_0 = arith.constant 0 : i32
    return %arg0, %arg1, %c0_i32 : i32, i32, i32
  }
}

</mosaic_0001>

<llo_original>
// kernel: dqn_forward.4
$region0: #{dqn_forward.4}
  #allocation0 [shape = 'u32[]', space=smem, size = 0x4, offset = 0x4, fixed_abs, tag = 'smem constant byte address 0x4 - core index']
  #allocation1 [shape = 'u32[72,128]{1,0:T(1,128)}', space=vmem, size = 0x9000, scoped, tag = 'internal scratch']
  %s0 = inlined_call_operand.vmem [shape: f32[1152,256], index: 0, kind: input, shape index: {}]
  %s1 = inlined_call_operand.vmem [shape: f32[256,128], index: 1, kind: input, shape index: {}]
  %s2 = inlined_call_operand.vmem [shape: f32[1,128], index: 2, kind: input, shape index: {}]
  %s3 = inlined_call_operand.vmem [shape: f32[1152,128], index: 3, kind: output, shape index: {}]
  %s4 = sld [smem:[#allocation0]]
  $region45: #{dqn_forward.4} parent=0
    _
  %s6 = ssub.s32 1, %s4
  %s7 = scalar_select 0, %s6, %s4
  loop: start=0, step=1, limit=4
  $region2: #{dqn_forward.4} parent=0 // loop_pre_header
    _
  $region3: #{dqn_forward.4} parent=0 // loop_header
    %s9 = sphi 0, %s13
    %p10 = scmp.ge.s32.totalorder %s9, 4
    %s19 = sphi 0, %s21
    %s22 = sphi 0, %s19
    %s23 = sphi 0, %s22
    %s39 = sphi 0, %s23
    %s43 = sphi 0, %s43
    %s45 = sphi 0, %s43
    %s46 = sphi 0, %s45
    %s60 = sphi 0, %s46
    %s64 = sphi 0, %s64
    %s66 = sphi 0, %s64
    %s67 = sphi 0, %s66
    %s81 = sphi 0, %s67
    %s87 = sphi 0, %s89
    %s90 = sphi 0, %s87
    %s91 = sphi 0, %s90
    %s107 = sphi 0, %s91
  $region4: #{dqn_forward.4} parent=0 // loop_header_branch
    %12 = sbr.rel (%p10) target = $region8
  $region5: #{dqn_forward.4} parent=0 // loop_body
    %s14 = ssub.s32 %s9, 1
    %s15 = ssub.s32 %s9, 2
    %s16 = sadd.s32 %s9, 1
    %s17 = ssub.s32 %s9, %s16
    %p18 = scmp.eq.s32.totalorder %s17, 0
    %s20 = sadd.s32 %s19, 1
    %s21 = scalar_select %p18, %s19, %s20
    %p24 = pneg %p18
    %p25 = scmp.eq.s32.totalorder %s9, 1
    %p26 = por %p24, %p25
    %p27 = scmp.ne.s32.totalorder %s19, %s22
    %p28 = scmp.eq.s32.totalorder %s9, 0
    %p29 = por %p27, %p28
    %p30 = scmp.ne.s32.totalorder %s19, %s22
    %p31 = scmp.eq.s32.totalorder %s14, 1
    %p32 = por %p30, %p31
    %p33 = scmp.ne.s32.totalorder %s22, %s23
    %p34 = scmp.eq.s32.totalorder %s14, 0
    %p35 = por %p33, %p34
    %p36 = scmp.ne.s32.totalorder %s22, %s23
    %p37 = scmp.eq.s32.totalorder %s15, 1
    %p38 = por %p36, %p37
    %p40 = scmp.ne.s32.totalorder %s23, %s39
    %p41 = scmp.eq.s32.totalorder %s15, 0
    %p42 = por %p40, %p41
    %s44 = sadd.s32 %s43, 1
    %p47 = scmp.eq.s32.totalorder %s9, 1
    %p48 = scmp.ne.s32.totalorder %s43, %s45
    %p49 = scmp.eq.s32.totalorder %s9, 0
    %p50 = por %p48, %p49
    %p51 = scmp.ne.s32.totalorder %s43, %s45
    %p52 = scmp.eq.s32.totalorder %s14, 1
    %p53 = por %p51, %p52
    %p54 = scmp.ne.s32.totalorder %s45, %s46
    %p55 = scmp.eq.s32.totalorder %s14, 0
    %p56 = por %p54, %p55
    %p57 = scmp.ne.s32.totalorder %s45, %s46
    %p58 = scmp.eq.s32.totalorder %s15, 1
    %p59 = por %p57, %p58
    %p61 = scmp.ne.s32.totalorder %s46, %s60
    %p62 = scmp.eq.s32.totalorder %s15, 0
    %p63 = por %p61, %p62
    %s65 = sadd.s32 %s64, 1
    %p68 = scmp.eq.s32.totalorder %s9, 1
    %p69 = scmp.ne.s32.totalorder %s64, %s66
    %p70 = scmp.eq.s32.totalorder %s9, 0
    %p71 = por %p69, %p70
    %p72 = scmp.ne.s32.totalorder %s64, %s66
    %p73 = scmp.eq.s32.totalorder %s14, 1
    %p74 = por %p72, %p73
    %p75 = scmp.ne.s32.totalorder %s66, %s67
    %p76 = scmp.eq.s32.totalorder %s14, 0
    %p77 = por %p75, %p76
    %p78 = scmp.ne.s32.totalorder %s66, %s67
    %p79 = scmp.eq.s32.totalorder %s15, 1
    %p80 = por %p78, %p79
    %p82 = scmp.ne.s32.totalorder %s67, %s81
    %p83 = scmp.eq.s32.totalorder %s15, 0
    %p84 = por %p82, %p83
    %s85 = ssub.s32 %s9, %s16
    %p86 = scmp.eq.s32.totalorder %s85, 0
    %s88 = sadd.s32 %s87, 1
    %s89 = scalar_select %p86, %s87, %s88
    %p92 = pneg %p86
    %p93 = scmp.eq.s32.totalorder %s9, 1
    %p94 = por %p92, %p93
    %p95 = scmp.ne.s32.totalorder %s87, %s90
    %p96 = scmp.eq.s32.totalorder %s9, 0
    %p97 = por %p95, %p96
    %p98 = scmp.ne.s32.totalorder %s87, %s90
    %p99 = scmp.eq.s32.totalorder %s14, 1
    %p100 = por %p98, %p99
    %p101 = scmp.ne.s32.totalorder %s90, %s91
    %p102 = scmp.eq.s32.totalorder %s14, 0
    %p103 = por %p101, %p102
    %p104 = scmp.ne.s32.totalorder %s90, %s91
    %p105 = scmp.eq.s32.totalorder %s15, 1
    %p106 = por %p104, %p105
    %p108 = scmp.ne.s32.totalorder %s91, %s107
    %p109 = scmp.eq.s32.totalorder %s15, 0
    %p110 = por %p108, %p109
    %p111 = scmp.le.s32.totalorder 1, %s9
    %p112 = scmp.lt.s32.totalorder %s9, 3
    %p113 = pnand %p111, %p112
    %p114 = pneg %p113
    // Predicated region
    $region9: #{dqn_forward.4} parent=5 // pred_check
      _
    $region10: #{dqn_forward.4} parent=5 // pred_check_branch
      %116 = sbr.rel (%p113) target = $region12
    $region11: #{dqn_forward.4} parent=5 // pred_region
      %s117 = ssub.s32 %s9, 1
      // Predicated region
      $region13: #{dqn_forward.4} parent=11 // pred_check
        %p118 = pneg %p56
      $region14: #{dqn_forward.4} parent=11 // pred_check_branch
        %120 = sbr.rel (%p118) target = $region16
      $region15: #{dqn_forward.4} parent=11 // pred_region
        _
      $region16: #{dqn_forward.4} parent=11 // pred_fallthru
        _
      // Predicated region
      $region17: #{dqn_forward.4} parent=11 // pred_check
        %p121 = pneg %p77
      $region18: #{dqn_forward.4} parent=11 // pred_check_branch
        %123 = sbr.rel (%p121) target = $region20
      $region19: #{dqn_forward.4} parent=11 // pred_region
        _
      $region20: #{dqn_forward.4} parent=11 // pred_fallthru
        _
    $region12: #{dqn_forward.4} parent=5 // pred_fallthru
      _
    %p124 = scmp.lt.s32.totalorder %s9, 2
    // Predicated region
    $region21: #{dqn_forward.4} parent=5 // pred_check
      %p125 = pneg %p124
    $region22: #{dqn_forward.4} parent=5 // pred_check_branch
      %127 = sbr.rel (%p125) target = $region24
    $region23: #{dqn_forward.4} parent=5 // pred_region
      // Predicated region
      $region25: #{dqn_forward.4} parent=23 // pred_check
        %p128 = pneg %p29
      $region26: #{dqn_forward.4} parent=23 // pred_check_branch
        %130 = sbr.rel (%p128) target = $region28
      $region27: #{dqn_forward.4} parent=23 // pred_region
        %s131 = smul.u32 72, %s9
        %p132 = scmp.lt.s32.totalorder %s131, 143
        %s133 = scalar_select %p132, %s131, 143
        %s134 = smul.addr %s133, 2
        %s135 = smul.addr %s134, 8
        %s136 = scalar_lea.vmem %s0, %s135
        %s137 = smul.u32 72, %s9
      $region28: #{dqn_forward.4} parent=23 // pred_fallthru
        _
    $region24: #{dqn_forward.4} parent=5 // pred_fallthru
      _
    %p138 = scmp.le.s32.totalorder 1, %s9
    %p139 = scmp.lt.s32.totalorder %s9, 3
    %p140 = pnand %p138, %p139
    %p141 = pneg %p140
    // Predicated region
    $region29: #{dqn_forward.4} parent=5 // pred_check
      _
    $region30: #{dqn_forward.4} parent=5 // pred_check_branch
      %143 = sbr.rel (%p140) target = $region32
    $region31: #{dqn_forward.4} parent=5 // pred_region
      %s144 = ssub.s32 %s9, 1
      %s145 = smul.u32 72, %s14
      %p146 = scmp.lt.s32.totalorder %s145, 143
      %s147 = scalar_select %p146, %s145, 143
      %s148 = smul.addr %s147, 2
      %s149 = smul.addr %s148, 8
      %s150 = scalar_lea.vmem %s0, %s149
      %p151 = pneg %p35
      %p152 = pneg %p32
      %p153 = pneg %p56
      %p154 = pneg %p53
      %p155 = pneg %p77
      %p156 = pneg %p74
      %p157 = pneg %p103
      %p158 = pneg %p100
      %s159 = smul.u32 72, %s14
      %p160 = scmp.lt.s32.totalorder %s159, 143
      %s161 = scalar_select %p160, %s159, 143
      %s162 = smul.addr %s161, 8
      %s163 = scalar_lea.vmem %s3, %s162
      %s164 = smul.u32 72, %s14
      %p165 = scmp.lt.s32.totalorder %s164, 143
      %s166 = scalar_select %p165, %s164, 143
      %s167 = smul.addr %s166, 2
      %s168 = smul.addr %s167, 8
      %s169 = scalar_lea.vmem %s0, %s168
      %s170 = smul.u32 72, %s14
      %s171 = smul.u32 72, %s14
      %p172 = scmp.lt.s32.totalorder %s171, 143
      %s173 = scalar_select %p172, %s171, 143
      %s174 = smul.addr %s173, 8
      %s175 = scalar_lea.vmem %s3, %s174
      %s176 = smul.u32 72, %s14
      %v177 = vld [vmem:[%s169] sm:$0xff]
      %v178 = vld [vmem:[%s169 + $0x8] sm:$0xff]
      %v179 = vld [vmem:[%s169 + $0x10] sm:$0xff]
      %v180 = vld [vmem:[%s169 + $0x18] sm:$0xff]
      %v181 = vld [vmem:[%s169 + $0x20] sm:$0xff]
      %v182 = vld [vmem:[%s169 + $0x28] sm:$0xff]
      %v183 = vld [vmem:[%s169 + $0x30] sm:$0xff]
      %v184 = vld [vmem:[%s169 + $0x38] sm:$0xff]
      %v185 = vld [vmem:[%s169 + $0x40] sm:$0xff]
      %v186 = vld [vmem:[%s169 + $0x48] sm:$0xff]
      %v187 = vld [vmem:[%s169 + $0x50] sm:$0xff]
      %v188 = vld [vmem:[%s169 + $0x58] sm:$0xff]
      %v189 = vld [vmem:[%s169 + $0x60] sm:$0xff]
      %v190 = vld [vmem:[%s169 + $0x68] sm:$0xff]
      %v191 = vld [vmem:[%s169 + $0x70] sm:$0xff]
      %v192 = vld [vmem:[%s169 + $0x78] sm:$0xff]
      %v193 = vld [vmem:[%s169 + $0x80] sm:$0xff]
      %v194 = vld [vmem:[%s169 + $0x88] sm:$0xff]
      %v195 = vld [vmem:[%s169 + $0x90] sm:$0xff]
      %v196 = vld [vmem:[%s169 + $0x98] sm:$0xff]
      %v197 = vld [vmem:[%s169 + $0xa0] sm:$0xff]
      %v198 = vld [vmem:[%s169 + $0xa8] sm:$0xff]
      %v199 = vld [vmem:[%s169 + $0xb0] sm:$0xff]
      %v200 = vld [vmem:[%s169 + $0xb8] sm:$0xff]
      %v201 = vld [vmem:[%s169 + $0xc0] sm:$0xff]
      %v202 = vld [vmem:[%s169 + $0xc8] sm:$0xff]
      %v203 = vld [vmem:[%s169 + $0xd0] sm:$0xff]
      %v204 = vld [vmem:[%s169 + $0xd8] sm:$0xff]
      %v205 = vld [vmem:[%s169 + $0xe0] sm:$0xff]
      %v206 = vld [vmem:[%s169 + $0xe8] sm:$0xff]
      %v207 = vld [vmem:[%s169 + $0xf0] sm:$0xff]
      %v208 = vld [vmem:[%s169 + $0xf8] sm:$0xff]
      %v209 = vld [vmem:[%s169 + $0x100] sm:$0xff]
      %v210 = vld [vmem:[%s169 + $0x108] sm:$0xff]
      %v211 = vld [vmem:[%s169 + $0x110] sm:$0xff]
      %v212 = vld [vmem:[%s169 + $0x118] sm:$0xff]
      %v213 = vld [vmem:[%s169 + $0x120] sm:$0xff]
      %v214 = vld [vmem:[%s169 + $0x128] sm:$0xff]
      %v215 = vld [vmem:[%s169 + $0x130] sm:$0xff]
      %v216 = vld [vmem:[%s169 + $0x138] sm:$0xff]
      %v217 = vld [vmem:[%s169 + $0x140] sm:$0xff]
      %v218 = vld [vmem:[%s169 + $0x148] sm:$0xff]
      %v219 = vld [vmem:[%s169 + $0x150] sm:$0xff]
      %v220 = vld [vmem:[%s169 + $0x158] sm:$0xff]
      %v221 = vld [vmem:[%s169 + $0x160] sm:$0xff]
      %v222 = vld [vmem:[%s169 + $0x168] sm:$0xff]
      %v223 = vld [vmem:[%s169 + $0x170] sm:$0xff]
      %v224 = vld [vmem:[%s169 + $0x178] sm:$0xff]
      %v225 = vld [vmem:[%s169 + $0x180] sm:$0xff]
      %v226 = vld [vmem:[%s169 + $0x188] sm:$0xff]
      %v227 = vld [vmem:[%s169 + $0x190] sm:$0xff]
      %v228 = vld [vmem:[%s169 + $0x198] sm:$0xff]
      %v229 = vld [vmem:[%s169 + $0x1a0] sm:$0xff]
      %v230 = vld [vmem:[%s169 + $0x1a8] sm:$0xff]
      %v231 = vld [vmem:[%s169 + $0x1b0] sm:$0xff]
      %v232 = vld [vmem:[%s169 + $0x1b8] sm:$0xff]
      %v233 = vld [vmem:[%s169 + $0x1c0] sm:$0xff]
      %v234 = vld [vmem:[%s169 + $0x1c8] sm:$0xff]
      %v235 = vld [vmem:[%s169 + $0x1d0] sm:$0xff]
      %v236 = vld [vmem:[%s169 + $0x1d8] sm:$0xff]
      %v237 = vld [vmem:[%s169 + $0x1e0] sm:$0xff]
      %v238 = vld [vmem:[%s169 + $0x1e8] sm:$0xff]
      %v239 = vld [vmem:[%s169 + $0x1f0] sm:$0xff]
      %v240 = vld [vmem:[%s169 + $0x1f8] sm:$0xff]
      %v241 = vld [vmem:[%s169 + $0x200] sm:$0xff]
      %v242 = vld [vmem:[%s169 + $0x208] sm:$0xff]
      %v243 = vld [vmem:[%s169 + $0x210] sm:$0xff]
      %v244 = vld [vmem:[%s169 + $0x218] sm:$0xff]
      %v245 = vld [vmem:[%s169 + $0x220] sm:$0xff]
      %v246 = vld [vmem:[%s169 + $0x228] sm:$0xff]
      %v247 = vld [vmem:[%s169 + $0x230] sm:$0xff]
      %v248 = vld [vmem:[%s169 + $0x238] sm:$0xff]
      %v249 = vld [vmem:[%s169 + $0x240] sm:$0xff]
      %v250 = vld [vmem:[%s169 + $0x248] sm:$0xff]
      %v251 = vld [vmem:[%s169 + $0x250] sm:$0xff]
      %v252 = vld [vmem:[%s169 + $0x258] sm:$0xff]
      %v253 = vld [vmem:[%s169 + $0x260] sm:$0xff]
      %v254 = vld [vmem:[%s169 + $0x268] sm:$0xff]
      %v255 = vld [vmem:[%s169 + $0x270] sm:$0xff]
      %v256 = vld [vmem:[%s169 + $0x278] sm:$0xff]
      %v257 = vld [vmem:[%s169 + $0x280] sm:$0xff]
      %v258 = vld [vmem:[%s169 + $0x288] sm:$0xff]
      %v259 = vld [vmem:[%s169 + $0x290] sm:$0xff]
      %v260 = vld [vmem:[%s169 + $0x298] sm:$0xff]
      %v261 = vld [vmem:[%s169 + $0x2a0] sm:$0xff]
      %v262 = vld [vmem:[%s169 + $0x2a8] sm:$0xff]
      %v263 = vld [vmem:[%s169 + $0x2b0] sm:$0xff]
      %v264 = vld [vmem:[%s169 + $0x2b8] sm:$0xff]
      %v265 = vld [vmem:[%s169 + $0x2c0] sm:$0xff]
      %v266 = vld [vmem:[%s169 + $0x2c8] sm:$0xff]
      %v267 = vld [vmem:[%s169 + $0x2d0] sm:$0xff]
      %v268 = vld [vmem:[%s169 + $0x2d8] sm:$0xff]
      %v269 = vld [vmem:[%s169 + $0x2e0] sm:$0xff]
      %v270 = vld [vmem:[%s169 + $0x2e8] sm:$0xff]
      %v271 = vld [vmem:[%s169 + $0x2f0] sm:$0xff]
      %v272 = vld [vmem:[%s169 + $0x2f8] sm:$0xff]
      %v273 = vld [vmem:[%s169 + $0x300] sm:$0xff]
      %v274 = vld [vmem:[%s169 + $0x308] sm:$0xff]
      %v275 = vld [vmem:[%s169 + $0x310] sm:$0xff]
      %v276 = vld [vmem:[%s169 + $0x318] sm:$0xff]
      %v277 = vld [vmem:[%s169 + $0x320] sm:$0xff]
      %v278 = vld [vmem:[%s169 + $0x328] sm:$0xff]
      %v279 = vld [vmem:[%s169 + $0x330] sm:$0xff]
      %v280 = vld [vmem:[%s169 + $0x338] sm:$0xff]
      %v281 = vld [vmem:[%s169 + $0x340] sm:$0xff]
      %v282 = vld [vmem:[%s169 + $0x348] sm:$0xff]
      %v283 = vld [vmem:[%s169 + $0x350] sm:$0xff]
      %v284 = vld [vmem:[%s169 + $0x358] sm:$0xff]
      %v285 = vld [vmem:[%s169 + $0x360] sm:$0xff]
      %v286 = vld [vmem:[%s169 + $0x368] sm:$0xff]
      %v287 = vld [vmem:[%s169 + $0x370] sm:$0xff]
      %v288 = vld [vmem:[%s169 + $0x378] sm:$0xff]
      %v289 = vld [vmem:[%s169 + $0x380] sm:$0xff]
      %v290 = vld [vmem:[%s169 + $0x388] sm:$0xff]
      %v291 = vld [vmem:[%s169 + $0x390] sm:$0xff]
      %v292 = vld [vmem:[%s169 + $0x398] sm:$0xff]
      %v293 = vld [vmem:[%s169 + $0x3a0] sm:$0xff]
      %v294 = vld [vmem:[%s169 + $0x3a8] sm:$0xff]
      %v295 = vld [vmem:[%s169 + $0x3b0] sm:$0xff]
      %v296 = vld [vmem:[%s169 + $0x3b8] sm:$0xff]
      %v297 = vld [vmem:[%s169 + $0x3c0] sm:$0xff]
      %v298 = vld [vmem:[%s169 + $0x3c8] sm:$0xff]
      %v299 = vld [vmem:[%s169 + $0x3d0] sm:$0xff]
      %v300 = vld [vmem:[%s169 + $0x3d8] sm:$0xff]
      %v301 = vld [vmem:[%s169 + $0x3e0] sm:$0xff]
      %v302 = vld [vmem:[%s169 + $0x3e8] sm:$0xff]
      %v303 = vld [vmem:[%s169 + $0x3f0] sm:$0xff]
      %v304 = vld [vmem:[%s169 + $0x3f8] sm:$0xff]
      %v305 = vld [vmem:[%s169 + $0x400] sm:$0xff]
      %v306 = vld [vmem:[%s169 + $0x408] sm:$0xff]
      %v307 = vld [vmem:[%s169 + $0x410] sm:$0xff]
      %v308 = vld [vmem:[%s169 + $0x418] sm:$0xff]
      %v309 = vld [vmem:[%s169 + $0x420] sm:$0xff]
      %v310 = vld [vmem:[%s169 + $0x428] sm:$0xff]
      %v311 = vld [vmem:[%s169 + $0x430] sm:$0xff]
      %v312 = vld [vmem:[%s169 + $0x438] sm:$0xff]
      %v313 = vld [vmem:[%s169 + $0x440] sm:$0xff]
      %v314 = vld [vmem:[%s169 + $0x448] sm:$0xff]
      %v315 = vld [vmem:[%s169 + $0x450] sm:$0xff]
      %v316 = vld [vmem:[%s169 + $0x458] sm:$0xff]
      %v317 = vld [vmem:[%s169 + $0x460] sm:$0xff]
      %v318 = vld [vmem:[%s169 + $0x468] sm:$0xff]
      %v319 = vld [vmem:[%s169 + $0x470] sm:$0xff]
      %v320 = vld [vmem:[%s169 + $0x478] sm:$0xff]
      %v321 = vld [vmem:[%s1] sm:$0xff]
      %v322 = vld [vmem:[%s1 + $0x8] sm:$0xff]
      %v323 = vld [vmem:[%s1 + $0x10] sm:$0xff]
      %v324 = vld [vmem:[%s1 + $0x18] sm:$0xff]
      %v325 = vld [vmem:[%s1 + $0x20] sm:$0xff]
      %v326 = vld [vmem:[%s1 + $0x28] sm:$0xff]
      %v327 = vld [vmem:[%s1 + $0x30] sm:$0xff]
      %v328 = vld [vmem:[%s1 + $0x38] sm:$0xff]
      %v329 = vld [vmem:[%s1 + $0x40] sm:$0xff]
      %v330 = vld [vmem:[%s1 + $0x48] sm:$0xff]
      %v331 = vld [vmem:[%s1 + $0x50] sm:$0xff]
      %v332 = vld [vmem:[%s1 + $0x58] sm:$0xff]
      %v333 = vld [vmem:[%s1 + $0x60] sm:$0xff]
      %v334 = vld [vmem:[%s1 + $0x68] sm:$0xff]
      %v335 = vld [vmem:[%s1 + $0x70] sm:$0xff]
      %v336 = vld [vmem:[%s1 + $0x78] sm:$0xff]
      %v337 = vld [vmem:[%s1 + $0x80] sm:$0xff]
      %v338 = vld [vmem:[%s1 + $0x88] sm:$0xff]
      %v339 = vld [vmem:[%s1 + $0x90] sm:$0xff]
      %v340 = vld [vmem:[%s1 + $0x98] sm:$0xff]
      %v341 = vld [vmem:[%s1 + $0xa0] sm:$0xff]
      %v342 = vld [vmem:[%s1 + $0xa8] sm:$0xff]
      %v343 = vld [vmem:[%s1 + $0xb0] sm:$0xff]
      %v344 = vld [vmem:[%s1 + $0xb8] sm:$0xff]
      %v345 = vld [vmem:[%s1 + $0xc0] sm:$0xff]
      %v346 = vld [vmem:[%s1 + $0xc8] sm:$0xff]
      %v347 = vld [vmem:[%s1 + $0xd0] sm:$0xff]
      %v348 = vld [vmem:[%s1 + $0xd8] sm:$0xff]
      %v349 = vld [vmem:[%s1 + $0xe0] sm:$0xff]
      %v350 = vld [vmem:[%s1 + $0xe8] sm:$0xff]
      %v351 = vld [vmem:[%s1 + $0xf0] sm:$0xff]
      %v352 = vld [vmem:[%s1 + $0xf8] sm:$0xff]
      %v353 = vld [vmem:[%s2] sm:$0x1]
      %v355 = vperm.slane %v353, 0
      %357 = vmatpush.msra.mxu0 %v336
      %358 = vmatpush.msra.mxu0 %v335
      %359 = vmatpush.msra.mxu0 %v334
      %360 = vmatpush.msra.mxu0 %v333
      %361 = vmatpush.msra.mxu0 %v332
      %362 = vmatpush.msra.mxu0 %v331
      %363 = vmatpush.msra.mxu0 %v330
      %364 = vmatpush.msra.mxu0 %v329
      %365 = vmatpush.msra.mxu0 %v328
      %366 = vmatpush.msra.mxu0 %v327
      %367 = vmatpush.msra.mxu0 %v326
      %368 = vmatpush.msra.mxu0 %v325
      %369 = vmatpush.msra.mxu0 %v324
      %370 = vmatpush.msra.mxu0 %v323
      %371 = vmatpush.msra.mxu0 %v322
      %372 = vmatpush.msra.mxu0 %v321
      %373 = vmatmul.f32.gmra.mxu0 %v177
      %v374 = vpop.f32.mrf.mxu0
      %v375 = vadd.f32 %v355, %v374
      %376 = vmatmul.f32.gmra.mxu0 %v179
      %v377 = vpop.f32.mrf.mxu0
      %v378 = vadd.f32 %v355, %v377
      %379 = vmatmul.f32.gmra.mxu0 %v181
      %v380 = vpop.f32.mrf.mxu0
      %v381 = vadd.f32 %v355, %v380
      %382 = vmatmul.f32.gmra.mxu0 %v183
      %v383 = vpop.f32.mrf.mxu0
      %v384 = vadd.f32 %v355, %v383
      %385 = vmatmul.f32.gmra.mxu0 %v185
      %v386 = vpop.f32.mrf.mxu0
      %v387 = vadd.f32 %v355, %v386
      %388 = vmatmul.f32.gmra.mxu0 %v187
      %v389 = vpop.f32.mrf.mxu0
      %v390 = vadd.f32 %v355, %v389
      %391 = vmatmul.f32.gmra.mxu0 %v189
      %v392 = vpop.f32.mrf.mxu0
      %v393 = vadd.f32 %v355, %v392
      %394 = vmatmul.f32.gmra.mxu0 %v191
      %v395 = vpop.f32.mrf.mxu0
      %v396 = vadd.f32 %v355, %v395
      %397 = vmatmul.f32.gmra.mxu0 %v193
      %v398 = vpop.f32.mrf.mxu0
      %v399 = vadd.f32 %v355, %v398
      %400 = vmatmul.f32.gmra.mxu0 %v195
      %v401 = vpop.f32.mrf.mxu0
      %v402 = vadd.f32 %v355, %v401
      %403 = vmatmul.f32.gmra.mxu0 %v197
      %v404 = vpop.f32.mrf.mxu0
      %v405 = vadd.f32 %v355, %v404
      %406 = vmatmul.f32.gmra.mxu0 %v199
      %v407 = vpop.f32.mrf.mxu0
      %v408 = vadd.f32 %v355, %v407
      %409 = vmatmul.f32.gmra.mxu0 %v201
      %v410 = vpop.f32.mrf.mxu0
      %v411 = vadd.f32 %v355, %v410
      %412 = vmatmul.f32.gmra.mxu0 %v203
      %v413 = vpop.f32.mrf.mxu0
      %v414 = vadd.f32 %v355, %v413
      %415 = vmatmul.f32.gmra.mxu0 %v205
      %v416 = vpop.f32.mrf.mxu0
      %v417 = vadd.f32 %v355, %v416
      %418 = vmatmul.f32.gmra.mxu0 %v207
      %v419 = vpop.f32.mrf.mxu0
      %v420 = vadd.f32 %v355, %v419
      %421 = vmatmul.f32.gmra.mxu0 %v209
      %v422 = vpop.f32.mrf.mxu0
      %v423 = vadd.f32 %v355, %v422
      %424 = vmatmul.f32.gmra.mxu0 %v211
      %v425 = vpop.f32.mrf.mxu0
      %v426 = vadd.f32 %v355, %v425
      %427 = vmatmul.f32.gmra.mxu0 %v213
      %v428 = vpop.f32.mrf.mxu0
      %v429 = vadd.f32 %v355, %v428
      %430 = vmatmul.f32.gmra.mxu0 %v215
      %v431 = vpop.f32.mrf.mxu0
      %v432 = vadd.f32 %v355, %v431
      %433 = vmatmul.f32.gmra.mxu0 %v217
      %v434 = vpop.f32.mrf.mxu0
      %v435 = vadd.f32 %v355, %v434
      %436 = vmatmul.f32.gmra.mxu0 %v219
      %v437 = vpop.f32.mrf.mxu0
      %v438 = vadd.f32 %v355, %v437
      %439 = vmatmul.f32.gmra.mxu0 %v221
      %v440 = vpop.f32.mrf.mxu0
      %v441 = vadd.f32 %v355, %v440
      %442 = vmatmul.f32.gmra.mxu0 %v223
      %v443 = vpop.f32.mrf.mxu0
      %v444 = vadd.f32 %v355, %v443
      %445 = vmatmul.f32.gmra.mxu0 %v225
      %v446 = vpop.f32.mrf.mxu0
      %v447 = vadd.f32 %v355, %v446
      %448 = vmatmul.f32.gmra.mxu0 %v227
      %v449 = vpop.f32.mrf.mxu0
      %v450 = vadd.f32 %v355, %v449
      %451 = vmatmul.f32.gmra.mxu0 %v229
      %v452 = vpop.f32.mrf.mxu0
      %v453 = vadd.f32 %v355, %v452
      %454 = vmatmul.f32.gmra.mxu0 %v231
      %v455 = vpop.f32.mrf.mxu0
      %v456 = vadd.f32 %v355, %v455
      %457 = vmatmul.f32.gmra.mxu0 %v233
      %v458 = vpop.f32.mrf.mxu0
      %v459 = vadd.f32 %v355, %v458
      %460 = vmatmul.f32.gmra.mxu0 %v235
      %v461 = vpop.f32.mrf.mxu0
      %v462 = vadd.f32 %v355, %v461
      %463 = vmatmul.f32.gmra.mxu0 %v237
      %v464 = vpop.f32.mrf.mxu0
      %v465 = vadd.f32 %v355, %v464
      %466 = vmatmul.f32.gmra.mxu0 %v239
      %v467 = vpop.f32.mrf.mxu0
      %v468 = vadd.f32 %v355, %v467
      %469 = vmatmul.f32.gmra.mxu0 %v241
      %v470 = vpop.f32.mrf.mxu0
      %v471 = vadd.f32 %v355, %v470
      %472 = vmatmul.f32.gmra.mxu0 %v243
      %v473 = vpop.f32.mrf.mxu0
      %v474 = vadd.f32 %v355, %v473
      %475 = vmatmul.f32.gmra.mxu0 %v245
      %v476 = vpop.f32.mrf.mxu0
      %v477 = vadd.f32 %v355, %v476
      %478 = vmatmul.f32.gmra.mxu0 %v247
      %v479 = vpop.f32.mrf.mxu0
      %v480 = vadd.f32 %v355, %v479
      %481 = vmatmul.f32.gmra.mxu0 %v249
      %v482 = vpop.f32.mrf.mxu0
      %v483 = vadd.f32 %v355, %v482
      %484 = vmatmul.f32.gmra.mxu0 %v251
      %v485 = vpop.f32.mrf.mxu0
      %v486 = vadd.f32 %v355, %v485
      %487 = vmatmul.f32.gmra.mxu0 %v253
      %v488 = vpop.f32.mrf.mxu0
      %v489 = vadd.f32 %v355, %v488
      %490 = vmatmul.f32.gmra.mxu0 %v255
      %v491 = vpop.f32.mrf.mxu0
      %v492 = vadd.f32 %v355, %v491
      %493 = vmatmul.f32.gmra.mxu0 %v257
      %v494 = vpop.f32.mrf.mxu0
      %v495 = vadd.f32 %v355, %v494
      %496 = vmatmul.f32.gmra.mxu0 %v259
      %v497 = vpop.f32.mrf.mxu0
      %v498 = vadd.f32 %v355, %v497
      %499 = vmatmul.f32.gmra.mxu0 %v261
      %v500 = vpop.f32.mrf.mxu0
      %v501 = vadd.f32 %v355, %v500
      %502 = vmatmul.f32.gmra.mxu0 %v263
      %v503 = vpop.f32.mrf.mxu0
      %v504 = vadd.f32 %v355, %v503
      %505 = vmatmul.f32.gmra.mxu0 %v265
      %v506 = vpop.f32.mrf.mxu0
      %v507 = vadd.f32 %v355, %v506
      %508 = vmatmul.f32.gmra.mxu0 %v267
      %v509 = vpop.f32.mrf.mxu0
      %v510 = vadd.f32 %v355, %v509
      %511 = vmatmul.f32.gmra.mxu0 %v269
      %v512 = vpop.f32.mrf.mxu0
      %v513 = vadd.f32 %v355, %v512
      %514 = vmatmul.f32.gmra.mxu0 %v271
      %v515 = vpop.f32.mrf.mxu0
      %v516 = vadd.f32 %v355, %v515
      %517 = vmatmul.f32.gmra.mxu0 %v273
      %v518 = vpop.f32.mrf.mxu0
      %v519 = vadd.f32 %v355, %v518
      %520 = vmatmul.f32.gmra.mxu0 %v275
      %v521 = vpop.f32.mrf.mxu0
      %v522 = vadd.f32 %v355, %v521
      %523 = vmatmul.f32.gmra.mxu0 %v277
      %v524 = vpop.f32.mrf.mxu0
      %v525 = vadd.f32 %v355, %v524
      %526 = vmatmul.f32.gmra.mxu0 %v279
      %v527 = vpop.f32.mrf.mxu0
      %v528 = vadd.f32 %v355, %v527
      %529 = vmatmul.f32.gmra.mxu0 %v281
      %v530 = vpop.f32.mrf.mxu0
      %v531 = vadd.f32 %v355, %v530
      %532 = vmatmul.f32.gmra.mxu0 %v283
      %v533 = vpop.f32.mrf.mxu0
      %v534 = vadd.f32 %v355, %v533
      %535 = vmatmul.f32.gmra.mxu0 %v285
      %v536 = vpop.f32.mrf.mxu0
      %v537 = vadd.f32 %v355, %v536
      %538 = vmatmul.f32.gmra.mxu0 %v287
      %v539 = vpop.f32.mrf.mxu0
      %v540 = vadd.f32 %v355, %v539
      %541 = vmatmul.f32.gmra.mxu0 %v289
      %v542 = vpop.f32.mrf.mxu0
      %v543 = vadd.f32 %v355, %v542
      %544 = vmatmul.f32.gmra.mxu0 %v291
      %v545 = vpop.f32.mrf.mxu0
      %v546 = vadd.f32 %v355, %v545
      %547 = vmatmul.f32.gmra.mxu0 %v293
      %v548 = vpop.f32.mrf.mxu0
      %v549 = vadd.f32 %v355, %v548
      %550 = vmatmul.f32.gmra.mxu0 %v295
      %v551 = vpop.f32.mrf.mxu0
      %v552 = vadd.f32 %v355, %v551
      %553 = vmatmul.f32.gmra.mxu0 %v297
      %v554 = vpop.f32.mrf.mxu0
      %v555 = vadd.f32 %v355, %v554
      %556 = vmatmul.f32.gmra.mxu0 %v299
      %v557 = vpop.f32.mrf.mxu0
      %v558 = vadd.f32 %v355, %v557
      %559 = vmatmul.f32.gmra.mxu0 %v301
      %v560 = vpop.f32.mrf.mxu0
      %v561 = vadd.f32 %v355, %v560
      %562 = vmatmul.f32.gmra.mxu0 %v303
      %v563 = vpop.f32.mrf.mxu0
      %v564 = vadd.f32 %v355, %v563
      %565 = vmatmul.f32.gmra.mxu0 %v305
      %v566 = vpop.f32.mrf.mxu0
      %v567 = vadd.f32 %v355, %v566
      %568 = vmatmul.f32.gmra.mxu0 %v307
      %v569 = vpop.f32.mrf.mxu0
      %v570 = vadd.f32 %v355, %v569
      %571 = vmatmul.f32.gmra.mxu0 %v309
      %v572 = vpop.f32.mrf.mxu0
      %v573 = vadd.f32 %v355, %v572
      %574 = vmatmul.f32.gmra.mxu0 %v311
      %v575 = vpop.f32.mrf.mxu0
      %v576 = vadd.f32 %v355, %v575
      %577 = vmatmul.f32.gmra.mxu0 %v313
      %v578 = vpop.f32.mrf.mxu0
      %v579 = vadd.f32 %v355, %v578
      %580 = vmatmul.f32.gmra.mxu0 %v315
      %v581 = vpop.f32.mrf.mxu0
      %v582 = vadd.f32 %v355, %v581
      %583 = vmatmul.f32.gmra.mxu0 %v317
      %v584 = vpop.f32.mrf.mxu0
      %v585 = vadd.f32 %v355, %v584
      %586 = vmatmul.f32.gmra.mxu0 %v319
      %v587 = vpop.f32.mrf.mxu0
      %v588 = vadd.f32 %v355, %v587
      %589 = vdwg.mxu0
      %590 = vmatpush.msra.mxu0 %v352
      %591 = vmatpush.msra.mxu0 %v351
      %592 = vmatpush.msra.mxu0 %v350
      %593 = vmatpush.msra.mxu0 %v349
      %594 = vmatpush.msra.mxu0 %v348
      %595 = vmatpush.msra.mxu0 %v347
      %596 = vmatpush.msra.mxu0 %v346
      %597 = vmatpush.msra.mxu0 %v345
      %598 = vmatpush.msra.mxu0 %v344
      %599 = vmatpush.msra.mxu0 %v343
      %600 = vmatpush.msra.mxu0 %v342
      %601 = vmatpush.msra.mxu0 %v341
      %602 = vmatpush.msra.mxu0 %v340
      %603 = vmatpush.msra.mxu0 %v339
      %604 = vmatpush.msra.mxu0 %v338
      %605 = vmatpush.msra.mxu0 %v337
      %606 = vmatmul.f32.gmra.mxu0 %v178
      %v607 = vpop.f32.mrf.mxu0
      %v608 = vadd.f32 %v375, %v607
      %609 = vmatmul.f32.gmra.mxu0 %v180
      %v610 = vpop.f32.mrf.mxu0
      %v611 = vadd.f32 %v378, %v610
      %612 = vmatmul.f32.gmra.mxu0 %v182
      %v613 = vpop.f32.mrf.mxu0
      %v614 = vadd.f32 %v381, %v613
      %615 = vmatmul.f32.gmra.mxu0 %v184
      %v616 = vpop.f32.mrf.mxu0
      %v617 = vadd.f32 %v384, %v616
      %618 = vmatmul.f32.gmra.mxu0 %v186
      %v619 = vpop.f32.mrf.mxu0
      %v620 = vadd.f32 %v387, %v619
      %621 = vmatmul.f32.gmra.mxu0 %v188
      %v622 = vpop.f32.mrf.mxu0
      %v623 = vadd.f32 %v390, %v622
      %624 = vmatmul.f32.gmra.mxu0 %v190
      %v625 = vpop.f32.mrf.mxu0
      %v626 = vadd.f32 %v393, %v625
      %627 = vmatmul.f32.gmra.mxu0 %v192
      %v628 = vpop.f32.mrf.mxu0
      %v629 = vadd.f32 %v396, %v628
      %630 = vmatmul.f32.gmra.mxu0 %v194
      %v631 = vpop.f32.mrf.mxu0
      %v632 = vadd.f32 %v399, %v631
      %633 = vmatmul.f32.gmra.mxu0 %v196
      %v634 = vpop.f32.mrf.mxu0
      %v635 = vadd.f32 %v402, %v634
      %636 = vmatmul.f32.gmra.mxu0 %v198
      %v637 = vpop.f32.mrf.mxu0
      %v638 = vadd.f32 %v405, %v637
      %639 = vmatmul.f32.gmra.mxu0 %v200
      %v640 = vpop.f32.mrf.mxu0
      %v641 = vadd.f32 %v408, %v640
      %642 = vmatmul.f32.gmra.mxu0 %v202
      %v643 = vpop.f32.mrf.mxu0
      %v644 = vadd.f32 %v411, %v643
      %645 = vmatmul.f32.gmra.mxu0 %v204
      %v646 = vpop.f32.mrf.mxu0
      %v647 = vadd.f32 %v414, %v646
      %648 = vmatmul.f32.gmra.mxu0 %v206
      %v649 = vpop.f32.mrf.mxu0
      %v650 = vadd.f32 %v417, %v649
      %651 = vmatmul.f32.gmra.mxu0 %v208
      %v652 = vpop.f32.mrf.mxu0
      %v653 = vadd.f32 %v420, %v652
      %654 = vmatmul.f32.gmra.mxu0 %v210
      %v655 = vpop.f32.mrf.mxu0
      %v656 = vadd.f32 %v423, %v655
      %657 = vmatmul.f32.gmra.mxu0 %v212
      %v658 = vpop.f32.mrf.mxu0
      %v659 = vadd.f32 %v426, %v658
      %660 = vmatmul.f32.gmra.mxu0 %v214
      %v661 = vpop.f32.mrf.mxu0
      %v662 = vadd.f32 %v429, %v661
      %663 = vmatmul.f32.gmra.mxu0 %v216
      %v664 = vpop.f32.mrf.mxu0
      %v665 = vadd.f32 %v432, %v664
      %666 = vmatmul.f32.gmra.mxu0 %v218
      %v667 = vpop.f32.mrf.mxu0
      %v668 = vadd.f32 %v435, %v667
      %669 = vmatmul.f32.gmra.mxu0 %v220
      %v670 = vpop.f32.mrf.mxu0
      %v671 = vadd.f32 %v438, %v670
      %672 = vmatmul.f32.gmra.mxu0 %v222
      %v673 = vpop.f32.mrf.mxu0
      %v674 = vadd.f32 %v441, %v673
      %675 = vmatmul.f32.gmra.mxu0 %v224
      %v676 = vpop.f32.mrf.mxu0
      %v677 = vadd.f32 %v444, %v676
      %678 = vmatmul.f32.gmra.mxu0 %v226
      %v679 = vpop.f32.mrf.mxu0
      %v680 = vadd.f32 %v447, %v679
      %681 = vmatmul.f32.gmra.mxu0 %v228
      %v682 = vpop.f32.mrf.mxu0
      %v683 = vadd.f32 %v450, %v682
      %684 = vmatmul.f32.gmra.mxu0 %v230
      %v685 = vpop.f32.mrf.mxu0
      %v686 = vadd.f32 %v453, %v685
      %687 = vmatmul.f32.gmra.mxu0 %v232
      %v688 = vpop.f32.mrf.mxu0
      %v689 = vadd.f32 %v456, %v688
      %690 = vmatmul.f32.gmra.mxu0 %v234
      %v691 = vpop.f32.mrf.mxu0
      %v692 = vadd.f32 %v459, %v691
      %693 = vmatmul.f32.gmra.mxu0 %v236
      %v694 = vpop.f32.mrf.mxu0
      %v695 = vadd.f32 %v462, %v694
      %696 = vmatmul.f32.gmra.mxu0 %v238
      %v697 = vpop.f32.mrf.mxu0
      %v698 = vadd.f32 %v465, %v697
      %699 = vmatmul.f32.gmra.mxu0 %v240
      %v700 = vpop.f32.mrf.mxu0
      %v701 = vadd.f32 %v468, %v700
      %702 = vmatmul.f32.gmra.mxu0 %v242
      %v703 = vpop.f32.mrf.mxu0
      %v704 = vadd.f32 %v471, %v703
      %705 = vmatmul.f32.gmra.mxu0 %v244
      %v706 = vpop.f32.mrf.mxu0
      %v707 = vadd.f32 %v474, %v706
      %708 = vmatmul.f32.gmra.mxu0 %v246
      %v709 = vpop.f32.mrf.mxu0
      %v710 = vadd.f32 %v477, %v709
      %711 = vmatmul.f32.gmra.mxu0 %v248
      %v712 = vpop.f32.mrf.mxu0
      %v713 = vadd.f32 %v480, %v712
      %714 = vmatmul.f32.gmra.mxu0 %v250
      %v715 = vpop.f32.mrf.mxu0
      %v716 = vadd.f32 %v483, %v715
      %717 = vmatmul.f32.gmra.mxu0 %v252
      %v718 = vpop.f32.mrf.mxu0
      %v719 = vadd.f32 %v486, %v718
      %720 = vmatmul.f32.gmra.mxu0 %v254
      %v721 = vpop.f32.mrf.mxu0
      %v722 = vadd.f32 %v489, %v721
      %723 = vmatmul.f32.gmra.mxu0 %v256
      %v724 = vpop.f32.mrf.mxu0
      %v725 = vadd.f32 %v492, %v724
      %726 = vmatmul.f32.gmra.mxu0 %v258
      %v727 = vpop.f32.mrf.mxu0
      %v728 = vadd.f32 %v495, %v727
      %729 = vmatmul.f32.gmra.mxu0 %v260
      %v730 = vpop.f32.mrf.mxu0
      %v731 = vadd.f32 %v498, %v730
      %732 = vmatmul.f32.gmra.mxu0 %v262
      %v733 = vpop.f32.mrf.mxu0
      %v734 = vadd.f32 %v501, %v733
      %735 = vmatmul.f32.gmra.mxu0 %v264
      %v736 = vpop.f32.mrf.mxu0
      %v737 = vadd.f32 %v504, %v736
      %738 = vmatmul.f32.gmra.mxu0 %v266
      %v739 = vpop.f32.mrf.mxu0
      %v740 = vadd.f32 %v507, %v739
      %741 = vmatmul.f32.gmra.mxu0 %v268
      %v742 = vpop.f32.mrf.mxu0
      %v743 = vadd.f32 %v510, %v742
      %744 = vmatmul.f32.gmra.mxu0 %v270
      %v745 = vpop.f32.mrf.mxu0
      %v746 = vadd.f32 %v513, %v745
      %747 = vmatmul.f32.gmra.mxu0 %v272
      %v748 = vpop.f32.mrf.mxu0
      %v749 = vadd.f32 %v516, %v748
      %750 = vmatmul.f32.gmra.mxu0 %v274
      %v751 = vpop.f32.mrf.mxu0
      %v752 = vadd.f32 %v519, %v751
      %753 = vmatmul.f32.gmra.mxu0 %v276
      %v754 = vpop.f32.mrf.mxu0
      %v755 = vadd.f32 %v522, %v754
      %756 = vmatmul.f32.gmra.mxu0 %v278
      %v757 = vpop.f32.mrf.mxu0
      %v758 = vadd.f32 %v525, %v757
      %759 = vmatmul.f32.gmra.mxu0 %v280
      %v760 = vpop.f32.mrf.mxu0
      %v761 = vadd.f32 %v528, %v760
      %762 = vmatmul.f32.gmra.mxu0 %v282
      %v763 = vpop.f32.mrf.mxu0
      %v764 = vadd.f32 %v531, %v763
      %765 = vmatmul.f32.gmra.mxu0 %v284
      %v766 = vpop.f32.mrf.mxu0
      %v767 = vadd.f32 %v534, %v766
      %768 = vmatmul.f32.gmra.mxu0 %v286
      %v769 = vpop.f32.mrf.mxu0
      %v770 = vadd.f32 %v537, %v769
      %771 = vmatmul.f32.gmra.mxu0 %v288
      %v772 = vpop.f32.mrf.mxu0
      %v773 = vadd.f32 %v540, %v772
      %774 = vmatmul.f32.gmra.mxu0 %v290
      %v775 = vpop.f32.mrf.mxu0
      %v776 = vadd.f32 %v543, %v775
      %777 = vmatmul.f32.gmra.mxu0 %v292
      %v778 = vpop.f32.mrf.mxu0
      %v779 = vadd.f32 %v546, %v778
      %780 = vmatmul.f32.gmra.mxu0 %v294
      %v781 = vpop.f32.mrf.mxu0
      %v782 = vadd.f32 %v549, %v781
      %783 = vmatmul.f32.gmra.mxu0 %v296
      %v784 = vpop.f32.mrf.mxu0
      %v785 = vadd.f32 %v552, %v784
      %786 = vmatmul.f32.gmra.mxu0 %v298
      %v787 = vpop.f32.mrf.mxu0
      %v788 = vadd.f32 %v555, %v787
      %789 = vmatmul.f32.gmra.mxu0 %v300
      %v790 = vpop.f32.mrf.mxu0
      %v791 = vadd.f32 %v558, %v790
      %792 = vmatmul.f32.gmra.mxu0 %v302
      %v793 = vpop.f32.mrf.mxu0
      %v794 = vadd.f32 %v561, %v793
      %795 = vmatmul.f32.gmra.mxu0 %v304
      %v796 = vpop.f32.mrf.mxu0
      %v797 = vadd.f32 %v564, %v796
      %798 = vmatmul.f32.gmra.mxu0 %v306
      %v799 = vpop.f32.mrf.mxu0
      %v800 = vadd.f32 %v567, %v799
      %801 = vmatmul.f32.gmra.mxu0 %v308
      %v802 = vpop.f32.mrf.mxu0
      %v803 = vadd.f32 %v570, %v802
      %804 = vmatmul.f32.gmra.mxu0 %v310
      %v805 = vpop.f32.mrf.mxu0
      %v806 = vadd.f32 %v573, %v805
      %807 = vmatmul.f32.gmra.mxu0 %v312
      %v808 = vpop.f32.mrf.mxu0
      %v809 = vadd.f32 %v576, %v808
      %810 = vmatmul.f32.gmra.mxu0 %v314
      %v811 = vpop.f32.mrf.mxu0
      %v812 = vadd.f32 %v579, %v811
      %813 = vmatmul.f32.gmra.mxu0 %v316
      %v814 = vpop.f32.mrf.mxu0
      %v815 = vadd.f32 %v582, %v814
      %816 = vmatmul.f32.gmra.mxu0 %v318
      %v817 = vpop.f32.mrf.mxu0
      %v818 = vadd.f32 %v585, %v817
      %819 = vmatmul.f32.gmra.mxu0 %v320
      %v820 = vpop.f32.mrf.mxu0
      %v821 = vadd.f32 %v588, %v820
      %822 = vdwg.mxu0
      %v823 = vmax.f32 %v608, 0.0
      %v824 = vmax.f32 %v611, 0.0
      %v825 = vmax.f32 %v614, 0.0
      %v826 = vmax.f32 %v617, 0.0
      %v827 = vmax.f32 %v620, 0.0
      %v828 = vmax.f32 %v623, 0.0
      %v829 = vmax.f32 %v626, 0.0
      %v830 = vmax.f32 %v629, 0.0
      %v831 = vmax.f32 %v632, 0.0
      %v832 = vmax.f32 %v635, 0.0
      %v833 = vmax.f32 %v638, 0.0
      %v834 = vmax.f32 %v641, 0.0
      %v835 = vmax.f32 %v644, 0.0
      %v836 = vmax.f32 %v647, 0.0
      %v837 = vmax.f32 %v650, 0.0
      %v838 = vmax.f32 %v653, 0.0
      %v839 = vmax.f32 %v656, 0.0
      %v840 = vmax.f32 %v659, 0.0
      %v841 = vmax.f32 %v662, 0.0
      %v842 = vmax.f32 %v665, 0.0
      %v843 = vmax.f32 %v668, 0.0
      %v844 = vmax.f32 %v671, 0.0
      %v845 = vmax.f32 %v674, 0.0
      %v846 = vmax.f32 %v677, 0.0
      %v847 = vmax.f32 %v680, 0.0
      %v848 = vmax.f32 %v683, 0.0
      %v849 = vmax.f32 %v686, 0.0
      %v850 = vmax.f32 %v689, 0.0
      %v851 = vmax.f32 %v692, 0.0
      %v852 = vmax.f32 %v695, 0.0
      %v853 = vmax.f32 %v698, 0.0
      %v854 = vmax.f32 %v701, 0.0
      %v855 = vmax.f32 %v704, 0.0
      %v856 = vmax.f32 %v707, 0.0
      %v857 = vmax.f32 %v710, 0.0
      %v858 = vmax.f32 %v713, 0.0
      %v859 = vmax.f32 %v716, 0.0
      %v860 = vmax.f32 %v719, 0.0
      %v861 = vmax.f32 %v722, 0.0
      %v862 = vmax.f32 %v725, 0.0
      %v863 = vmax.f32 %v728, 0.0
      %v864 = vmax.f32 %v731, 0.0
      %v865 = vmax.f32 %v734, 0.0
      %v866 = vmax.f32 %v737, 0.0
      %v867 = vmax.f32 %v740, 0.0
      %v868 = vmax.f32 %v743, 0.0
      %v869 = vmax.f32 %v746, 0.0
      %v870 = vmax.f32 %v749, 0.0
      %v871 = vmax.f32 %v752, 0.0
      %v872 = vmax.f32 %v755, 0.0
      %v873 = vmax.f32 %v758, 0.0
      %v874 = vmax.f32 %v761, 0.0
      %v875 = vmax.f32 %v764, 0.0
      %v876 = vmax.f32 %v767, 0.0
      %v877 = vmax.f32 %v770, 0.0
      %v878 = vmax.f32 %v773, 0.0
      %v879 = vmax.f32 %v776, 0.0
      %v880 = vmax.f32 %v779, 0.0
      %v881 = vmax.f32 %v782, 0.0
      %v882 = vmax.f32 %v785, 0.0
      %v883 = vmax.f32 %v788, 0.0
      %v884 = vmax.f32 %v791, 0.0
      %v885 = vmax.f32 %v794, 0.0
      %v886 = vmax.f32 %v797, 0.0
      %v887 = vmax.f32 %v800, 0.0
      %v888 = vmax.f32 %v803, 0.0
      %v889 = vmax.f32 %v806, 0.0
      %v890 = vmax.f32 %v809, 0.0
      %v891 = vmax.f32 %v812, 0.0
      %v892 = vmax.f32 %v815, 0.0
      %v893 = vmax.f32 %v818, 0.0
      %v894 = vmax.f32 %v821, 0.0
      %895 = vst [vmem:[%s175] sm:$0xff] %v823
      %896 = vst [vmem:[%s175 + $0x8] sm:$0xff] %v824
      %897 = vst [vmem:[%s175 + $0x10] sm:$0xff] %v825
      %898 = vst [vmem:[%s175 + $0x18] sm:$0xff] %v826
      %899 = vst [vmem:[%s175 + $0x20] sm:$0xff] %v827
      %900 = vst [vmem:[%s175 + $0x28] sm:$0xff] %v828
      %901 = vst [vmem:[%s175 + $0x30] sm:$0xff] %v829
      %902 = vst [vmem:[%s175 + $0x38] sm:$0xff] %v830
      %903 = vst [vmem:[%s175 + $0x40] sm:$0xff] %v831
      %904 = vst [vmem:[%s175 + $0x48] sm:$0xff] %v832
      %905 = vst [vmem:[%s175 + $0x50] sm:$0xff] %v833
      %906 = vst [vmem:[%s175 + $0x58] sm:$0xff] %v834
      %907 = vst [vmem:[%s175 + $0x60] sm:$0xff] %v835
      %908 = vst [vmem:[%s175 + $0x68] sm:$0xff] %v836
      %909 = vst [vmem:[%s175 + $0x70] sm:$0xff] %v837
      %910 = vst [vmem:[%s175 + $0x78] sm:$0xff] %v838
      %911 = vst [vmem:[%s175 + $0x80] sm:$0xff] %v839
      %912 = vst [vmem:[%s175 + $0x88] sm:$0xff] %v840
      %913 = vst [vmem:[%s175 + $0x90] sm:$0xff] %v841
      %914 = vst [vmem:[%s175 + $0x98] sm:$0xff] %v842
      %915 = vst [vmem:[%s175 + $0xa0] sm:$0xff] %v843
      %916 = vst [vmem:[%s175 + $0xa8] sm:$0xff] %v844
      %917 = vst [vmem:[%s175 + $0xb0] sm:$0xff] %v845
      %918 = vst [vmem:[%s175 + $0xb8] sm:$0xff] %v846
      %919 = vst [vmem:[%s175 + $0xc0] sm:$0xff] %v847
      %920 = vst [vmem:[%s175 + $0xc8] sm:$0xff] %v848
      %921 = vst [vmem:[%s175 + $0xd0] sm:$0xff] %v849
      %922 = vst [vmem:[%s175 + $0xd8] sm:$0xff] %v850
      %923 = vst [vmem:[%s175 + $0xe0] sm:$0xff] %v851
      %924 = vst [vmem:[%s175 + $0xe8] sm:$0xff] %v852
      %925 = vst [vmem:[%s175 + $0xf0] sm:$0xff] %v853
      %926 = vst [vmem:[%s175 + $0xf8] sm:$0xff] %v854
      %927 = vst [vmem:[%s175 + $0x100] sm:$0xff] %v855
      %928 = vst [vmem:[%s175 + $0x108] sm:$0xff] %v856
      %929 = vst [vmem:[%s175 + $0x110] sm:$0xff] %v857
      %930 = vst [vmem:[%s175 + $0x118] sm:$0xff] %v858
      %931 = vst [vmem:[%s175 + $0x120] sm:$0xff] %v859
      %932 = vst [vmem:[%s175 + $0x128] sm:$0xff] %v860
      %933 = vst [vmem:[%s175 + $0x130] sm:$0xff] %v861
      %934 = vst [vmem:[%s175 + $0x138] sm:$0xff] %v862
      %935 = vst [vmem:[%s175 + $0x140] sm:$0xff] %v863
      %936 = vst [vmem:[%s175 + $0x148] sm:$0xff] %v864
      %937 = vst [vmem:[%s175 + $0x150] sm:$0xff] %v865
      %938 = vst [vmem:[%s175 + $0x158] sm:$0xff] %v866
      %939 = vst [vmem:[%s175 + $0x160] sm:$0xff] %v867
      %940 = vst [vmem:[%s175 + $0x168] sm:$0xff] %v868
      %941 = vst [vmem:[%s175 + $0x170] sm:$0xff] %v869
      %942 = vst [vmem:[%s175 + $0x178] sm:$0xff] %v870
      %943 = vst [vmem:[%s175 + $0x180] sm:$0xff] %v871
      %944 = vst [vmem:[%s175 + $0x188] sm:$0xff] %v872
      %945 = vst [vmem:[%s175 + $0x190] sm:$0xff] %v873
      %946 = vst [vmem:[%s175 + $0x198] sm:$0xff] %v874
      %947 = vst [vmem:[%s175 + $0x1a0] sm:$0xff] %v875
      %948 = vst [vmem:[%s175 + $0x1a8] sm:$0xff] %v876
      %949 = vst [vmem:[%s175 + $0x1b0] sm:$0xff] %v877
      %950 = vst [vmem:[%s175 + $0x1b8] sm:$0xff] %v878
      %951 = vst [vmem:[%s175 + $0x1c0] sm:$0xff] %v879
      %952 = vst [vmem:[%s175 + $0x1c8] sm:$0xff] %v880
      %953 = vst [vmem:[%s175 + $0x1d0] sm:$0xff] %v881
      %954 = vst [vmem:[%s175 + $0x1d8] sm:$0xff] %v882
      %955 = vst [vmem:[%s175 + $0x1e0] sm:$0xff] %v883
      %956 = vst [vmem:[%s175 + $0x1e8] sm:$0xff] %v884
      %957 = vst [vmem:[%s175 + $0x1f0] sm:$0xff] %v885
      %958 = vst [vmem:[%s175 + $0x1f8] sm:$0xff] %v886
      %959 = vst [vmem:[%s175 + $0x200] sm:$0xff] %v887
      %960 = vst [vmem:[%s175 + $0x208] sm:$0xff] %v888
      %961 = vst [vmem:[%s175 + $0x210] sm:$0xff] %v889
      %962 = vst [vmem:[%s175 + $0x218] sm:$0xff] %v890
      %963 = vst [vmem:[%s175 + $0x220] sm:$0xff] %v891
      %964 = vst [vmem:[%s175 + $0x228] sm:$0xff] %v892
      %965 = vst [vmem:[%s175 + $0x230] sm:$0xff] %v893
      %966 = vst [vmem:[%s175 + $0x238] sm:$0xff] %v894
      %s967 = smul.u32 72, %s14
      %p968 = scmp.lt.s32.totalorder %s967, 143
      %s969 = scalar_select %p968, %s967, 143
      %s970 = smul.addr %s969, 8
      %s971 = scalar_lea.vmem %s3, %s970
      // Predicated region
      $region33: #{dqn_forward.4} parent=31 // pred_check
        %p972 = pneg %p100
      $region34: #{dqn_forward.4} parent=31 // pred_check_branch
        %974 = sbr.rel (%p972) target = $region36
      $region35: #{dqn_forward.4} parent=31 // pred_region
        %s975 = smul.u32 72, %s14
      $region36: #{dqn_forward.4} parent=31 // pred_fallthru
        _
    $region32: #{dqn_forward.4} parent=5 // pred_fallthru
      _
    %p976 = scmp.le.s32.totalorder 2, %s9
    // Predicated region
    $region37: #{dqn_forward.4} parent=5 // pred_check
      %p977 = pneg %p976
    $region38: #{dqn_forward.4} parent=5 // pred_check_branch
      %979 = sbr.rel (%p977) target = $region40
    $region39: #{dqn_forward.4} parent=5 // pred_region
      %s980 = ssub.s32 %s9, 2
      // Predicated region
      $region41: #{dqn_forward.4} parent=39 // pred_check
        %p981 = pneg %p106
      $region42: #{dqn_forward.4} parent=39 // pred_check_branch
        %983 = sbr.rel (%p981) target = $region44
      $region43: #{dqn_forward.4} parent=39 // pred_region
        %s984 = smul.u32 72, %s15
        %p985 = scmp.lt.s32.totalorder %s984, 143
        %s986 = scalar_select %p985, %s984, 143
        %s987 = smul.addr %s986, 8
        %s988 = scalar_lea.vmem %s3, %s987
      $region44: #{dqn_forward.4} parent=39 // pred_fallthru
        _
    $region40: #{dqn_forward.4} parent=5 // pred_fallthru
      _
  $region6: #{dqn_forward.4} parent=0 // loop_footer
    %s13 = sadd.s32 1, %s9
  $region7: #{dqn_forward.4} parent=0 // loop_footer_branch
    %8 = sbr.rel target = $region3
  $region8: #{dqn_forward.4} parent=0 // loop_exit
    _

// kernel: dqn_forward.5
$region0: #{dqn_forward.5}
  #allocation0 [shape = 'u32[]', space=smem, size = 0x4, offset = 0x4, fixed_abs, tag = 'smem constant byte address 0x4 - core index']
  #allocation1 [shape = 'u32[72,128]{1,0:T(1,128)}', space=vmem, size = 0x9000, scoped, tag = 'internal scratch']
  %s0 = inlined_call_operand.vmem [shape: f32[256,512], index: 0, kind: input, shape index: {}]
  %s1 = inlined_call_operand.vmem [shape: f32[512,128], index: 1, kind: input, shape index: {}]
  %s2 = inlined_call_operand.vmem [shape: f32[1,128], index: 2, kind: input, shape index: {}]
  %s3 = inlined_call_operand.vmem [shape: f32[256,128], index: 3, kind: output, shape index: {}]
  %s4 = sld [smem:[#allocation0]]
  $region45: #{dqn_forward.5} parent=0
    _
  %s6 = ssub.s32 1, %s4
  %s7 = scalar_select 0, %s6, %s4
  loop: start=0, step=1, limit=4
  $region2: #{dqn_forward.5} parent=0 // loop_pre_header
    _
  $region3: #{dqn_forward.5} parent=0 // loop_header
    %s9 = sphi 0, %s13
    %p10 = scmp.ge.s32.totalorder %s9, 4
    %s19 = sphi 0, %s21
    %s22 = sphi 0, %s19
    %s23 = sphi 0, %s22
    %s39 = sphi 0, %s23
    %s43 = sphi 0, %s43
    %s45 = sphi 0, %s43
    %s46 = sphi 0, %s45
    %s60 = sphi 0, %s46
    %s64 = sphi 0, %s64
    %s66 = sphi 0, %s64
    %s67 = sphi 0, %s66
    %s81 = sphi 0, %s67
    %s87 = sphi 0, %s89
    %s90 = sphi 0, %s87
    %s91 = sphi 0, %s90
    %s107 = sphi 0, %s91
  $region4: #{dqn_forward.5} parent=0 // loop_header_branch
    %12 = sbr.rel (%p10) target = $region8
  $region5: #{dqn_forward.5} parent=0 // loop_body
    %s14 = ssub.s32 %s9, 1
    %s15 = ssub.s32 %s9, 2
    %s16 = sadd.s32 %s9, 1
    %s17 = ssub.s32 %s9, %s16
    %p18 = scmp.eq.s32.totalorder %s17, 0
    %s20 = sadd.s32 %s19, 1
    %s21 = scalar_select %p18, %s19, %s20
    %p24 = pneg %p18
    %p25 = scmp.eq.s32.totalorder %s9, 1
    %p26 = por %p24, %p25
    %p27 = scmp.ne.s32.totalorder %s19, %s22
    %p28 = scmp.eq.s32.totalorder %s9, 0
    %p29 = por %p27, %p28
    %p30 = scmp.ne.s32.totalorder %s19, %s22
    %p31 = scmp.eq.s32.totalorder %s14, 1
    %p32 = por %p30, %p31
    %p33 = scmp.ne.s32.totalorder %s22, %s23
    %p34 = scmp.eq.s32.totalorder %s14, 0
    %p35 = por %p33, %p34
    %p36 = scmp.ne.s32.totalorder %s22, %s23
    %p37 = scmp.eq.s32.totalorder %s15, 1
    %p38 = por %p36, %p37
    %p40 = scmp.ne.s32.totalorder %s23, %s39
    %p41 = scmp.eq.s32.totalorder %s15, 0
    %p42 = por %p40, %p41
    %s44 = sadd.s32 %s43, 1
    %p47 = scmp.eq.s32.totalorder %s9, 1
    %p48 = scmp.ne.s32.totalorder %s43, %s45
    %p49 = scmp.eq.s32.totalorder %s9, 0
    %p50 = por %p48, %p49
    %p51 = scmp.ne.s32.totalorder %s43, %s45
    %p52 = scmp.eq.s32.totalorder %s14, 1
    %p53 = por %p51, %p52
    %p54 = scmp.ne.s32.totalorder %s45, %s46
    %p55 = scmp.eq.s32.totalorder %s14, 0
    %p56 = por %p54, %p55
    %p57 = scmp.ne.s32.totalorder %s45, %s46
    %p58 = scmp.eq.s32.totalorder %s15, 1
    %p59 = por %p57, %p58
    %p61 = scmp.ne.s32.totalorder %s46, %s60
    %p62 = scmp.eq.s32.totalorder %s15, 0
    %p63 = por %p61, %p62
    %s65 = sadd.s32 %s64, 1
    %p68 = scmp.eq.s32.totalorder %s9, 1
    %p69 = scmp.ne.s32.totalorder %s64, %s66
    %p70 = scmp.eq.s32.totalorder %s9, 0
    %p71 = por %p69, %p70
    %p72 = scmp.ne.s32.totalorder %s64, %s66
    %p73 = scmp.eq.s32.totalorder %s14, 1
    %p74 = por %p72, %p73
    %p75 = scmp.ne.s32.totalorder %s66, %s67
    %p76 = scmp.eq.s32.totalorder %s14, 0
    %p77 = por %p75, %p76
    %p78 = scmp.ne.s32.totalorder %s66, %s67
    %p79 = scmp.eq.s32.totalorder %s15, 1
    %p80 = por %p78, %p79
    %p82 = scmp.ne.s32.totalorder %s67, %s81
    %p83 = scmp.eq.s32.totalorder %s15, 0
    %p84 = por %p82, %p83
    %s85 = ssub.s32 %s9, %s16
    %p86 = scmp.eq.s32.totalorder %s85, 0
    %s88 = sadd.s32 %s87, 1
    %s89 = scalar_select %p86, %s87, %s88
    %p92 = pneg %p86
    %p93 = scmp.eq.s32.totalorder %s9, 1
    %p94 = por %p92, %p93
    %p95 = scmp.ne.s32.totalorder %s87, %s90
    %p96 = scmp.eq.s32.totalorder %s9, 0
    %p97 = por %p95, %p96
    %p98 = scmp.ne.s32.totalorder %s87, %s90
    %p99 = scmp.eq.s32.totalorder %s14, 1
    %p100 = por %p98, %p99
    %p101 = scmp.ne.s32.totalorder %s90, %s91
    %p102 = scmp.eq.s32.totalorder %s14, 0
    %p103 = por %p101, %p102
    %p104 = scmp.ne.s32.totalorder %s90, %s91
    %p105 = scmp.eq.s32.totalorder %s15, 1
    %p106 = por %p104, %p105
    %p108 = scmp.ne.s32.totalorder %s91, %s107
    %p109 = scmp.eq.s32.totalorder %s15, 0
    %p110 = por %p108, %p109
    %p111 = scmp.le.s32.totalorder 1, %s9
    %p112 = scmp.lt.s32.totalorder %s9, 3
    %p113 = pnand %p111, %p112
    %p114 = pneg %p113
    // Predicated region
    $region9: #{dqn_forward.5} parent=5 // pred_check
      _
    $region10: #{dqn_forward.5} parent=5 // pred_check_branch
      %116 = sbr.rel (%p113) target = $region12
    $region11: #{dqn_forward.5} parent=5 // pred_region
      %s117 = ssub.s32 %s9, 1
      // Predicated region
      $region13: #{dqn_forward.5} parent=11 // pred_check
        %p118 = pneg %p56
      $region14: #{dqn_forward.5} parent=11 // pred_check_branch
        %120 = sbr.rel (%p118) target = $region16
      $region15: #{dqn_forward.5} parent=11 // pred_region
        _
      $region16: #{dqn_forward.5} parent=11 // pred_fallthru
        _
      // Predicated region
      $region17: #{dqn_forward.5} parent=11 // pred_check
        %p121 = pneg %p77
      $region18: #{dqn_forward.5} parent=11 // pred_check_branch
        %123 = sbr.rel (%p121) target = $region20
      $region19: #{dqn_forward.5} parent=11 // pred_region
        _
      $region20: #{dqn_forward.5} parent=11 // pred_fallthru
        _
    $region12: #{dqn_forward.5} parent=5 // pred_fallthru
      _
    %p124 = scmp.lt.s32.totalorder %s9, 2
    // Predicated region
    $region21: #{dqn_forward.5} parent=5 // pred_check
      %p125 = pneg %p124
    $region22: #{dqn_forward.5} parent=5 // pred_check_branch
      %127 = sbr.rel (%p125) target = $region24
    $region23: #{dqn_forward.5} parent=5 // pred_region
      // Predicated region
      $region25: #{dqn_forward.5} parent=23 // pred_check
        %p128 = pneg %p29
      $region26: #{dqn_forward.5} parent=23 // pred_check_branch
        %130 = sbr.rel (%p128) target = $region28
      $region27: #{dqn_forward.5} parent=23 // pred_region
        %s131 = smul.u32 16, %s9
        %p132 = scmp.lt.s32.totalorder %s131, 31
        %s133 = scalar_select %p132, %s131, 31
        %s134 = smul.addr %s133, 4
        %s135 = smul.addr %s134, 8
        %s136 = scalar_lea.vmem %s0, %s135
        %s137 = smul.u32 16, %s9
      $region28: #{dqn_forward.5} parent=23 // pred_fallthru
        _
    $region24: #{dqn_forward.5} parent=5 // pred_fallthru
      _
    %p138 = scmp.le.s32.totalorder 1, %s9
    %p139 = scmp.lt.s32.totalorder %s9, 3
    %p140 = pnand %p138, %p139
    %p141 = pneg %p140
    // Predicated region
    $region29: #{dqn_forward.5} parent=5 // pred_check
      _
    $region30: #{dqn_forward.5} parent=5 // pred_check_branch
      %143 = sbr.rel (%p140) target = $region32
    $region31: #{dqn_forward.5} parent=5 // pred_region
      %s144 = ssub.s32 %s9, 1
      %s145 = smul.u32 16, %s14
      %p146 = scmp.lt.s32.totalorder %s145, 31
      %s147 = scalar_select %p146, %s145, 31
      %s148 = smul.addr %s147, 4
      %s149 = smul.addr %s148, 8
      %s150 = scalar_lea.vmem %s0, %s149
      %p151 = pneg %p35
      %p152 = pneg %p32
      %p153 = pneg %p56
      %p154 = pneg %p53
      %p155 = pneg %p77
      %p156 = pneg %p74
      %p157 = pneg %p103
      %p158 = pneg %p100
      %s159 = smul.u32 16, %s14
      %p160 = scmp.lt.s32.totalorder %s159, 31
      %s161 = scalar_select %p160, %s159, 31
      %s162 = smul.addr %s161, 8
      %s163 = scalar_lea.vmem %s3, %s162
      %s164 = smul.u32 16, %s14
      %p165 = scmp.lt.s32.totalorder %s164, 31
      %s166 = scalar_select %p165, %s164, 31
      %s167 = smul.addr %s166, 4
      %s168 = smul.addr %s167, 8
      %s169 = scalar_lea.vmem %s0, %s168
      %s170 = smul.u32 16, %s14
      %s171 = smul.u32 16, %s14
      %p172 = scmp.lt.s32.totalorder %s171, 31
      %s173 = scalar_select %p172, %s171, 31
      %s174 = smul.addr %s173, 8
      %s175 = scalar_lea.vmem %s3, %s174
      %s176 = smul.u32 16, %s14
      %v177 = vld [vmem:[%s169] sm:$0xff]
      %v178 = vld [vmem:[%s169 + $0x8] sm:$0xff]
      %v179 = vld [vmem:[%s169 + $0x10] sm:$0xff]
      %v180 = vld [vmem:[%s169 + $0x18] sm:$0xff]
      %v181 = vld [vmem:[%s169 + $0x20] sm:$0xff]
      %v182 = vld [vmem:[%s169 + $0x28] sm:$0xff]
      %v183 = vld [vmem:[%s169 + $0x30] sm:$0xff]
      %v184 = vld [vmem:[%s169 + $0x38] sm:$0xff]
      %v185 = vld [vmem:[%s169 + $0x40] sm:$0xff]
      %v186 = vld [vmem:[%s169 + $0x48] sm:$0xff]
      %v187 = vld [vmem:[%s169 + $0x50] sm:$0xff]
      %v188 = vld [vmem:[%s169 + $0x58] sm:$0xff]
      %v189 = vld [vmem:[%s169 + $0x60] sm:$0xff]
      %v190 = vld [vmem:[%s169 + $0x68] sm:$0xff]
      %v191 = vld [vmem:[%s169 + $0x70] sm:$0xff]
      %v192 = vld [vmem:[%s169 + $0x78] sm:$0xff]
      %v193 = vld [vmem:[%s169 + $0x80] sm:$0xff]
      %v194 = vld [vmem:[%s169 + $0x88] sm:$0xff]
      %v195 = vld [vmem:[%s169 + $0x90] sm:$0xff]
      %v196 = vld [vmem:[%s169 + $0x98] sm:$0xff]
      %v197 = vld [vmem:[%s169 + $0xa0] sm:$0xff]
      %v198 = vld [vmem:[%s169 + $0xa8] sm:$0xff]
      %v199 = vld [vmem:[%s169 + $0xb0] sm:$0xff]
      %v200 = vld [vmem:[%s169 + $0xb8] sm:$0xff]
      %v201 = vld [vmem:[%s169 + $0xc0] sm:$0xff]
      %v202 = vld [vmem:[%s169 + $0xc8] sm:$0xff]
      %v203 = vld [vmem:[%s169 + $0xd0] sm:$0xff]
      %v204 = vld [vmem:[%s169 + $0xd8] sm:$0xff]
      %v205 = vld [vmem:[%s169 + $0xe0] sm:$0xff]
      %v206 = vld [vmem:[%s169 + $0xe8] sm:$0xff]
      %v207 = vld [vmem:[%s169 + $0xf0] sm:$0xff]
      %v208 = vld [vmem:[%s169 + $0xf8] sm:$0xff]
      %v209 = vld [vmem:[%s169 + $0x100] sm:$0xff]
      %v210 = vld [vmem:[%s169 + $0x108] sm:$0xff]
      %v211 = vld [vmem:[%s169 + $0x110] sm:$0xff]
      %v212 = vld [vmem:[%s169 + $0x118] sm:$0xff]
      %v213 = vld [vmem:[%s169 + $0x120] sm:$0xff]
      %v214 = vld [vmem:[%s169 + $0x128] sm:$0xff]
      %v215 = vld [vmem:[%s169 + $0x130] sm:$0xff]
      %v216 = vld [vmem:[%s169 + $0x138] sm:$0xff]
      %v217 = vld [vmem:[%s169 + $0x140] sm:$0xff]
      %v218 = vld [vmem:[%s169 + $0x148] sm:$0xff]
      %v219 = vld [vmem:[%s169 + $0x150] sm:$0xff]
      %v220 = vld [vmem:[%s169 + $0x158] sm:$0xff]
      %v221 = vld [vmem:[%s169 + $0x160] sm:$0xff]
      %v222 = vld [vmem:[%s169 + $0x168] sm:$0xff]
      %v223 = vld [vmem:[%s169 + $0x170] sm:$0xff]
      %v224 = vld [vmem:[%s169 + $0x178] sm:$0xff]
      %v225 = vld [vmem:[%s169 + $0x180] sm:$0xff]
      %v226 = vld [vmem:[%s169 + $0x188] sm:$0xff]
      %v227 = vld [vmem:[%s169 + $0x190] sm:$0xff]
      %v228 = vld [vmem:[%s169 + $0x198] sm:$0xff]
      %v229 = vld [vmem:[%s169 + $0x1a0] sm:$0xff]
      %v230 = vld [vmem:[%s169 + $0x1a8] sm:$0xff]
      %v231 = vld [vmem:[%s169 + $0x1b0] sm:$0xff]
      %v232 = vld [vmem:[%s169 + $0x1b8] sm:$0xff]
      %v233 = vld [vmem:[%s169 + $0x1c0] sm:$0xff]
      %v234 = vld [vmem:[%s169 + $0x1c8] sm:$0xff]
      %v235 = vld [vmem:[%s169 + $0x1d0] sm:$0xff]
      %v236 = vld [vmem:[%s169 + $0x1d8] sm:$0xff]
      %v237 = vld [vmem:[%s169 + $0x1e0] sm:$0xff]
      %v238 = vld [vmem:[%s169 + $0x1e8] sm:$0xff]
      %v239 = vld [vmem:[%s169 + $0x1f0] sm:$0xff]
      %v240 = vld [vmem:[%s169 + $0x1f8] sm:$0xff]
      %v241 = vld [vmem:[%s1] sm:$0xff]
      %v242 = vld [vmem:[%s1 + $0x8] sm:$0xff]
      %v243 = vld [vmem:[%s1 + $0x10] sm:$0xff]
      %v244 = vld [vmem:[%s1 + $0x18] sm:$0xff]
      %v245 = vld [vmem:[%s1 + $0x20] sm:$0xff]
      %v246 = vld [vmem:[%s1 + $0x28] sm:$0xff]
      %v247 = vld [vmem:[%s1 + $0x30] sm:$0xff]
      %v248 = vld [vmem:[%s1 + $0x38] sm:$0xff]
      %v249 = vld [vmem:[%s1 + $0x40] sm:$0xff]
      %v250 = vld [vmem:[%s1 + $0x48] sm:$0xff]
      %v251 = vld [vmem:[%s1 + $0x50] sm:$0xff]
      %v252 = vld [vmem:[%s1 + $0x58] sm:$0xff]
      %v253 = vld [vmem:[%s1 + $0x60] sm:$0xff]
      %v254 = vld [vmem:[%s1 + $0x68] sm:$0xff]
      %v255 = vld [vmem:[%s1 + $0x70] sm:$0xff]
      %v256 = vld [vmem:[%s1 + $0x78] sm:$0xff]
      %v257 = vld [vmem:[%s1 + $0x80] sm:$0xff]
      %v258 = vld [vmem:[%s1 + $0x88] sm:$0xff]
      %v259 = vld [vmem:[%s1 + $0x90] sm:$0xff]
      %v260 = vld [vmem:[%s1 + $0x98] sm:$0xff]
      %v261 = vld [vmem:[%s1 + $0xa0] sm:$0xff]
      %v262 = vld [vmem:[%s1 + $0xa8] sm:$0xff]
      %v263 = vld [vmem:[%s1 + $0xb0] sm:$0xff]
      %v264 = vld [vmem:[%s1 + $0xb8] sm:$0xff]
      %v265 = vld [vmem:[%s1 + $0xc0] sm:$0xff]
      %v266 = vld [vmem:[%s1 + $0xc8] sm:$0xff]
      %v267 = vld [vmem:[%s1 + $0xd0] sm:$0xff]
      %v268 = vld [vmem:[%s1 + $0xd8] sm:$0xff]
      %v269 = vld [vmem:[%s1 + $0xe0] sm:$0xff]
      %v270 = vld [vmem:[%s1 + $0xe8] sm:$0xff]
      %v271 = vld [vmem:[%s1 + $0xf0] sm:$0xff]
      %v272 = vld [vmem:[%s1 + $0xf8] sm:$0xff]
      %v273 = vld [vmem:[%s1 + $0x100] sm:$0xff]
      %v274 = vld [vmem:[%s1 + $0x108] sm:$0xff]
      %v275 = vld [vmem:[%s1 + $0x110] sm:$0xff]
      %v276 = vld [vmem:[%s1 + $0x118] sm:$0xff]
      %v277 = vld [vmem:[%s1 + $0x120] sm:$0xff]
      %v278 = vld [vmem:[%s1 + $0x128] sm:$0xff]
      %v279 = vld [vmem:[%s1 + $0x130] sm:$0xff]
      %v280 = vld [vmem:[%s1 + $0x138] sm:$0xff]
      %v281 = vld [vmem:[%s1 + $0x140] sm:$0xff]
      %v282 = vld [vmem:[%s1 + $0x148] sm:$0xff]
      %v283 = vld [vmem:[%s1 + $0x150] sm:$0xff]
      %v284 = vld [vmem:[%s1 + $0x158] sm:$0xff]
      %v285 = vld [vmem:[%s1 + $0x160] sm:$0xff]
      %v286 = vld [vmem:[%s1 + $0x168] sm:$0xff]
      %v287 = vld [vmem:[%s1 + $0x170] sm:$0xff]
      %v288 = vld [vmem:[%s1 + $0x178] sm:$0xff]
      %v289 = vld [vmem:[%s1 + $0x180] sm:$0xff]
      %v290 = vld [vmem:[%s1 + $0x188] sm:$0xff]
      %v291 = vld [vmem:[%s1 + $0x190] sm:$0xff]
      %v292 = vld [vmem:[%s1 + $0x198] sm:$0xff]
      %v293 = vld [vmem:[%s1 + $0x1a0] sm:$0xff]
      %v294 = vld [vmem:[%s1 + $0x1a8] sm:$0xff]
      %v295 = vld [vmem:[%s1 + $0x1b0] sm:$0xff]
      %v296 = vld [vmem:[%s1 + $0x1b8] sm:$0xff]
      %v297 = vld [vmem:[%s1 + $0x1c0] sm:$0xff]
      %v298 = vld [vmem:[%s1 + $0x1c8] sm:$0xff]
      %v299 = vld [vmem:[%s1 + $0x1d0] sm:$0xff]
      %v300 = vld [vmem:[%s1 + $0x1d8] sm:$0xff]
      %v301 = vld [vmem:[%s1 + $0x1e0] sm:$0xff]
      %v302 = vld [vmem:[%s1 + $0x1e8] sm:$0xff]
      %v303 = vld [vmem:[%s1 + $0x1f0] sm:$0xff]
      %v304 = vld [vmem:[%s1 + $0x1f8] sm:$0xff]
      %v305 = vld [vmem:[%s2] sm:$0x1]
      %v307 = vperm.slane %v305, 0
      %309 = vmatpush.msra.mxu0 %v256
      %310 = vmatpush.msra.mxu0 %v255
      %311 = vmatpush.msra.mxu0 %v254
      %312 = vmatpush.msra.mxu0 %v253
      %313 = vmatpush.msra.mxu0 %v252
      %314 = vmatpush.msra.mxu0 %v251
      %315 = vmatpush.msra.mxu0 %v250
      %316 = vmatpush.msra.mxu0 %v249
      %317 = vmatpush.msra.mxu0 %v248
      %318 = vmatpush.msra.mxu0 %v247
      %319 = vmatpush.msra.mxu0 %v246
      %320 = vmatpush.msra.mxu0 %v245
      %321 = vmatpush.msra.mxu0 %v244
      %322 = vmatpush.msra.mxu0 %v243
      %323 = vmatpush.msra.mxu0 %v242
      %324 = vmatpush.msra.mxu0 %v241
      %325 = vmatmul.f32.gmra.mxu0 %v177
      %v326 = vpop.f32.mrf.mxu0
      %v327 = vadd.f32 %v307, %v326
      %328 = vmatmul.f32.gmra.mxu0 %v181
      %v329 = vpop.f32.mrf.mxu0
      %v330 = vadd.f32 %v307, %v329
      %331 = vmatmul.f32.gmra.mxu0 %v185
      %v332 = vpop.f32.mrf.mxu0
      %v333 = vadd.f32 %v307, %v332
      %334 = vmatmul.f32.gmra.mxu0 %v189
      %v335 = vpop.f32.mrf.mxu0
      %v336 = vadd.f32 %v307, %v335
      %337 = vmatmul.f32.gmra.mxu0 %v193
      %v338 = vpop.f32.mrf.mxu0
      %v339 = vadd.f32 %v307, %v338
      %340 = vmatmul.f32.gmra.mxu0 %v197
      %v341 = vpop.f32.mrf.mxu0
      %v342 = vadd.f32 %v307, %v341
      %343 = vmatmul.f32.gmra.mxu0 %v201
      %v344 = vpop.f32.mrf.mxu0
      %v345 = vadd.f32 %v307, %v344
      %346 = vmatmul.f32.gmra.mxu0 %v205
      %v347 = vpop.f32.mrf.mxu0
      %v348 = vadd.f32 %v307, %v347
      %349 = vmatmul.f32.gmra.mxu0 %v209
      %v350 = vpop.f32.mrf.mxu0
      %v351 = vadd.f32 %v307, %v350
      %352 = vmatmul.f32.gmra.mxu0 %v213
      %v353 = vpop.f32.mrf.mxu0
      %v354 = vadd.f32 %v307, %v353
      %355 = vmatmul.f32.gmra.mxu0 %v217
      %v356 = vpop.f32.mrf.mxu0
      %v357 = vadd.f32 %v307, %v356
      %358 = vmatmul.f32.gmra.mxu0 %v221
      %v359 = vpop.f32.mrf.mxu0
      %v360 = vadd.f32 %v307, %v359
      %361 = vmatmul.f32.gmra.mxu0 %v225
      %v362 = vpop.f32.mrf.mxu0
      %v363 = vadd.f32 %v307, %v362
      %364 = vmatmul.f32.gmra.mxu0 %v229
      %v365 = vpop.f32.mrf.mxu0
      %v366 = vadd.f32 %v307, %v365
      %367 = vmatmul.f32.gmra.mxu0 %v233
      %v368 = vpop.f32.mrf.mxu0
      %v369 = vadd.f32 %v307, %v368
      %370 = vmatmul.f32.gmra.mxu0 %v237
      %v371 = vpop.f32.mrf.mxu0
      %v372 = vadd.f32 %v307, %v371
      %373 = vdwg.mxu0
      %374 = vmatpush.msra.mxu0 %v272
      %375 = vmatpush.msra.mxu0 %v271
      %376 = vmatpush.msra.mxu0 %v270
      %377 = vmatpush.msra.mxu0 %v269
      %378 = vmatpush.msra.mxu0 %v268
      %379 = vmatpush.msra.mxu0 %v267
      %380 = vmatpush.msra.mxu0 %v266
      %381 = vmatpush.msra.mxu0 %v265
      %382 = vmatpush.msra.mxu0 %v264
      %383 = vmatpush.msra.mxu0 %v263
      %384 = vmatpush.msra.mxu0 %v262
      %385 = vmatpush.msra.mxu0 %v261
      %386 = vmatpush.msra.mxu0 %v260
      %387 = vmatpush.msra.mxu0 %v259
      %388 = vmatpush.msra.mxu0 %v258
      %389 = vmatpush.msra.mxu0 %v257
      %390 = vmatmul.f32.gmra.mxu0 %v178
      %v391 = vpop.f32.mrf.mxu0
      %v392 = vadd.f32 %v327, %v391
      %393 = vmatmul.f32.gmra.mxu0 %v182
      %v394 = vpop.f32.mrf.mxu0
      %v395 = vadd.f32 %v330, %v394
      %396 = vmatmul.f32.gmra.mxu0 %v186
      %v397 = vpop.f32.mrf.mxu0
      %v398 = vadd.f32 %v333, %v397
      %399 = vmatmul.f32.gmra.mxu0 %v190
      %v400 = vpop.f32.mrf.mxu0
      %v401 = vadd.f32 %v336, %v400
      %402 = vmatmul.f32.gmra.mxu0 %v194
      %v403 = vpop.f32.mrf.mxu0
      %v404 = vadd.f32 %v339, %v403
      %405 = vmatmul.f32.gmra.mxu0 %v198
      %v406 = vpop.f32.mrf.mxu0
      %v407 = vadd.f32 %v342, %v406
      %408 = vmatmul.f32.gmra.mxu0 %v202
      %v409 = vpop.f32.mrf.mxu0
      %v410 = vadd.f32 %v345, %v409
      %411 = vmatmul.f32.gmra.mxu0 %v206
      %v412 = vpop.f32.mrf.mxu0
      %v413 = vadd.f32 %v348, %v412
      %414 = vmatmul.f32.gmra.mxu0 %v210
      %v415 = vpop.f32.mrf.mxu0
      %v416 = vadd.f32 %v351, %v415
      %417 = vmatmul.f32.gmra.mxu0 %v214
      %v418 = vpop.f32.mrf.mxu0
      %v419 = vadd.f32 %v354, %v418
      %420 = vmatmul.f32.gmra.mxu0 %v218
      %v421 = vpop.f32.mrf.mxu0
      %v422 = vadd.f32 %v357, %v421
      %423 = vmatmul.f32.gmra.mxu0 %v222
      %v424 = vpop.f32.mrf.mxu0
      %v425 = vadd.f32 %v360, %v424
      %426 = vmatmul.f32.gmra.mxu0 %v226
      %v427 = vpop.f32.mrf.mxu0
      %v428 = vadd.f32 %v363, %v427
      %429 = vmatmul.f32.gmra.mxu0 %v230
      %v430 = vpop.f32.mrf.mxu0
      %v431 = vadd.f32 %v366, %v430
      %432 = vmatmul.f32.gmra.mxu0 %v234
      %v433 = vpop.f32.mrf.mxu0
      %v434 = vadd.f32 %v369, %v433
      %435 = vmatmul.f32.gmra.mxu0 %v238
      %v436 = vpop.f32.mrf.mxu0
      %v437 = vadd.f32 %v372, %v436
      %438 = vdwg.mxu0
      %439 = vmatpush.msra.mxu0 %v288
      %440 = vmatpush.msra.mxu0 %v287
      %441 = vmatpush.msra.mxu0 %v286
      %442 = vmatpush.msra.mxu0 %v285
      %443 = vmatpush.msra.mxu0 %v284
      %444 = vmatpush.msra.mxu0 %v283
      %445 = vmatpush.msra.mxu0 %v282
      %446 = vmatpush.msra.mxu0 %v281
      %447 = vmatpush.msra.mxu0 %v280
      %448 = vmatpush.msra.mxu0 %v279
      %449 = vmatpush.msra.mxu0 %v278
      %450 = vmatpush.msra.mxu0 %v277
      %451 = vmatpush.msra.mxu0 %v276
      %452 = vmatpush.msra.mxu0 %v275
      %453 = vmatpush.msra.mxu0 %v274
      %454 = vmatpush.msra.mxu0 %v273
      %455 = vmatmul.f32.gmra.mxu0 %v179
      %v456 = vpop.f32.mrf.mxu0
      %v457 = vadd.f32 %v392, %v456
      %458 = vmatmul.f32.gmra.mxu0 %v183
      %v459 = vpop.f32.mrf.mxu0
      %v460 = vadd.f32 %v395, %v459
      %461 = vmatmul.f32.gmra.mxu0 %v187
      %v462 = vpop.f32.mrf.mxu0
      %v463 = vadd.f32 %v398, %v462
      %464 = vmatmul.f32.gmra.mxu0 %v191
      %v465 = vpop.f32.mrf.mxu0
      %v466 = vadd.f32 %v401, %v465
      %467 = vmatmul.f32.gmra.mxu0 %v195
      %v468 = vpop.f32.mrf.mxu0
      %v469 = vadd.f32 %v404, %v468
      %470 = vmatmul.f32.gmra.mxu0 %v199
      %v471 = vpop.f32.mrf.mxu0
      %v472 = vadd.f32 %v407, %v471
      %473 = vmatmul.f32.gmra.mxu0 %v203
      %v474 = vpop.f32.mrf.mxu0
      %v475 = vadd.f32 %v410, %v474
      %476 = vmatmul.f32.gmra.mxu0 %v207
      %v477 = vpop.f32.mrf.mxu0
      %v478 = vadd.f32 %v413, %v477
      %479 = vmatmul.f32.gmra.mxu0 %v211
      %v480 = vpop.f32.mrf.mxu0
      %v481 = vadd.f32 %v416, %v480
      %482 = vmatmul.f32.gmra.mxu0 %v215
      %v483 = vpop.f32.mrf.mxu0
      %v484 = vadd.f32 %v419, %v483
      %485 = vmatmul.f32.gmra.mxu0 %v219
      %v486 = vpop.f32.mrf.mxu0
      %v487 = vadd.f32 %v422, %v486
      %488 = vmatmul.f32.gmra.mxu0 %v223
      %v489 = vpop.f32.mrf.mxu0
      %v490 = vadd.f32 %v425, %v489
      %491 = vmatmul.f32.gmra.mxu0 %v227
      %v492 = vpop.f32.mrf.mxu0
      %v493 = vadd.f32 %v428, %v492
      %494 = vmatmul.f32.gmra.mxu0 %v231
      %v495 = vpop.f32.mrf.mxu0
      %v496 = vadd.f32 %v431, %v495
      %497 = vmatmul.f32.gmra.mxu0 %v235
      %v498 = vpop.f32.mrf.mxu0
      %v499 = vadd.f32 %v434, %v498
      %500 = vmatmul.f32.gmra.mxu0 %v239
      %v501 = vpop.f32.mrf.mxu0
      %v502 = vadd.f32 %v437, %v501
      %503 = vdwg.mxu0
      %504 = vmatpush.msra.mxu0 %v304
      %505 = vmatpush.msra.mxu0 %v303
      %506 = vmatpush.msra.mxu0 %v302
      %507 = vmatpush.msra.mxu0 %v301
      %508 = vmatpush.msra.mxu0 %v300
      %509 = vmatpush.msra.mxu0 %v299
      %510 = vmatpush.msra.mxu0 %v298
      %511 = vmatpush.msra.mxu0 %v297
      %512 = vmatpush.msra.mxu0 %v296
      %513 = vmatpush.msra.mxu0 %v295
      %514 = vmatpush.msra.mxu0 %v294
      %515 = vmatpush.msra.mxu0 %v293
      %516 = vmatpush.msra.mxu0 %v292
      %517 = vmatpush.msra.mxu0 %v291
      %518 = vmatpush.msra.mxu0 %v290
      %519 = vmatpush.msra.mxu0 %v289
      %520 = vmatmul.f32.gmra.mxu0 %v180
      %v521 = vpop.f32.mrf.mxu0
      %v522 = vadd.f32 %v457, %v521
      %523 = vmatmul.f32.gmra.mxu0 %v184
      %v524 = vpop.f32.mrf.mxu0
      %v525 = vadd.f32 %v460, %v524
      %526 = vmatmul.f32.gmra.mxu0 %v188
      %v527 = vpop.f32.mrf.mxu0
      %v528 = vadd.f32 %v463, %v527
      %529 = vmatmul.f32.gmra.mxu0 %v192
      %v530 = vpop.f32.mrf.mxu0
      %v531 = vadd.f32 %v466, %v530
      %532 = vmatmul.f32.gmra.mxu0 %v196
      %v533 = vpop.f32.mrf.mxu0
      %v534 = vadd.f32 %v469, %v533
      %535 = vmatmul.f32.gmra.mxu0 %v200
      %v536 = vpop.f32.mrf.mxu0
      %v537 = vadd.f32 %v472, %v536
      %538 = vmatmul.f32.gmra.mxu0 %v204
      %v539 = vpop.f32.mrf.mxu0
      %v540 = vadd.f32 %v475, %v539
      %541 = vmatmul.f32.gmra.mxu0 %v208
      %v542 = vpop.f32.mrf.mxu0
      %v543 = vadd.f32 %v478, %v542
      %544 = vmatmul.f32.gmra.mxu0 %v212
      %v545 = vpop.f32.mrf.mxu0
      %v546 = vadd.f32 %v481, %v545
      %547 = vmatmul.f32.gmra.mxu0 %v216
      %v548 = vpop.f32.mrf.mxu0
      %v549 = vadd.f32 %v484, %v548
      %550 = vmatmul.f32.gmra.mxu0 %v220
      %v551 = vpop.f32.mrf.mxu0
      %v552 = vadd.f32 %v487, %v551
      %553 = vmatmul.f32.gmra.mxu0 %v224
      %v554 = vpop.f32.mrf.mxu0
      %v555 = vadd.f32 %v490, %v554
      %556 = vmatmul.f32.gmra.mxu0 %v228
      %v557 = vpop.f32.mrf.mxu0
      %v558 = vadd.f32 %v493, %v557
      %559 = vmatmul.f32.gmra.mxu0 %v232
      %v560 = vpop.f32.mrf.mxu0
      %v561 = vadd.f32 %v496, %v560
      %562 = vmatmul.f32.gmra.mxu0 %v236
      %v563 = vpop.f32.mrf.mxu0
      %v564 = vadd.f32 %v499, %v563
      %565 = vmatmul.f32.gmra.mxu0 %v240
      %v566 = vpop.f32.mrf.mxu0
      %v567 = vadd.f32 %v502, %v566
      %568 = vdwg.mxu0
      %v569 = vmax.f32 %v522, 0.0
      %v570 = vmax.f32 %v525, 0.0
      %v571 = vmax.f32 %v528, 0.0
      %v572 = vmax.f32 %v531, 0.0
      %v573 = vmax.f32 %v534, 0.0
      %v574 = vmax.f32 %v537, 0.0
      %v575 = vmax.f32 %v540, 0.0
      %v576 = vmax.f32 %v543, 0.0
      %v577 = vmax.f32 %v546, 0.0
      %v578 = vmax.f32 %v549, 0.0
      %v579 = vmax.f32 %v552, 0.0
      %v580 = vmax.f32 %v555, 0.0
      %v581 = vmax.f32 %v558, 0.0
      %v582 = vmax.f32 %v561, 0.0
      %v583 = vmax.f32 %v564, 0.0
      %v584 = vmax.f32 %v567, 0.0
      %585 = vst [vmem:[%s175] sm:$0xff] %v569
      %586 = vst [vmem:[%s175 + $0x8] sm:$0xff] %v570
      %587 = vst [vmem:[%s175 + $0x10] sm:$0xff] %v571
      %588 = vst [vmem:[%s175 + $0x18] sm:$0xff] %v572
      %589 = vst [vmem:[%s175 + $0x20] sm:$0xff] %v573
      %590 = vst [vmem:[%s175 + $0x28] sm:$0xff] %v574
      %591 = vst [vmem:[%s175 + $0x30] sm:$0xff] %v575
      %592 = vst [vmem:[%s175 + $0x38] sm:$0xff] %v576
      %593 = vst [vmem:[%s175 + $0x40] sm:$0xff] %v577
      %594 = vst [vmem:[%s175 + $0x48] sm:$0xff] %v578
      %595 = vst [vmem:[%s175 + $0x50] sm:$0xff] %v579
      %596 = vst [vmem:[%s175 + $0x58] sm:$0xff] %v580
      %597 = vst [vmem:[%s175 + $0x60] sm:$0xff] %v581
      %598 = vst [vmem:[%s175 + $0x68] sm:$0xff] %v582
      %599 = vst [vmem:[%s175 + $0x70] sm:$0xff] %v583
      %600 = vst [vmem:[%s175 + $0x78] sm:$0xff] %v584
      %s601 = smul.u32 16, %s14
      %p602 = scmp.lt.s32.totalorder %s601, 31
      %s603 = scalar_select %p602, %s601, 31
      %s604 = smul.addr %s603, 8
      %s605 = scalar_lea.vmem %s3, %s604
      // Predicated region
      $region33: #{dqn_forward.5} parent=31 // pred_check
        %p606 = pneg %p100
      $region34: #{dqn_forward.5} parent=31 // pred_check_branch
        %608 = sbr.rel (%p606) target = $region36
      $region35: #{dqn_forward.5} parent=31 // pred_region
        %s609 = smul.u32 16, %s14
      $region36: #{dqn_forward.5} parent=31 // pred_fallthru
        _
    $region32: #{dqn_forward.5} parent=5 // pred_fallthru
      _
    %p610 = scmp.le.s32.totalorder 2, %s9
    // Predicated region
    $region37: #{dqn_forward.5} parent=5 // pred_check
      %p611 = pneg %p610
    $region38: #{dqn_forward.5} parent=5 // pred_check_branch
      %613 = sbr.rel (%p611) target = $region40
    $region39: #{dqn_forward.5} parent=5 // pred_region
      %s614 = ssub.s32 %s9, 2
      // Predicated region
      $region41: #{dqn_forward.5} parent=39 // pred_check
        %p615 = pneg %p106
      $region42: #{dqn_forward.5} parent=39 // pred_check_branch
        %617 = sbr.rel (%p615) target = $region44
      $region43: #{dqn_forward.5} parent=39 // pred_region
        %s618 = smul.u32 16, %s15
        %p619 = scmp.lt.s32.totalorder %s618, 31
        %s620 = scalar_select %p619, %s618, 31
        %s621 = smul.addr %s620, 8
        %s622 = scalar_lea.vmem %s3, %s621
      $region44: #{dqn_forward.5} parent=39 // pred_fallthru
        _
    $region40: #{dqn_forward.5} parent=5 // pred_fallthru
      _
  $region6: #{dqn_forward.5} parent=0 // loop_footer
    %s13 = sadd.s32 1, %s9
  $region7: #{dqn_forward.5} parent=0 // loop_footer_branch
    %8 = sbr.rel target = $region3
  $region8: #{dqn_forward.5} parent=0 // loop_exit
    _

// kernel: dqn_forward.6
$region0: #{dqn_forward.6}
  #allocation0 [shape = 'u32[]', space=smem, size = 0x4, offset = 0x4, fixed_abs, tag = 'smem constant byte address 0x4 - core index']
  #allocation1 [shape = 'u32[72,128]{1,0:T(1,128)}', space=vmem, size = 0x9000, scoped, tag = 'internal scratch']
  %s0 = inlined_call_operand.vmem [shape: f32[176,576], index: 0, kind: input, shape index: {}]
  %s1 = inlined_call_operand.vmem [shape: f32[576,128], index: 1, kind: input, shape index: {}]
  %s2 = inlined_call_operand.vmem [shape: f32[1,128], index: 2, kind: input, shape index: {}]
  %s3 = inlined_call_operand.vmem [shape: f32[176,128], index: 3, kind: output, shape index: {}]
  %s4 = sld [smem:[#allocation0]]
  $region45: #{dqn_forward.6} parent=0
    _
  %s6 = ssub.s32 1, %s4
  %s7 = scalar_select 0, %s6, %s4
  loop: start=0, step=1, limit=4
  $region2: #{dqn_forward.6} parent=0 // loop_pre_header
    _
  $region3: #{dqn_forward.6} parent=0 // loop_header
    %s9 = sphi 0, %s13
    %p10 = scmp.ge.s32.totalorder %s9, 4
    %s19 = sphi 0, %s21
    %s22 = sphi 0, %s19
    %s23 = sphi 0, %s22
    %s39 = sphi 0, %s23
    %s43 = sphi 0, %s43
    %s45 = sphi 0, %s43
    %s46 = sphi 0, %s45
    %s60 = sphi 0, %s46
    %s64 = sphi 0, %s64
    %s66 = sphi 0, %s64
    %s67 = sphi 0, %s66
    %s81 = sphi 0, %s67
    %s87 = sphi 0, %s89
    %s90 = sphi 0, %s87
    %s91 = sphi 0, %s90
    %s107 = sphi 0, %s91
  $region4: #{dqn_forward.6} parent=0 // loop_header_branch
    %12 = sbr.rel (%p10) target = $region8
  $region5: #{dqn_forward.6} parent=0 // loop_body
    %s14 = ssub.s32 %s9, 1
    %s15 = ssub.s32 %s9, 2
    %s16 = sadd.s32 %s9, 1
    %s17 = ssub.s32 %s9, %s16
    %p18 = scmp.eq.s32.totalorder %s17, 0
    %s20 = sadd.s32 %s19, 1
    %s21 = scalar_select %p18, %s19, %s20
    %p24 = pneg %p18
    %p25 = scmp.eq.s32.totalorder %s9, 1
    %p26 = por %p24, %p25
    %p27 = scmp.ne.s32.totalorder %s19, %s22
    %p28 = scmp.eq.s32.totalorder %s9, 0
    %p29 = por %p27, %p28
    %p30 = scmp.ne.s32.totalorder %s19, %s22
    %p31 = scmp.eq.s32.totalorder %s14, 1
    %p32 = por %p30, %p31
    %p33 = scmp.ne.s32.totalorder %s22, %s23
    %p34 = scmp.eq.s32.totalorder %s14, 0
    %p35 = por %p33, %p34
    %p36 = scmp.ne.s32.totalorder %s22, %s23
    %p37 = scmp.eq.s32.totalorder %s15, 1
    %p38 = por %p36, %p37
    %p40 = scmp.ne.s32.totalorder %s23, %s39
    %p41 = scmp.eq.s32.totalorder %s15, 0
    %p42 = por %p40, %p41
    %s44 = sadd.s32 %s43, 1
    %p47 = scmp.eq.s32.totalorder %s9, 1
    %p48 = scmp.ne.s32.totalorder %s43, %s45
    %p49 = scmp.eq.s32.totalorder %s9, 0
    %p50 = por %p48, %p49
    %p51 = scmp.ne.s32.totalorder %s43, %s45
    %p52 = scmp.eq.s32.totalorder %s14, 1
    %p53 = por %p51, %p52
    %p54 = scmp.ne.s32.totalorder %s45, %s46
    %p55 = scmp.eq.s32.totalorder %s14, 0
    %p56 = por %p54, %p55
    %p57 = scmp.ne.s32.totalorder %s45, %s46
    %p58 = scmp.eq.s32.totalorder %s15, 1
    %p59 = por %p57, %p58
    %p61 = scmp.ne.s32.totalorder %s46, %s60
    %p62 = scmp.eq.s32.totalorder %s15, 0
    %p63 = por %p61, %p62
    %s65 = sadd.s32 %s64, 1
    %p68 = scmp.eq.s32.totalorder %s9, 1
    %p69 = scmp.ne.s32.totalorder %s64, %s66
    %p70 = scmp.eq.s32.totalorder %s9, 0
    %p71 = por %p69, %p70
    %p72 = scmp.ne.s32.totalorder %s64, %s66
    %p73 = scmp.eq.s32.totalorder %s14, 1
    %p74 = por %p72, %p73
    %p75 = scmp.ne.s32.totalorder %s66, %s67
    %p76 = scmp.eq.s32.totalorder %s14, 0
    %p77 = por %p75, %p76
    %p78 = scmp.ne.s32.totalorder %s66, %s67
    %p79 = scmp.eq.s32.totalorder %s15, 1
    %p80 = por %p78, %p79
    %p82 = scmp.ne.s32.totalorder %s67, %s81
    %p83 = scmp.eq.s32.totalorder %s15, 0
    %p84 = por %p82, %p83
    %s85 = ssub.s32 %s9, %s16
    %p86 = scmp.eq.s32.totalorder %s85, 0
    %s88 = sadd.s32 %s87, 1
    %s89 = scalar_select %p86, %s87, %s88
    %p92 = pneg %p86
    %p93 = scmp.eq.s32.totalorder %s9, 1
    %p94 = por %p92, %p93
    %p95 = scmp.ne.s32.totalorder %s87, %s90
    %p96 = scmp.eq.s32.totalorder %s9, 0
    %p97 = por %p95, %p96
    %p98 = scmp.ne.s32.totalorder %s87, %s90
    %p99 = scmp.eq.s32.totalorder %s14, 1
    %p100 = por %p98, %p99
    %p101 = scmp.ne.s32.totalorder %s90, %s91
    %p102 = scmp.eq.s32.totalorder %s14, 0
    %p103 = por %p101, %p102
    %p104 = scmp.ne.s32.totalorder %s90, %s91
    %p105 = scmp.eq.s32.totalorder %s15, 1
    %p106 = por %p104, %p105
    %p108 = scmp.ne.s32.totalorder %s91, %s107
    %p109 = scmp.eq.s32.totalorder %s15, 0
    %p110 = por %p108, %p109
    %p111 = scmp.le.s32.totalorder 1, %s9
    %p112 = scmp.lt.s32.totalorder %s9, 3
    %p113 = pnand %p111, %p112
    %p114 = pneg %p113
    // Predicated region
    $region9: #{dqn_forward.6} parent=5 // pred_check
      _
    $region10: #{dqn_forward.6} parent=5 // pred_check_branch
      %116 = sbr.rel (%p113) target = $region12
    $region11: #{dqn_forward.6} parent=5 // pred_region
      %s117 = ssub.s32 %s9, 1
      // Predicated region
      $region13: #{dqn_forward.6} parent=11 // pred_check
        %p118 = pneg %p56
      $region14: #{dqn_forward.6} parent=11 // pred_check_branch
        %120 = sbr.rel (%p118) target = $region16
      $region15: #{dqn_forward.6} parent=11 // pred_region
        _
      $region16: #{dqn_forward.6} parent=11 // pred_fallthru
        _
      // Predicated region
      $region17: #{dqn_forward.6} parent=11 // pred_check
        %p121 = pneg %p77
      $region18: #{dqn_forward.6} parent=11 // pred_check_branch
        %123 = sbr.rel (%p121) target = $region20
      $region19: #{dqn_forward.6} parent=11 // pred_region
        _
      $region20: #{dqn_forward.6} parent=11 // pred_fallthru
        _
    $region12: #{dqn_forward.6} parent=5 // pred_fallthru
      _
    %p124 = scmp.lt.s32.totalorder %s9, 2
    // Predicated region
    $region21: #{dqn_forward.6} parent=5 // pred_check
      %p125 = pneg %p124
    $region22: #{dqn_forward.6} parent=5 // pred_check_branch
      %127 = sbr.rel (%p125) target = $region24
    $region23: #{dqn_forward.6} parent=5 // pred_region
      // Predicated region
      $region25: #{dqn_forward.6} parent=23 // pred_check
        %p128 = pneg %p29
      $region26: #{dqn_forward.6} parent=23 // pred_check_branch
        %130 = sbr.rel (%p128) target = $region28
      $region27: #{dqn_forward.6} parent=23 // pred_region
        %s131 = smul.u32 11, %s9
        %p132 = scmp.lt.s32.totalorder %s131, 21
        %s133 = scalar_select %p132, %s131, 21
        %s134 = smul.addr %s133, 5
        %s135 = smul.addr %s134, 8
        %s136 = scalar_lea.vmem %s0, %s135
        %s137 = smul.u32 11, %s9
      $region28: #{dqn_forward.6} parent=23 // pred_fallthru
        _
    $region24: #{dqn_forward.6} parent=5 // pred_fallthru
      _
    %p138 = scmp.le.s32.totalorder 1, %s9
    %p139 = scmp.lt.s32.totalorder %s9, 3
    %p140 = pnand %p138, %p139
    %p141 = pneg %p140
    // Predicated region
    $region29: #{dqn_forward.6} parent=5 // pred_check
      _
    $region30: #{dqn_forward.6} parent=5 // pred_check_branch
      %143 = sbr.rel (%p140) target = $region32
    $region31: #{dqn_forward.6} parent=5 // pred_region
      %s144 = ssub.s32 %s9, 1
      %s145 = smul.u32 11, %s14
      %p146 = scmp.lt.s32.totalorder %s145, 21
      %s147 = scalar_select %p146, %s145, 21
      %s148 = smul.addr %s147, 5
      %s149 = smul.addr %s148, 8
      %s150 = scalar_lea.vmem %s0, %s149
      %p151 = pneg %p35
      %p152 = pneg %p32
      %p153 = pneg %p56
      %p154 = pneg %p53
      %p155 = pneg %p77
      %p156 = pneg %p74
      %p157 = pneg %p103
      %p158 = pneg %p100
      %s159 = smul.u32 11, %s14
      %p160 = scmp.lt.s32.totalorder %s159, 21
      %s161 = scalar_select %p160, %s159, 21
      %s162 = smul.addr %s161, 8
      %s163 = scalar_lea.vmem %s3, %s162
      %s164 = smul.u32 11, %s14
      %p165 = scmp.lt.s32.totalorder %s164, 21
      %s166 = scalar_select %p165, %s164, 21
      %s167 = smul.addr %s166, 5
      %s168 = smul.addr %s167, 8
      %s169 = scalar_lea.vmem %s0, %s168
      %s170 = smul.u32 11, %s14
      %s171 = smul.u32 11, %s14
      %p172 = scmp.lt.s32.totalorder %s171, 21
      %s173 = scalar_select %p172, %s171, 21
      %s174 = smul.addr %s173, 8
      %s175 = scalar_lea.vmem %s3, %s174
      %s176 = smul.u32 11, %s14
      %v177 = vld [vmem:[%s169] sm:$0xff]
      %v178 = vld [vmem:[%s169 + $0x8] sm:$0xff]
      %v179 = vld [vmem:[%s169 + $0x10] sm:$0xff]
      %v180 = vld [vmem:[%s169 + $0x18] sm:$0xff]
      %v181 = vld [vmem:[%s169 + $0x20] sm:$0xff]
      %v182 = vld [vmem:[%s169 + $0x28] sm:$0xff]
      %v183 = vld [vmem:[%s169 + $0x30] sm:$0xff]
      %v184 = vld [vmem:[%s169 + $0x38] sm:$0xff]
      %v185 = vld [vmem:[%s169 + $0x40] sm:$0xff]
      %v186 = vld [vmem:[%s169 + $0x48] sm:$0xff]
      %v187 = vld [vmem:[%s169 + $0x50] sm:$0xff]
      %v188 = vld [vmem:[%s169 + $0x58] sm:$0xff]
      %v189 = vld [vmem:[%s169 + $0x60] sm:$0xff]
      %v190 = vld [vmem:[%s169 + $0x68] sm:$0xff]
      %v191 = vld [vmem:[%s169 + $0x70] sm:$0xff]
      %v192 = vld [vmem:[%s169 + $0x78] sm:$0xff]
      %v193 = vld [vmem:[%s169 + $0x80] sm:$0xff]
      %v194 = vld [vmem:[%s169 + $0x88] sm:$0xff]
      %v195 = vld [vmem:[%s169 + $0x90] sm:$0xff]
      %v196 = vld [vmem:[%s169 + $0x98] sm:$0xff]
      %v197 = vld [vmem:[%s169 + $0xa0] sm:$0xff]
      %v198 = vld [vmem:[%s169 + $0xa8] sm:$0xff]
      %v199 = vld [vmem:[%s169 + $0xb0] sm:$0xff]
      %v200 = vld [vmem:[%s169 + $0xb8] sm:$0xff]
      %v201 = vld [vmem:[%s169 + $0xc0] sm:$0xff]
      %v202 = vld [vmem:[%s169 + $0xc8] sm:$0xff]
      %v203 = vld [vmem:[%s169 + $0xd0] sm:$0xff]
      %v204 = vld [vmem:[%s169 + $0xd8] sm:$0xff]
      %v205 = vld [vmem:[%s169 + $0xe0] sm:$0xff]
      %v206 = vld [vmem:[%s169 + $0xe8] sm:$0xff]
      %v207 = vld [vmem:[%s169 + $0xf0] sm:$0xff]
      %v208 = vld [vmem:[%s169 + $0xf8] sm:$0xff]
      %v209 = vld [vmem:[%s169 + $0x100] sm:$0xff]
      %v210 = vld [vmem:[%s169 + $0x108] sm:$0xff]
      %v211 = vld [vmem:[%s169 + $0x110] sm:$0xff]
      %v212 = vld [vmem:[%s169 + $0x118] sm:$0xff]
      %v213 = vld [vmem:[%s169 + $0x120] sm:$0xff]
      %v214 = vld [vmem:[%s169 + $0x128] sm:$0xff]
      %v215 = vld [vmem:[%s169 + $0x130] sm:$0xff]
      %v216 = vld [vmem:[%s169 + $0x138] sm:$0xff]
      %v217 = vld [vmem:[%s169 + $0x140] sm:$0xff]
      %v218 = vld [vmem:[%s169 + $0x148] sm:$0xff]
      %v219 = vld [vmem:[%s169 + $0x150] sm:$0xff]
      %v220 = vld [vmem:[%s169 + $0x158] sm:$0xff]
      %v221 = vld [vmem:[%s169 + $0x160] sm:$0xff]
      %v222 = vld [vmem:[%s169 + $0x168] sm:$0xff]
      %v223 = vld [vmem:[%s169 + $0x170] sm:$0xff]
      %v224 = vld [vmem:[%s169 + $0x178] sm:$0xff]
      %v225 = vld [vmem:[%s169 + $0x180] sm:$0xff]
      %v226 = vld [vmem:[%s169 + $0x188] sm:$0xff]
      %v227 = vld [vmem:[%s169 + $0x190] sm:$0xff]
      %v228 = vld [vmem:[%s169 + $0x198] sm:$0xff]
      %v229 = vld [vmem:[%s169 + $0x1a0] sm:$0xff]
      %v230 = vld [vmem:[%s169 + $0x1a8] sm:$0xff]
      %v231 = vld [vmem:[%s169 + $0x1b0] sm:$0xff]
      %v232 = vld [vmem:[%s1] sm:$0xff]
      %v233 = vld [vmem:[%s1 + $0x8] sm:$0xff]
      %v234 = vld [vmem:[%s1 + $0x10] sm:$0xff]
      %v235 = vld [vmem:[%s1 + $0x18] sm:$0xff]
      %v236 = vld [vmem:[%s1 + $0x20] sm:$0xff]
      %v237 = vld [vmem:[%s1 + $0x28] sm:$0xff]
      %v238 = vld [vmem:[%s1 + $0x30] sm:$0xff]
      %v239 = vld [vmem:[%s1 + $0x38] sm:$0xff]
      %v240 = vld [vmem:[%s1 + $0x40] sm:$0xff]
      %v241 = vld [vmem:[%s1 + $0x48] sm:$0xff]
      %v242 = vld [vmem:[%s1 + $0x50] sm:$0xff]
      %v243 = vld [vmem:[%s1 + $0x58] sm:$0xff]
      %v244 = vld [vmem:[%s1 + $0x60] sm:$0xff]
      %v245 = vld [vmem:[%s1 + $0x68] sm:$0xff]
      %v246 = vld [vmem:[%s1 + $0x70] sm:$0xff]
      %v247 = vld [vmem:[%s1 + $0x78] sm:$0xff]
      %v248 = vld [vmem:[%s1 + $0x80] sm:$0xff]
      %v249 = vld [vmem:[%s1 + $0x88] sm:$0xff]
      %v250 = vld [vmem:[%s1 + $0x90] sm:$0xff]
      %v251 = vld [vmem:[%s1 + $0x98] sm:$0xff]
      %v252 = vld [vmem:[%s1 + $0xa0] sm:$0xff]
      %v253 = vld [vmem:[%s1 + $0xa8] sm:$0xff]
      %v254 = vld [vmem:[%s1 + $0xb0] sm:$0xff]
      %v255 = vld [vmem:[%s1 + $0xb8] sm:$0xff]
      %v256 = vld [vmem:[%s1 + $0xc0] sm:$0xff]
      %v257 = vld [vmem:[%s1 + $0xc8] sm:$0xff]
      %v258 = vld [vmem:[%s1 + $0xd0] sm:$0xff]
      %v259 = vld [vmem:[%s1 + $0xd8] sm:$0xff]
      %v260 = vld [vmem:[%s1 + $0xe0] sm:$0xff]
      %v261 = vld [vmem:[%s1 + $0xe8] sm:$0xff]
      %v262 = vld [vmem:[%s1 + $0xf0] sm:$0xff]
      %v263 = vld [vmem:[%s1 + $0xf8] sm:$0xff]
      %v264 = vld [vmem:[%s1 + $0x100] sm:$0xff]
      %v265 = vld [vmem:[%s1 + $0x108] sm:$0xff]
      %v266 = vld [vmem:[%s1 + $0x110] sm:$0xff]
      %v267 = vld [vmem:[%s1 + $0x118] sm:$0xff]
      %v268 = vld [vmem:[%s1 + $0x120] sm:$0xff]
      %v269 = vld [vmem:[%s1 + $0x128] sm:$0xff]
      %v270 = vld [vmem:[%s1 + $0x130] sm:$0xff]
      %v271 = vld [vmem:[%s1 + $0x138] sm:$0xff]
      %v272 = vld [vmem:[%s1 + $0x140] sm:$0xff]
      %v273 = vld [vmem:[%s1 + $0x148] sm:$0xff]
      %v274 = vld [vmem:[%s1 + $0x150] sm:$0xff]
      %v275 = vld [vmem:[%s1 + $0x158] sm:$0xff]
      %v276 = vld [vmem:[%s1 + $0x160] sm:$0xff]
      %v277 = vld [vmem:[%s1 + $0x168] sm:$0xff]
      %v278 = vld [vmem:[%s1 + $0x170] sm:$0xff]
      %v279 = vld [vmem:[%s1 + $0x178] sm:$0xff]
      %v280 = vld [vmem:[%s1 + $0x180] sm:$0xff]
      %v281 = vld [vmem:[%s1 + $0x188] sm:$0xff]
      %v282 = vld [vmem:[%s1 + $0x190] sm:$0xff]
      %v283 = vld [vmem:[%s1 + $0x198] sm:$0xff]
      %v284 = vld [vmem:[%s1 + $0x1a0] sm:$0xff]
      %v285 = vld [vmem:[%s1 + $0x1a8] sm:$0xff]
      %v286 = vld [vmem:[%s1 + $0x1b0] sm:$0xff]
      %v287 = vld [vmem:[%s1 + $0x1b8] sm:$0xff]
      %v288 = vld [vmem:[%s1 + $0x1c0] sm:$0xff]
      %v289 = vld [vmem:[%s1 + $0x1c8] sm:$0xff]
      %v290 = vld [vmem:[%s1 + $0x1d0] sm:$0xff]
      %v291 = vld [vmem:[%s1 + $0x1d8] sm:$0xff]
      %v292 = vld [vmem:[%s1 + $0x1e0] sm:$0xff]
      %v293 = vld [vmem:[%s1 + $0x1e8] sm:$0xff]
      %v294 = vld [vmem:[%s1 + $0x1f0] sm:$0xff]
      %v295 = vld [vmem:[%s1 + $0x1f8] sm:$0xff]
      %v296 = vld [vmem:[%s1 + $0x200] sm:$0xff]
      %v297 = vld [vmem:[%s1 + $0x208] sm:$0xff]
      %v298 = vld [vmem:[%s1 + $0x210] sm:$0xff]
      %v299 = vld [vmem:[%s1 + $0x218] sm:$0xff]
      %v300 = vld [vmem:[%s1 + $0x220] sm:$0xff]
      %v301 = vld [vmem:[%s1 + $0x228] sm:$0xff]
      %v302 = vld [vmem:[%s1 + $0x230] sm:$0xff]
      %v303 = vld [vmem:[%s1 + $0x238] sm:$0xff]
      %v304 = vld [vmem:[%s2] sm:$0x1]
      %v306 = vperm.slane %v304, 0
      %vm308 = vcmask 523264
      %v310 = vsel %vm308, %v181, 0
      %v313 = vsel %vm308, %v186, 0
      %v316 = vsel %vm308, %v191, 0
      %v319 = vsel %vm308, %v196, 0
      %v322 = vsel %vm308, %v201, 0
      %v325 = vsel %vm308, %v206, 0
      %v328 = vsel %vm308, %v211, 0
      %v331 = vsel %vm308, %v216, 0
      %v334 = vsel %vm308, %v221, 0
      %v337 = vsel %vm308, %v226, 0
      %v340 = vsel %vm308, %v231, 0
      %342 = vmatpush.msra.mxu0 %v247
      %343 = vmatpush.msra.mxu0 %v246
      %344 = vmatpush.msra.mxu0 %v245
      %345 = vmatpush.msra.mxu0 %v244
      %346 = vmatpush.msra.mxu0 %v243
      %347 = vmatpush.msra.mxu0 %v242
      %348 = vmatpush.msra.mxu0 %v241
      %349 = vmatpush.msra.mxu0 %v240
      %350 = vmatpush.msra.mxu0 %v239
      %351 = vmatpush.msra.mxu0 %v238
      %352 = vmatpush.msra.mxu0 %v237
      %353 = vmatpush.msra.mxu0 %v236
      %354 = vmatpush.msra.mxu0 %v235
      %355 = vmatpush.msra.mxu0 %v234
      %356 = vmatpush.msra.mxu0 %v233
      %357 = vmatpush.msra.mxu0 %v232
      %358 = vmatmul.f32.gmra.mxu0 %v177
      %v359 = vpop.f32.mrf.mxu0
      %v360 = vadd.f32 %v306, %v359
      %361 = vmatmul.f32.gmra.mxu0 %v182
      %v362 = vpop.f32.mrf.mxu0
      %v363 = vadd.f32 %v306, %v362
      %364 = vmatmul.f32.gmra.mxu0 %v187
      %v365 = vpop.f32.mrf.mxu0
      %v366 = vadd.f32 %v306, %v365
      %367 = vmatmul.f32.gmra.mxu0 %v192
      %v368 = vpop.f32.mrf.mxu0
      %v369 = vadd.f32 %v306, %v368
      %370 = vmatmul.f32.gmra.mxu0 %v197
      %v371 = vpop.f32.mrf.mxu0
      %v372 = vadd.f32 %v306, %v371
      %373 = vmatmul.f32.gmra.mxu0 %v202
      %v374 = vpop.f32.mrf.mxu0
      %v375 = vadd.f32 %v306, %v374
      %376 = vmatmul.f32.gmra.mxu0 %v207
      %v377 = vpop.f32.mrf.mxu0
      %v378 = vadd.f32 %v306, %v377
      %379 = vmatmul.f32.gmra.mxu0 %v212
      %v380 = vpop.f32.mrf.mxu0
      %v381 = vadd.f32 %v306, %v380
      %382 = vmatmul.f32.gmra.mxu0 %v217
      %v383 = vpop.f32.mrf.mxu0
      %v384 = vadd.f32 %v306, %v383
      %385 = vmatmul.f32.gmra.mxu0 %v222
      %v386 = vpop.f32.mrf.mxu0
      %v387 = vadd.f32 %v306, %v386
      %388 = vmatmul.f32.gmra.mxu0 %v227
      %v389 = vpop.f32.mrf.mxu0
      %v390 = vadd.f32 %v306, %v389
      %391 = vdwg.mxu0
      %392 = vmatpush.msra.mxu0 %v263
      %393 = vmatpush.msra.mxu0 %v262
      %394 = vmatpush.msra.mxu0 %v261
      %395 = vmatpush.msra.mxu0 %v260
      %396 = vmatpush.msra.mxu0 %v259
      %397 = vmatpush.msra.mxu0 %v258
      %398 = vmatpush.msra.mxu0 %v257
      %399 = vmatpush.msra.mxu0 %v256
      %400 = vmatpush.msra.mxu0 %v255
      %401 = vmatpush.msra.mxu0 %v254
      %402 = vmatpush.msra.mxu0 %v253
      %403 = vmatpush.msra.mxu0 %v252
      %404 = vmatpush.msra.mxu0 %v251
      %405 = vmatpush.msra.mxu0 %v250
      %406 = vmatpush.msra.mxu0 %v249
      %407 = vmatpush.msra.mxu0 %v248
      %408 = vmatmul.f32.gmra.mxu0 %v178
      %v409 = vpop.f32.mrf.mxu0
      %v410 = vadd.f32 %v360, %v409
      %411 = vmatmul.f32.gmra.mxu0 %v183
      %v412 = vpop.f32.mrf.mxu0
      %v413 = vadd.f32 %v363, %v412
      %414 = vmatmul.f32.gmra.mxu0 %v188
      %v415 = vpop.f32.mrf.mxu0
      %v416 = vadd.f32 %v366, %v415
      %417 = vmatmul.f32.gmra.mxu0 %v193
      %v418 = vpop.f32.mrf.mxu0
      %v419 = vadd.f32 %v369, %v418
      %420 = vmatmul.f32.gmra.mxu0 %v198
      %v421 = vpop.f32.mrf.mxu0
      %v422 = vadd.f32 %v372, %v421
      %423 = vmatmul.f32.gmra.mxu0 %v203
      %v424 = vpop.f32.mrf.mxu0
      %v425 = vadd.f32 %v375, %v424
      %426 = vmatmul.f32.gmra.mxu0 %v208
      %v427 = vpop.f32.mrf.mxu0
      %v428 = vadd.f32 %v378, %v427
      %429 = vmatmul.f32.gmra.mxu0 %v213
      %v430 = vpop.f32.mrf.mxu0
      %v431 = vadd.f32 %v381, %v430
      %432 = vmatmul.f32.gmra.mxu0 %v218
      %v433 = vpop.f32.mrf.mxu0
      %v434 = vadd.f32 %v384, %v433
      %435 = vmatmul.f32.gmra.mxu0 %v223
      %v436 = vpop.f32.mrf.mxu0
      %v437 = vadd.f32 %v387, %v436
      %438 = vmatmul.f32.gmra.mxu0 %v228
      %v439 = vpop.f32.mrf.mxu0
      %v440 = vadd.f32 %v390, %v439
      %441 = vdwg.mxu0
      %442 = vmatpush.msra.mxu0 %v279
      %443 = vmatpush.msra.mxu0 %v278
      %444 = vmatpush.msra.mxu0 %v277
      %445 = vmatpush.msra.mxu0 %v276
      %446 = vmatpush.msra.mxu0 %v275
      %447 = vmatpush.msra.mxu0 %v274
      %448 = vmatpush.msra.mxu0 %v273
      %449 = vmatpush.msra.mxu0 %v272
      %450 = vmatpush.msra.mxu0 %v271
      %451 = vmatpush.msra.mxu0 %v270
      %452 = vmatpush.msra.mxu0 %v269
      %453 = vmatpush.msra.mxu0 %v268
      %454 = vmatpush.msra.mxu0 %v267
      %455 = vmatpush.msra.mxu0 %v266
      %456 = vmatpush.msra.mxu0 %v265
      %457 = vmatpush.msra.mxu0 %v264
      %458 = vmatmul.f32.gmra.mxu0 %v179
      %v459 = vpop.f32.mrf.mxu0
      %v460 = vadd.f32 %v410, %v459
      %461 = vmatmul.f32.gmra.mxu0 %v184
      %v462 = vpop.f32.mrf.mxu0
      %v463 = vadd.f32 %v413, %v462
      %464 = vmatmul.f32.gmra.mxu0 %v189
      %v465 = vpop.f32.mrf.mxu0
      %v466 = vadd.f32 %v416, %v465
      %467 = vmatmul.f32.gmra.mxu0 %v194
      %v468 = vpop.f32.mrf.mxu0
      %v469 = vadd.f32 %v419, %v468
      %470 = vmatmul.f32.gmra.mxu0 %v199
      %v471 = vpop.f32.mrf.mxu0
      %v472 = vadd.f32 %v422, %v471
      %473 = vmatmul.f32.gmra.mxu0 %v204
      %v474 = vpop.f32.mrf.mxu0
      %v475 = vadd.f32 %v425, %v474
      %476 = vmatmul.f32.gmra.mxu0 %v209
      %v477 = vpop.f32.mrf.mxu0
      %v478 = vadd.f32 %v428, %v477
      %479 = vmatmul.f32.gmra.mxu0 %v214
      %v480 = vpop.f32.mrf.mxu0
      %v481 = vadd.f32 %v431, %v480
      %482 = vmatmul.f32.gmra.mxu0 %v219
      %v483 = vpop.f32.mrf.mxu0
      %v484 = vadd.f32 %v434, %v483
      %485 = vmatmul.f32.gmra.mxu0 %v224
      %v486 = vpop.f32.mrf.mxu0
      %v487 = vadd.f32 %v437, %v486
      %488 = vmatmul.f32.gmra.mxu0 %v229
      %v489 = vpop.f32.mrf.mxu0
      %v490 = vadd.f32 %v440, %v489
      %491 = vdwg.mxu0
      %492 = vmatpush.msra.mxu0 %v295
      %493 = vmatpush.msra.mxu0 %v294
      %494 = vmatpush.msra.mxu0 %v293
      %495 = vmatpush.msra.mxu0 %v292
      %496 = vmatpush.msra.mxu0 %v291
      %497 = vmatpush.msra.mxu0 %v290
      %498 = vmatpush.msra.mxu0 %v289
      %499 = vmatpush.msra.mxu0 %v288
      %500 = vmatpush.msra.mxu0 %v287
      %501 = vmatpush.msra.mxu0 %v286
      %502 = vmatpush.msra.mxu0 %v285
      %503 = vmatpush.msra.mxu0 %v284
      %504 = vmatpush.msra.mxu0 %v283
      %505 = vmatpush.msra.mxu0 %v282
      %506 = vmatpush.msra.mxu0 %v281
      %507 = vmatpush.msra.mxu0 %v280
      %508 = vmatmul.f32.gmra.mxu0 %v180
      %v509 = vpop.f32.mrf.mxu0
      %v510 = vadd.f32 %v460, %v509
      %511 = vmatmul.f32.gmra.mxu0 %v185
      %v512 = vpop.f32.mrf.mxu0
      %v513 = vadd.f32 %v463, %v512
      %514 = vmatmul.f32.gmra.mxu0 %v190
      %v515 = vpop.f32.mrf.mxu0
      %v516 = vadd.f32 %v466, %v515
      %517 = vmatmul.f32.gmra.mxu0 %v195
      %v518 = vpop.f32.mrf.mxu0
      %v519 = vadd.f32 %v469, %v518
      %520 = vmatmul.f32.gmra.mxu0 %v200
      %v521 = vpop.f32.mrf.mxu0
      %v522 = vadd.f32 %v472, %v521
      %523 = vmatmul.f32.gmra.mxu0 %v205
      %v524 = vpop.f32.mrf.mxu0
      %v525 = vadd.f32 %v475, %v524
      %526 = vmatmul.f32.gmra.mxu0 %v210
      %v527 = vpop.f32.mrf.mxu0
      %v528 = vadd.f32 %v478, %v527
      %529 = vmatmul.f32.gmra.mxu0 %v215
      %v530 = vpop.f32.mrf.mxu0
      %v531 = vadd.f32 %v481, %v530
      %532 = vmatmul.f32.gmra.mxu0 %v220
      %v533 = vpop.f32.mrf.mxu0
      %v534 = vadd.f32 %v484, %v533
      %535 = vmatmul.f32.gmra.mxu0 %v225
      %v536 = vpop.f32.mrf.mxu0
      %v537 = vadd.f32 %v487, %v536
      %538 = vmatmul.f32.gmra.mxu0 %v230
      %v539 = vpop.f32.mrf.mxu0
      %v540 = vadd.f32 %v490, %v539
      %541 = vdwg.mxu0
      %542 = vmatpush.msra.mxu0 0.0
      %543 = vmatpush.msra.mxu0 0.0
      %544 = vmatpush.msra.mxu0 0.0
      %545 = vmatpush.msra.mxu0 0.0
      %546 = vmatpush.msra.mxu0 0.0
      %547 = vmatpush.msra.mxu0 0.0
      %548 = vmatpush.msra.mxu0 0.0
      %549 = vmatpush.msra.mxu0 0.0
      %550 = vmatpush.msra.mxu0 %v303
      %551 = vmatpush.msra.mxu0 %v302
      %552 = vmatpush.msra.mxu0 %v301
      %553 = vmatpush.msra.mxu0 %v300
      %554 = vmatpush.msra.mxu0 %v299
      %555 = vmatpush.msra.mxu0 %v298
      %556 = vmatpush.msra.mxu0 %v297
      %557 = vmatpush.msra.mxu0 %v296
      %558 = vmatmul.f32.gmra.mxu0 %v310
      %v559 = vpop.f32.mrf.mxu0
      %v560 = vadd.f32 %v510, %v559
      %561 = vmatmul.f32.gmra.mxu0 %v313
      %v562 = vpop.f32.mrf.mxu0
      %v563 = vadd.f32 %v513, %v562
      %564 = vmatmul.f32.gmra.mxu0 %v316
      %v565 = vpop.f32.mrf.mxu0
      %v566 = vadd.f32 %v516, %v565
      %567 = vmatmul.f32.gmra.mxu0 %v319
      %v568 = vpop.f32.mrf.mxu0
      %v569 = vadd.f32 %v519, %v568
      %570 = vmatmul.f32.gmra.mxu0 %v322
      %v571 = vpop.f32.mrf.mxu0
      %v572 = vadd.f32 %v522, %v571
      %573 = vmatmul.f32.gmra.mxu0 %v325
      %v574 = vpop.f32.mrf.mxu0
      %v575 = vadd.f32 %v525, %v574
      %576 = vmatmul.f32.gmra.mxu0 %v328
      %v577 = vpop.f32.mrf.mxu0
      %v578 = vadd.f32 %v528, %v577
      %579 = vmatmul.f32.gmra.mxu0 %v331
      %v580 = vpop.f32.mrf.mxu0
      %v581 = vadd.f32 %v531, %v580
      %582 = vmatmul.f32.gmra.mxu0 %v334
      %v583 = vpop.f32.mrf.mxu0
      %v584 = vadd.f32 %v534, %v583
      %585 = vmatmul.f32.gmra.mxu0 %v337
      %v586 = vpop.f32.mrf.mxu0
      %v587 = vadd.f32 %v537, %v586
      %588 = vmatmul.f32.gmra.mxu0 %v340
      %v589 = vpop.f32.mrf.mxu0
      %v590 = vadd.f32 %v540, %v589
      %591 = vdwg.mxu0
      %v592 = vmax.f32 %v560, 0.0
      %v593 = vmax.f32 %v563, 0.0
      %v594 = vmax.f32 %v566, 0.0
      %v595 = vmax.f32 %v569, 0.0
      %v596 = vmax.f32 %v572, 0.0
      %v597 = vmax.f32 %v575, 0.0
      %v598 = vmax.f32 %v578, 0.0
      %v599 = vmax.f32 %v581, 0.0
      %v600 = vmax.f32 %v584, 0.0
      %v601 = vmax.f32 %v587, 0.0
      %v602 = vmax.f32 %v590, 0.0
      %603 = vst [vmem:[%s175] sm:$0xff] %v592
      %604 = vst [vmem:[%s175 + $0x8] sm:$0xff] %v593
      %605 = vst [vmem:[%s175 + $0x10] sm:$0xff] %v594
      %606 = vst [vmem:[%s175 + $0x18] sm:$0xff] %v595
      %607 = vst [vmem:[%s175 + $0x20] sm:$0xff] %v596
      %608 = vst [vmem:[%s175 + $0x28] sm:$0xff] %v597
      %609 = vst [vmem:[%s175 + $0x30] sm:$0xff] %v598
      %610 = vst [vmem:[%s175 + $0x38] sm:$0xff] %v599
      %611 = vst [vmem:[%s175 + $0x40] sm:$0xff] %v600
      %612 = vst [vmem:[%s175 + $0x48] sm:$0xff] %v601
      %613 = vst [vmem:[%s175 + $0x50] sm:$0xff] %v602
      %s614 = smul.u32 11, %s14
      %p615 = scmp.lt.s32.totalorder %s614, 21
      %s616 = scalar_select %p615, %s614, 21
      %s617 = smul.addr %s616, 8
      %s618 = scalar_lea.vmem %s3, %s617
      // Predicated region
      $region33: #{dqn_forward.6} parent=31 // pred_check
        %p619 = pneg %p100
      $region34: #{dqn_forward.6} parent=31 // pred_check_branch
        %621 = sbr.rel (%p619) target = $region36
      $region35: #{dqn_forward.6} parent=31 // pred_region
        %s622 = smul.u32 11, %s14
      $region36: #{dqn_forward.6} parent=31 // pred_fallthru
        _
    $region32: #{dqn_forward.6} parent=5 // pred_fallthru
      _
    %p623 = scmp.le.s32.totalorder 2, %s9
    // Predicated region
    $region37: #{dqn_forward.6} parent=5 // pred_check
      %p624 = pneg %p623
    $region38: #{dqn_forward.6} parent=5 // pred_check_branch
      %626 = sbr.rel (%p624) target = $region40
    $region39: #{dqn_forward.6} parent=5 // pred_region
      %s627 = ssub.s32 %s9, 2
      // Predicated region
      $region41: #{dqn_forward.6} parent=39 // pred_check
        %p628 = pneg %p106
      $region42: #{dqn_forward.6} parent=39 // pred_check_branch
        %630 = sbr.rel (%p628) target = $region44
      $region43: #{dqn_forward.6} parent=39 // pred_region
        %s631 = smul.u32 11, %s15
        %p632 = scmp.lt.s32.totalorder %s631, 21
        %s633 = scalar_select %p632, %s631, 21
        %s634 = smul.addr %s633, 8
        %s635 = scalar_lea.vmem %s3, %s634
      $region44: #{dqn_forward.6} parent=39 // pred_fallthru
        _
    $region40: #{dqn_forward.6} parent=5 // pred_fallthru
      _
  $region6: #{dqn_forward.6} parent=0 // loop_footer
    %s13 = sadd.s32 1, %s9
  $region7: #{dqn_forward.6} parent=0 // loop_footer_branch
    %8 = sbr.rel target = $region3
  $region8: #{dqn_forward.6} parent=0 // loop_exit
    _

// kernel: dqn_forward.7
$region0: #{dqn_forward.7}
  #allocation0 [shape = 'u32[]', space=smem, size = 0x4, offset = 0x4, fixed_abs, tag = 'smem constant byte address 0x4 - core index']
  #allocation1 [shape = 'u32[72,128]{1,0:T(1,128)}', space=vmem, size = 0x9000, scoped, tag = 'internal scratch']
  %s0 = inlined_call_operand.vmem [shape: f32[8,5376], index: 0, kind: input, shape index: {}]
  %s1 = inlined_call_operand.vmem [shape: f32[5376,512], index: 1, kind: input, shape index: {}]
  %s2 = inlined_call_operand.vmem [shape: f32[1,512], index: 2, kind: input, shape index: {}]
  %s3 = inlined_call_operand.vmem [shape: f32[512,128], index: 3, kind: input, shape index: {}]
  %s4 = inlined_call_operand.vmem [shape: f32[1,128], index: 4, kind: input, shape index: {}]
  %s5 = inlined_call_operand.vmem [shape: f32[1,8,128], index: 5, kind: output, shape index: {}]
  %s6 = sld [smem:[#allocation0]]
  $region30: #{dqn_forward.7} parent=0
    _
  %s8 = ssub.s32 1, %s6
  %s9 = scalar_select 0, %s8, %s6
  // Predicated region
  $region2: #{dqn_forward.7} parent=0 // pred_check
    _
  $region3: #{dqn_forward.7} parent=0 // pred_check_branch
    %11 = sbr.rel (0) target = $region5
  $region4: #{dqn_forward.7} parent=0 // pred_region
    _
  $region5: #{dqn_forward.7} parent=0 // pred_fallthru
    _
  // Predicated region
  $region6: #{dqn_forward.7} parent=0 // pred_check
    _
  $region7: #{dqn_forward.7} parent=0 // pred_check_branch
    %13 = sbr.rel (0) target = $region9
  $region8: #{dqn_forward.7} parent=0 // pred_region
    _
  $region9: #{dqn_forward.7} parent=0 // pred_fallthru
    _
  // Predicated region
  $region10: #{dqn_forward.7} parent=0 // pred_check
    _
  $region11: #{dqn_forward.7} parent=0 // pred_check_branch
    %15 = sbr.rel (0) target = $region13
  $region12: #{dqn_forward.7} parent=0 // pred_region
    _
  $region13: #{dqn_forward.7} parent=0 // pred_fallthru
    _
  // Predicated region
  $region14: #{dqn_forward.7} parent=0 // pred_check
    _
  $region15: #{dqn_forward.7} parent=0 // pred_check_branch
    %17 = sbr.rel (0) target = $region17
  $region16: #{dqn_forward.7} parent=0 // pred_region
    _
  $region17: #{dqn_forward.7} parent=0 // pred_fallthru
    _
  // Predicated region
  $region18: #{dqn_forward.7} parent=0 // pred_check
    _
  $region19: #{dqn_forward.7} parent=0 // pred_check_branch
    %19 = sbr.rel (0) target = $region21
  $region20: #{dqn_forward.7} parent=0 // pred_region
    _
  $region21: #{dqn_forward.7} parent=0 // pred_fallthru
    _
  %v20 = vld [vmem:[%s0] sm:$0xff]
  %v21 = vld [vmem:[%s0 + $0x8] sm:$0xff]
  %v22 = vld [vmem:[%s0 + $0x10] sm:$0xff]
  %v23 = vld [vmem:[%s0 + $0x18] sm:$0xff]
  %v24 = vld [vmem:[%s0 + $0x20] sm:$0xff]
  %v25 = vld [vmem:[%s0 + $0x28] sm:$0xff]
  %v26 = vld [vmem:[%s0 + $0x30] sm:$0xff]
  %v27 = vld [vmem:[%s0 + $0x38] sm:$0xff]
  %v28 = vld [vmem:[%s0 + $0x40] sm:$0xff]
  %v29 = vld [vmem:[%s0 + $0x48] sm:$0xff]
  %v30 = vld [vmem:[%s0 + $0x50] sm:$0xff]
  %v31 = vld [vmem:[%s0 + $0x58] sm:$0xff]
  %v32 = vld [vmem:[%s0 + $0x60] sm:$0xff]
  %v33 = vld [vmem:[%s0 + $0x68] sm:$0xff]
  %v34 = vld [vmem:[%s0 + $0x70] sm:$0xff]
  %v35 = vld [vmem:[%s0 + $0x78] sm:$0xff]
  %v36 = vld [vmem:[%s0 + $0x80] sm:$0xff]
  %v37 = vld [vmem:[%s0 + $0x88] sm:$0xff]
  %v38 = vld [vmem:[%s0 + $0x90] sm:$0xff]
  %v39 = vld [vmem:[%s0 + $0x98] sm:$0xff]
  %v40 = vld [vmem:[%s0 + $0xa0] sm:$0xff]
  %v41 = vld [vmem:[%s0 + $0xa8] sm:$0xff]
  %v42 = vld [vmem:[%s0 + $0xb0] sm:$0xff]
  %v43 = vld [vmem:[%s0 + $0xb8] sm:$0xff]
  %v44 = vld [vmem:[%s0 + $0xc0] sm:$0xff]
  %v45 = vld [vmem:[%s0 + $0xc8] sm:$0xff]
  %v46 = vld [vmem:[%s0 + $0xd0] sm:$0xff]
  %v47 = vld [vmem:[%s0 + $0xd8] sm:$0xff]
  %v48 = vld [vmem:[%s0 + $0xe0] sm:$0xff]
  %v49 = vld [vmem:[%s0 + $0xe8] sm:$0xff]
  %v50 = vld [vmem:[%s0 + $0xf0] sm:$0xff]
  %v51 = vld [vmem:[%s0 + $0xf8] sm:$0xff]
  %v52 = vld [vmem:[%s0 + $0x100] sm:$0xff]
  %v53 = vld [vmem:[%s0 + $0x108] sm:$0xff]
  %v54 = vld [vmem:[%s0 + $0x110] sm:$0xff]
  %v55 = vld [vmem:[%s0 + $0x118] sm:$0xff]
  %v56 = vld [vmem:[%s0 + $0x120] sm:$0xff]
  %v57 = vld [vmem:[%s0 + $0x128] sm:$0xff]
  %v58 = vld [vmem:[%s0 + $0x130] sm:$0xff]
  %v59 = vld [vmem:[%s0 + $0x138] sm:$0xff]
  %v60 = vld [vmem:[%s0 + $0x140] sm:$0xff]
  %v61 = vld [vmem:[%s0 + $0x148] sm:$0xff]
  %v62 = vld [vmem:[%s1] sm:$0xff]
  %v63 = vld [vmem:[%s1 + $0x8] sm:$0xff]
  %v64 = vld [vmem:[%s1 + $0x10] sm:$0xff]
  %v65 = vld [vmem:[%s1 + $0x18] sm:$0xff]
  %v66 = vld [vmem:[%s1 + $0x20] sm:$0xff]
  %v67 = vld [vmem:[%s1 + $0x28] sm:$0xff]
  %v68 = vld [vmem:[%s1 + $0x30] sm:$0xff]
  %v69 = vld [vmem:[%s1 + $0x38] sm:$0xff]
  %v70 = vld [vmem:[%s1 + $0x40] sm:$0xff]
  %v71 = vld [vmem:[%s1 + $0x48] sm:$0xff]
  %v72 = vld [vmem:[%s1 + $0x50] sm:$0xff]
  %v73 = vld [vmem:[%s1 + $0x58] sm:$0xff]
  %v74 = vld [vmem:[%s1 + $0x60] sm:$0xff]
  %v75 = vld [vmem:[%s1 + $0x68] sm:$0xff]
  %v76 = vld [vmem:[%s1 + $0x70] sm:$0xff]
  %v77 = vld [vmem:[%s1 + $0x78] sm:$0xff]
  %v78 = vld [vmem:[%s1 + $0x80] sm:$0xff]
  %v79 = vld [vmem:[%s1 + $0x88] sm:$0xff]
  %v80 = vld [vmem:[%s1 + $0x90] sm:$0xff]
  %v81 = vld [vmem:[%s1 + $0x98] sm:$0xff]
  %v82 = vld [vmem:[%s1 + $0xa0] sm:$0xff]
  %v83 = vld [vmem:[%s1 + $0xa8] sm:$0xff]
  %v84 = vld [vmem:[%s1 + $0xb0] sm:$0xff]
  %v85 = vld [vmem:[%s1 + $0xb8] sm:$0xff]
  %v86 = vld [vmem:[%s1 + $0xc0] sm:$0xff]
  %v87 = vld [vmem:[%s1 + $0xc8] sm:$0xff]
  %v88 = vld [vmem:[%s1 + $0xd0] sm:$0xff]
  %v89 = vld [vmem:[%s1 + $0xd8] sm:$0xff]
  %v90 = vld [vmem:[%s1 + $0xe0] sm:$0xff]
  %v91 = vld [vmem:[%s1 + $0xe8] sm:$0xff]
  %v92 = vld [vmem:[%s1 + $0xf0] sm:$0xff]
  %v93 = vld [vmem:[%s1 + $0xf8] sm:$0xff]
  %v94 = vld [vmem:[%s1 + $0x100] sm:$0xff]
  %v95 = vld [vmem:[%s1 + $0x108] sm:$0xff]
  %v96 = vld [vmem:[%s1 + $0x110] sm:$0xff]
  %v97 = vld [vmem:[%s1 + $0x118] sm:$0xff]
  %v98 = vld [vmem:[%s1 + $0x120] sm:$0xff]
  %v99 = vld [vmem:[%s1 + $0x128] sm:$0xff]
  %v100 = vld [vmem:[%s1 + $0x130] sm:$0xff]
  %v101 = vld [vmem:[%s1 + $0x138] sm:$0xff]
  %v102 = vld [vmem:[%s1 + $0x140] sm:$0xff]
  %v103 = vld [vmem:[%s1 + $0x148] sm:$0xff]
  %v104 = vld [vmem:[%s1 + $0x150] sm:$0xff]
  %v105 = vld [vmem:[%s1 + $0x158] sm:$0xff]
  %v106 = vld [vmem:[%s1 + $0x160] sm:$0xff]
  %v107 = vld [vmem:[%s1 + $0x168] sm:$0xff]
  %v108 = vld [vmem:[%s1 + $0x170] sm:$0xff]
  %v109 = vld [vmem:[%s1 + $0x178] sm:$0xff]
  %v110 = vld [vmem:[%s1 + $0x180] sm:$0xff]
  %v111 = vld [vmem:[%s1 + $0x188] sm:$0xff]
  %v112 = vld [vmem:[%s1 + $0x190] sm:$0xff]
  %v113 = vld [vmem:[%s1 + $0x198] sm:$0xff]
  %v114 = vld [vmem:[%s1 + $0x1a0] sm:$0xff]
  %v115 = vld [vmem:[%s1 + $0x1a8] sm:$0xff]
  %v116 = vld [vmem:[%s1 + $0x1b0] sm:$0xff]
  %v117 = vld [vmem:[%s1 + $0x1b8] sm:$0xff]
  %v118 = vld [vmem:[%s1 + $0x1c0] sm:$0xff]
  %v119 = vld [vmem:[%s1 + $0x1c8] sm:$0xff]
  %v120 = vld [vmem:[%s1 + $0x1d0] sm:$0xff]
  %v121 = vld [vmem:[%s1 + $0x1d8] sm:$0xff]
  %v122 = vld [vmem:[%s1 + $0x1e0] sm:$0xff]
  %v123 = vld [vmem:[%s1 + $0x1e8] sm:$0xff]
  %v124 = vld [vmem:[%s1 + $0x1f0] sm:$0xff]
  %v125 = vld [vmem:[%s1 + $0x1f8] sm:$0xff]
  %v126 = vld [vmem:[%s1 + $0x200] sm:$0xff]
  %v127 = vld [vmem:[%s1 + $0x208] sm:$0xff]
  %v128 = vld [vmem:[%s1 + $0x210] sm:$0xff]
  %v129 = vld [vmem:[%s1 + $0x218] sm:$0xff]
  %v130 = vld [vmem:[%s1 + $0x220] sm:$0xff]
  %v131 = vld [vmem:[%s1 + $0x228] sm:$0xff]
  %v132 = vld [vmem:[%s1 + $0x230] sm:$0xff]
  %v133 = vld [vmem:[%s1 + $0x238] sm:$0xff]
  %v134 = vld [vmem:[%s1 + $0x240] sm:$0xff]
  %v135 = vld [vmem:[%s1 + $0x248] sm:$0xff]
  %v136 = vld [vmem:[%s1 + $0x250] sm:$0xff]
  %v137 = vld [vmem:[%s1 + $0x258] sm:$0xff]
  %v138 = vld [vmem:[%s1 + $0x260] sm:$0xff]
  %v139 = vld [vmem:[%s1 + $0x268] sm:$0xff]
  %v140 = vld [vmem:[%s1 + $0x270] sm:$0xff]
  %v141 = vld [vmem:[%s1 + $0x278] sm:$0xff]
  %v142 = vld [vmem:[%s1 + $0x280] sm:$0xff]
  %v143 = vld [vmem:[%s1 + $0x288] sm:$0xff]
  %v144 = vld [vmem:[%s1 + $0x290] sm:$0xff]
  %v145 = vld [vmem:[%s1 + $0x298] sm:$0xff]
  %v146 = vld [vmem:[%s1 + $0x2a0] sm:$0xff]
  %v147 = vld [vmem:[%s1 + $0x2a8] sm:$0xff]
  %v148 = vld [vmem:[%s1 + $0x2b0] sm:$0xff]
  %v149 = vld [vmem:[%s1 + $0x2b8] sm:$0xff]
  %v150 = vld [vmem:[%s1 + $0x2c0] sm:$0xff]
  %v151 = vld [vmem:[%s1 + $0x2c8] sm:$0xff]
  %v152 = vld [vmem:[%s1 + $0x2d0] sm:$0xff]
  %v153 = vld [vmem:[%s1 + $0x2d8] sm:$0xff]
  %v154 = vld [vmem:[%s1 + $0x2e0] sm:$0xff]
  %v155 = vld [vmem:[%s1 + $0x2e8] sm:$0xff]
  %v156 = vld [vmem:[%s1 + $0x2f0] sm:$0xff]
  %v157 = vld [vmem:[%s1 + $0x2f8] sm:$0xff]
  %v158 = vld [vmem:[%s1 + $0x300] sm:$0xff]
  %v159 = vld [vmem:[%s1 + $0x308] sm:$0xff]
  %v160 = vld [vmem:[%s1 + $0x310] sm:$0xff]
  %v161 = vld [vmem:[%s1 + $0x318] sm:$0xff]
  %v162 = vld [vmem:[%s1 + $0x320] sm:$0xff]
  %v163 = vld [vmem:[%s1 + $0x328] sm:$0xff]
  %v164 = vld [vmem:[%s1 + $0x330] sm:$0xff]
  %v165 = vld [vmem:[%s1 + $0x338] sm:$0xff]
  %v166 = vld [vmem:[%s1 + $0x340] sm:$0xff]
  %v167 = vld [vmem:[%s1 + $0x348] sm:$0xff]
  %v168 = vld [vmem:[%s1 + $0x350] sm:$0xff]
  %v169 = vld [vmem:[%s1 + $0x358] sm:$0xff]
  %v170 = vld [vmem:[%s1 + $0x360] sm:$0xff]
  %v171 = vld [vmem:[%s1 + $0x368] sm:$0xff]
  %v172 = vld [vmem:[%s1 + $0x370] sm:$0xff]
  %v173 = vld [vmem:[%s1 + $0x378] sm:$0xff]
  %v174 = vld [vmem:[%s1 + $0x380] sm:$0xff]
  %v175 = vld [vmem:[%s1 + $0x388] sm:$0xff]
  %v176 = vld [vmem:[%s1 + $0x390] sm:$0xff]
  %v177 = vld [vmem:[%s1 + $0x398] sm:$0xff]
  %v178 = vld [vmem:[%s1 + $0x3a0] sm:$0xff]
  %v179 = vld [vmem:[%s1 + $0x3a8] sm:$0xff]
  %v180 = vld [vmem:[%s1 + $0x3b0] sm:$0xff]
  %v181 = vld [vmem:[%s1 + $0x3b8] sm:$0xff]
  %v182 = vld [vmem:[%s1 + $0x3c0] sm:$0xff]
  %v183 = vld [vmem:[%s1 + $0x3c8] sm:$0xff]
  %v184 = vld [vmem:[%s1 + $0x3d0] sm:$0xff]
  %v185 = vld [vmem:[%s1 + $0x3d8] sm:$0xff]
  %v186 = vld [vmem:[%s1 + $0x3e0] sm:$0xff]
  %v187 = vld [vmem:[%s1 + $0x3e8] sm:$0xff]
  %v188 = vld [vmem:[%s1 + $0x3f0] sm:$0xff]
  %v189 = vld [vmem:[%s1 + $0x3f8] sm:$0xff]
  %v190 = vld [vmem:[%s1 + $0x400] sm:$0xff]
  %v191 = vld [vmem:[%s1 + $0x408] sm:$0xff]
  %v192 = vld [vmem:[%s1 + $0x410] sm:$0xff]
  %v193 = vld [vmem:[%s1 + $0x418] sm:$0xff]
  %v194 = vld [vmem:[%s1 + $0x420] sm:$0xff]
  %v195 = vld [vmem:[%s1 + $0x428] sm:$0xff]
  %v196 = vld [vmem:[%s1 + $0x430] sm:$0xff]
  %v197 = vld [vmem:[%s1 + $0x438] sm:$0xff]
  %v198 = vld [vmem:[%s1 + $0x440] sm:$0xff]
  %v199 = vld [vmem:[%s1 + $0x448] sm:$0xff]
  %v200 = vld [vmem:[%s1 + $0x450] sm:$0xff]
  %v201 = vld [vmem:[%s1 + $0x458] sm:$0xff]
  %v202 = vld [vmem:[%s1 + $0x460] sm:$0xff]
  %v203 = vld [vmem:[%s1 + $0x468] sm:$0xff]
  %v204 = vld [vmem:[%s1 + $0x470] sm:$0xff]
  %v205 = vld [vmem:[%s1 + $0x478] sm:$0xff]
  %v206 = vld [vmem:[%s1 + $0x480] sm:$0xff]
  %v207 = vld [vmem:[%s1 + $0x488] sm:$0xff]
  %v208 = vld [vmem:[%s1 + $0x490] sm:$0xff]
  %v209 = vld [vmem:[%s1 + $0x498] sm:$0xff]
  %v210 = vld [vmem:[%s1 + $0x4a0] sm:$0xff]
  %v211 = vld [vmem:[%s1 + $0x4a8] sm:$0xff]
  %v212 = vld [vmem:[%s1 + $0x4b0] sm:$0xff]
  %v213 = vld [vmem:[%s1 + $0x4b8] sm:$0xff]
  %v214 = vld [vmem:[%s1 + $0x4c0] sm:$0xff]
  %v215 = vld [vmem:[%s1 + $0x4c8] sm:$0xff]
  %v216 = vld [vmem:[%s1 + $0x4d0] sm:$0xff]
  %v217 = vld [vmem:[%s1 + $0x4d8] sm:$0xff]
  %v218 = vld [vmem:[%s1 + $0x4e0] sm:$0xff]
  %v219 = vld [vmem:[%s1 + $0x4e8] sm:$0xff]
  %v220 = vld [vmem:[%s1 + $0x4f0] sm:$0xff]
  %v221 = vld [vmem:[%s1 + $0x4f8] sm:$0xff]
  %v222 = vld [vmem:[%s1 + $0x500] sm:$0xff]
  %v223 = vld [vmem:[%s1 + $0x508] sm:$0xff]
  %v224 = vld [vmem:[%s1 + $0x510] sm:$0xff]
  %v225 = vld [vmem:[%s1 + $0x518] sm:$0xff]
  %v226 = vld [vmem:[%s1 + $0x520] sm:$0xff]
  %v227 = vld [vmem:[%s1 + $0x528] sm:$0xff]
  %v228 = vld [vmem:[%s1 + $0x530] sm:$0xff]
  %v229 = vld [vmem:[%s1 + $0x538] sm:$0xff]
  %v230 = vld [vmem:[%s1 + $0x540] sm:$0xff]
  %v231 = vld [vmem:[%s1 + $0x548] sm:$0xff]
  %v232 = vld [vmem:[%s1 + $0x550] sm:$0xff]
  %v233 = vld [vmem:[%s1 + $0x558] sm:$0xff]
  %v234 = vld [vmem:[%s1 + $0x560] sm:$0xff]
  %v235 = vld [vmem:[%s1 + $0x568] sm:$0xff]
  %v236 = vld [vmem:[%s1 + $0x570] sm:$0xff]
  %v237 = vld [vmem:[%s1 + $0x578] sm:$0xff]
  %v238 = vld [vmem:[%s1 + $0x580] sm:$0xff]
  %v239 = vld [vmem:[%s1 + $0x588] sm:$0xff]
  %v240 = vld [vmem:[%s1 + $0x590] sm:$0xff]
  %v241 = vld [vmem:[%s1 + $0x598] sm:$0xff]
  %v242 = vld [vmem:[%s1 + $0x5a0] sm:$0xff]
  %v243 = vld [vmem:[%s1 + $0x5a8] sm:$0xff]
  %v244 = vld [vmem:[%s1 + $0x5b0] sm:$0xff]
  %v245 = vld [vmem:[%s1 + $0x5b8] sm:$0xff]
  %v246 = vld [vmem:[%s1 + $0x5c0] sm:$0xff]
  %v247 = vld [vmem:[%s1 + $0x5c8] sm:$0xff]
  %v248 = vld [vmem:[%s1 + $0x5d0] sm:$0xff]
  %v249 = vld [vmem:[%s1 + $0x5d8] sm:$0xff]
  %v250 = vld [vmem:[%s1 + $0x5e0] sm:$0xff]
  %v251 = vld [vmem:[%s1 + $0x5e8] sm:$0xff]
  %v252 = vld [vmem:[%s1 + $0x5f0] sm:$0xff]
  %v253 = vld [vmem:[%s1 + $0x5f8] sm:$0xff]
  %v254 = vld [vmem:[%s1 + $0x600] sm:$0xff]
  %v255 = vld [vmem:[%s1 + $0x608] sm:$0xff]
  %v256 = vld [vmem:[%s1 + $0x610] sm:$0xff]
  %v257 = vld [vmem:[%s1 + $0x618] sm:$0xff]
  %v258 = vld [vmem:[%s1 + $0x620] sm:$0xff]
  %v259 = vld [vmem:[%s1 + $0x628] sm:$0xff]
  %v260 = vld [vmem:[%s1 + $0x630] sm:$0xff]
  %v261 = vld [vmem:[%s1 + $0x638] sm:$0xff]
  %v262 = vld [vmem:[%s1 + $0x640] sm:$0xff]
  %v263 = vld [vmem:[%s1 + $0x648] sm:$0xff]
  %v264 = vld [vmem:[%s1 + $0x650] sm:$0xff]
  %v265 = vld [vmem:[%s1 + $0x658] sm:$0xff]
  %v266 = vld [vmem:[%s1 + $0x660] sm:$0xff]
  %v267 = vld [vmem:[%s1 + $0x668] sm:$0xff]
  %v268 = vld [vmem:[%s1 + $0x670] sm:$0xff]
  %v269 = vld [vmem:[%s1 + $0x678] sm:$0xff]
  %v270 = vld [vmem:[%s1 + $0x680] sm:$0xff]
  %v271 = vld [vmem:[%s1 + $0x688] sm:$0xff]
  %v272 = vld [vmem:[%s1 + $0x690] sm:$0xff]
  %v273 = vld [vmem:[%s1 + $0x698] sm:$0xff]
  %v274 = vld [vmem:[%s1 + $0x6a0] sm:$0xff]
  %v275 = vld [vmem:[%s1 + $0x6a8] sm:$0xff]
  %v276 = vld [vmem:[%s1 + $0x6b0] sm:$0xff]
  %v277 = vld [vmem:[%s1 + $0x6b8] sm:$0xff]
  %v278 = vld [vmem:[%s1 + $0x6c0] sm:$0xff]
  %v279 = vld [vmem:[%s1 + $0x6c8] sm:$0xff]
  %v280 = vld [vmem:[%s1 + $0x6d0] sm:$0xff]
  %v281 = vld [vmem:[%s1 + $0x6d8] sm:$0xff]
  %v282 = vld [vmem:[%s1 + $0x6e0] sm:$0xff]
  %v283 = vld [vmem:[%s1 + $0x6e8] sm:$0xff]
  %v284 = vld [vmem:[%s1 + $0x6f0] sm:$0xff]
  %v285 = vld [vmem:[%s1 + $0x6f8] sm:$0xff]
  %v286 = vld [vmem:[%s1 + $0x700] sm:$0xff]
  %v287 = vld [vmem:[%s1 + $0x708] sm:$0xff]
  %v288 = vld [vmem:[%s1 + $0x710] sm:$0xff]
  %v289 = vld [vmem:[%s1 + $0x718] sm:$0xff]
  %v290 = vld [vmem:[%s1 + $0x720] sm:$0xff]
  %v291 = vld [vmem:[%s1 + $0x728] sm:$0xff]
  %v292 = vld [vmem:[%s1 + $0x730] sm:$0xff]
  %v293 = vld [vmem:[%s1 + $0x738] sm:$0xff]
  %v294 = vld [vmem:[%s1 + $0x740] sm:$0xff]
  %v295 = vld [vmem:[%s1 + $0x748] sm:$0xff]
  %v296 = vld [vmem:[%s1 + $0x750] sm:$0xff]
  %v297 = vld [vmem:[%s1 + $0x758] sm:$0xff]
  %v298 = vld [vmem:[%s1 + $0x760] sm:$0xff]
  %v299 = vld [vmem:[%s1 + $0x768] sm:$0xff]
  %v300 = vld [vmem:[%s1 + $0x770] sm:$0xff]
  %v301 = vld [vmem:[%s1 + $0x778] sm:$0xff]
  %v302 = vld [vmem:[%s1 + $0x780] sm:$0xff]
  %v303 = vld [vmem:[%s1 + $0x788] sm:$0xff]
  %v304 = vld [vmem:[%s1 + $0x790] sm:$0xff]
  %v305 = vld [vmem:[%s1 + $0x798] sm:$0xff]
  %v306 = vld [vmem:[%s1 + $0x7a0] sm:$0xff]
  %v307 = vld [vmem:[%s1 + $0x7a8] sm:$0xff]
  %v308 = vld [vmem:[%s1 + $0x7b0] sm:$0xff]
  %v309 = vld [vmem:[%s1 + $0x7b8] sm:$0xff]
  %v310 = vld [vmem:[%s1 + $0x7c0] sm:$0xff]
  %v311 = vld [vmem:[%s1 + $0x7c8] sm:$0xff]
  %v312 = vld [vmem:[%s1 + $0x7d0] sm:$0xff]
  %v313 = vld [vmem:[%s1 + $0x7d8] sm:$0xff]
  %v314 = vld [vmem:[%s1 + $0x7e0] sm:$0xff]
  %v315 = vld [vmem:[%s1 + $0x7e8] sm:$0xff]
  %v316 = vld [vmem:[%s1 + $0x7f0] sm:$0xff]
  %v317 = vld [vmem:[%s1 + $0x7f8] sm:$0xff]
  %v318 = vld [vmem:[%s1 + $0x800] sm:$0xff]
  %v319 = vld [vmem:[%s1 + $0x808] sm:$0xff]
  %v320 = vld [vmem:[%s1 + $0x810] sm:$0xff]
  %v321 = vld [vmem:[%s1 + $0x818] sm:$0xff]
  %v322 = vld [vmem:[%s1 + $0x820] sm:$0xff]
  %v323 = vld [vmem:[%s1 + $0x828] sm:$0xff]
  %v324 = vld [vmem:[%s1 + $0x830] sm:$0xff]
  %v325 = vld [vmem:[%s1 + $0x838] sm:$0xff]
  %v326 = vld [vmem:[%s1 + $0x840] sm:$0xff]
  %v327 = vld [vmem:[%s1 + $0x848] sm:$0xff]
  %v328 = vld [vmem:[%s1 + $0x850] sm:$0xff]
  %v329 = vld [vmem:[%s1 + $0x858] sm:$0xff]
  %v330 = vld [vmem:[%s1 + $0x860] sm:$0xff]
  %v331 = vld [vmem:[%s1 + $0x868] sm:$0xff]
  %v332 = vld [vmem:[%s1 + $0x870] sm:$0xff]
  %v333 = vld [vmem:[%s1 + $0x878] sm:$0xff]
  %v334 = vld [vmem:[%s1 + $0x880] sm:$0xff]
  %v335 = vld [vmem:[%s1 + $0x888] sm:$0xff]
  %v336 = vld [vmem:[%s1 + $0x890] sm:$0xff]
  %v337 = vld [vmem:[%s1 + $0x898] sm:$0xff]
  %v338 = vld [vmem:[%s1 + $0x8a0] sm:$0xff]
  %v339 = vld [vmem:[%s1 + $0x8a8] sm:$0xff]
  %v340 = vld [vmem:[%s1 + $0x8b0] sm:$0xff]
  %v341 = vld [vmem:[%s1 + $0x8b8] sm:$0xff]
  %v342 = vld [vmem:[%s1 + $0x8c0] sm:$0xff]
  %v343 = vld [vmem:[%s1 + $0x8c8] sm:$0xff]
  %v344 = vld [vmem:[%s1 + $0x8d0] sm:$0xff]
  %v345 = vld [vmem:[%s1 + $0x8d8] sm:$0xff]
  %v346 = vld [vmem:[%s1 + $0x8e0] sm:$0xff]
  %v347 = vld [vmem:[%s1 + $0x8e8] sm:$0xff]
  %v348 = vld [vmem:[%s1 + $0x8f0] sm:$0xff]
  %v349 = vld [vmem:[%s1 + $0x8f8] sm:$0xff]
  %v350 = vld [vmem:[%s1 + $0x900] sm:$0xff]
  %v351 = vld [vmem:[%s1 + $0x908] sm:$0xff]
  %v352 = vld [vmem:[%s1 + $0x910] sm:$0xff]
  %v353 = vld [vmem:[%s1 + $0x918] sm:$0xff]
  %v354 = vld [vmem:[%s1 + $0x920] sm:$0xff]
  %v355 = vld [vmem:[%s1 + $0x928] sm:$0xff]
  %v356 = vld [vmem:[%s1 + $0x930] sm:$0xff]
  %v357 = vld [vmem:[%s1 + $0x938] sm:$0xff]
  %v358 = vld [vmem:[%s1 + $0x940] sm:$0xff]
  %v359 = vld [vmem:[%s1 + $0x948] sm:$0xff]
  %v360 = vld [vmem:[%s1 + $0x950] sm:$0xff]
  %v361 = vld [vmem:[%s1 + $0x958] sm:$0xff]
  %v362 = vld [vmem:[%s1 + $0x960] sm:$0xff]
  %v363 = vld [vmem:[%s1 + $0x968] sm:$0xff]
  %v364 = vld [vmem:[%s1 + $0x970] sm:$0xff]
  %v365 = vld [vmem:[%s1 + $0x978] sm:$0xff]
  %v366 = vld [vmem:[%s1 + $0x980] sm:$0xff]
  %v367 = vld [vmem:[%s1 + $0x988] sm:$0xff]
  %v368 = vld [vmem:[%s1 + $0x990] sm:$0xff]
  %v369 = vld [vmem:[%s1 + $0x998] sm:$0xff]
  %v370 = vld [vmem:[%s1 + $0x9a0] sm:$0xff]
  %v371 = vld [vmem:[%s1 + $0x9a8] sm:$0xff]
  %v372 = vld [vmem:[%s1 + $0x9b0] sm:$0xff]
  %v373 = vld [vmem:[%s1 + $0x9b8] sm:$0xff]
  %v374 = vld [vmem:[%s1 + $0x9c0] sm:$0xff]
  %v375 = vld [vmem:[%s1 + $0x9c8] sm:$0xff]
  %v376 = vld [vmem:[%s1 + $0x9d0] sm:$0xff]
  %v377 = vld [vmem:[%s1 + $0x9d8] sm:$0xff]
  %v378 = vld [vmem:[%s1 + $0x9e0] sm:$0xff]
  %v379 = vld [vmem:[%s1 + $0x9e8] sm:$0xff]
  %v380 = vld [vmem:[%s1 + $0x9f0] sm:$0xff]
  %v381 = vld [vmem:[%s1 + $0x9f8] sm:$0xff]
  %v382 = vld [vmem:[%s1 + $0xa00] sm:$0xff]
  %v383 = vld [vmem:[%s1 + $0xa08] sm:$0xff]
  %v384 = vld [vmem:[%s1 + $0xa10] sm:$0xff]
  %v385 = vld [vmem:[%s1 + $0xa18] sm:$0xff]
  %v386 = vld [vmem:[%s1 + $0xa20] sm:$0xff]
  %v387 = vld [vmem:[%s1 + $0xa28] sm:$0xff]
  %v388 = vld [vmem:[%s1 + $0xa30] sm:$0xff]
  %v389 = vld [vmem:[%s1 + $0xa38] sm:$0xff]
  %v390 = vld [vmem:[%s1 + $0xa40] sm:$0xff]
  %v391 = vld [vmem:[%s1 + $0xa48] sm:$0xff]
  %v392 = vld [vmem:[%s1 + $0xa50] sm:$0xff]
  %v393 = vld [vmem:[%s1 + $0xa58] sm:$0xff]
  %v394 = vld [vmem:[%s1 + $0xa60] sm:$0xff]
  %v395 = vld [vmem:[%s1 + $0xa68] sm:$0xff]
  %v396 = vld [vmem:[%s1 + $0xa70] sm:$0xff]
  %v397 = vld [vmem:[%s1 + $0xa78] sm:$0xff]
  %v398 = vld [vmem:[%s1 + $0xa80] sm:$0xff]
  %v399 = vld [vmem:[%s1 + $0xa88] sm:$0xff]
  %v400 = vld [vmem:[%s1 + $0xa90] sm:$0xff]
  %v401 = vld [vmem:[%s1 + $0xa98] sm:$0xff]
  %v402 = vld [vmem:[%s1 + $0xaa0] sm:$0xff]
  %v403 = vld [vmem:[%s1 + $0xaa8] sm:$0xff]
  %v404 = vld [vmem:[%s1 + $0xab0] sm:$0xff]
  %v405 = vld [vmem:[%s1 + $0xab8] sm:$0xff]
  %v406 = vld [vmem:[%s1 + $0xac0] sm:$0xff]
  %v407 = vld [vmem:[%s1 + $0xac8] sm:$0xff]
  %v408 = vld [vmem:[%s1 + $0xad0] sm:$0xff]
  %v409 = vld [vmem:[%s1 + $0xad8] sm:$0xff]
  %v410 = vld [vmem:[%s1 + $0xae0] sm:$0xff]
  %v411 = vld [vmem:[%s1 + $0xae8] sm:$0xff]
  %v412 = vld [vmem:[%s1 + $0xaf0] sm:$0xff]
  %v413 = vld [vmem:[%s1 + $0xaf8] sm:$0xff]
  %v414 = vld [vmem:[%s1 + $0xb00] sm:$0xff]
  %v415 = vld [vmem:[%s1 + $0xb08] sm:$0xff]
  %v416 = vld [vmem:[%s1 + $0xb10] sm:$0xff]
  %v417 = vld [vmem:[%s1 + $0xb18] sm:$0xff]
  %v418 = vld [vmem:[%s1 + $0xb20] sm:$0xff]
  %v419 = vld [vmem:[%s1 + $0xb28] sm:$0xff]
  %v420 = vld [vmem:[%s1 + $0xb30] sm:$0xff]
  %v421 = vld [vmem:[%s1 + $0xb38] sm:$0xff]
  %v422 = vld [vmem:[%s1 + $0xb40] sm:$0xff]
  %v423 = vld [vmem:[%s1 + $0xb48] sm:$0xff]
  %v424 = vld [vmem:[%s1 + $0xb50] sm:$0xff]
  %v425 = vld [vmem:[%s1 + $0xb58] sm:$0xff]
  %v426 = vld [vmem:[%s1 + $0xb60] sm:$0xff]
  %v427 = vld [vmem:[%s1 + $0xb68] sm:$0xff]
  %v428 = vld [vmem:[%s1 + $0xb70] sm:$0xff]
  %v429 = vld [vmem:[%s1 + $0xb78] sm:$0xff]
  %v430 = vld [vmem:[%s1 + $0xb80] sm:$0xff]
  %v431 = vld [vmem:[%s1 + $0xb88] sm:$0xff]
  %v432 = vld [vmem:[%s1 + $0xb90] sm:$0xff]
  %v433 = vld [vmem:[%s1 + $0xb98] sm:$0xff]
  %v434 = vld [vmem:[%s1 + $0xba0] sm:$0xff]
  %v435 = vld [vmem:[%s1 + $0xba8] sm:$0xff]
  %v436 = vld [vmem:[%s1 + $0xbb0] sm:$0xff]
  %v437 = vld [vmem:[%s1 + $0xbb8] sm:$0xff]
  %v438 = vld [vmem:[%s1 + $0xbc0] sm:$0xff]
  %v439 = vld [vmem:[%s1 + $0xbc8] sm:$0xff]
  %v440 = vld [vmem:[%s1 + $0xbd0] sm:$0xff]
  %v441 = vld [vmem:[%s1 + $0xbd8] sm:$0xff]
  %v442 = vld [vmem:[%s1 + $0xbe0] sm:$0xff]
  %v443 = vld [vmem:[%s1 + $0xbe8] sm:$0xff]
  %v444 = vld [vmem:[%s1 + $0xbf0] sm:$0xff]
  %v445 = vld [vmem:[%s1 + $0xbf8] sm:$0xff]
  %v446 = vld [vmem:[%s1 + $0xc00] sm:$0xff]
  %v447 = vld [vmem:[%s1 + $0xc08] sm:$0xff]
  %v448 = vld [vmem:[%s1 + $0xc10] sm:$0xff]
  %v449 = vld [vmem:[%s1 + $0xc18] sm:$0xff]
  %v450 = vld [vmem:[%s1 + $0xc20] sm:$0xff]
  %v451 = vld [vmem:[%s1 + $0xc28] sm:$0xff]
  %v452 = vld [vmem:[%s1 + $0xc30] sm:$0xff]
  %v453 = vld [vmem:[%s1 + $0xc38] sm:$0xff]
  %v454 = vld [vmem:[%s1 + $0xc40] sm:$0xff]
  %v455 = vld [vmem:[%s1 + $0xc48] sm:$0xff]
  %v456 = vld [vmem:[%s1 + $0xc50] sm:$0xff]
  %v457 = vld [vmem:[%s1 + $0xc58] sm:$0xff]
  %v458 = vld [vmem:[%s1 + $0xc60] sm:$0xff]
  %v459 = vld [vmem:[%s1 + $0xc68] sm:$0xff]
  %v460 = vld [vmem:[%s1 + $0xc70] sm:$0xff]
  %v461 = vld [vmem:[%s1 + $0xc78] sm:$0xff]
  %v462 = vld [vmem:[%s1 + $0xc80] sm:$0xff]
  %v463 = vld [vmem:[%s1 + $0xc88] sm:$0xff]
  %v464 = vld [vmem:[%s1 + $0xc90] sm:$0xff]
  %v465 = vld [vmem:[%s1 + $0xc98] sm:$0xff]
  %v466 = vld [vmem:[%s1 + $0xca0] sm:$0xff]
  %v467 = vld [vmem:[%s1 + $0xca8] sm:$0xff]
  %v468 = vld [vmem:[%s1 + $0xcb0] sm:$0xff]
  %v469 = vld [vmem:[%s1 + $0xcb8] sm:$0xff]
  %v470 = vld [vmem:[%s1 + $0xcc0] sm:$0xff]
  %v471 = vld [vmem:[%s1 + $0xcc8] sm:$0xff]
  %v472 = vld [vmem:[%s1 + $0xcd0] sm:$0xff]
  %v473 = vld [vmem:[%s1 + $0xcd8] sm:$0xff]
  %v474 = vld [vmem:[%s1 + $0xce0] sm:$0xff]
  %v475 = vld [vmem:[%s1 + $0xce8] sm:$0xff]
  %v476 = vld [vmem:[%s1 + $0xcf0] sm:$0xff]
  %v477 = vld [vmem:[%s1 + $0xcf8] sm:$0xff]
  %v478 = vld [vmem:[%s1 + $0xd00] sm:$0xff]
  %v479 = vld [vmem:[%s1 + $0xd08] sm:$0xff]
  %v480 = vld [vmem:[%s1 + $0xd10] sm:$0xff]
  %v481 = vld [vmem:[%s1 + $0xd18] sm:$0xff]
  %v482 = vld [vmem:[%s1 + $0xd20] sm:$0xff]
  %v483 = vld [vmem:[%s1 + $0xd28] sm:$0xff]
  %v484 = vld [vmem:[%s1 + $0xd30] sm:$0xff]
  %v485 = vld [vmem:[%s1 + $0xd38] sm:$0xff]
  %v486 = vld [vmem:[%s1 + $0xd40] sm:$0xff]
  %v487 = vld [vmem:[%s1 + $0xd48] sm:$0xff]
  %v488 = vld [vmem:[%s1 + $0xd50] sm:$0xff]
  %v489 = vld [vmem:[%s1 + $0xd58] sm:$0xff]
  %v490 = vld [vmem:[%s1 + $0xd60] sm:$0xff]
  %v491 = vld [vmem:[%s1 + $0xd68] sm:$0xff]
  %v492 = vld [vmem:[%s1 + $0xd70] sm:$0xff]
  %v493 = vld [vmem:[%s1 + $0xd78] sm:$0xff]
  %v494 = vld [vmem:[%s1 + $0xd80] sm:$0xff]
  %v495 = vld [vmem:[%s1 + $0xd88] sm:$0xff]
  %v496 = vld [vmem:[%s1 + $0xd90] sm:$0xff]
  %v497 = vld [vmem:[%s1 + $0xd98] sm:$0xff]
  %v498 = vld [vmem:[%s1 + $0xda0] sm:$0xff]
  %v499 = vld [vmem:[%s1 + $0xda8] sm:$0xff]
  %v500 = vld [vmem:[%s1 + $0xdb0] sm:$0xff]
  %v501 = vld [vmem:[%s1 + $0xdb8] sm:$0xff]
  %v502 = vld [vmem:[%s1 + $0xdc0] sm:$0xff]
  %v503 = vld [vmem:[%s1 + $0xdc8] sm:$0xff]
  %v504 = vld [vmem:[%s1 + $0xdd0] sm:$0xff]
  %v505 = vld [vmem:[%s1 + $0xdd8] sm:$0xff]
  %v506 = vld [vmem:[%s1 + $0xde0] sm:$0xff]
  %v507 = vld [vmem:[%s1 + $0xde8] sm:$0xff]
  %v508 = vld [vmem:[%s1 + $0xdf0] sm:$0xff]
  %v509 = vld [vmem:[%s1 + $0xdf8] sm:$0xff]
  %v510 = vld [vmem:[%s1 + $0xe00] sm:$0xff]
  %v511 = vld [vmem:[%s1 + $0xe08] sm:$0xff]
  %v512 = vld [vmem:[%s1 + $0xe10] sm:$0xff]
  %v513 = vld [vmem:[%s1 + $0xe18] sm:$0xff]
  %v514 = vld [vmem:[%s1 + $0xe20] sm:$0xff]
  %v515 = vld [vmem:[%s1 + $0xe28] sm:$0xff]
  %v516 = vld [vmem:[%s1 + $0xe30] sm:$0xff]
  %v517 = vld [vmem:[%s1 + $0xe38] sm:$0xff]
  %v518 = vld [vmem:[%s1 + $0xe40] sm:$0xff]
  %v519 = vld [vmem:[%s1 + $0xe48] sm:$0xff]
  %v520 = vld [vmem:[%s1 + $0xe50] sm:$0xff]
  %v521 = vld [vmem:[%s1 + $0xe58] sm:$0xff]
  %v522 = vld [vmem:[%s1 + $0xe60] sm:$0xff]
  %v523 = vld [vmem:[%s1 + $0xe68] sm:$0xff]
  %v524 = vld [vmem:[%s1 + $0xe70] sm:$0xff]
  %v525 = vld [vmem:[%s1 + $0xe78] sm:$0xff]
  %v526 = vld [vmem:[%s1 + $0xe80] sm:$0xff]
  %v527 = vld [vmem:[%s1 + $0xe88] sm:$0xff]
  %v528 = vld [vmem:[%s1 + $0xe90] sm:$0xff]
  %v529 = vld [vmem:[%s1 + $0xe98] sm:$0xff]
  %v530 = vld [vmem:[%s1 + $0xea0] sm:$0xff]
  %v531 = vld [vmem:[%s1 + $0xea8] sm:$0xff]
  %v532 = vld [vmem:[%s1 + $0xeb0] sm:$0xff]
  %v533 = vld [vmem:[%s1 + $0xeb8] sm:$0xff]
  %v534 = vld [vmem:[%s1 + $0xec0] sm:$0xff]
  %v535 = vld [vmem:[%s1 + $0xec8] sm:$0xff]
  %v536 = vld [vmem:[%s1 + $0xed0] sm:$0xff]
  %v537 = vld [vmem:[%s1 + $0xed8] sm:$0xff]
  %v538 = vld [vmem:[%s1 + $0xee0] sm:$0xff]
  %v539 = vld [vmem:[%s1 + $0xee8] sm:$0xff]
  %v540 = vld [vmem:[%s1 + $0xef0] sm:$0xff]
  %v541 = vld [vmem:[%s1 + $0xef8] sm:$0xff]
  %v542 = vld [vmem:[%s1 + $0xf00] sm:$0xff]
  %v543 = vld [vmem:[%s1 + $0xf08] sm:$0xff]
  %v544 = vld [vmem:[%s1 + $0xf10] sm:$0xff]
  %v545 = vld [vmem:[%s1 + $0xf18] sm:$0xff]
  %v546 = vld [vmem:[%s1 + $0xf20] sm:$0xff]
  %v547 = vld [vmem:[%s1 + $0xf28] sm:$0xff]
  %v548 = vld [vmem:[%s1 + $0xf30] sm:$0xff]
  %v549 = vld [vmem:[%s1 + $0xf38] sm:$0xff]
  %v550 = vld [vmem:[%s1 + $0xf40] sm:$0xff]
  %v551 = vld [vmem:[%s1 + $0xf48] sm:$0xff]
  %v552 = vld [vmem:[%s1 + $0xf50] sm:$0xff]
  %v553 = vld [vmem:[%s1 + $0xf58] sm:$0xff]
  %v554 = vld [vmem:[%s1 + $0xf60] sm:$0xff]
  %v555 = vld [vmem:[%s1 + $0xf68] sm:$0xff]
  %v556 = vld [vmem:[%s1 + $0xf70] sm:$0xff]
  %v557 = vld [vmem:[%s1 + $0xf78] sm:$0xff]
  %v558 = vld [vmem:[%s1 + $0xf80] sm:$0xff]
  %v559 = vld [vmem:[%s1 + $0xf88] sm:$0xff]
  %v560 = vld [vmem:[%s1 + $0xf90] sm:$0xff]
  %v561 = vld [vmem:[%s1 + $0xf98] sm:$0xff]
  %v562 = vld [vmem:[%s1 + $0xfa0] sm:$0xff]
  %v563 = vld [vmem:[%s1 + $0xfa8] sm:$0xff]
  %v564 = vld [vmem:[%s1 + $0xfb0] sm:$0xff]
  %v565 = vld [vmem:[%s1 + $0xfb8] sm:$0xff]
  %v566 = vld [vmem:[%s1 + $0xfc0] sm:$0xff]
  %v567 = vld [vmem:[%s1 + $0xfc8] sm:$0xff]
  %v568 = vld [vmem:[%s1 + $0xfd0] sm:$0xff]
  %v569 = vld [vmem:[%s1 + $0xfd8] sm:$0xff]
  %v570 = vld [vmem:[%s1 + $0xfe0] sm:$0xff]
  %v571 = vld [vmem:[%s1 + $0xfe8] sm:$0xff]
  %v572 = vld [vmem:[%s1 + $0xff0] sm:$0xff]
  %v573 = vld [vmem:[%s1 + $0xff8] sm:$0xff]
  %v574 = vld [vmem:[%s1 + $0x1000] sm:$0xff]
  %v575 = vld [vmem:[%s1 + $0x1008] sm:$0xff]
  %v576 = vld [vmem:[%s1 + $0x1010] sm:$0xff]
  %v577 = vld [vmem:[%s1 + $0x1018] sm:$0xff]
  %v578 = vld [vmem:[%s1 + $0x1020] sm:$0xff]
  %v579 = vld [vmem:[%s1 + $0x1028] sm:$0xff]
  %v580 = vld [vmem:[%s1 + $0x1030] sm:$0xff]
  %v581 = vld [vmem:[%s1 + $0x1038] sm:$0xff]
  %v582 = vld [vmem:[%s1 + $0x1040] sm:$0xff]
  %v583 = vld [vmem:[%s1 + $0x1048] sm:$0xff]
  %v584 = vld [vmem:[%s1 + $0x1050] sm:$0xff]
  %v585 = vld [vmem:[%s1 + $0x1058] sm:$0xff]
  %v586 = vld [vmem:[%s1 + $0x1060] sm:$0xff]
  %v587 = vld [vmem:[%s1 + $0x1068] sm:$0xff]
  %v588 = vld [vmem:[%s1 + $0x1070] sm:$0xff]
  %v589 = vld [vmem:[%s1 + $0x1078] sm:$0xff]
  %v590 = vld [vmem:[%s1 + $0x1080] sm:$0xff]
  %v591 = vld [vmem:[%s1 + $0x1088] sm:$0xff]
  %v592 = vld [vmem:[%s1 + $0x1090] sm:$0xff]
  %v593 = vld [vmem:[%s1 + $0x1098] sm:$0xff]
  %v594 = vld [vmem:[%s1 + $0x10a0] sm:$0xff]
  %v595 = vld [vmem:[%s1 + $0x10a8] sm:$0xff]
  %v596 = vld [vmem:[%s1 + $0x10b0] sm:$0xff]
  %v597 = vld [vmem:[%s1 + $0x10b8] sm:$0xff]
  %v598 = vld [vmem:[%s1 + $0x10c0] sm:$0xff]
  %v599 = vld [vmem:[%s1 + $0x10c8] sm:$0xff]
  %v600 = vld [vmem:[%s1 + $0x10d0] sm:$0xff]
  %v601 = vld [vmem:[%s1 + $0x10d8] sm:$0xff]
  %v602 = vld [vmem:[%s1 + $0x10e0] sm:$0xff]
  %v603 = vld [vmem:[%s1 + $0x10e8] sm:$0xff]
  %v604 = vld [vmem:[%s1 + $0x10f0] sm:$0xff]
  %v605 = vld [vmem:[%s1 + $0x10f8] sm:$0xff]
  %v606 = vld [vmem:[%s1 + $0x1100] sm:$0xff]
  %v607 = vld [vmem:[%s1 + $0x1108] sm:$0xff]
  %v608 = vld [vmem:[%s1 + $0x1110] sm:$0xff]
  %v609 = vld [vmem:[%s1 + $0x1118] sm:$0xff]
  %v610 = vld [vmem:[%s1 + $0x1120] sm:$0xff]
  %v611 = vld [vmem:[%s1 + $0x1128] sm:$0xff]
  %v612 = vld [vmem:[%s1 + $0x1130] sm:$0xff]
  %v613 = vld [vmem:[%s1 + $0x1138] sm:$0xff]
  %v614 = vld [vmem:[%s1 + $0x1140] sm:$0xff]
  %v615 = vld [vmem:[%s1 + $0x1148] sm:$0xff]
  %v616 = vld [vmem:[%s1 + $0x1150] sm:$0xff]
  %v617 = vld [vmem:[%s1 + $0x1158] sm:$0xff]
  %v618 = vld [vmem:[%s1 + $0x1160] sm:$0xff]
  %v619 = vld [vmem:[%s1 + $0x1168] sm:$0xff]
  %v620 = vld [vmem:[%s1 + $0x1170] sm:$0xff]
  %v621 = vld [vmem:[%s1 + $0x1178] sm:$0xff]
  %v622 = vld [vmem:[%s1 + $0x1180] sm:$0xff]
  %v623 = vld [vmem:[%s1 + $0x1188] sm:$0xff]
  %v624 = vld [vmem:[%s1 + $0x1190] sm:$0xff]
  %v625 = vld [vmem:[%s1 + $0x1198] sm:$0xff]
  %v626 = vld [vmem:[%s1 + $0x11a0] sm:$0xff]
  %v627 = vld [vmem:[%s1 + $0x11a8] sm:$0xff]
  %v628 = vld [vmem:[%s1 + $0x11b0] sm:$0xff]
  %v629 = vld [vmem:[%s1 + $0x11b8] sm:$0xff]
  %v630 = vld [vmem:[%s1 + $0x11c0] sm:$0xff]
  %v631 = vld [vmem:[%s1 + $0x11c8] sm:$0xff]
  %v632 = vld [vmem:[%s1 + $0x11d0] sm:$0xff]
  %v633 = vld [vmem:[%s1 + $0x11d8] sm:$0xff]
  %v634 = vld [vmem:[%s1 + $0x11e0] sm:$0xff]
  %v635 = vld [vmem:[%s1 + $0x11e8] sm:$0xff]
  %v636 = vld [vmem:[%s1 + $0x11f0] sm:$0xff]
  %v637 = vld [vmem:[%s1 + $0x11f8] sm:$0xff]
  %v638 = vld [vmem:[%s1 + $0x1200] sm:$0xff]
  %v639 = vld [vmem:[%s1 + $0x1208] sm:$0xff]
  %v640 = vld [vmem:[%s1 + $0x1210] sm:$0xff]
  %v641 = vld [vmem:[%s1 + $0x1218] sm:$0xff]
  %v642 = vld [vmem:[%s1 + $0x1220] sm:$0xff]
  %v643 = vld [vmem:[%s1 + $0x1228] sm:$0xff]
  %v644 = vld [vmem:[%s1 + $0x1230] sm:$0xff]
  %v645 = vld [vmem:[%s1 + $0x1238] sm:$0xff]
  %v646 = vld [vmem:[%s1 + $0x1240] sm:$0xff]
  %v647 = vld [vmem:[%s1 + $0x1248] sm:$0xff]
  %v648 = vld [vmem:[%s1 + $0x1250] sm:$0xff]
  %v649 = vld [vmem:[%s1 + $0x1258] sm:$0xff]
  %v650 = vld [vmem:[%s1 + $0x1260] sm:$0xff]
  %v651 = vld [vmem:[%s1 + $0x1268] sm:$0xff]
  %v652 = vld [vmem:[%s1 + $0x1270] sm:$0xff]
  %v653 = vld [vmem:[%s1 + $0x1278] sm:$0xff]
  %v654 = vld [vmem:[%s1 + $0x1280] sm:$0xff]
  %v655 = vld [vmem:[%s1 + $0x1288] sm:$0xff]
  %v656 = vld [vmem:[%s1 + $0x1290] sm:$0xff]
  %v657 = vld [vmem:[%s1 + $0x1298] sm:$0xff]
  %v658 = vld [vmem:[%s1 + $0x12a0] sm:$0xff]
  %v659 = vld [vmem:[%s1 + $0x12a8] sm:$0xff]
  %v660 = vld [vmem:[%s1 + $0x12b0] sm:$0xff]
  %v661 = vld [vmem:[%s1 + $0x12b8] sm:$0xff]
  %v662 = vld [vmem:[%s1 + $0x12c0] sm:$0xff]
  %v663 = vld [vmem:[%s1 + $0x12c8] sm:$0xff]
  %v664 = vld [vmem:[%s1 + $0x12d0] sm:$0xff]
  %v665 = vld [vmem:[%s1 + $0x12d8] sm:$0xff]
  %v666 = vld [vmem:[%s1 + $0x12e0] sm:$0xff]
  %v667 = vld [vmem:[%s1 + $0x12e8] sm:$0xff]
  %v668 = vld [vmem:[%s1 + $0x12f0] sm:$0xff]
  %v669 = vld [vmem:[%s1 + $0x12f8] sm:$0xff]
  %v670 = vld [vmem:[%s1 + $0x1300] sm:$0xff]
  %v671 = vld [vmem:[%s1 + $0x1308] sm:$0xff]
  %v672 = vld [vmem:[%s1 + $0x1310] sm:$0xff]
  %v673 = vld [vmem:[%s1 + $0x1318] sm:$0xff]
  %v674 = vld [vmem:[%s1 + $0x1320] sm:$0xff]
  %v675 = vld [vmem:[%s1 + $0x1328] sm:$0xff]
  %v676 = vld [vmem:[%s1 + $0x1330] sm:$0xff]
  %v677 = vld [vmem:[%s1 + $0x1338] sm:$0xff]
  %v678 = vld [vmem:[%s1 + $0x1340] sm:$0xff]
  %v679 = vld [vmem:[%s1 + $0x1348] sm:$0xff]
  %v680 = vld [vmem:[%s1 + $0x1350] sm:$0xff]
  %v681 = vld [vmem:[%s1 + $0x1358] sm:$0xff]
  %v682 = vld [vmem:[%s1 + $0x1360] sm:$0xff]
  %v683 = vld [vmem:[%s1 + $0x1368] sm:$0xff]
  %v684 = vld [vmem:[%s1 + $0x1370] sm:$0xff]
  %v685 = vld [vmem:[%s1 + $0x1378] sm:$0xff]
  %v686 = vld [vmem:[%s1 + $0x1380] sm:$0xff]
  %v687 = vld [vmem:[%s1 + $0x1388] sm:$0xff]
  %v688 = vld [vmem:[%s1 + $0x1390] sm:$0xff]
  %v689 = vld [vmem:[%s1 + $0x1398] sm:$0xff]
  %v690 = vld [vmem:[%s1 + $0x13a0] sm:$0xff]
  %v691 = vld [vmem:[%s1 + $0x13a8] sm:$0xff]
  %v692 = vld [vmem:[%s1 + $0x13b0] sm:$0xff]
  %v693 = vld [vmem:[%s1 + $0x13b8] sm:$0xff]
  %v694 = vld [vmem:[%s1 + $0x13c0] sm:$0xff]
  %v695 = vld [vmem:[%s1 + $0x13c8] sm:$0xff]
  %v696 = vld [vmem:[%s1 + $0x13d0] sm:$0xff]
  %v697 = vld [vmem:[%s1 + $0x13d8] sm:$0xff]
  %v698 = vld [vmem:[%s1 + $0x13e0] sm:$0xff]
  %v699 = vld [vmem:[%s1 + $0x13e8] sm:$0xff]
  %v700 = vld [vmem:[%s1 + $0x13f0] sm:$0xff]
  %v701 = vld [vmem:[%s1 + $0x13f8] sm:$0xff]
  %v702 = vld [vmem:[%s1 + $0x1400] sm:$0xff]
  %v703 = vld [vmem:[%s1 + $0x1408] sm:$0xff]
  %v704 = vld [vmem:[%s1 + $0x1410] sm:$0xff]
  %v705 = vld [vmem:[%s1 + $0x1418] sm:$0xff]
  %v706 = vld [vmem:[%s1 + $0x1420] sm:$0xff]
  %v707 = vld [vmem:[%s1 + $0x1428] sm:$0xff]
  %v708 = vld [vmem:[%s1 + $0x1430] sm:$0xff]
  %v709 = vld [vmem:[%s1 + $0x1438] sm:$0xff]
  %v710 = vld [vmem:[%s1 + $0x1440] sm:$0xff]
  %v711 = vld [vmem:[%s1 + $0x1448] sm:$0xff]
  %v712 = vld [vmem:[%s1 + $0x1450] sm:$0xff]
  %v713 = vld [vmem:[%s1 + $0x1458] sm:$0xff]
  %v714 = vld [vmem:[%s1 + $0x1460] sm:$0xff]
  %v715 = vld [vmem:[%s1 + $0x1468] sm:$0xff]
  %v716 = vld [vmem:[%s1 + $0x1470] sm:$0xff]
  %v717 = vld [vmem:[%s1 + $0x1478] sm:$0xff]
  %v718 = vld [vmem:[%s1 + $0x1480] sm:$0xff]
  %v719 = vld [vmem:[%s1 + $0x1488] sm:$0xff]
  %v720 = vld [vmem:[%s1 + $0x1490] sm:$0xff]
  %v721 = vld [vmem:[%s1 + $0x1498] sm:$0xff]
  %v722 = vld [vmem:[%s1 + $0x14a0] sm:$0xff]
  %v723 = vld [vmem:[%s1 + $0x14a8] sm:$0xff]
  %v724 = vld [vmem:[%s1 + $0x14b0] sm:$0xff]
  %v725 = vld [vmem:[%s1 + $0x14b8] sm:$0xff]
  %v726 = vld [vmem:[%s1 + $0x14c0] sm:$0xff]
  %v727 = vld [vmem:[%s1 + $0x14c8] sm:$0xff]
  %v728 = vld [vmem:[%s1 + $0x14d0] sm:$0xff]
  %v729 = vld [vmem:[%s1 + $0x14d8] sm:$0xff]
  %v730 = vld [vmem:[%s1 + $0x14e0] sm:$0xff]
  %v731 = vld [vmem:[%s1 + $0x14e8] sm:$0xff]
  %v732 = vld [vmem:[%s1 + $0x14f0] sm:$0xff]
  %v733 = vld [vmem:[%s1 + $0x14f8] sm:$0xff]
  %v734 = vld [vmem:[%s1 + $0x1500] sm:$0xff]
  %v735 = vld [vmem:[%s1 + $0x1508] sm:$0xff]
  %v736 = vld [vmem:[%s1 + $0x1510] sm:$0xff]
  %v737 = vld [vmem:[%s1 + $0x1518] sm:$0xff]
  %v738 = vld [vmem:[%s1 + $0x1520] sm:$0xff]
  %v739 = vld [vmem:[%s1 + $0x1528] sm:$0xff]
  %v740 = vld [vmem:[%s1 + $0x1530] sm:$0xff]
  %v741 = vld [vmem:[%s1 + $0x1538] sm:$0xff]
  %v742 = vld [vmem:[%s1 + $0x1540] sm:$0xff]
  %v743 = vld [vmem:[%s1 + $0x1548] sm:$0xff]
  %v744 = vld [vmem:[%s1 + $0x1550] sm:$0xff]
  %v745 = vld [vmem:[%s1 + $0x1558] sm:$0xff]
  %v746 = vld [vmem:[%s1 + $0x1560] sm:$0xff]
  %v747 = vld [vmem:[%s1 + $0x1568] sm:$0xff]
  %v748 = vld [vmem:[%s1 + $0x1570] sm:$0xff]
  %v749 = vld [vmem:[%s1 + $0x1578] sm:$0xff]
  %v750 = vld [vmem:[%s1 + $0x1580] sm:$0xff]
  %v751 = vld [vmem:[%s1 + $0x1588] sm:$0xff]
  %v752 = vld [vmem:[%s1 + $0x1590] sm:$0xff]
  %v753 = vld [vmem:[%s1 + $0x1598] sm:$0xff]
  %v754 = vld [vmem:[%s1 + $0x15a0] sm:$0xff]
  %v755 = vld [vmem:[%s1 + $0x15a8] sm:$0xff]
  %v756 = vld [vmem:[%s1 + $0x15b0] sm:$0xff]
  %v757 = vld [vmem:[%s1 + $0x15b8] sm:$0xff]
  %v758 = vld [vmem:[%s1 + $0x15c0] sm:$0xff]
  %v759 = vld [vmem:[%s1 + $0x15c8] sm:$0xff]
  %v760 = vld [vmem:[%s1 + $0x15d0] sm:$0xff]
  %v761 = vld [vmem:[%s1 + $0x15d8] sm:$0xff]
  %v762 = vld [vmem:[%s1 + $0x15e0] sm:$0xff]
  %v763 = vld [vmem:[%s1 + $0x15e8] sm:$0xff]
  %v764 = vld [vmem:[%s1 + $0x15f0] sm:$0xff]
  %v765 = vld [vmem:[%s1 + $0x15f8] sm:$0xff]
  %v766 = vld [vmem:[%s1 + $0x1600] sm:$0xff]
  %v767 = vld [vmem:[%s1 + $0x1608] sm:$0xff]
  %v768 = vld [vmem:[%s1 + $0x1610] sm:$0xff]
  %v769 = vld [vmem:[%s1 + $0x1618] sm:$0xff]
  %v770 = vld [vmem:[%s1 + $0x1620] sm:$0xff]
  %v771 = vld [vmem:[%s1 + $0x1628] sm:$0xff]
  %v772 = vld [vmem:[%s1 + $0x1630] sm:$0xff]
  %v773 = vld [vmem:[%s1 + $0x1638] sm:$0xff]
  %v774 = vld [vmem:[%s1 + $0x1640] sm:$0xff]
  %v775 = vld [vmem:[%s1 + $0x1648] sm:$0xff]
  %v776 = vld [vmem:[%s1 + $0x1650] sm:$0xff]
  %v777 = vld [vmem:[%s1 + $0x1658] sm:$0xff]
  %v778 = vld [vmem:[%s1 + $0x1660] sm:$0xff]
  %v779 = vld [vmem:[%s1 + $0x1668] sm:$0xff]
  %v780 = vld [vmem:[%s1 + $0x1670] sm:$0xff]
  %v781 = vld [vmem:[%s1 + $0x1678] sm:$0xff]
  %v782 = vld [vmem:[%s1 + $0x1680] sm:$0xff]
  %v783 = vld [vmem:[%s1 + $0x1688] sm:$0xff]
  %v784 = vld [vmem:[%s1 + $0x1690] sm:$0xff]
  %v785 = vld [vmem:[%s1 + $0x1698] sm:$0xff]
  %v786 = vld [vmem:[%s1 + $0x16a0] sm:$0xff]
  %v787 = vld [vmem:[%s1 + $0x16a8] sm:$0xff]
  %v788 = vld [vmem:[%s1 + $0x16b0] sm:$0xff]
  %v789 = vld [vmem:[%s1 + $0x16b8] sm:$0xff]
  %v790 = vld [vmem:[%s1 + $0x16c0] sm:$0xff]
  %v791 = vld [vmem:[%s1 + $0x16c8] sm:$0xff]
  %v792 = vld [vmem:[%s1 + $0x16d0] sm:$0xff]
  %v793 = vld [vmem:[%s1 + $0x16d8] sm:$0xff]
  %v794 = vld [vmem:[%s1 + $0x16e0] sm:$0xff]
  %v795 = vld [vmem:[%s1 + $0x16e8] sm:$0xff]
  %v796 = vld [vmem:[%s1 + $0x16f0] sm:$0xff]
  %v797 = vld [vmem:[%s1 + $0x16f8] sm:$0xff]
  %v798 = vld [vmem:[%s1 + $0x1700] sm:$0xff]
  %v799 = vld [vmem:[%s1 + $0x1708] sm:$0xff]
  %v800 = vld [vmem:[%s1 + $0x1710] sm:$0xff]
  %v801 = vld [vmem:[%s1 + $0x1718] sm:$0xff]
  %v802 = vld [vmem:[%s1 + $0x1720] sm:$0xff]
  %v803 = vld [vmem:[%s1 + $0x1728] sm:$0xff]
  %v804 = vld [vmem:[%s1 + $0x1730] sm:$0xff]
  %v805 = vld [vmem:[%s1 + $0x1738] sm:$0xff]
  %v806 = vld [vmem:[%s1 + $0x1740] sm:$0xff]
  %v807 = vld [vmem:[%s1 + $0x1748] sm:$0xff]
  %v808 = vld [vmem:[%s1 + $0x1750] sm:$0xff]
  %v809 = vld [vmem:[%s1 + $0x1758] sm:$0xff]
  %v810 = vld [vmem:[%s1 + $0x1760] sm:$0xff]
  %v811 = vld [vmem:[%s1 + $0x1768] sm:$0xff]
  %v812 = vld [vmem:[%s1 + $0x1770] sm:$0xff]
  %v813 = vld [vmem:[%s1 + $0x1778] sm:$0xff]
  %v814 = vld [vmem:[%s1 + $0x1780] sm:$0xff]
  %v815 = vld [vmem:[%s1 + $0x1788] sm:$0xff]
  %v816 = vld [vmem:[%s1 + $0x1790] sm:$0xff]
  %v817 = vld [vmem:[%s1 + $0x1798] sm:$0xff]
  %v818 = vld [vmem:[%s1 + $0x17a0] sm:$0xff]
  %v819 = vld [vmem:[%s1 + $0x17a8] sm:$0xff]
  %v820 = vld [vmem:[%s1 + $0x17b0] sm:$0xff]
  %v821 = vld [vmem:[%s1 + $0x17b8] sm:$0xff]
  %v822 = vld [vmem:[%s1 + $0x17c0] sm:$0xff]
  %v823 = vld [vmem:[%s1 + $0x17c8] sm:$0xff]
  %v824 = vld [vmem:[%s1 + $0x17d0] sm:$0xff]
  %v825 = vld [vmem:[%s1 + $0x17d8] sm:$0xff]
  %v826 = vld [vmem:[%s1 + $0x17e0] sm:$0xff]
  %v827 = vld [vmem:[%s1 + $0x17e8] sm:$0xff]
  %v828 = vld [vmem:[%s1 + $0x17f0] sm:$0xff]
  %v829 = vld [vmem:[%s1 + $0x17f8] sm:$0xff]
  %v830 = vld [vmem:[%s1 + $0x1800] sm:$0xff]
  %v831 = vld [vmem:[%s1 + $0x1808] sm:$0xff]
  %v832 = vld [vmem:[%s1 + $0x1810] sm:$0xff]
  %v833 = vld [vmem:[%s1 + $0x1818] sm:$0xff]
  %v834 = vld [vmem:[%s1 + $0x1820] sm:$0xff]
  %v835 = vld [vmem:[%s1 + $0x1828] sm:$0xff]
  %v836 = vld [vmem:[%s1 + $0x1830] sm:$0xff]
  %v837 = vld [vmem:[%s1 + $0x1838] sm:$0xff]
  %v838 = vld [vmem:[%s1 + $0x1840] sm:$0xff]
  %v839 = vld [vmem:[%s1 + $0x1848] sm:$0xff]
  %v840 = vld [vmem:[%s1 + $0x1850] sm:$0xff]
  %v841 = vld [vmem:[%s1 + $0x1858] sm:$0xff]
  %v842 = vld [vmem:[%s1 + $0x1860] sm:$0xff]
  %v843 = vld [vmem:[%s1 + $0x1868] sm:$0xff]
  %v844 = vld [vmem:[%s1 + $0x1870] sm:$0xff]
  %v845 = vld [vmem:[%s1 + $0x1878] sm:$0xff]
  %v846 = vld [vmem:[%s1 + $0x1880] sm:$0xff]
  %v847 = vld [vmem:[%s1 + $0x1888] sm:$0xff]
  %v848 = vld [vmem:[%s1 + $0x1890] sm:$0xff]
  %v849 = vld [vmem:[%s1 + $0x1898] sm:$0xff]
  %v850 = vld [vmem:[%s1 + $0x18a0] sm:$0xff]
  %v851 = vld [vmem:[%s1 + $0x18a8] sm:$0xff]
  %v852 = vld [vmem:[%s1 + $0x18b0] sm:$0xff]
  %v853 = vld [vmem:[%s1 + $0x18b8] sm:$0xff]
  %v854 = vld [vmem:[%s1 + $0x18c0] sm:$0xff]
  %v855 = vld [vmem:[%s1 + $0x18c8] sm:$0xff]
  %v856 = vld [vmem:[%s1 + $0x18d0] sm:$0xff]
  %v857 = vld [vmem:[%s1 + $0x18d8] sm:$0xff]
  %v858 = vld [vmem:[%s1 + $0x18e0] sm:$0xff]
  %v859 = vld [vmem:[%s1 + $0x18e8] sm:$0xff]
  %v860 = vld [vmem:[%s1 + $0x18f0] sm:$0xff]
  %v861 = vld [vmem:[%s1 + $0x18f8] sm:$0xff]
  %v862 = vld [vmem:[%s1 + $0x1900] sm:$0xff]
  %v863 = vld [vmem:[%s1 + $0x1908] sm:$0xff]
  %v864 = vld [vmem:[%s1 + $0x1910] sm:$0xff]
  %v865 = vld [vmem:[%s1 + $0x1918] sm:$0xff]
  %v866 = vld [vmem:[%s1 + $0x1920] sm:$0xff]
  %v867 = vld [vmem:[%s1 + $0x1928] sm:$0xff]
  %v868 = vld [vmem:[%s1 + $0x1930] sm:$0xff]
  %v869 = vld [vmem:[%s1 + $0x1938] sm:$0xff]
  %v870 = vld [vmem:[%s1 + $0x1940] sm:$0xff]
  %v871 = vld [vmem:[%s1 + $0x1948] sm:$0xff]
  %v872 = vld [vmem:[%s1 + $0x1950] sm:$0xff]
  %v873 = vld [vmem:[%s1 + $0x1958] sm:$0xff]
  %v874 = vld [vmem:[%s1 + $0x1960] sm:$0xff]
  %v875 = vld [vmem:[%s1 + $0x1968] sm:$0xff]
  %v876 = vld [vmem:[%s1 + $0x1970] sm:$0xff]
  %v877 = vld [vmem:[%s1 + $0x1978] sm:$0xff]
  %v878 = vld [vmem:[%s1 + $0x1980] sm:$0xff]
  %v879 = vld [vmem:[%s1 + $0x1988] sm:$0xff]
  %v880 = vld [vmem:[%s1 + $0x1990] sm:$0xff]
  %v881 = vld [vmem:[%s1 + $0x1998] sm:$0xff]
  %v882 = vld [vmem:[%s1 + $0x19a0] sm:$0xff]
  %v883 = vld [vmem:[%s1 + $0x19a8] sm:$0xff]
  %v884 = vld [vmem:[%s1 + $0x19b0] sm:$0xff]
  %v885 = vld [vmem:[%s1 + $0x19b8] sm:$0xff]
  %v886 = vld [vmem:[%s1 + $0x19c0] sm:$0xff]
  %v887 = vld [vmem:[%s1 + $0x19c8] sm:$0xff]
  %v888 = vld [vmem:[%s1 + $0x19d0] sm:$0xff]
  %v889 = vld [vmem:[%s1 + $0x19d8] sm:$0xff]
  %v890 = vld [vmem:[%s1 + $0x19e0] sm:$0xff]
  %v891 = vld [vmem:[%s1 + $0x19e8] sm:$0xff]
  %v892 = vld [vmem:[%s1 + $0x19f0] sm:$0xff]
  %v893 = vld [vmem:[%s1 + $0x19f8] sm:$0xff]
  %v894 = vld [vmem:[%s1 + $0x1a00] sm:$0xff]
  %v895 = vld [vmem:[%s1 + $0x1a08] sm:$0xff]
  %v896 = vld [vmem:[%s1 + $0x1a10] sm:$0xff]
  %v897 = vld [vmem:[%s1 + $0x1a18] sm:$0xff]
  %v898 = vld [vmem:[%s1 + $0x1a20] sm:$0xff]
  %v899 = vld [vmem:[%s1 + $0x1a28] sm:$0xff]
  %v900 = vld [vmem:[%s1 + $0x1a30] sm:$0xff]
  %v901 = vld [vmem:[%s1 + $0x1a38] sm:$0xff]
  %v902 = vld [vmem:[%s1 + $0x1a40] sm:$0xff]
  %v903 = vld [vmem:[%s1 + $0x1a48] sm:$0xff]
  %v904 = vld [vmem:[%s1 + $0x1a50] sm:$0xff]
  %v905 = vld [vmem:[%s1 + $0x1a58] sm:$0xff]
  %v906 = vld [vmem:[%s1 + $0x1a60] sm:$0xff]
  %v907 = vld [vmem:[%s1 + $0x1a68] sm:$0xff]
  %v908 = vld [vmem:[%s1 + $0x1a70] sm:$0xff]
  %v909 = vld [vmem:[%s1 + $0x1a78] sm:$0xff]
  %v910 = vld [vmem:[%s1 + $0x1a80] sm:$0xff]
  %v911 = vld [vmem:[%s1 + $0x1a88] sm:$0xff]
  %v912 = vld [vmem:[%s1 + $0x1a90] sm:$0xff]
  %v913 = vld [vmem:[%s1 + $0x1a98] sm:$0xff]
  %v914 = vld [vmem:[%s1 + $0x1aa0] sm:$0xff]
  %v915 = vld [vmem:[%s1 + $0x1aa8] sm:$0xff]
  %v916 = vld [vmem:[%s1 + $0x1ab0] sm:$0xff]
  %v917 = vld [vmem:[%s1 + $0x1ab8] sm:$0xff]
  %v918 = vld [vmem:[%s1 + $0x1ac0] sm:$0xff]
  %v919 = vld [vmem:[%s1 + $0x1ac8] sm:$0xff]
  %v920 = vld [vmem:[%s1 + $0x1ad0] sm:$0xff]
  %v921 = vld [vmem:[%s1 + $0x1ad8] sm:$0xff]
  %v922 = vld [vmem:[%s1 + $0x1ae0] sm:$0xff]
  %v923 = vld [vmem:[%s1 + $0x1ae8] sm:$0xff]
  %v924 = vld [vmem:[%s1 + $0x1af0] sm:$0xff]
  %v925 = vld [vmem:[%s1 + $0x1af8] sm:$0xff]
  %v926 = vld [vmem:[%s1 + $0x1b00] sm:$0xff]
  %v927 = vld [vmem:[%s1 + $0x1b08] sm:$0xff]
  %v928 = vld [vmem:[%s1 + $0x1b10] sm:$0xff]
  %v929 = vld [vmem:[%s1 + $0x1b18] sm:$0xff]
  %v930 = vld [vmem:[%s1 + $0x1b20] sm:$0xff]
  %v931 = vld [vmem:[%s1 + $0x1b28] sm:$0xff]
  %v932 = vld [vmem:[%s1 + $0x1b30] sm:$0xff]
  %v933 = vld [vmem:[%s1 + $0x1b38] sm:$0xff]
  %v934 = vld [vmem:[%s1 + $0x1b40] sm:$0xff]
  %v935 = vld [vmem:[%s1 + $0x1b48] sm:$0xff]
  %v936 = vld [vmem:[%s1 + $0x1b50] sm:$0xff]
  %v937 = vld [vmem:[%s1 + $0x1b58] sm:$0xff]
  %v938 = vld [vmem:[%s1 + $0x1b60] sm:$0xff]
  %v939 = vld [vmem:[%s1 + $0x1b68] sm:$0xff]
  %v940 = vld [vmem:[%s1 + $0x1b70] sm:$0xff]
  %v941 = vld [vmem:[%s1 + $0x1b78] sm:$0xff]
  %v942 = vld [vmem:[%s1 + $0x1b80] sm:$0xff]
  %v943 = vld [vmem:[%s1 + $0x1b88] sm:$0xff]
  %v944 = vld [vmem:[%s1 + $0x1b90] sm:$0xff]
  %v945 = vld [vmem:[%s1 + $0x1b98] sm:$0xff]
  %v946 = vld [vmem:[%s1 + $0x1ba0] sm:$0xff]
  %v947 = vld [vmem:[%s1 + $0x1ba8] sm:$0xff]
  %v948 = vld [vmem:[%s1 + $0x1bb0] sm:$0xff]
  %v949 = vld [vmem:[%s1 + $0x1bb8] sm:$0xff]
  %v950 = vld [vmem:[%s1 + $0x1bc0] sm:$0xff]
  %v951 = vld [vmem:[%s1 + $0x1bc8] sm:$0xff]
  %v952 = vld [vmem:[%s1 + $0x1bd0] sm:$0xff]
  %v953 = vld [vmem:[%s1 + $0x1bd8] sm:$0xff]
  %v954 = vld [vmem:[%s1 + $0x1be0] sm:$0xff]
  %v955 = vld [vmem:[%s1 + $0x1be8] sm:$0xff]
  %v956 = vld [vmem:[%s1 + $0x1bf0] sm:$0xff]
  %v957 = vld [vmem:[%s1 + $0x1bf8] sm:$0xff]
  %v958 = vld [vmem:[%s1 + $0x1c00] sm:$0xff]
  %v959 = vld [vmem:[%s1 + $0x1c08] sm:$0xff]
  %v960 = vld [vmem:[%s1 + $0x1c10] sm:$0xff]
  %v961 = vld [vmem:[%s1 + $0x1c18] sm:$0xff]
  %v962 = vld [vmem:[%s1 + $0x1c20] sm:$0xff]
  %v963 = vld [vmem:[%s1 + $0x1c28] sm:$0xff]
  %v964 = vld [vmem:[%s1 + $0x1c30] sm:$0xff]
  %v965 = vld [vmem:[%s1 + $0x1c38] sm:$0xff]
  %v966 = vld [vmem:[%s1 + $0x1c40] sm:$0xff]
  %v967 = vld [vmem:[%s1 + $0x1c48] sm:$0xff]
  %v968 = vld [vmem:[%s1 + $0x1c50] sm:$0xff]
  %v969 = vld [vmem:[%s1 + $0x1c58] sm:$0xff]
  %v970 = vld [vmem:[%s1 + $0x1c60] sm:$0xff]
  %v971 = vld [vmem:[%s1 + $0x1c68] sm:$0xff]
  %v972 = vld [vmem:[%s1 + $0x1c70] sm:$0xff]
  %v973 = vld [vmem:[%s1 + $0x1c78] sm:$0xff]
  %v974 = vld [vmem:[%s1 + $0x1c80] sm:$0xff]
  %v975 = vld [vmem:[%s1 + $0x1c88] sm:$0xff]
  %v976 = vld [vmem:[%s1 + $0x1c90] sm:$0xff]
  %v977 = vld [vmem:[%s1 + $0x1c98] sm:$0xff]
  %v978 = vld [vmem:[%s1 + $0x1ca0] sm:$0xff]
  %v979 = vld [vmem:[%s1 + $0x1ca8] sm:$0xff]
  %v980 = vld [vmem:[%s1 + $0x1cb0] sm:$0xff]
  %v981 = vld [vmem:[%s1 + $0x1cb8] sm:$0xff]
  %v982 = vld [vmem:[%s1 + $0x1cc0] sm:$0xff]
  %v983 = vld [vmem:[%s1 + $0x1cc8] sm:$0xff]
  %v984 = vld [vmem:[%s1 + $0x1cd0] sm:$0xff]
  %v985 = vld [vmem:[%s1 + $0x1cd8] sm:$0xff]
  %v986 = vld [vmem:[%s1 + $0x1ce0] sm:$0xff]
  %v987 = vld [vmem:[%s1 + $0x1ce8] sm:$0xff]
  %v988 = vld [vmem:[%s1 + $0x1cf0] sm:$0xff]
  %v989 = vld [vmem:[%s1 + $0x1cf8] sm:$0xff]
  %v990 = vld [vmem:[%s1 + $0x1d00] sm:$0xff]
  %v991 = vld [vmem:[%s1 + $0x1d08] sm:$0xff]
  %v992 = vld [vmem:[%s1 + $0x1d10] sm:$0xff]
  %v993 = vld [vmem:[%s1 + $0x1d18] sm:$0xff]
  %v994 = vld [vmem:[%s1 + $0x1d20] sm:$0xff]
  %v995 = vld [vmem:[%s1 + $0x1d28] sm:$0xff]
  %v996 = vld [vmem:[%s1 + $0x1d30] sm:$0xff]
  %v997 = vld [vmem:[%s1 + $0x1d38] sm:$0xff]
  %v998 = vld [vmem:[%s1 + $0x1d40] sm:$0xff]
  %v999 = vld [vmem:[%s1 + $0x1d48] sm:$0xff]
  %v1000 = vld [vmem:[%s1 + $0x1d50] sm:$0xff]
  %v1001 = vld [vmem:[%s1 + $0x1d58] sm:$0xff]
  %v1002 = vld [vmem:[%s1 + $0x1d60] sm:$0xff]
  %v1003 = vld [vmem:[%s1 + $0x1d68] sm:$0xff]
  %v1004 = vld [vmem:[%s1 + $0x1d70] sm:$0xff]
  %v1005 = vld [vmem:[%s1 + $0x1d78] sm:$0xff]
  %v1006 = vld [vmem:[%s1 + $0x1d80] sm:$0xff]
  %v1007 = vld [vmem:[%s1 + $0x1d88] sm:$0xff]
  %v1008 = vld [vmem:[%s1 + $0x1d90] sm:$0xff]
  %v1009 = vld [vmem:[%s1 + $0x1d98] sm:$0xff]
  %v1010 = vld [vmem:[%s1 + $0x1da0] sm:$0xff]
  %v1011 = vld [vmem:[%s1 + $0x1da8] sm:$0xff]
  %v1012 = vld [vmem:[%s1 + $0x1db0] sm:$0xff]
  %v1013 = vld [vmem:[%s1 + $0x1db8] sm:$0xff]
  %v1014 = vld [vmem:[%s1 + $0x1dc0] sm:$0xff]
  %v1015 = vld [vmem:[%s1 + $0x1dc8] sm:$0xff]
  %v1016 = vld [vmem:[%s1 + $0x1dd0] sm:$0xff]
  %v1017 = vld [vmem:[%s1 + $0x1dd8] sm:$0xff]
  %v1018 = vld [vmem:[%s1 + $0x1de0] sm:$0xff]
  %v1019 = vld [vmem:[%s1 + $0x1de8] sm:$0xff]
  %v1020 = vld [vmem:[%s1 + $0x1df0] sm:$0xff]
  %v1021 = vld [vmem:[%s1 + $0x1df8] sm:$0xff]
  %v1022 = vld [vmem:[%s1 + $0x1e00] sm:$0xff]
  %v1023 = vld [vmem:[%s1 + $0x1e08] sm:$0xff]
  %v1024 = vld [vmem:[%s1 + $0x1e10] sm:$0xff]
  %v1025 = vld [vmem:[%s1 + $0x1e18] sm:$0xff]
  %v1026 = vld [vmem:[%s1 + $0x1e20] sm:$0xff]
  %v1027 = vld [vmem:[%s1 + $0x1e28] sm:$0xff]
  %v1028 = vld [vmem:[%s1 + $0x1e30] sm:$0xff]
  %v1029 = vld [vmem:[%s1 + $0x1e38] sm:$0xff]
  %v1030 = vld [vmem:[%s1 + $0x1e40] sm:$0xff]
  %v1031 = vld [vmem:[%s1 + $0x1e48] sm:$0xff]
  %v1032 = vld [vmem:[%s1 + $0x1e50] sm:$0xff]
  %v1033 = vld [vmem:[%s1 + $0x1e58] sm:$0xff]
  %v1034 = vld [vmem:[%s1 + $0x1e60] sm:$0xff]
  %v1035 = vld [vmem:[%s1 + $0x1e68] sm:$0xff]
  %v1036 = vld [vmem:[%s1 + $0x1e70] sm:$0xff]
  %v1037 = vld [vmem:[%s1 + $0x1e78] sm:$0xff]
  %v1038 = vld [vmem:[%s1 + $0x1e80] sm:$0xff]
  %v1039 = vld [vmem:[%s1 + $0x1e88] sm:$0xff]
  %v1040 = vld [vmem:[%s1 + $0x1e90] sm:$0xff]
  %v1041 = vld [vmem:[%s1 + $0x1e98] sm:$0xff]
  %v1042 = vld [vmem:[%s1 + $0x1ea0] sm:$0xff]
  %v1043 = vld [vmem:[%s1 + $0x1ea8] sm:$0xff]
  %v1044 = vld [vmem:[%s1 + $0x1eb0] sm:$0xff]
  %v1045 = vld [vmem:[%s1 + $0x1eb8] sm:$0xff]
  %v1046 = vld [vmem:[%s1 + $0x1ec0] sm:$0xff]
  %v1047 = vld [vmem:[%s1 + $0x1ec8] sm:$0xff]
  %v1048 = vld [vmem:[%s1 + $0x1ed0] sm:$0xff]
  %v1049 = vld [vmem:[%s1 + $0x1ed8] sm:$0xff]
  %v1050 = vld [vmem:[%s1 + $0x1ee0] sm:$0xff]
  %v1051 = vld [vmem:[%s1 + $0x1ee8] sm:$0xff]
  %v1052 = vld [vmem:[%s1 + $0x1ef0] sm:$0xff]
  %v1053 = vld [vmem:[%s1 + $0x1ef8] sm:$0xff]
  %v1054 = vld [vmem:[%s1 + $0x1f00] sm:$0xff]
  %v1055 = vld [vmem:[%s1 + $0x1f08] sm:$0xff]
  %v1056 = vld [vmem:[%s1 + $0x1f10] sm:$0xff]
  %v1057 = vld [vmem:[%s1 + $0x1f18] sm:$0xff]
  %v1058 = vld [vmem:[%s1 + $0x1f20] sm:$0xff]
  %v1059 = vld [vmem:[%s1 + $0x1f28] sm:$0xff]
  %v1060 = vld [vmem:[%s1 + $0x1f30] sm:$0xff]
  %v1061 = vld [vmem:[%s1 + $0x1f38] sm:$0xff]
  %v1062 = vld [vmem:[%s1 + $0x1f40] sm:$0xff]
  %v1063 = vld [vmem:[%s1 + $0x1f48] sm:$0xff]
  %v1064 = vld [vmem:[%s1 + $0x1f50] sm:$0xff]
  %v1065 = vld [vmem:[%s1 + $0x1f58] sm:$0xff]
  %v1066 = vld [vmem:[%s1 + $0x1f60] sm:$0xff]
  %v1067 = vld [vmem:[%s1 + $0x1f68] sm:$0xff]
  %v1068 = vld [vmem:[%s1 + $0x1f70] sm:$0xff]
  %v1069 = vld [vmem:[%s1 + $0x1f78] sm:$0xff]
  %v1070 = vld [vmem:[%s1 + $0x1f80] sm:$0xff]
  %v1071 = vld [vmem:[%s1 + $0x1f88] sm:$0xff]
  %v1072 = vld [vmem:[%s1 + $0x1f90] sm:$0xff]
  %v1073 = vld [vmem:[%s1 + $0x1f98] sm:$0xff]
  %v1074 = vld [vmem:[%s1 + $0x1fa0] sm:$0xff]
  %v1075 = vld [vmem:[%s1 + $0x1fa8] sm:$0xff]
  %v1076 = vld [vmem:[%s1 + $0x1fb0] sm:$0xff]
  %v1077 = vld [vmem:[%s1 + $0x1fb8] sm:$0xff]
  %v1078 = vld [vmem:[%s1 + $0x1fc0] sm:$0xff]
  %v1079 = vld [vmem:[%s1 + $0x1fc8] sm:$0xff]
  %v1080 = vld [vmem:[%s1 + $0x1fd0] sm:$0xff]
  %v1081 = vld [vmem:[%s1 + $0x1fd8] sm:$0xff]
  %v1082 = vld [vmem:[%s1 + $0x1fe0] sm:$0xff]
  %v1083 = vld [vmem:[%s1 + $0x1fe8] sm:$0xff]
  %v1084 = vld [vmem:[%s1 + $0x1ff0] sm:$0xff]
  %v1085 = vld [vmem:[%s1 + $0x1ff8] sm:$0xff]
  %v1086 = vld [vmem:[%s1 + $0x2000] sm:$0xff]
  %v1087 = vld [vmem:[%s1 + $0x2008] sm:$0xff]
  %v1088 = vld [vmem:[%s1 + $0x2010] sm:$0xff]
  %v1089 = vld [vmem:[%s1 + $0x2018] sm:$0xff]
  %v1090 = vld [vmem:[%s1 + $0x2020] sm:$0xff]
  %v1091 = vld [vmem:[%s1 + $0x2028] sm:$0xff]
  %v1092 = vld [vmem:[%s1 + $0x2030] sm:$0xff]
  %v1093 = vld [vmem:[%s1 + $0x2038] sm:$0xff]
  %v1094 = vld [vmem:[%s1 + $0x2040] sm:$0xff]
  %v1095 = vld [vmem:[%s1 + $0x2048] sm:$0xff]
  %v1096 = vld [vmem:[%s1 + $0x2050] sm:$0xff]
  %v1097 = vld [vmem:[%s1 + $0x2058] sm:$0xff]
  %v1098 = vld [vmem:[%s1 + $0x2060] sm:$0xff]
  %v1099 = vld [vmem:[%s1 + $0x2068] sm:$0xff]
  %v1100 = vld [vmem:[%s1 + $0x2070] sm:$0xff]
  %v1101 = vld [vmem:[%s1 + $0x2078] sm:$0xff]
  %v1102 = vld [vmem:[%s1 + $0x2080] sm:$0xff]
  %v1103 = vld [vmem:[%s1 + $0x2088] sm:$0xff]
  %v1104 = vld [vmem:[%s1 + $0x2090] sm:$0xff]
  %v1105 = vld [vmem:[%s1 + $0x2098] sm:$0xff]
  %v1106 = vld [vmem:[%s1 + $0x20a0] sm:$0xff]
  %v1107 = vld [vmem:[%s1 + $0x20a8] sm:$0xff]
  %v1108 = vld [vmem:[%s1 + $0x20b0] sm:$0xff]
  %v1109 = vld [vmem:[%s1 + $0x20b8] sm:$0xff]
  %v1110 = vld [vmem:[%s1 + $0x20c0] sm:$0xff]
  %v1111 = vld [vmem:[%s1 + $0x20c8] sm:$0xff]
  %v1112 = vld [vmem:[%s1 + $0x20d0] sm:$0xff]
  %v1113 = vld [vmem:[%s1 + $0x20d8] sm:$0xff]
  %v1114 = vld [vmem:[%s1 + $0x20e0] sm:$0xff]
  %v1115 = vld [vmem:[%s1 + $0x20e8] sm:$0xff]
  %v1116 = vld [vmem:[%s1 + $0x20f0] sm:$0xff]
  %v1117 = vld [vmem:[%s1 + $0x20f8] sm:$0xff]
  %v1118 = vld [vmem:[%s1 + $0x2100] sm:$0xff]
  %v1119 = vld [vmem:[%s1 + $0x2108] sm:$0xff]
  %v1120 = vld [vmem:[%s1 + $0x2110] sm:$0xff]
  %v1121 = vld [vmem:[%s1 + $0x2118] sm:$0xff]
  %v1122 = vld [vmem:[%s1 + $0x2120] sm:$0xff]
  %v1123 = vld [vmem:[%s1 + $0x2128] sm:$0xff]
  %v1124 = vld [vmem:[%s1 + $0x2130] sm:$0xff]
  %v1125 = vld [vmem:[%s1 + $0x2138] sm:$0xff]
  %v1126 = vld [vmem:[%s1 + $0x2140] sm:$0xff]
  %v1127 = vld [vmem:[%s1 + $0x2148] sm:$0xff]
  %v1128 = vld [vmem:[%s1 + $0x2150] sm:$0xff]
  %v1129 = vld [vmem:[%s1 + $0x2158] sm:$0xff]
  %v1130 = vld [vmem:[%s1 + $0x2160] sm:$0xff]
  %v1131 = vld [vmem:[%s1 + $0x2168] sm:$0xff]
  %v1132 = vld [vmem:[%s1 + $0x2170] sm:$0xff]
  %v1133 = vld [vmem:[%s1 + $0x2178] sm:$0xff]
  %v1134 = vld [vmem:[%s1 + $0x2180] sm:$0xff]
  %v1135 = vld [vmem:[%s1 + $0x2188] sm:$0xff]
  %v1136 = vld [vmem:[%s1 + $0x2190] sm:$0xff]
  %v1137 = vld [vmem:[%s1 + $0x2198] sm:$0xff]
  %v1138 = vld [vmem:[%s1 + $0x21a0] sm:$0xff]
  %v1139 = vld [vmem:[%s1 + $0x21a8] sm:$0xff]
  %v1140 = vld [vmem:[%s1 + $0x21b0] sm:$0xff]
  %v1141 = vld [vmem:[%s1 + $0x21b8] sm:$0xff]
  %v1142 = vld [vmem:[%s1 + $0x21c0] sm:$0xff]
  %v1143 = vld [vmem:[%s1 + $0x21c8] sm:$0xff]
  %v1144 = vld [vmem:[%s1 + $0x21d0] sm:$0xff]
  %v1145 = vld [vmem:[%s1 + $0x21d8] sm:$0xff]
  %v1146 = vld [vmem:[%s1 + $0x21e0] sm:$0xff]
  %v1147 = vld [vmem:[%s1 + $0x21e8] sm:$0xff]
  %v1148 = vld [vmem:[%s1 + $0x21f0] sm:$0xff]
  %v1149 = vld [vmem:[%s1 + $0x21f8] sm:$0xff]
  %v1150 = vld [vmem:[%s1 + $0x2200] sm:$0xff]
  %v1151 = vld [vmem:[%s1 + $0x2208] sm:$0xff]
  %v1152 = vld [vmem:[%s1 + $0x2210] sm:$0xff]
  %v1153 = vld [vmem:[%s1 + $0x2218] sm:$0xff]
  %v1154 = vld [vmem:[%s1 + $0x2220] sm:$0xff]
  %v1155 = vld [vmem:[%s1 + $0x2228] sm:$0xff]
  %v1156 = vld [vmem:[%s1 + $0x2230] sm:$0xff]
  %v1157 = vld [vmem:[%s1 + $0x2238] sm:$0xff]
  %v1158 = vld [vmem:[%s1 + $0x2240] sm:$0xff]
  %v1159 = vld [vmem:[%s1 + $0x2248] sm:$0xff]
  %v1160 = vld [vmem:[%s1 + $0x2250] sm:$0xff]
  %v1161 = vld [vmem:[%s1 + $0x2258] sm:$0xff]
  %v1162 = vld [vmem:[%s1 + $0x2260] sm:$0xff]
  %v1163 = vld [vmem:[%s1 + $0x2268] sm:$0xff]
  %v1164 = vld [vmem:[%s1 + $0x2270] sm:$0xff]
  %v1165 = vld [vmem:[%s1 + $0x2278] sm:$0xff]
  %v1166 = vld [vmem:[%s1 + $0x2280] sm:$0xff]
  %v1167 = vld [vmem:[%s1 + $0x2288] sm:$0xff]
  %v1168 = vld [vmem:[%s1 + $0x2290] sm:$0xff]
  %v1169 = vld [vmem:[%s1 + $0x2298] sm:$0xff]
  %v1170 = vld [vmem:[%s1 + $0x22a0] sm:$0xff]
  %v1171 = vld [vmem:[%s1 + $0x22a8] sm:$0xff]
  %v1172 = vld [vmem:[%s1 + $0x22b0] sm:$0xff]
  %v1173 = vld [vmem:[%s1 + $0x22b8] sm:$0xff]
  %v1174 = vld [vmem:[%s1 + $0x22c0] sm:$0xff]
  %v1175 = vld [vmem:[%s1 + $0x22c8] sm:$0xff]
  %v1176 = vld [vmem:[%s1 + $0x22d0] sm:$0xff]
  %v1177 = vld [vmem:[%s1 + $0x22d8] sm:$0xff]
  %v1178 = vld [vmem:[%s1 + $0x22e0] sm:$0xff]
  %v1179 = vld [vmem:[%s1 + $0x22e8] sm:$0xff]
  %v1180 = vld [vmem:[%s1 + $0x22f0] sm:$0xff]
  %v1181 = vld [vmem:[%s1 + $0x22f8] sm:$0xff]
  %v1182 = vld [vmem:[%s1 + $0x2300] sm:$0xff]
  %v1183 = vld [vmem:[%s1 + $0x2308] sm:$0xff]
  %v1184 = vld [vmem:[%s1 + $0x2310] sm:$0xff]
  %v1185 = vld [vmem:[%s1 + $0x2318] sm:$0xff]
  %v1186 = vld [vmem:[%s1 + $0x2320] sm:$0xff]
  %v1187 = vld [vmem:[%s1 + $0x2328] sm:$0xff]
  %v1188 = vld [vmem:[%s1 + $0x2330] sm:$0xff]
  %v1189 = vld [vmem:[%s1 + $0x2338] sm:$0xff]
  %v1190 = vld [vmem:[%s1 + $0x2340] sm:$0xff]
  %v1191 = vld [vmem:[%s1 + $0x2348] sm:$0xff]
  %v1192 = vld [vmem:[%s1 + $0x2350] sm:$0xff]
  %v1193 = vld [vmem:[%s1 + $0x2358] sm:$0xff]
  %v1194 = vld [vmem:[%s1 + $0x2360] sm:$0xff]
  %v1195 = vld [vmem:[%s1 + $0x2368] sm:$0xff]
  %v1196 = vld [vmem:[%s1 + $0x2370] sm:$0xff]
  %v1197 = vld [vmem:[%s1 + $0x2378] sm:$0xff]
  %v1198 = vld [vmem:[%s1 + $0x2380] sm:$0xff]
  %v1199 = vld [vmem:[%s1 + $0x2388] sm:$0xff]
  %v1200 = vld [vmem:[%s1 + $0x2390] sm:$0xff]
  %v1201 = vld [vmem:[%s1 + $0x2398] sm:$0xff]
  %v1202 = vld [vmem:[%s1 + $0x23a0] sm:$0xff]
  %v1203 = vld [vmem:[%s1 + $0x23a8] sm:$0xff]
  %v1204 = vld [vmem:[%s1 + $0x23b0] sm:$0xff]
  %v1205 = vld [vmem:[%s1 + $0x23b8] sm:$0xff]
  %v1206 = vld [vmem:[%s1 + $0x23c0] sm:$0xff]
  %v1207 = vld [vmem:[%s1 + $0x23c8] sm:$0xff]
  %v1208 = vld [vmem:[%s1 + $0x23d0] sm:$0xff]
  %v1209 = vld [vmem:[%s1 + $0x23d8] sm:$0xff]
  %v1210 = vld [vmem:[%s1 + $0x23e0] sm:$0xff]
  %v1211 = vld [vmem:[%s1 + $0x23e8] sm:$0xff]
  %v1212 = vld [vmem:[%s1 + $0x23f0] sm:$0xff]
  %v1213 = vld [vmem:[%s1 + $0x23f8] sm:$0xff]
  %v1214 = vld [vmem:[%s1 + $0x2400] sm:$0xff]
  %v1215 = vld [vmem:[%s1 + $0x2408] sm:$0xff]
  %v1216 = vld [vmem:[%s1 + $0x2410] sm:$0xff]
  %v1217 = vld [vmem:[%s1 + $0x2418] sm:$0xff]
  %v1218 = vld [vmem:[%s1 + $0x2420] sm:$0xff]
  %v1219 = vld [vmem:[%s1 + $0x2428] sm:$0xff]
  %v1220 = vld [vmem:[%s1 + $0x2430] sm:$0xff]
  %v1221 = vld [vmem:[%s1 + $0x2438] sm:$0xff]
  %v1222 = vld [vmem:[%s1 + $0x2440] sm:$0xff]
  %v1223 = vld [vmem:[%s1 + $0x2448] sm:$0xff]
  %v1224 = vld [vmem:[%s1 + $0x2450] sm:$0xff]
  %v1225 = vld [vmem:[%s1 + $0x2458] sm:$0xff]
  %v1226 = vld [vmem:[%s1 + $0x2460] sm:$0xff]
  %v1227 = vld [vmem:[%s1 + $0x2468] sm:$0xff]
  %v1228 = vld [vmem:[%s1 + $0x2470] sm:$0xff]
  %v1229 = vld [vmem:[%s1 + $0x2478] sm:$0xff]
  %v1230 = vld [vmem:[%s1 + $0x2480] sm:$0xff]
  %v1231 = vld [vmem:[%s1 + $0x2488] sm:$0xff]
  %v1232 = vld [vmem:[%s1 + $0x2490] sm:$0xff]
  %v1233 = vld [vmem:[%s1 + $0x2498] sm:$0xff]
  %v1234 = vld [vmem:[%s1 + $0x24a0] sm:$0xff]
  %v1235 = vld [vmem:[%s1 + $0x24a8] sm:$0xff]
  %v1236 = vld [vmem:[%s1 + $0x24b0] sm:$0xff]
  %v1237 = vld [vmem:[%s1 + $0x24b8] sm:$0xff]
  %v1238 = vld [vmem:[%s1 + $0x24c0] sm:$0xff]
  %v1239 = vld [vmem:[%s1 + $0x24c8] sm:$0xff]
  %v1240 = vld [vmem:[%s1 + $0x24d0] sm:$0xff]
  %v1241 = vld [vmem:[%s1 + $0x24d8] sm:$0xff]
  %v1242 = vld [vmem:[%s1 + $0x24e0] sm:$0xff]
  %v1243 = vld [vmem:[%s1 + $0x24e8] sm:$0xff]
  %v1244 = vld [vmem:[%s1 + $0x24f0] sm:$0xff]
  %v1245 = vld [vmem:[%s1 + $0x24f8] sm:$0xff]
  %v1246 = vld [vmem:[%s1 + $0x2500] sm:$0xff]
  %v1247 = vld [vmem:[%s1 + $0x2508] sm:$0xff]
  %v1248 = vld [vmem:[%s1 + $0x2510] sm:$0xff]
  %v1249 = vld [vmem:[%s1 + $0x2518] sm:$0xff]
  %v1250 = vld [vmem:[%s1 + $0x2520] sm:$0xff]
  %v1251 = vld [vmem:[%s1 + $0x2528] sm:$0xff]
  %v1252 = vld [vmem:[%s1 + $0x2530] sm:$0xff]
  %v1253 = vld [vmem:[%s1 + $0x2538] sm:$0xff]
  %v1254 = vld [vmem:[%s1 + $0x2540] sm:$0xff]
  %v1255 = vld [vmem:[%s1 + $0x2548] sm:$0xff]
  %v1256 = vld [vmem:[%s1 + $0x2550] sm:$0xff]
  %v1257 = vld [vmem:[%s1 + $0x2558] sm:$0xff]
  %v1258 = vld [vmem:[%s1 + $0x2560] sm:$0xff]
  %v1259 = vld [vmem:[%s1 + $0x2568] sm:$0xff]
  %v1260 = vld [vmem:[%s1 + $0x2570] sm:$0xff]
  %v1261 = vld [vmem:[%s1 + $0x2578] sm:$0xff]
  %v1262 = vld [vmem:[%s1 + $0x2580] sm:$0xff]
  %v1263 = vld [vmem:[%s1 + $0x2588] sm:$0xff]
  %v1264 = vld [vmem:[%s1 + $0x2590] sm:$0xff]
  %v1265 = vld [vmem:[%s1 + $0x2598] sm:$0xff]
  %v1266 = vld [vmem:[%s1 + $0x25a0] sm:$0xff]
  %v1267 = vld [vmem:[%s1 + $0x25a8] sm:$0xff]
  %v1268 = vld [vmem:[%s1 + $0x25b0] sm:$0xff]
  %v1269 = vld [vmem:[%s1 + $0x25b8] sm:$0xff]
  %v1270 = vld [vmem:[%s1 + $0x25c0] sm:$0xff]
  %v1271 = vld [vmem:[%s1 + $0x25c8] sm:$0xff]
  %v1272 = vld [vmem:[%s1 + $0x25d0] sm:$0xff]
  %v1273 = vld [vmem:[%s1 + $0x25d8] sm:$0xff]
  %v1274 = vld [vmem:[%s1 + $0x25e0] sm:$0xff]
  %v1275 = vld [vmem:[%s1 + $0x25e8] sm:$0xff]
  %v1276 = vld [vmem:[%s1 + $0x25f0] sm:$0xff]
  %v1277 = vld [vmem:[%s1 + $0x25f8] sm:$0xff]
  %v1278 = vld [vmem:[%s1 + $0x2600] sm:$0xff]
  %v1279 = vld [vmem:[%s1 + $0x2608] sm:$0xff]
  %v1280 = vld [vmem:[%s1 + $0x2610] sm:$0xff]
  %v1281 = vld [vmem:[%s1 + $0x2618] sm:$0xff]
  %v1282 = vld [vmem:[%s1 + $0x2620] sm:$0xff]
  %v1283 = vld [vmem:[%s1 + $0x2628] sm:$0xff]
  %v1284 = vld [vmem:[%s1 + $0x2630] sm:$0xff]
  %v1285 = vld [vmem:[%s1 + $0x2638] sm:$0xff]
  %v1286 = vld [vmem:[%s1 + $0x2640] sm:$0xff]
  %v1287 = vld [vmem:[%s1 + $0x2648] sm:$0xff]
  %v1288 = vld [vmem:[%s1 + $0x2650] sm:$0xff]
  %v1289 = vld [vmem:[%s1 + $0x2658] sm:$0xff]
  %v1290 = vld [vmem:[%s1 + $0x2660] sm:$0xff]
  %v1291 = vld [vmem:[%s1 + $0x2668] sm:$0xff]
  %v1292 = vld [vmem:[%s1 + $0x2670] sm:$0xff]
  %v1293 = vld [vmem:[%s1 + $0x2678] sm:$0xff]
  %v1294 = vld [vmem:[%s1 + $0x2680] sm:$0xff]
  %v1295 = vld [vmem:[%s1 + $0x2688] sm:$0xff]
  %v1296 = vld [vmem:[%s1 + $0x2690] sm:$0xff]
  %v1297 = vld [vmem:[%s1 + $0x2698] sm:$0xff]
  %v1298 = vld [vmem:[%s1 + $0x26a0] sm:$0xff]
  %v1299 = vld [vmem:[%s1 + $0x26a8] sm:$0xff]
  %v1300 = vld [vmem:[%s1 + $0x26b0] sm:$0xff]
  %v1301 = vld [vmem:[%s1 + $0x26b8] sm:$0xff]
  %v1302 = vld [vmem:[%s1 + $0x26c0] sm:$0xff]
  %v1303 = vld [vmem:[%s1 + $0x26c8] sm:$0xff]
  %v1304 = vld [vmem:[%s1 + $0x26d0] sm:$0xff]
  %v1305 = vld [vmem:[%s1 + $0x26d8] sm:$0xff]
  %v1306 = vld [vmem:[%s1 + $0x26e0] sm:$0xff]
  %v1307 = vld [vmem:[%s1 + $0x26e8] sm:$0xff]
  %v1308 = vld [vmem:[%s1 + $0x26f0] sm:$0xff]
  %v1309 = vld [vmem:[%s1 + $0x26f8] sm:$0xff]
  %v1310 = vld [vmem:[%s1 + $0x2700] sm:$0xff]
  %v1311 = vld [vmem:[%s1 + $0x2708] sm:$0xff]
  %v1312 = vld [vmem:[%s1 + $0x2710] sm:$0xff]
  %v1313 = vld [vmem:[%s1 + $0x2718] sm:$0xff]
  %v1314 = vld [vmem:[%s1 + $0x2720] sm:$0xff]
  %v1315 = vld [vmem:[%s1 + $0x2728] sm:$0xff]
  %v1316 = vld [vmem:[%s1 + $0x2730] sm:$0xff]
  %v1317 = vld [vmem:[%s1 + $0x2738] sm:$0xff]
  %v1318 = vld [vmem:[%s1 + $0x2740] sm:$0xff]
  %v1319 = vld [vmem:[%s1 + $0x2748] sm:$0xff]
  %v1320 = vld [vmem:[%s1 + $0x2750] sm:$0xff]
  %v1321 = vld [vmem:[%s1 + $0x2758] sm:$0xff]
  %v1322 = vld [vmem:[%s1 + $0x2760] sm:$0xff]
  %v1323 = vld [vmem:[%s1 + $0x2768] sm:$0xff]
  %v1324 = vld [vmem:[%s1 + $0x2770] sm:$0xff]
  %v1325 = vld [vmem:[%s1 + $0x2778] sm:$0xff]
  %v1326 = vld [vmem:[%s1 + $0x2780] sm:$0xff]
  %v1327 = vld [vmem:[%s1 + $0x2788] sm:$0xff]
  %v1328 = vld [vmem:[%s1 + $0x2790] sm:$0xff]
  %v1329 = vld [vmem:[%s1 + $0x2798] sm:$0xff]
  %v1330 = vld [vmem:[%s1 + $0x27a0] sm:$0xff]
  %v1331 = vld [vmem:[%s1 + $0x27a8] sm:$0xff]
  %v1332 = vld [vmem:[%s1 + $0x27b0] sm:$0xff]
  %v1333 = vld [vmem:[%s1 + $0x27b8] sm:$0xff]
  %v1334 = vld [vmem:[%s1 + $0x27c0] sm:$0xff]
  %v1335 = vld [vmem:[%s1 + $0x27c8] sm:$0xff]
  %v1336 = vld [vmem:[%s1 + $0x27d0] sm:$0xff]
  %v1337 = vld [vmem:[%s1 + $0x27d8] sm:$0xff]
  %v1338 = vld [vmem:[%s1 + $0x27e0] sm:$0xff]
  %v1339 = vld [vmem:[%s1 + $0x27e8] sm:$0xff]
  %v1340 = vld [vmem:[%s1 + $0x27f0] sm:$0xff]
  %v1341 = vld [vmem:[%s1 + $0x27f8] sm:$0xff]
  %v1342 = vld [vmem:[%s1 + $0x2800] sm:$0xff]
  %v1343 = vld [vmem:[%s1 + $0x2808] sm:$0xff]
  %v1344 = vld [vmem:[%s1 + $0x2810] sm:$0xff]
  %v1345 = vld [vmem:[%s1 + $0x2818] sm:$0xff]
  %v1346 = vld [vmem:[%s1 + $0x2820] sm:$0xff]
  %v1347 = vld [vmem:[%s1 + $0x2828] sm:$0xff]
  %v1348 = vld [vmem:[%s1 + $0x2830] sm:$0xff]
  %v1349 = vld [vmem:[%s1 + $0x2838] sm:$0xff]
  %v1350 = vld [vmem:[%s1 + $0x2840] sm:$0xff]
  %v1351 = vld [vmem:[%s1 + $0x2848] sm:$0xff]
  %v1352 = vld [vmem:[%s1 + $0x2850] sm:$0xff]
  %v1353 = vld [vmem:[%s1 + $0x2858] sm:$0xff]
  %v1354 = vld [vmem:[%s1 + $0x2860] sm:$0xff]
  %v1355 = vld [vmem:[%s1 + $0x2868] sm:$0xff]
  %v1356 = vld [vmem:[%s1 + $0x2870] sm:$0xff]
  %v1357 = vld [vmem:[%s1 + $0x2878] sm:$0xff]
  %v1358 = vld [vmem:[%s1 + $0x2880] sm:$0xff]
  %v1359 = vld [vmem:[%s1 + $0x2888] sm:$0xff]
  %v1360 = vld [vmem:[%s1 + $0x2890] sm:$0xff]
  %v1361 = vld [vmem:[%s1 + $0x2898] sm:$0xff]
  %v1362 = vld [vmem:[%s1 + $0x28a0] sm:$0xff]
  %v1363 = vld [vmem:[%s1 + $0x28a8] sm:$0xff]
  %v1364 = vld [vmem:[%s1 + $0x28b0] sm:$0xff]
  %v1365 = vld [vmem:[%s1 + $0x28b8] sm:$0xff]
  %v1366 = vld [vmem:[%s1 + $0x28c0] sm:$0xff]
  %v1367 = vld [vmem:[%s1 + $0x28c8] sm:$0xff]
  %v1368 = vld [vmem:[%s1 + $0x28d0] sm:$0xff]
  %v1369 = vld [vmem:[%s1 + $0x28d8] sm:$0xff]
  %v1370 = vld [vmem:[%s1 + $0x28e0] sm:$0xff]
  %v1371 = vld [vmem:[%s1 + $0x28e8] sm:$0xff]
  %v1372 = vld [vmem:[%s1 + $0x28f0] sm:$0xff]
  %v1373 = vld [vmem:[%s1 + $0x28f8] sm:$0xff]
  %v1374 = vld [vmem:[%s1 + $0x2900] sm:$0xff]
  %v1375 = vld [vmem:[%s1 + $0x2908] sm:$0xff]
  %v1376 = vld [vmem:[%s1 + $0x2910] sm:$0xff]
  %v1377 = vld [vmem:[%s1 + $0x2918] sm:$0xff]
  %v1378 = vld [vmem:[%s1 + $0x2920] sm:$0xff]
  %v1379 = vld [vmem:[%s1 + $0x2928] sm:$0xff]
  %v1380 = vld [vmem:[%s1 + $0x2930] sm:$0xff]
  %v1381 = vld [vmem:[%s1 + $0x2938] sm:$0xff]
  %v1382 = vld [vmem:[%s1 + $0x2940] sm:$0xff]
  %v1383 = vld [vmem:[%s1 + $0x2948] sm:$0xff]
  %v1384 = vld [vmem:[%s1 + $0x2950] sm:$0xff]
  %v1385 = vld [vmem:[%s1 + $0x2958] sm:$0xff]
  %v1386 = vld [vmem:[%s1 + $0x2960] sm:$0xff]
  %v1387 = vld [vmem:[%s1 + $0x2968] sm:$0xff]
  %v1388 = vld [vmem:[%s1 + $0x2970] sm:$0xff]
  %v1389 = vld [vmem:[%s1 + $0x2978] sm:$0xff]
  %v1390 = vld [vmem:[%s1 + $0x2980] sm:$0xff]
  %v1391 = vld [vmem:[%s1 + $0x2988] sm:$0xff]
  %v1392 = vld [vmem:[%s1 + $0x2990] sm:$0xff]
  %v1393 = vld [vmem:[%s1 + $0x2998] sm:$0xff]
  %v1394 = vld [vmem:[%s1 + $0x29a0] sm:$0xff]
  %v1395 = vld [vmem:[%s1 + $0x29a8] sm:$0xff]
  %v1396 = vld [vmem:[%s1 + $0x29b0] sm:$0xff]
  %v1397 = vld [vmem:[%s1 + $0x29b8] sm:$0xff]
  %v1398 = vld [vmem:[%s1 + $0x29c0] sm:$0xff]
  %v1399 = vld [vmem:[%s1 + $0x29c8] sm:$0xff]
  %v1400 = vld [vmem:[%s1 + $0x29d0] sm:$0xff]
  %v1401 = vld [vmem:[%s1 + $0x29d8] sm:$0xff]
  %v1402 = vld [vmem:[%s1 + $0x29e0] sm:$0xff]
  %v1403 = vld [vmem:[%s1 + $0x29e8] sm:$0xff]
  %v1404 = vld [vmem:[%s1 + $0x29f0] sm:$0xff]
  %v1405 = vld [vmem:[%s1 + $0x29f8] sm:$0xff]
  %v1406 = vld [vmem:[%s1 + $0x2a00] sm:$0xff]
  %v1407 = vld [vmem:[%s1 + $0x2a08] sm:$0xff]
  %v1408 = vld [vmem:[%s1 + $0x2a10] sm:$0xff]
  %v1409 = vld [vmem:[%s1 + $0x2a18] sm:$0xff]
  %v1410 = vld [vmem:[%s1 + $0x2a20] sm:$0xff]
  %v1411 = vld [vmem:[%s1 + $0x2a28] sm:$0xff]
  %v1412 = vld [vmem:[%s1 + $0x2a30] sm:$0xff]
  %v1413 = vld [vmem:[%s1 + $0x2a38] sm:$0xff]
  %v1414 = vld [vmem:[%s1 + $0x2a40] sm:$0xff]
  %v1415 = vld [vmem:[%s1 + $0x2a48] sm:$0xff]
  %v1416 = vld [vmem:[%s1 + $0x2a50] sm:$0xff]
  %v1417 = vld [vmem:[%s1 + $0x2a58] sm:$0xff]
  %v1418 = vld [vmem:[%s1 + $0x2a60] sm:$0xff]
  %v1419 = vld [vmem:[%s1 + $0x2a68] sm:$0xff]
  %v1420 = vld [vmem:[%s1 + $0x2a70] sm:$0xff]
  %v1421 = vld [vmem:[%s1 + $0x2a78] sm:$0xff]
  %v1422 = vld [vmem:[%s1 + $0x2a80] sm:$0xff]
  %v1423 = vld [vmem:[%s1 + $0x2a88] sm:$0xff]
  %v1424 = vld [vmem:[%s1 + $0x2a90] sm:$0xff]
  %v1425 = vld [vmem:[%s1 + $0x2a98] sm:$0xff]
  %v1426 = vld [vmem:[%s1 + $0x2aa0] sm:$0xff]
  %v1427 = vld [vmem:[%s1 + $0x2aa8] sm:$0xff]
  %v1428 = vld [vmem:[%s1 + $0x2ab0] sm:$0xff]
  %v1429 = vld [vmem:[%s1 + $0x2ab8] sm:$0xff]
  %v1430 = vld [vmem:[%s1 + $0x2ac0] sm:$0xff]
  %v1431 = vld [vmem:[%s1 + $0x2ac8] sm:$0xff]
  %v1432 = vld [vmem:[%s1 + $0x2ad0] sm:$0xff]
  %v1433 = vld [vmem:[%s1 + $0x2ad8] sm:$0xff]
  %v1434 = vld [vmem:[%s1 + $0x2ae0] sm:$0xff]
  %v1435 = vld [vmem:[%s1 + $0x2ae8] sm:$0xff]
  %v1436 = vld [vmem:[%s1 + $0x2af0] sm:$0xff]
  %v1437 = vld [vmem:[%s1 + $0x2af8] sm:$0xff]
  %v1438 = vld [vmem:[%s1 + $0x2b00] sm:$0xff]
  %v1439 = vld [vmem:[%s1 + $0x2b08] sm:$0xff]
  %v1440 = vld [vmem:[%s1 + $0x2b10] sm:$0xff]
  %v1441 = vld [vmem:[%s1 + $0x2b18] sm:$0xff]
  %v1442 = vld [vmem:[%s1 + $0x2b20] sm:$0xff]
  %v1443 = vld [vmem:[%s1 + $0x2b28] sm:$0xff]
  %v1444 = vld [vmem:[%s1 + $0x2b30] sm:$0xff]
  %v1445 = vld [vmem:[%s1 + $0x2b38] sm:$0xff]
  %v1446 = vld [vmem:[%s1 + $0x2b40] sm:$0xff]
  %v1447 = vld [vmem:[%s1 + $0x2b48] sm:$0xff]
  %v1448 = vld [vmem:[%s1 + $0x2b50] sm:$0xff]
  %v1449 = vld [vmem:[%s1 + $0x2b58] sm:$0xff]
  %v1450 = vld [vmem:[%s1 + $0x2b60] sm:$0xff]
  %v1451 = vld [vmem:[%s1 + $0x2b68] sm:$0xff]
  %v1452 = vld [vmem:[%s1 + $0x2b70] sm:$0xff]
  %v1453 = vld [vmem:[%s1 + $0x2b78] sm:$0xff]
  %v1454 = vld [vmem:[%s1 + $0x2b80] sm:$0xff]
  %v1455 = vld [vmem:[%s1 + $0x2b88] sm:$0xff]
  %v1456 = vld [vmem:[%s1 + $0x2b90] sm:$0xff]
  %v1457 = vld [vmem:[%s1 + $0x2b98] sm:$0xff]
  %v1458 = vld [vmem:[%s1 + $0x2ba0] sm:$0xff]
  %v1459 = vld [vmem:[%s1 + $0x2ba8] sm:$0xff]
  %v1460 = vld [vmem:[%s1 + $0x2bb0] sm:$0xff]
  %v1461 = vld [vmem:[%s1 + $0x2bb8] sm:$0xff]
  %v1462 = vld [vmem:[%s1 + $0x2bc0] sm:$0xff]
  %v1463 = vld [vmem:[%s1 + $0x2bc8] sm:$0xff]
  %v1464 = vld [vmem:[%s1 + $0x2bd0] sm:$0xff]
  %v1465 = vld [vmem:[%s1 + $0x2bd8] sm:$0xff]
  %v1466 = vld [vmem:[%s1 + $0x2be0] sm:$0xff]
  %v1467 = vld [vmem:[%s1 + $0x2be8] sm:$0xff]
  %v1468 = vld [vmem:[%s1 + $0x2bf0] sm:$0xff]
  %v1469 = vld [vmem:[%s1 + $0x2bf8] sm:$0xff]
  %v1470 = vld [vmem:[%s1 + $0x2c00] sm:$0xff]
  %v1471 = vld [vmem:[%s1 + $0x2c08] sm:$0xff]
  %v1472 = vld [vmem:[%s1 + $0x2c10] sm:$0xff]
  %v1473 = vld [vmem:[%s1 + $0x2c18] sm:$0xff]
  %v1474 = vld [vmem:[%s1 + $0x2c20] sm:$0xff]
  %v1475 = vld [vmem:[%s1 + $0x2c28] sm:$0xff]
  %v1476 = vld [vmem:[%s1 + $0x2c30] sm:$0xff]
  %v1477 = vld [vmem:[%s1 + $0x2c38] sm:$0xff]
  %v1478 = vld [vmem:[%s1 + $0x2c40] sm:$0xff]
  %v1479 = vld [vmem:[%s1 + $0x2c48] sm:$0xff]
  %v1480 = vld [vmem:[%s1 + $0x2c50] sm:$0xff]
  %v1481 = vld [vmem:[%s1 + $0x2c58] sm:$0xff]
  %v1482 = vld [vmem:[%s1 + $0x2c60] sm:$0xff]
  %v1483 = vld [vmem:[%s1 + $0x2c68] sm:$0xff]
  %v1484 = vld [vmem:[%s1 + $0x2c70] sm:$0xff]
  %v1485 = vld [vmem:[%s1 + $0x2c78] sm:$0xff]
  %v1486 = vld [vmem:[%s1 + $0x2c80] sm:$0xff]
  %v1487 = vld [vmem:[%s1 + $0x2c88] sm:$0xff]
  %v1488 = vld [vmem:[%s1 + $0x2c90] sm:$0xff]
  %v1489 = vld [vmem:[%s1 + $0x2c98] sm:$0xff]
  %v1490 = vld [vmem:[%s1 + $0x2ca0] sm:$0xff]
  %v1491 = vld [vmem:[%s1 + $0x2ca8] sm:$0xff]
  %v1492 = vld [vmem:[%s1 + $0x2cb0] sm:$0xff]
  %v1493 = vld [vmem:[%s1 + $0x2cb8] sm:$0xff]
  %v1494 = vld [vmem:[%s1 + $0x2cc0] sm:$0xff]
  %v1495 = vld [vmem:[%s1 + $0x2cc8] sm:$0xff]
  %v1496 = vld [vmem:[%s1 + $0x2cd0] sm:$0xff]
  %v1497 = vld [vmem:[%s1 + $0x2cd8] sm:$0xff]
  %v1498 = vld [vmem:[%s1 + $0x2ce0] sm:$0xff]
  %v1499 = vld [vmem:[%s1 + $0x2ce8] sm:$0xff]
  %v1500 = vld [vmem:[%s1 + $0x2cf0] sm:$0xff]
  %v1501 = vld [vmem:[%s1 + $0x2cf8] sm:$0xff]
  %v1502 = vld [vmem:[%s1 + $0x2d00] sm:$0xff]
  %v1503 = vld [vmem:[%s1 + $0x2d08] sm:$0xff]
  %v1504 = vld [vmem:[%s1 + $0x2d10] sm:$0xff]
  %v1505 = vld [vmem:[%s1 + $0x2d18] sm:$0xff]
  %v1506 = vld [vmem:[%s1 + $0x2d20] sm:$0xff]
  %v1507 = vld [vmem:[%s1 + $0x2d28] sm:$0xff]
  %v1508 = vld [vmem:[%s1 + $0x2d30] sm:$0xff]
  %v1509 = vld [vmem:[%s1 + $0x2d38] sm:$0xff]
  %v1510 = vld [vmem:[%s1 + $0x2d40] sm:$0xff]
  %v1511 = vld [vmem:[%s1 + $0x2d48] sm:$0xff]
  %v1512 = vld [vmem:[%s1 + $0x2d50] sm:$0xff]
  %v1513 = vld [vmem:[%s1 + $0x2d58] sm:$0xff]
  %v1514 = vld [vmem:[%s1 + $0x2d60] sm:$0xff]
  %v1515 = vld [vmem:[%s1 + $0x2d68] sm:$0xff]
  %v1516 = vld [vmem:[%s1 + $0x2d70] sm:$0xff]
  %v1517 = vld [vmem:[%s1 + $0x2d78] sm:$0xff]
  %v1518 = vld [vmem:[%s1 + $0x2d80] sm:$0xff]
  %v1519 = vld [vmem:[%s1 + $0x2d88] sm:$0xff]
  %v1520 = vld [vmem:[%s1 + $0x2d90] sm:$0xff]
  %v1521 = vld [vmem:[%s1 + $0x2d98] sm:$0xff]
  %v1522 = vld [vmem:[%s1 + $0x2da0] sm:$0xff]
  %v1523 = vld [vmem:[%s1 + $0x2da8] sm:$0xff]
  %v1524 = vld [vmem:[%s1 + $0x2db0] sm:$0xff]
  %v1525 = vld [vmem:[%s1 + $0x2db8] sm:$0xff]
  %v1526 = vld [vmem:[%s1 + $0x2dc0] sm:$0xff]
  %v1527 = vld [vmem:[%s1 + $0x2dc8] sm:$0xff]
  %v1528 = vld [vmem:[%s1 + $0x2dd0] sm:$0xff]
  %v1529 = vld [vmem:[%s1 + $0x2dd8] sm:$0xff]
  %v1530 = vld [vmem:[%s1 + $0x2de0] sm:$0xff]
  %v1531 = vld [vmem:[%s1 + $0x2de8] sm:$0xff]
  %v1532 = vld [vmem:[%s1 + $0x2df0] sm:$0xff]
  %v1533 = vld [vmem:[%s1 + $0x2df8] sm:$0xff]
  %v1534 = vld [vmem:[%s1 + $0x2e00] sm:$0xff]
  %v1535 = vld [vmem:[%s1 + $0x2e08] sm:$0xff]
  %v1536 = vld [vmem:[%s1 + $0x2e10] sm:$0xff]
  %v1537 = vld [vmem:[%s1 + $0x2e18] sm:$0xff]
  %v1538 = vld [vmem:[%s1 + $0x2e20] sm:$0xff]
  %v1539 = vld [vmem:[%s1 + $0x2e28] sm:$0xff]
  %v1540 = vld [vmem:[%s1 + $0x2e30] sm:$0xff]
  %v1541 = vld [vmem:[%s1 + $0x2e38] sm:$0xff]
  %v1542 = vld [vmem:[%s1 + $0x2e40] sm:$0xff]
  %v1543 = vld [vmem:[%s1 + $0x2e48] sm:$0xff]
  %v1544 = vld [vmem:[%s1 + $0x2e50] sm:$0xff]
  %v1545 = vld [vmem:[%s1 + $0x2e58] sm:$0xff]
  %v1546 = vld [vmem:[%s1 + $0x2e60] sm:$0xff]
  %v1547 = vld [vmem:[%s1 + $0x2e68] sm:$0xff]
  %v1548 = vld [vmem:[%s1 + $0x2e70] sm:$0xff]
  %v1549 = vld [vmem:[%s1 + $0x2e78] sm:$0xff]
  %v1550 = vld [vmem:[%s1 + $0x2e80] sm:$0xff]
  %v1551 = vld [vmem:[%s1 + $0x2e88] sm:$0xff]
  %v1552 = vld [vmem:[%s1 + $0x2e90] sm:$0xff]
  %v1553 = vld [vmem:[%s1 + $0x2e98] sm:$0xff]
  %v1554 = vld [vmem:[%s1 + $0x2ea0] sm:$0xff]
  %v1555 = vld [vmem:[%s1 + $0x2ea8] sm:$0xff]
  %v1556 = vld [vmem:[%s1 + $0x2eb0] sm:$0xff]
  %v1557 = vld [vmem:[%s1 + $0x2eb8] sm:$0xff]
  %v1558 = vld [vmem:[%s1 + $0x2ec0] sm:$0xff]
  %v1559 = vld [vmem:[%s1 + $0x2ec8] sm:$0xff]
  %v1560 = vld [vmem:[%s1 + $0x2ed0] sm:$0xff]
  %v1561 = vld [vmem:[%s1 + $0x2ed8] sm:$0xff]
  %v1562 = vld [vmem:[%s1 + $0x2ee0] sm:$0xff]
  %v1563 = vld [vmem:[%s1 + $0x2ee8] sm:$0xff]
  %v1564 = vld [vmem:[%s1 + $0x2ef0] sm:$0xff]
  %v1565 = vld [vmem:[%s1 + $0x2ef8] sm:$0xff]
  %v1566 = vld [vmem:[%s1 + $0x2f00] sm:$0xff]
  %v1567 = vld [vmem:[%s1 + $0x2f08] sm:$0xff]
  %v1568 = vld [vmem:[%s1 + $0x2f10] sm:$0xff]
  %v1569 = vld [vmem:[%s1 + $0x2f18] sm:$0xff]
  %v1570 = vld [vmem:[%s1 + $0x2f20] sm:$0xff]
  %v1571 = vld [vmem:[%s1 + $0x2f28] sm:$0xff]
  %v1572 = vld [vmem:[%s1 + $0x2f30] sm:$0xff]
  %v1573 = vld [vmem:[%s1 + $0x2f38] sm:$0xff]
  %v1574 = vld [vmem:[%s1 + $0x2f40] sm:$0xff]
  %v1575 = vld [vmem:[%s1 + $0x2f48] sm:$0xff]
  %v1576 = vld [vmem:[%s1 + $0x2f50] sm:$0xff]
  %v1577 = vld [vmem:[%s1 + $0x2f58] sm:$0xff]
  %v1578 = vld [vmem:[%s1 + $0x2f60] sm:$0xff]
  %v1579 = vld [vmem:[%s1 + $0x2f68] sm:$0xff]
  %v1580 = vld [vmem:[%s1 + $0x2f70] sm:$0xff]
  %v1581 = vld [vmem:[%s1 + $0x2f78] sm:$0xff]
  %v1582 = vld [vmem:[%s1 + $0x2f80] sm:$0xff]
  %v1583 = vld [vmem:[%s1 + $0x2f88] sm:$0xff]
  %v1584 = vld [vmem:[%s1 + $0x2f90] sm:$0xff]
  %v1585 = vld [vmem:[%s1 + $0x2f98] sm:$0xff]
  %v1586 = vld [vmem:[%s1 + $0x2fa0] sm:$0xff]
  %v1587 = vld [vmem:[%s1 + $0x2fa8] sm:$0xff]
  %v1588 = vld [vmem:[%s1 + $0x2fb0] sm:$0xff]
  %v1589 = vld [vmem:[%s1 + $0x2fb8] sm:$0xff]
  %v1590 = vld [vmem:[%s1 + $0x2fc0] sm:$0xff]
  %v1591 = vld [vmem:[%s1 + $0x2fc8] sm:$0xff]
  %v1592 = vld [vmem:[%s1 + $0x2fd0] sm:$0xff]
  %v1593 = vld [vmem:[%s1 + $0x2fd8] sm:$0xff]
  %v1594 = vld [vmem:[%s1 + $0x2fe0] sm:$0xff]
  %v1595 = vld [vmem:[%s1 + $0x2fe8] sm:$0xff]
  %v1596 = vld [vmem:[%s1 + $0x2ff0] sm:$0xff]
  %v1597 = vld [vmem:[%s1 + $0x2ff8] sm:$0xff]
  %v1598 = vld [vmem:[%s1 + $0x3000] sm:$0xff]
  %v1599 = vld [vmem:[%s1 + $0x3008] sm:$0xff]
  %v1600 = vld [vmem:[%s1 + $0x3010] sm:$0xff]
  %v1601 = vld [vmem:[%s1 + $0x3018] sm:$0xff]
  %v1602 = vld [vmem:[%s1 + $0x3020] sm:$0xff]
  %v1603 = vld [vmem:[%s1 + $0x3028] sm:$0xff]
  %v1604 = vld [vmem:[%s1 + $0x3030] sm:$0xff]
  %v1605 = vld [vmem:[%s1 + $0x3038] sm:$0xff]
  %v1606 = vld [vmem:[%s1 + $0x3040] sm:$0xff]
  %v1607 = vld [vmem:[%s1 + $0x3048] sm:$0xff]
  %v1608 = vld [vmem:[%s1 + $0x3050] sm:$0xff]
  %v1609 = vld [vmem:[%s1 + $0x3058] sm:$0xff]
  %v1610 = vld [vmem:[%s1 + $0x3060] sm:$0xff]
  %v1611 = vld [vmem:[%s1 + $0x3068] sm:$0xff]
  %v1612 = vld [vmem:[%s1 + $0x3070] sm:$0xff]
  %v1613 = vld [vmem:[%s1 + $0x3078] sm:$0xff]
  %v1614 = vld [vmem:[%s1 + $0x3080] sm:$0xff]
  %v1615 = vld [vmem:[%s1 + $0x3088] sm:$0xff]
  %v1616 = vld [vmem:[%s1 + $0x3090] sm:$0xff]
  %v1617 = vld [vmem:[%s1 + $0x3098] sm:$0xff]
  %v1618 = vld [vmem:[%s1 + $0x30a0] sm:$0xff]
  %v1619 = vld [vmem:[%s1 + $0x30a8] sm:$0xff]
  %v1620 = vld [vmem:[%s1 + $0x30b0] sm:$0xff]
  %v1621 = vld [vmem:[%s1 + $0x30b8] sm:$0xff]
  %v1622 = vld [vmem:[%s1 + $0x30c0] sm:$0xff]
  %v1623 = vld [vmem:[%s1 + $0x30c8] sm:$0xff]
  %v1624 = vld [vmem:[%s1 + $0x30d0] sm:$0xff]
  %v1625 = vld [vmem:[%s1 + $0x30d8] sm:$0xff]
  %v1626 = vld [vmem:[%s1 + $0x30e0] sm:$0xff]
  %v1627 = vld [vmem:[%s1 + $0x30e8] sm:$0xff]
  %v1628 = vld [vmem:[%s1 + $0x30f0] sm:$0xff]
  %v1629 = vld [vmem:[%s1 + $0x30f8] sm:$0xff]
  %v1630 = vld [vmem:[%s1 + $0x3100] sm:$0xff]
  %v1631 = vld [vmem:[%s1 + $0x3108] sm:$0xff]
  %v1632 = vld [vmem:[%s1 + $0x3110] sm:$0xff]
  %v1633 = vld [vmem:[%s1 + $0x3118] sm:$0xff]
  %v1634 = vld [vmem:[%s1 + $0x3120] sm:$0xff]
  %v1635 = vld [vmem:[%s1 + $0x3128] sm:$0xff]
  %v1636 = vld [vmem:[%s1 + $0x3130] sm:$0xff]
  %v1637 = vld [vmem:[%s1 + $0x3138] sm:$0xff]
  %v1638 = vld [vmem:[%s1 + $0x3140] sm:$0xff]
  %v1639 = vld [vmem:[%s1 + $0x3148] sm:$0xff]
  %v1640 = vld [vmem:[%s1 + $0x3150] sm:$0xff]
  %v1641 = vld [vmem:[%s1 + $0x3158] sm:$0xff]
  %v1642 = vld [vmem:[%s1 + $0x3160] sm:$0xff]
  %v1643 = vld [vmem:[%s1 + $0x3168] sm:$0xff]
  %v1644 = vld [vmem:[%s1 + $0x3170] sm:$0xff]
  %v1645 = vld [vmem:[%s1 + $0x3178] sm:$0xff]
  %v1646 = vld [vmem:[%s1 + $0x3180] sm:$0xff]
  %v1647 = vld [vmem:[%s1 + $0x3188] sm:$0xff]
  %v1648 = vld [vmem:[%s1 + $0x3190] sm:$0xff]
  %v1649 = vld [vmem:[%s1 + $0x3198] sm:$0xff]
  %v1650 = vld [vmem:[%s1 + $0x31a0] sm:$0xff]
  %v1651 = vld [vmem:[%s1 + $0x31a8] sm:$0xff]
  %v1652 = vld [vmem:[%s1 + $0x31b0] sm:$0xff]
  %v1653 = vld [vmem:[%s1 + $0x31b8] sm:$0xff]
  %v1654 = vld [vmem:[%s1 + $0x31c0] sm:$0xff]
  %v1655 = vld [vmem:[%s1 + $0x31c8] sm:$0xff]
  %v1656 = vld [vmem:[%s1 + $0x31d0] sm:$0xff]
  %v1657 = vld [vmem:[%s1 + $0x31d8] sm:$0xff]
  %v1658 = vld [vmem:[%s1 + $0x31e0] sm:$0xff]
  %v1659 = vld [vmem:[%s1 + $0x31e8] sm:$0xff]
  %v1660 = vld [vmem:[%s1 + $0x31f0] sm:$0xff]
  %v1661 = vld [vmem:[%s1 + $0x31f8] sm:$0xff]
  %v1662 = vld [vmem:[%s1 + $0x3200] sm:$0xff]
  %v1663 = vld [vmem:[%s1 + $0x3208] sm:$0xff]
  %v1664 = vld [vmem:[%s1 + $0x3210] sm:$0xff]
  %v1665 = vld [vmem:[%s1 + $0x3218] sm:$0xff]
  %v1666 = vld [vmem:[%s1 + $0x3220] sm:$0xff]
  %v1667 = vld [vmem:[%s1 + $0x3228] sm:$0xff]
  %v1668 = vld [vmem:[%s1 + $0x3230] sm:$0xff]
  %v1669 = vld [vmem:[%s1 + $0x3238] sm:$0xff]
  %v1670 = vld [vmem:[%s1 + $0x3240] sm:$0xff]
  %v1671 = vld [vmem:[%s1 + $0x3248] sm:$0xff]
  %v1672 = vld [vmem:[%s1 + $0x3250] sm:$0xff]
  %v1673 = vld [vmem:[%s1 + $0x3258] sm:$0xff]
  %v1674 = vld [vmem:[%s1 + $0x3260] sm:$0xff]
  %v1675 = vld [vmem:[%s1 + $0x3268] sm:$0xff]
  %v1676 = vld [vmem:[%s1 + $0x3270] sm:$0xff]
  %v1677 = vld [vmem:[%s1 + $0x3278] sm:$0xff]
  %v1678 = vld [vmem:[%s1 + $0x3280] sm:$0xff]
  %v1679 = vld [vmem:[%s1 + $0x3288] sm:$0xff]
  %v1680 = vld [vmem:[%s1 + $0x3290] sm:$0xff]
  %v1681 = vld [vmem:[%s1 + $0x3298] sm:$0xff]
  %v1682 = vld [vmem:[%s1 + $0x32a0] sm:$0xff]
  %v1683 = vld [vmem:[%s1 + $0x32a8] sm:$0xff]
  %v1684 = vld [vmem:[%s1 + $0x32b0] sm:$0xff]
  %v1685 = vld [vmem:[%s1 + $0x32b8] sm:$0xff]
  %v1686 = vld [vmem:[%s1 + $0x32c0] sm:$0xff]
  %v1687 = vld [vmem:[%s1 + $0x32c8] sm:$0xff]
  %v1688 = vld [vmem:[%s1 + $0x32d0] sm:$0xff]
  %v1689 = vld [vmem:[%s1 + $0x32d8] sm:$0xff]
  %v1690 = vld [vmem:[%s1 + $0x32e0] sm:$0xff]
  %v1691 = vld [vmem:[%s1 + $0x32e8] sm:$0xff]
  %v1692 = vld [vmem:[%s1 + $0x32f0] sm:$0xff]
  %v1693 = vld [vmem:[%s1 + $0x32f8] sm:$0xff]
  %v1694 = vld [vmem:[%s1 + $0x3300] sm:$0xff]
  %v1695 = vld [vmem:[%s1 + $0x3308] sm:$0xff]
  %v1696 = vld [vmem:[%s1 + $0x3310] sm:$0xff]
  %v1697 = vld [vmem:[%s1 + $0x3318] sm:$0xff]
  %v1698 = vld [vmem:[%s1 + $0x3320] sm:$0xff]
  %v1699 = vld [vmem:[%s1 + $0x3328] sm:$0xff]
  %v1700 = vld [vmem:[%s1 + $0x3330] sm:$0xff]
  %v1701 = vld [vmem:[%s1 + $0x3338] sm:$0xff]
  %v1702 = vld [vmem:[%s1 + $0x3340] sm:$0xff]
  %v1703 = vld [vmem:[%s1 + $0x3348] sm:$0xff]
  %v1704 = vld [vmem:[%s1 + $0x3350] sm:$0xff]
  %v1705 = vld [vmem:[%s1 + $0x3358] sm:$0xff]
  %v1706 = vld [vmem:[%s1 + $0x3360] sm:$0xff]
  %v1707 = vld [vmem:[%s1 + $0x3368] sm:$0xff]
  %v1708 = vld [vmem:[%s1 + $0x3370] sm:$0xff]
  %v1709 = vld [vmem:[%s1 + $0x3378] sm:$0xff]
  %v1710 = vld [vmem:[%s1 + $0x3380] sm:$0xff]
  %v1711 = vld [vmem:[%s1 + $0x3388] sm:$0xff]
  %v1712 = vld [vmem:[%s1 + $0x3390] sm:$0xff]
  %v1713 = vld [vmem:[%s1 + $0x3398] sm:$0xff]
  %v1714 = vld [vmem:[%s1 + $0x33a0] sm:$0xff]
  %v1715 = vld [vmem:[%s1 + $0x33a8] sm:$0xff]
  %v1716 = vld [vmem:[%s1 + $0x33b0] sm:$0xff]
  %v1717 = vld [vmem:[%s1 + $0x33b8] sm:$0xff]
  %v1718 = vld [vmem:[%s1 + $0x33c0] sm:$0xff]
  %v1719 = vld [vmem:[%s1 + $0x33c8] sm:$0xff]
  %v1720 = vld [vmem:[%s1 + $0x33d0] sm:$0xff]
  %v1721 = vld [vmem:[%s1 + $0x33d8] sm:$0xff]
  %v1722 = vld [vmem:[%s1 + $0x33e0] sm:$0xff]
  %v1723 = vld [vmem:[%s1 + $0x33e8] sm:$0xff]
  %v1724 = vld [vmem:[%s1 + $0x33f0] sm:$0xff]
  %v1725 = vld [vmem:[%s1 + $0x33f8] sm:$0xff]
  %v1726 = vld [vmem:[%s1 + $0x3400] sm:$0xff]
  %v1727 = vld [vmem:[%s1 + $0x3408] sm:$0xff]
  %v1728 = vld [vmem:[%s1 + $0x3410] sm:$0xff]
  %v1729 = vld [vmem:[%s1 + $0x3418] sm:$0xff]
  %v1730 = vld [vmem:[%s1 + $0x3420] sm:$0xff]
  %v1731 = vld [vmem:[%s1 + $0x3428] sm:$0xff]
  %v1732 = vld [vmem:[%s1 + $0x3430] sm:$0xff]
  %v1733 = vld [vmem:[%s1 + $0x3438] sm:$0xff]
  %v1734 = vld [vmem:[%s1 + $0x3440] sm:$0xff]
  %v1735 = vld [vmem:[%s1 + $0x3448] sm:$0xff]
  %v1736 = vld [vmem:[%s1 + $0x3450] sm:$0xff]
  %v1737 = vld [vmem:[%s1 + $0x3458] sm:$0xff]
  %v1738 = vld [vmem:[%s1 + $0x3460] sm:$0xff]
  %v1739 = vld [vmem:[%s1 + $0x3468] sm:$0xff]
  %v1740 = vld [vmem:[%s1 + $0x3470] sm:$0xff]
  %v1741 = vld [vmem:[%s1 + $0x3478] sm:$0xff]
  %v1742 = vld [vmem:[%s1 + $0x3480] sm:$0xff]
  %v1743 = vld [vmem:[%s1 + $0x3488] sm:$0xff]
  %v1744 = vld [vmem:[%s1 + $0x3490] sm:$0xff]
  %v1745 = vld [vmem:[%s1 + $0x3498] sm:$0xff]
  %v1746 = vld [vmem:[%s1 + $0x34a0] sm:$0xff]
  %v1747 = vld [vmem:[%s1 + $0x34a8] sm:$0xff]
  %v1748 = vld [vmem:[%s1 + $0x34b0] sm:$0xff]
  %v1749 = vld [vmem:[%s1 + $0x34b8] sm:$0xff]
  %v1750 = vld [vmem:[%s1 + $0x34c0] sm:$0xff]
  %v1751 = vld [vmem:[%s1 + $0x34c8] sm:$0xff]
  %v1752 = vld [vmem:[%s1 + $0x34d0] sm:$0xff]
  %v1753 = vld [vmem:[%s1 + $0x34d8] sm:$0xff]
  %v1754 = vld [vmem:[%s1 + $0x34e0] sm:$0xff]
  %v1755 = vld [vmem:[%s1 + $0x34e8] sm:$0xff]
  %v1756 = vld [vmem:[%s1 + $0x34f0] sm:$0xff]
  %v1757 = vld [vmem:[%s1 + $0x34f8] sm:$0xff]
  %v1758 = vld [vmem:[%s1 + $0x3500] sm:$0xff]
  %v1759 = vld [vmem:[%s1 + $0x3508] sm:$0xff]
  %v1760 = vld [vmem:[%s1 + $0x3510] sm:$0xff]
  %v1761 = vld [vmem:[%s1 + $0x3518] sm:$0xff]
  %v1762 = vld [vmem:[%s1 + $0x3520] sm:$0xff]
  %v1763 = vld [vmem:[%s1 + $0x3528] sm:$0xff]
  %v1764 = vld [vmem:[%s1 + $0x3530] sm:$0xff]
  %v1765 = vld [vmem:[%s1 + $0x3538] sm:$0xff]
  %v1766 = vld [vmem:[%s1 + $0x3540] sm:$0xff]
  %v1767 = vld [vmem:[%s1 + $0x3548] sm:$0xff]
  %v1768 = vld [vmem:[%s1 + $0x3550] sm:$0xff]
  %v1769 = vld [vmem:[%s1 + $0x3558] sm:$0xff]
  %v1770 = vld [vmem:[%s1 + $0x3560] sm:$0xff]
  %v1771 = vld [vmem:[%s1 + $0x3568] sm:$0xff]
  %v1772 = vld [vmem:[%s1 + $0x3570] sm:$0xff]
  %v1773 = vld [vmem:[%s1 + $0x3578] sm:$0xff]
  %v1774 = vld [vmem:[%s1 + $0x3580] sm:$0xff]
  %v1775 = vld [vmem:[%s1 + $0x3588] sm:$0xff]
  %v1776 = vld [vmem:[%s1 + $0x3590] sm:$0xff]
  %v1777 = vld [vmem:[%s1 + $0x3598] sm:$0xff]
  %v1778 = vld [vmem:[%s1 + $0x35a0] sm:$0xff]
  %v1779 = vld [vmem:[%s1 + $0x35a8] sm:$0xff]
  %v1780 = vld [vmem:[%s1 + $0x35b0] sm:$0xff]
  %v1781 = vld [vmem:[%s1 + $0x35b8] sm:$0xff]
  %v1782 = vld [vmem:[%s1 + $0x35c0] sm:$0xff]
  %v1783 = vld [vmem:[%s1 + $0x35c8] sm:$0xff]
  %v1784 = vld [vmem:[%s1 + $0x35d0] sm:$0xff]
  %v1785 = vld [vmem:[%s1 + $0x35d8] sm:$0xff]
  %v1786 = vld [vmem:[%s1 + $0x35e0] sm:$0xff]
  %v1787 = vld [vmem:[%s1 + $0x35e8] sm:$0xff]
  %v1788 = vld [vmem:[%s1 + $0x35f0] sm:$0xff]
  %v1789 = vld [vmem:[%s1 + $0x35f8] sm:$0xff]
  %v1790 = vld [vmem:[%s1 + $0x3600] sm:$0xff]
  %v1791 = vld [vmem:[%s1 + $0x3608] sm:$0xff]
  %v1792 = vld [vmem:[%s1 + $0x3610] sm:$0xff]
  %v1793 = vld [vmem:[%s1 + $0x3618] sm:$0xff]
  %v1794 = vld [vmem:[%s1 + $0x3620] sm:$0xff]
  %v1795 = vld [vmem:[%s1 + $0x3628] sm:$0xff]
  %v1796 = vld [vmem:[%s1 + $0x3630] sm:$0xff]
  %v1797 = vld [vmem:[%s1 + $0x3638] sm:$0xff]
  %v1798 = vld [vmem:[%s1 + $0x3640] sm:$0xff]
  %v1799 = vld [vmem:[%s1 + $0x3648] sm:$0xff]
  %v1800 = vld [vmem:[%s1 + $0x3650] sm:$0xff]
  %v1801 = vld [vmem:[%s1 + $0x3658] sm:$0xff]
  %v1802 = vld [vmem:[%s1 + $0x3660] sm:$0xff]
  %v1803 = vld [vmem:[%s1 + $0x3668] sm:$0xff]
  %v1804 = vld [vmem:[%s1 + $0x3670] sm:$0xff]
  %v1805 = vld [vmem:[%s1 + $0x3678] sm:$0xff]
  %v1806 = vld [vmem:[%s1 + $0x3680] sm:$0xff]
  %v1807 = vld [vmem:[%s1 + $0x3688] sm:$0xff]
  %v1808 = vld [vmem:[%s1 + $0x3690] sm:$0xff]
  %v1809 = vld [vmem:[%s1 + $0x3698] sm:$0xff]
  %v1810 = vld [vmem:[%s1 + $0x36a0] sm:$0xff]
  %v1811 = vld [vmem:[%s1 + $0x36a8] sm:$0xff]
  %v1812 = vld [vmem:[%s1 + $0x36b0] sm:$0xff]
  %v1813 = vld [vmem:[%s1 + $0x36b8] sm:$0xff]
  %v1814 = vld [vmem:[%s1 + $0x36c0] sm:$0xff]
  %v1815 = vld [vmem:[%s1 + $0x36c8] sm:$0xff]
  %v1816 = vld [vmem:[%s1 + $0x36d0] sm:$0xff]
  %v1817 = vld [vmem:[%s1 + $0x36d8] sm:$0xff]
  %v1818 = vld [vmem:[%s1 + $0x36e0] sm:$0xff]
  %v1819 = vld [vmem:[%s1 + $0x36e8] sm:$0xff]
  %v1820 = vld [vmem:[%s1 + $0x36f0] sm:$0xff]
  %v1821 = vld [vmem:[%s1 + $0x36f8] sm:$0xff]
  %v1822 = vld [vmem:[%s1 + $0x3700] sm:$0xff]
  %v1823 = vld [vmem:[%s1 + $0x3708] sm:$0xff]
  %v1824 = vld [vmem:[%s1 + $0x3710] sm:$0xff]
  %v1825 = vld [vmem:[%s1 + $0x3718] sm:$0xff]
  %v1826 = vld [vmem:[%s1 + $0x3720] sm:$0xff]
  %v1827 = vld [vmem:[%s1 + $0x3728] sm:$0xff]
  %v1828 = vld [vmem:[%s1 + $0x3730] sm:$0xff]
  %v1829 = vld [vmem:[%s1 + $0x3738] sm:$0xff]
  %v1830 = vld [vmem:[%s1 + $0x3740] sm:$0xff]
  %v1831 = vld [vmem:[%s1 + $0x3748] sm:$0xff]
  %v1832 = vld [vmem:[%s1 + $0x3750] sm:$0xff]
  %v1833 = vld [vmem:[%s1 + $0x3758] sm:$0xff]
  %v1834 = vld [vmem:[%s1 + $0x3760] sm:$0xff]
  %v1835 = vld [vmem:[%s1 + $0x3768] sm:$0xff]
  %v1836 = vld [vmem:[%s1 + $0x3770] sm:$0xff]
  %v1837 = vld [vmem:[%s1 + $0x3778] sm:$0xff]
  %v1838 = vld [vmem:[%s1 + $0x3780] sm:$0xff]
  %v1839 = vld [vmem:[%s1 + $0x3788] sm:$0xff]
  %v1840 = vld [vmem:[%s1 + $0x3790] sm:$0xff]
  %v1841 = vld [vmem:[%s1 + $0x3798] sm:$0xff]
  %v1842 = vld [vmem:[%s1 + $0x37a0] sm:$0xff]
  %v1843 = vld [vmem:[%s1 + $0x37a8] sm:$0xff]
  %v1844 = vld [vmem:[%s1 + $0x37b0] sm:$0xff]
  %v1845 = vld [vmem:[%s1 + $0x37b8] sm:$0xff]
  %v1846 = vld [vmem:[%s1 + $0x37c0] sm:$0xff]
  %v1847 = vld [vmem:[%s1 + $0x37c8] sm:$0xff]
  %v1848 = vld [vmem:[%s1 + $0x37d0] sm:$0xff]
  %v1849 = vld [vmem:[%s1 + $0x37d8] sm:$0xff]
  %v1850 = vld [vmem:[%s1 + $0x37e0] sm:$0xff]
  %v1851 = vld [vmem:[%s1 + $0x37e8] sm:$0xff]
  %v1852 = vld [vmem:[%s1 + $0x37f0] sm:$0xff]
  %v1853 = vld [vmem:[%s1 + $0x37f8] sm:$0xff]
  %v1854 = vld [vmem:[%s1 + $0x3800] sm:$0xff]
  %v1855 = vld [vmem:[%s1 + $0x3808] sm:$0xff]
  %v1856 = vld [vmem:[%s1 + $0x3810] sm:$0xff]
  %v1857 = vld [vmem:[%s1 + $0x3818] sm:$0xff]
  %v1858 = vld [vmem:[%s1 + $0x3820] sm:$0xff]
  %v1859 = vld [vmem:[%s1 + $0x3828] sm:$0xff]
  %v1860 = vld [vmem:[%s1 + $0x3830] sm:$0xff]
  %v1861 = vld [vmem:[%s1 + $0x3838] sm:$0xff]
  %v1862 = vld [vmem:[%s1 + $0x3840] sm:$0xff]
  %v1863 = vld [vmem:[%s1 + $0x3848] sm:$0xff]
  %v1864 = vld [vmem:[%s1 + $0x3850] sm:$0xff]
  %v1865 = vld [vmem:[%s1 + $0x3858] sm:$0xff]
  %v1866 = vld [vmem:[%s1 + $0x3860] sm:$0xff]
  %v1867 = vld [vmem:[%s1 + $0x3868] sm:$0xff]
  %v1868 = vld [vmem:[%s1 + $0x3870] sm:$0xff]
  %v1869 = vld [vmem:[%s1 + $0x3878] sm:$0xff]
  %v1870 = vld [vmem:[%s1 + $0x3880] sm:$0xff]
  %v1871 = vld [vmem:[%s1 + $0x3888] sm:$0xff]
  %v1872 = vld [vmem:[%s1 + $0x3890] sm:$0xff]
  %v1873 = vld [vmem:[%s1 + $0x3898] sm:$0xff]
  %v1874 = vld [vmem:[%s1 + $0x38a0] sm:$0xff]
  %v1875 = vld [vmem:[%s1 + $0x38a8] sm:$0xff]
  %v1876 = vld [vmem:[%s1 + $0x38b0] sm:$0xff]
  %v1877 = vld [vmem:[%s1 + $0x38b8] sm:$0xff]
  %v1878 = vld [vmem:[%s1 + $0x38c0] sm:$0xff]
  %v1879 = vld [vmem:[%s1 + $0x38c8] sm:$0xff]
  %v1880 = vld [vmem:[%s1 + $0x38d0] sm:$0xff]
  %v1881 = vld [vmem:[%s1 + $0x38d8] sm:$0xff]
  %v1882 = vld [vmem:[%s1 + $0x38e0] sm:$0xff]
  %v1883 = vld [vmem:[%s1 + $0x38e8] sm:$0xff]
  %v1884 = vld [vmem:[%s1 + $0x38f0] sm:$0xff]
  %v1885 = vld [vmem:[%s1 + $0x38f8] sm:$0xff]
  %v1886 = vld [vmem:[%s1 + $0x3900] sm:$0xff]
  %v1887 = vld [vmem:[%s1 + $0x3908] sm:$0xff]
  %v1888 = vld [vmem:[%s1 + $0x3910] sm:$0xff]
  %v1889 = vld [vmem:[%s1 + $0x3918] sm:$0xff]
  %v1890 = vld [vmem:[%s1 + $0x3920] sm:$0xff]
  %v1891 = vld [vmem:[%s1 + $0x3928] sm:$0xff]
  %v1892 = vld [vmem:[%s1 + $0x3930] sm:$0xff]
  %v1893 = vld [vmem:[%s1 + $0x3938] sm:$0xff]
  %v1894 = vld [vmem:[%s1 + $0x3940] sm:$0xff]
  %v1895 = vld [vmem:[%s1 + $0x3948] sm:$0xff]
  %v1896 = vld [vmem:[%s1 + $0x3950] sm:$0xff]
  %v1897 = vld [vmem:[%s1 + $0x3958] sm:$0xff]
  %v1898 = vld [vmem:[%s1 + $0x3960] sm:$0xff]
  %v1899 = vld [vmem:[%s1 + $0x3968] sm:$0xff]
  %v1900 = vld [vmem:[%s1 + $0x3970] sm:$0xff]
  %v1901 = vld [vmem:[%s1 + $0x3978] sm:$0xff]
  %v1902 = vld [vmem:[%s1 + $0x3980] sm:$0xff]
  %v1903 = vld [vmem:[%s1 + $0x3988] sm:$0xff]
  %v1904 = vld [vmem:[%s1 + $0x3990] sm:$0xff]
  %v1905 = vld [vmem:[%s1 + $0x3998] sm:$0xff]
  %v1906 = vld [vmem:[%s1 + $0x39a0] sm:$0xff]
  %v1907 = vld [vmem:[%s1 + $0x39a8] sm:$0xff]
  %v1908 = vld [vmem:[%s1 + $0x39b0] sm:$0xff]
  %v1909 = vld [vmem:[%s1 + $0x39b8] sm:$0xff]
  %v1910 = vld [vmem:[%s1 + $0x39c0] sm:$0xff]
  %v1911 = vld [vmem:[%s1 + $0x39c8] sm:$0xff]
  %v1912 = vld [vmem:[%s1 + $0x39d0] sm:$0xff]
  %v1913 = vld [vmem:[%s1 + $0x39d8] sm:$0xff]
  %v1914 = vld [vmem:[%s1 + $0x39e0] sm:$0xff]
  %v1915 = vld [vmem:[%s1 + $0x39e8] sm:$0xff]
  %v1916 = vld [vmem:[%s1 + $0x39f0] sm:$0xff]
  %v1917 = vld [vmem:[%s1 + $0x39f8] sm:$0xff]
  %v1918 = vld [vmem:[%s1 + $0x3a00] sm:$0xff]
  %v1919 = vld [vmem:[%s1 + $0x3a08] sm:$0xff]
  %v1920 = vld [vmem:[%s1 + $0x3a10] sm:$0xff]
  %v1921 = vld [vmem:[%s1 + $0x3a18] sm:$0xff]
  %v1922 = vld [vmem:[%s1 + $0x3a20] sm:$0xff]
  %v1923 = vld [vmem:[%s1 + $0x3a28] sm:$0xff]
  %v1924 = vld [vmem:[%s1 + $0x3a30] sm:$0xff]
  %v1925 = vld [vmem:[%s1 + $0x3a38] sm:$0xff]
  %v1926 = vld [vmem:[%s1 + $0x3a40] sm:$0xff]
  %v1927 = vld [vmem:[%s1 + $0x3a48] sm:$0xff]
  %v1928 = vld [vmem:[%s1 + $0x3a50] sm:$0xff]
  %v1929 = vld [vmem:[%s1 + $0x3a58] sm:$0xff]
  %v1930 = vld [vmem:[%s1 + $0x3a60] sm:$0xff]
  %v1931 = vld [vmem:[%s1 + $0x3a68] sm:$0xff]
  %v1932 = vld [vmem:[%s1 + $0x3a70] sm:$0xff]
  %v1933 = vld [vmem:[%s1 + $0x3a78] sm:$0xff]
  %v1934 = vld [vmem:[%s1 + $0x3a80] sm:$0xff]
  %v1935 = vld [vmem:[%s1 + $0x3a88] sm:$0xff]
  %v1936 = vld [vmem:[%s1 + $0x3a90] sm:$0xff]
  %v1937 = vld [vmem:[%s1 + $0x3a98] sm:$0xff]
  %v1938 = vld [vmem:[%s1 + $0x3aa0] sm:$0xff]
  %v1939 = vld [vmem:[%s1 + $0x3aa8] sm:$0xff]
  %v1940 = vld [vmem:[%s1 + $0x3ab0] sm:$0xff]
  %v1941 = vld [vmem:[%s1 + $0x3ab8] sm:$0xff]
  %v1942 = vld [vmem:[%s1 + $0x3ac0] sm:$0xff]
  %v1943 = vld [vmem:[%s1 + $0x3ac8] sm:$0xff]
  %v1944 = vld [vmem:[%s1 + $0x3ad0] sm:$0xff]
  %v1945 = vld [vmem:[%s1 + $0x3ad8] sm:$0xff]
  %v1946 = vld [vmem:[%s1 + $0x3ae0] sm:$0xff]
  %v1947 = vld [vmem:[%s1 + $0x3ae8] sm:$0xff]
  %v1948 = vld [vmem:[%s1 + $0x3af0] sm:$0xff]
  %v1949 = vld [vmem:[%s1 + $0x3af8] sm:$0xff]
  %v1950 = vld [vmem:[%s1 + $0x3b00] sm:$0xff]
  %v1951 = vld [vmem:[%s1 + $0x3b08] sm:$0xff]
  %v1952 = vld [vmem:[%s1 + $0x3b10] sm:$0xff]
  %v1953 = vld [vmem:[%s1 + $0x3b18] sm:$0xff]
  %v1954 = vld [vmem:[%s1 + $0x3b20] sm:$0xff]
  %v1955 = vld [vmem:[%s1 + $0x3b28] sm:$0xff]
  %v1956 = vld [vmem:[%s1 + $0x3b30] sm:$0xff]
  %v1957 = vld [vmem:[%s1 + $0x3b38] sm:$0xff]
  %v1958 = vld [vmem:[%s1 + $0x3b40] sm:$0xff]
  %v1959 = vld [vmem:[%s1 + $0x3b48] sm:$0xff]
  %v1960 = vld [vmem:[%s1 + $0x3b50] sm:$0xff]
  %v1961 = vld [vmem:[%s1 + $0x3b58] sm:$0xff]
  %v1962 = vld [vmem:[%s1 + $0x3b60] sm:$0xff]
  %v1963 = vld [vmem:[%s1 + $0x3b68] sm:$0xff]
  %v1964 = vld [vmem:[%s1 + $0x3b70] sm:$0xff]
  %v1965 = vld [vmem:[%s1 + $0x3b78] sm:$0xff]
  %v1966 = vld [vmem:[%s1 + $0x3b80] sm:$0xff]
  %v1967 = vld [vmem:[%s1 + $0x3b88] sm:$0xff]
  %v1968 = vld [vmem:[%s1 + $0x3b90] sm:$0xff]
  %v1969 = vld [vmem:[%s1 + $0x3b98] sm:$0xff]
  %v1970 = vld [vmem:[%s1 + $0x3ba0] sm:$0xff]
  %v1971 = vld [vmem:[%s1 + $0x3ba8] sm:$0xff]
  %v1972 = vld [vmem:[%s1 + $0x3bb0] sm:$0xff]
  %v1973 = vld [vmem:[%s1 + $0x3bb8] sm:$0xff]
  %v1974 = vld [vmem:[%s1 + $0x3bc0] sm:$0xff]
  %v1975 = vld [vmem:[%s1 + $0x3bc8] sm:$0xff]
  %v1976 = vld [vmem:[%s1 + $0x3bd0] sm:$0xff]
  %v1977 = vld [vmem:[%s1 + $0x3bd8] sm:$0xff]
  %v1978 = vld [vmem:[%s1 + $0x3be0] sm:$0xff]
  %v1979 = vld [vmem:[%s1 + $0x3be8] sm:$0xff]
  %v1980 = vld [vmem:[%s1 + $0x3bf0] sm:$0xff]
  %v1981 = vld [vmem:[%s1 + $0x3bf8] sm:$0xff]
  %v1982 = vld [vmem:[%s1 + $0x3c00] sm:$0xff]
  %v1983 = vld [vmem:[%s1 + $0x3c08] sm:$0xff]
  %v1984 = vld [vmem:[%s1 + $0x3c10] sm:$0xff]
  %v1985 = vld [vmem:[%s1 + $0x3c18] sm:$0xff]
  %v1986 = vld [vmem:[%s1 + $0x3c20] sm:$0xff]
  %v1987 = vld [vmem:[%s1 + $0x3c28] sm:$0xff]
  %v1988 = vld [vmem:[%s1 + $0x3c30] sm:$0xff]
  %v1989 = vld [vmem:[%s1 + $0x3c38] sm:$0xff]
  %v1990 = vld [vmem:[%s1 + $0x3c40] sm:$0xff]
  %v1991 = vld [vmem:[%s1 + $0x3c48] sm:$0xff]
  %v1992 = vld [vmem:[%s1 + $0x3c50] sm:$0xff]
  %v1993 = vld [vmem:[%s1 + $0x3c58] sm:$0xff]
  %v1994 = vld [vmem:[%s1 + $0x3c60] sm:$0xff]
  %v1995 = vld [vmem:[%s1 + $0x3c68] sm:$0xff]
  %v1996 = vld [vmem:[%s1 + $0x3c70] sm:$0xff]
  %v1997 = vld [vmem:[%s1 + $0x3c78] sm:$0xff]
  %v1998 = vld [vmem:[%s1 + $0x3c80] sm:$0xff]
  %v1999 = vld [vmem:[%s1 + $0x3c88] sm:$0xff]
  %v2000 = vld [vmem:[%s1 + $0x3c90] sm:$0xff]
  %v2001 = vld [vmem:[%s1 + $0x3c98] sm:$0xff]
  %v2002 = vld [vmem:[%s1 + $0x3ca0] sm:$0xff]
  %v2003 = vld [vmem:[%s1 + $0x3ca8] sm:$0xff]
  %v2004 = vld [vmem:[%s1 + $0x3cb0] sm:$0xff]
  %v2005 = vld [vmem:[%s1 + $0x3cb8] sm:$0xff]
  %v2006 = vld [vmem:[%s1 + $0x3cc0] sm:$0xff]
  %v2007 = vld [vmem:[%s1 + $0x3cc8] sm:$0xff]
  %v2008 = vld [vmem:[%s1 + $0x3cd0] sm:$0xff]
  %v2009 = vld [vmem:[%s1 + $0x3cd8] sm:$0xff]
  %v2010 = vld [vmem:[%s1 + $0x3ce0] sm:$0xff]
  %v2011 = vld [vmem:[%s1 + $0x3ce8] sm:$0xff]
  %v2012 = vld [vmem:[%s1 + $0x3cf0] sm:$0xff]
  %v2013 = vld [vmem:[%s1 + $0x3cf8] sm:$0xff]
  %v2014 = vld [vmem:[%s1 + $0x3d00] sm:$0xff]
  %v2015 = vld [vmem:[%s1 + $0x3d08] sm:$0xff]
  %v2016 = vld [vmem:[%s1 + $0x3d10] sm:$0xff]
  %v2017 = vld [vmem:[%s1 + $0x3d18] sm:$0xff]
  %v2018 = vld [vmem:[%s1 + $0x3d20] sm:$0xff]
  %v2019 = vld [vmem:[%s1 + $0x3d28] sm:$0xff]
  %v2020 = vld [vmem:[%s1 + $0x3d30] sm:$0xff]
  %v2021 = vld [vmem:[%s1 + $0x3d38] sm:$0xff]
  %v2022 = vld [vmem:[%s1 + $0x3d40] sm:$0xff]
  %v2023 = vld [vmem:[%s1 + $0x3d48] sm:$0xff]
  %v2024 = vld [vmem:[%s1 + $0x3d50] sm:$0xff]
  %v2025 = vld [vmem:[%s1 + $0x3d58] sm:$0xff]
  %v2026 = vld [vmem:[%s1 + $0x3d60] sm:$0xff]
  %v2027 = vld [vmem:[%s1 + $0x3d68] sm:$0xff]
  %v2028 = vld [vmem:[%s1 + $0x3d70] sm:$0xff]
  %v2029 = vld [vmem:[%s1 + $0x3d78] sm:$0xff]
  %v2030 = vld [vmem:[%s1 + $0x3d80] sm:$0xff]
  %v2031 = vld [vmem:[%s1 + $0x3d88] sm:$0xff]
  %v2032 = vld [vmem:[%s1 + $0x3d90] sm:$0xff]
  %v2033 = vld [vmem:[%s1 + $0x3d98] sm:$0xff]
  %v2034 = vld [vmem:[%s1 + $0x3da0] sm:$0xff]
  %v2035 = vld [vmem:[%s1 + $0x3da8] sm:$0xff]
  %v2036 = vld [vmem:[%s1 + $0x3db0] sm:$0xff]
  %v2037 = vld [vmem:[%s1 + $0x3db8] sm:$0xff]
  %v2038 = vld [vmem:[%s1 + $0x3dc0] sm:$0xff]
  %v2039 = vld [vmem:[%s1 + $0x3dc8] sm:$0xff]
  %v2040 = vld [vmem:[%s1 + $0x3dd0] sm:$0xff]
  %v2041 = vld [vmem:[%s1 + $0x3dd8] sm:$0xff]
  %v2042 = vld [vmem:[%s1 + $0x3de0] sm:$0xff]
  %v2043 = vld [vmem:[%s1 + $0x3de8] sm:$0xff]
  %v2044 = vld [vmem:[%s1 + $0x3df0] sm:$0xff]
  %v2045 = vld [vmem:[%s1 + $0x3df8] sm:$0xff]
  %v2046 = vld [vmem:[%s1 + $0x3e00] sm:$0xff]
  %v2047 = vld [vmem:[%s1 + $0x3e08] sm:$0xff]
  %v2048 = vld [vmem:[%s1 + $0x3e10] sm:$0xff]
  %v2049 = vld [vmem:[%s1 + $0x3e18] sm:$0xff]
  %v2050 = vld [vmem:[%s1 + $0x3e20] sm:$0xff]
  %v2051 = vld [vmem:[%s1 + $0x3e28] sm:$0xff]
  %v2052 = vld [vmem:[%s1 + $0x3e30] sm:$0xff]
  %v2053 = vld [vmem:[%s1 + $0x3e38] sm:$0xff]
  %v2054 = vld [vmem:[%s1 + $0x3e40] sm:$0xff]
  %v2055 = vld [vmem:[%s1 + $0x3e48] sm:$0xff]
  %v2056 = vld [vmem:[%s1 + $0x3e50] sm:$0xff]
  %v2057 = vld [vmem:[%s1 + $0x3e58] sm:$0xff]
  %v2058 = vld [vmem:[%s1 + $0x3e60] sm:$0xff]
  %v2059 = vld [vmem:[%s1 + $0x3e68] sm:$0xff]
  %v2060 = vld [vmem:[%s1 + $0x3e70] sm:$0xff]
  %v2061 = vld [vmem:[%s1 + $0x3e78] sm:$0xff]
  %v2062 = vld [vmem:[%s1 + $0x3e80] sm:$0xff]
  %v2063 = vld [vmem:[%s1 + $0x3e88] sm:$0xff]
  %v2064 = vld [vmem:[%s1 + $0x3e90] sm:$0xff]
  %v2065 = vld [vmem:[%s1 + $0x3e98] sm:$0xff]
  %v2066 = vld [vmem:[%s1 + $0x3ea0] sm:$0xff]
  %v2067 = vld [vmem:[%s1 + $0x3ea8] sm:$0xff]
  %v2068 = vld [vmem:[%s1 + $0x3eb0] sm:$0xff]
  %v2069 = vld [vmem:[%s1 + $0x3eb8] sm:$0xff]
  %v2070 = vld [vmem:[%s1 + $0x3ec0] sm:$0xff]
  %v2071 = vld [vmem:[%s1 + $0x3ec8] sm:$0xff]
  %v2072 = vld [vmem:[%s1 + $0x3ed0] sm:$0xff]
  %v2073 = vld [vmem:[%s1 + $0x3ed8] sm:$0xff]
  %v2074 = vld [vmem:[%s1 + $0x3ee0] sm:$0xff]
  %v2075 = vld [vmem:[%s1 + $0x3ee8] sm:$0xff]
  %v2076 = vld [vmem:[%s1 + $0x3ef0] sm:$0xff]
  %v2077 = vld [vmem:[%s1 + $0x3ef8] sm:$0xff]
  %v2078 = vld [vmem:[%s1 + $0x3f00] sm:$0xff]
  %v2079 = vld [vmem:[%s1 + $0x3f08] sm:$0xff]
  %v2080 = vld [vmem:[%s1 + $0x3f10] sm:$0xff]
  %v2081 = vld [vmem:[%s1 + $0x3f18] sm:$0xff]
  %v2082 = vld [vmem:[%s1 + $0x3f20] sm:$0xff]
  %v2083 = vld [vmem:[%s1 + $0x3f28] sm:$0xff]
  %v2084 = vld [vmem:[%s1 + $0x3f30] sm:$0xff]
  %v2085 = vld [vmem:[%s1 + $0x3f38] sm:$0xff]
  %v2086 = vld [vmem:[%s1 + $0x3f40] sm:$0xff]
  %v2087 = vld [vmem:[%s1 + $0x3f48] sm:$0xff]
  %v2088 = vld [vmem:[%s1 + $0x3f50] sm:$0xff]
  %v2089 = vld [vmem:[%s1 + $0x3f58] sm:$0xff]
  %v2090 = vld [vmem:[%s1 + $0x3f60] sm:$0xff]
  %v2091 = vld [vmem:[%s1 + $0x3f68] sm:$0xff]
  %v2092 = vld [vmem:[%s1 + $0x3f70] sm:$0xff]
  %v2093 = vld [vmem:[%s1 + $0x3f78] sm:$0xff]
  %v2094 = vld [vmem:[%s1 + $0x3f80] sm:$0xff]
  %v2095 = vld [vmem:[%s1 + $0x3f88] sm:$0xff]
  %v2096 = vld [vmem:[%s1 + $0x3f90] sm:$0xff]
  %v2097 = vld [vmem:[%s1 + $0x3f98] sm:$0xff]
  %v2098 = vld [vmem:[%s1 + $0x3fa0] sm:$0xff]
  %v2099 = vld [vmem:[%s1 + $0x3fa8] sm:$0xff]
  %v2100 = vld [vmem:[%s1 + $0x3fb0] sm:$0xff]
  %v2101 = vld [vmem:[%s1 + $0x3fb8] sm:$0xff]
  %v2102 = vld [vmem:[%s1 + $0x3fc0] sm:$0xff]
  %v2103 = vld [vmem:[%s1 + $0x3fc8] sm:$0xff]
  %v2104 = vld [vmem:[%s1 + $0x3fd0] sm:$0xff]
  %v2105 = vld [vmem:[%s1 + $0x3fd8] sm:$0xff]
  %v2106 = vld [vmem:[%s1 + $0x3fe0] sm:$0xff]
  %v2107 = vld [vmem:[%s1 + $0x3fe8] sm:$0xff]
  %v2108 = vld [vmem:[%s1 + $0x3ff0] sm:$0xff]
  %v2109 = vld [vmem:[%s1 + $0x3ff8] sm:$0xff]
  %v2110 = vld [vmem:[%s1 + $0x4000] sm:$0xff]
  %v2111 = vld [vmem:[%s1 + $0x4008] sm:$0xff]
  %v2112 = vld [vmem:[%s1 + $0x4010] sm:$0xff]
  %v2113 = vld [vmem:[%s1 + $0x4018] sm:$0xff]
  %v2114 = vld [vmem:[%s1 + $0x4020] sm:$0xff]
  %v2115 = vld [vmem:[%s1 + $0x4028] sm:$0xff]
  %v2116 = vld [vmem:[%s1 + $0x4030] sm:$0xff]
  %v2117 = vld [vmem:[%s1 + $0x4038] sm:$0xff]
  %v2118 = vld [vmem:[%s1 + $0x4040] sm:$0xff]
  %v2119 = vld [vmem:[%s1 + $0x4048] sm:$0xff]
  %v2120 = vld [vmem:[%s1 + $0x4050] sm:$0xff]
  %v2121 = vld [vmem:[%s1 + $0x4058] sm:$0xff]
  %v2122 = vld [vmem:[%s1 + $0x4060] sm:$0xff]
  %v2123 = vld [vmem:[%s1 + $0x4068] sm:$0xff]
  %v2124 = vld [vmem:[%s1 + $0x4070] sm:$0xff]
  %v2125 = vld [vmem:[%s1 + $0x4078] sm:$0xff]
  %v2126 = vld [vmem:[%s1 + $0x4080] sm:$0xff]
  %v2127 = vld [vmem:[%s1 + $0x4088] sm:$0xff]
  %v2128 = vld [vmem:[%s1 + $0x4090] sm:$0xff]
  %v2129 = vld [vmem:[%s1 + $0x4098] sm:$0xff]
  %v2130 = vld [vmem:[%s1 + $0x40a0] sm:$0xff]
  %v2131 = vld [vmem:[%s1 + $0x40a8] sm:$0xff]
  %v2132 = vld [vmem:[%s1 + $0x40b0] sm:$0xff]
  %v2133 = vld [vmem:[%s1 + $0x40b8] sm:$0xff]
  %v2134 = vld [vmem:[%s1 + $0x40c0] sm:$0xff]
  %v2135 = vld [vmem:[%s1 + $0x40c8] sm:$0xff]
  %v2136 = vld [vmem:[%s1 + $0x40d0] sm:$0xff]
  %v2137 = vld [vmem:[%s1 + $0x40d8] sm:$0xff]
  %v2138 = vld [vmem:[%s1 + $0x40e0] sm:$0xff]
  %v2139 = vld [vmem:[%s1 + $0x40e8] sm:$0xff]
  %v2140 = vld [vmem:[%s1 + $0x40f0] sm:$0xff]
  %v2141 = vld [vmem:[%s1 + $0x40f8] sm:$0xff]
  %v2142 = vld [vmem:[%s1 + $0x4100] sm:$0xff]
  %v2143 = vld [vmem:[%s1 + $0x4108] sm:$0xff]
  %v2144 = vld [vmem:[%s1 + $0x4110] sm:$0xff]
  %v2145 = vld [vmem:[%s1 + $0x4118] sm:$0xff]
  %v2146 = vld [vmem:[%s1 + $0x4120] sm:$0xff]
  %v2147 = vld [vmem:[%s1 + $0x4128] sm:$0xff]
  %v2148 = vld [vmem:[%s1 + $0x4130] sm:$0xff]
  %v2149 = vld [vmem:[%s1 + $0x4138] sm:$0xff]
  %v2150 = vld [vmem:[%s1 + $0x4140] sm:$0xff]
  %v2151 = vld [vmem:[%s1 + $0x4148] sm:$0xff]
  %v2152 = vld [vmem:[%s1 + $0x4150] sm:$0xff]
  %v2153 = vld [vmem:[%s1 + $0x4158] sm:$0xff]
  %v2154 = vld [vmem:[%s1 + $0x4160] sm:$0xff]
  %v2155 = vld [vmem:[%s1 + $0x4168] sm:$0xff]
  %v2156 = vld [vmem:[%s1 + $0x4170] sm:$0xff]
  %v2157 = vld [vmem:[%s1 + $0x4178] sm:$0xff]
  %v2158 = vld [vmem:[%s1 + $0x4180] sm:$0xff]
  %v2159 = vld [vmem:[%s1 + $0x4188] sm:$0xff]
  %v2160 = vld [vmem:[%s1 + $0x4190] sm:$0xff]
  %v2161 = vld [vmem:[%s1 + $0x4198] sm:$0xff]
  %v2162 = vld [vmem:[%s1 + $0x41a0] sm:$0xff]
  %v2163 = vld [vmem:[%s1 + $0x41a8] sm:$0xff]
  %v2164 = vld [vmem:[%s1 + $0x41b0] sm:$0xff]
  %v2165 = vld [vmem:[%s1 + $0x41b8] sm:$0xff]
  %v2166 = vld [vmem:[%s1 + $0x41c0] sm:$0xff]
  %v2167 = vld [vmem:[%s1 + $0x41c8] sm:$0xff]
  %v2168 = vld [vmem:[%s1 + $0x41d0] sm:$0xff]
  %v2169 = vld [vmem:[%s1 + $0x41d8] sm:$0xff]
  %v2170 = vld [vmem:[%s1 + $0x41e0] sm:$0xff]
  %v2171 = vld [vmem:[%s1 + $0x41e8] sm:$0xff]
  %v2172 = vld [vmem:[%s1 + $0x41f0] sm:$0xff]
  %v2173 = vld [vmem:[%s1 + $0x41f8] sm:$0xff]
  %v2174 = vld [vmem:[%s1 + $0x4200] sm:$0xff]
  %v2175 = vld [vmem:[%s1 + $0x4208] sm:$0xff]
  %v2176 = vld [vmem:[%s1 + $0x4210] sm:$0xff]
  %v2177 = vld [vmem:[%s1 + $0x4218] sm:$0xff]
  %v2178 = vld [vmem:[%s1 + $0x4220] sm:$0xff]
  %v2179 = vld [vmem:[%s1 + $0x4228] sm:$0xff]
  %v2180 = vld [vmem:[%s1 + $0x4230] sm:$0xff]
  %v2181 = vld [vmem:[%s1 + $0x4238] sm:$0xff]
  %v2182 = vld [vmem:[%s1 + $0x4240] sm:$0xff]
  %v2183 = vld [vmem:[%s1 + $0x4248] sm:$0xff]
  %v2184 = vld [vmem:[%s1 + $0x4250] sm:$0xff]
  %v2185 = vld [vmem:[%s1 + $0x4258] sm:$0xff]
  %v2186 = vld [vmem:[%s1 + $0x4260] sm:$0xff]
  %v2187 = vld [vmem:[%s1 + $0x4268] sm:$0xff]
  %v2188 = vld [vmem:[%s1 + $0x4270] sm:$0xff]
  %v2189 = vld [vmem:[%s1 + $0x4278] sm:$0xff]
  %v2190 = vld [vmem:[%s1 + $0x4280] sm:$0xff]
  %v2191 = vld [vmem:[%s1 + $0x4288] sm:$0xff]
  %v2192 = vld [vmem:[%s1 + $0x4290] sm:$0xff]
  %v2193 = vld [vmem:[%s1 + $0x4298] sm:$0xff]
  %v2194 = vld [vmem:[%s1 + $0x42a0] sm:$0xff]
  %v2195 = vld [vmem:[%s1 + $0x42a8] sm:$0xff]
  %v2196 = vld [vmem:[%s1 + $0x42b0] sm:$0xff]
  %v2197 = vld [vmem:[%s1 + $0x42b8] sm:$0xff]
  %v2198 = vld [vmem:[%s1 + $0x42c0] sm:$0xff]
  %v2199 = vld [vmem:[%s1 + $0x42c8] sm:$0xff]
  %v2200 = vld [vmem:[%s1 + $0x42d0] sm:$0xff]
  %v2201 = vld [vmem:[%s1 + $0x42d8] sm:$0xff]
  %v2202 = vld [vmem:[%s1 + $0x42e0] sm:$0xff]
  %v2203 = vld [vmem:[%s1 + $0x42e8] sm:$0xff]
  %v2204 = vld [vmem:[%s1 + $0x42f0] sm:$0xff]
  %v2205 = vld [vmem:[%s1 + $0x42f8] sm:$0xff]
  %v2206 = vld [vmem:[%s1 + $0x4300] sm:$0xff]
  %v2207 = vld [vmem:[%s1 + $0x4308] sm:$0xff]
  %v2208 = vld [vmem:[%s1 + $0x4310] sm:$0xff]
  %v2209 = vld [vmem:[%s1 + $0x4318] sm:$0xff]
  %v2210 = vld [vmem:[%s1 + $0x4320] sm:$0xff]
  %v2211 = vld [vmem:[%s1 + $0x4328] sm:$0xff]
  %v2212 = vld [vmem:[%s1 + $0x4330] sm:$0xff]
  %v2213 = vld [vmem:[%s1 + $0x4338] sm:$0xff]
  %v2214 = vld [vmem:[%s1 + $0x4340] sm:$0xff]
  %v2215 = vld [vmem:[%s1 + $0x4348] sm:$0xff]
  %v2216 = vld [vmem:[%s1 + $0x4350] sm:$0xff]
  %v2217 = vld [vmem:[%s1 + $0x4358] sm:$0xff]
  %v2218 = vld [vmem:[%s1 + $0x4360] sm:$0xff]
  %v2219 = vld [vmem:[%s1 + $0x4368] sm:$0xff]
  %v2220 = vld [vmem:[%s1 + $0x4370] sm:$0xff]
  %v2221 = vld [vmem:[%s1 + $0x4378] sm:$0xff]
  %v2222 = vld [vmem:[%s1 + $0x4380] sm:$0xff]
  %v2223 = vld [vmem:[%s1 + $0x4388] sm:$0xff]
  %v2224 = vld [vmem:[%s1 + $0x4390] sm:$0xff]
  %v2225 = vld [vmem:[%s1 + $0x4398] sm:$0xff]
  %v2226 = vld [vmem:[%s1 + $0x43a0] sm:$0xff]
  %v2227 = vld [vmem:[%s1 + $0x43a8] sm:$0xff]
  %v2228 = vld [vmem:[%s1 + $0x43b0] sm:$0xff]
  %v2229 = vld [vmem:[%s1 + $0x43b8] sm:$0xff]
  %v2230 = vld [vmem:[%s1 + $0x43c0] sm:$0xff]
  %v2231 = vld [vmem:[%s1 + $0x43c8] sm:$0xff]
  %v2232 = vld [vmem:[%s1 + $0x43d0] sm:$0xff]
  %v2233 = vld [vmem:[%s1 + $0x43d8] sm:$0xff]
  %v2234 = vld [vmem:[%s1 + $0x43e0] sm:$0xff]
  %v2235 = vld [vmem:[%s1 + $0x43e8] sm:$0xff]
  %v2236 = vld [vmem:[%s1 + $0x43f0] sm:$0xff]
  %v2237 = vld [vmem:[%s1 + $0x43f8] sm:$0xff]
  %v2238 = vld [vmem:[%s1 + $0x4400] sm:$0xff]
  %v2239 = vld [vmem:[%s1 + $0x4408] sm:$0xff]
  %v2240 = vld [vmem:[%s1 + $0x4410] sm:$0xff]
  %v2241 = vld [vmem:[%s1 + $0x4418] sm:$0xff]
  %v2242 = vld [vmem:[%s1 + $0x4420] sm:$0xff]
  %v2243 = vld [vmem:[%s1 + $0x4428] sm:$0xff]
  %v2244 = vld [vmem:[%s1 + $0x4430] sm:$0xff]
  %v2245 = vld [vmem:[%s1 + $0x4438] sm:$0xff]
  %v2246 = vld [vmem:[%s1 + $0x4440] sm:$0xff]
  %v2247 = vld [vmem:[%s1 + $0x4448] sm:$0xff]
  %v2248 = vld [vmem:[%s1 + $0x4450] sm:$0xff]
  %v2249 = vld [vmem:[%s1 + $0x4458] sm:$0xff]
  %v2250 = vld [vmem:[%s1 + $0x4460] sm:$0xff]
  %v2251 = vld [vmem:[%s1 + $0x4468] sm:$0xff]
  %v2252 = vld [vmem:[%s1 + $0x4470] sm:$0xff]
  %v2253 = vld [vmem:[%s1 + $0x4478] sm:$0xff]
  %v2254 = vld [vmem:[%s1 + $0x4480] sm:$0xff]
  %v2255 = vld [vmem:[%s1 + $0x4488] sm:$0xff]
  %v2256 = vld [vmem:[%s1 + $0x4490] sm:$0xff]
  %v2257 = vld [vmem:[%s1 + $0x4498] sm:$0xff]
  %v2258 = vld [vmem:[%s1 + $0x44a0] sm:$0xff]
  %v2259 = vld [vmem:[%s1 + $0x44a8] sm:$0xff]
  %v2260 = vld [vmem:[%s1 + $0x44b0] sm:$0xff]
  %v2261 = vld [vmem:[%s1 + $0x44b8] sm:$0xff]
  %v2262 = vld [vmem:[%s1 + $0x44c0] sm:$0xff]
  %v2263 = vld [vmem:[%s1 + $0x44c8] sm:$0xff]
  %v2264 = vld [vmem:[%s1 + $0x44d0] sm:$0xff]
  %v2265 = vld [vmem:[%s1 + $0x44d8] sm:$0xff]
  %v2266 = vld [vmem:[%s1 + $0x44e0] sm:$0xff]
  %v2267 = vld [vmem:[%s1 + $0x44e8] sm:$0xff]
  %v2268 = vld [vmem:[%s1 + $0x44f0] sm:$0xff]
  %v2269 = vld [vmem:[%s1 + $0x44f8] sm:$0xff]
  %v2270 = vld [vmem:[%s1 + $0x4500] sm:$0xff]
  %v2271 = vld [vmem:[%s1 + $0x4508] sm:$0xff]
  %v2272 = vld [vmem:[%s1 + $0x4510] sm:$0xff]
  %v2273 = vld [vmem:[%s1 + $0x4518] sm:$0xff]
  %v2274 = vld [vmem:[%s1 + $0x4520] sm:$0xff]
  %v2275 = vld [vmem:[%s1 + $0x4528] sm:$0xff]
  %v2276 = vld [vmem:[%s1 + $0x4530] sm:$0xff]
  %v2277 = vld [vmem:[%s1 + $0x4538] sm:$0xff]
  %v2278 = vld [vmem:[%s1 + $0x4540] sm:$0xff]
  %v2279 = vld [vmem:[%s1 + $0x4548] sm:$0xff]
  %v2280 = vld [vmem:[%s1 + $0x4550] sm:$0xff]
  %v2281 = vld [vmem:[%s1 + $0x4558] sm:$0xff]
  %v2282 = vld [vmem:[%s1 + $0x4560] sm:$0xff]
  %v2283 = vld [vmem:[%s1 + $0x4568] sm:$0xff]
  %v2284 = vld [vmem:[%s1 + $0x4570] sm:$0xff]
  %v2285 = vld [vmem:[%s1 + $0x4578] sm:$0xff]
  %v2286 = vld [vmem:[%s1 + $0x4580] sm:$0xff]
  %v2287 = vld [vmem:[%s1 + $0x4588] sm:$0xff]
  %v2288 = vld [vmem:[%s1 + $0x4590] sm:$0xff]
  %v2289 = vld [vmem:[%s1 + $0x4598] sm:$0xff]
  %v2290 = vld [vmem:[%s1 + $0x45a0] sm:$0xff]
  %v2291 = vld [vmem:[%s1 + $0x45a8] sm:$0xff]
  %v2292 = vld [vmem:[%s1 + $0x45b0] sm:$0xff]
  %v2293 = vld [vmem:[%s1 + $0x45b8] sm:$0xff]
  %v2294 = vld [vmem:[%s1 + $0x45c0] sm:$0xff]
  %v2295 = vld [vmem:[%s1 + $0x45c8] sm:$0xff]
  %v2296 = vld [vmem:[%s1 + $0x45d0] sm:$0xff]
  %v2297 = vld [vmem:[%s1 + $0x45d8] sm:$0xff]
  %v2298 = vld [vmem:[%s1 + $0x45e0] sm:$0xff]
  %v2299 = vld [vmem:[%s1 + $0x45e8] sm:$0xff]
  %v2300 = vld [vmem:[%s1 + $0x45f0] sm:$0xff]
  %v2301 = vld [vmem:[%s1 + $0x45f8] sm:$0xff]
  %v2302 = vld [vmem:[%s1 + $0x4600] sm:$0xff]
  %v2303 = vld [vmem:[%s1 + $0x4608] sm:$0xff]
  %v2304 = vld [vmem:[%s1 + $0x4610] sm:$0xff]
  %v2305 = vld [vmem:[%s1 + $0x4618] sm:$0xff]
  %v2306 = vld [vmem:[%s1 + $0x4620] sm:$0xff]
  %v2307 = vld [vmem:[%s1 + $0x4628] sm:$0xff]
  %v2308 = vld [vmem:[%s1 + $0x4630] sm:$0xff]
  %v2309 = vld [vmem:[%s1 + $0x4638] sm:$0xff]
  %v2310 = vld [vmem:[%s1 + $0x4640] sm:$0xff]
  %v2311 = vld [vmem:[%s1 + $0x4648] sm:$0xff]
  %v2312 = vld [vmem:[%s1 + $0x4650] sm:$0xff]
  %v2313 = vld [vmem:[%s1 + $0x4658] sm:$0xff]
  %v2314 = vld [vmem:[%s1 + $0x4660] sm:$0xff]
  %v2315 = vld [vmem:[%s1 + $0x4668] sm:$0xff]
  %v2316 = vld [vmem:[%s1 + $0x4670] sm:$0xff]
  %v2317 = vld [vmem:[%s1 + $0x4678] sm:$0xff]
  %v2318 = vld [vmem:[%s1 + $0x4680] sm:$0xff]
  %v2319 = vld [vmem:[%s1 + $0x4688] sm:$0xff]
  %v2320 = vld [vmem:[%s1 + $0x4690] sm:$0xff]
  %v2321 = vld [vmem:[%s1 + $0x4698] sm:$0xff]
  %v2322 = vld [vmem:[%s1 + $0x46a0] sm:$0xff]
  %v2323 = vld [vmem:[%s1 + $0x46a8] sm:$0xff]
  %v2324 = vld [vmem:[%s1 + $0x46b0] sm:$0xff]
  %v2325 = vld [vmem:[%s1 + $0x46b8] sm:$0xff]
  %v2326 = vld [vmem:[%s1 + $0x46c0] sm:$0xff]
  %v2327 = vld [vmem:[%s1 + $0x46c8] sm:$0xff]
  %v2328 = vld [vmem:[%s1 + $0x46d0] sm:$0xff]
  %v2329 = vld [vmem:[%s1 + $0x46d8] sm:$0xff]
  %v2330 = vld [vmem:[%s1 + $0x46e0] sm:$0xff]
  %v2331 = vld [vmem:[%s1 + $0x46e8] sm:$0xff]
  %v2332 = vld [vmem:[%s1 + $0x46f0] sm:$0xff]
  %v2333 = vld [vmem:[%s1 + $0x46f8] sm:$0xff]
  %v2334 = vld [vmem:[%s1 + $0x4700] sm:$0xff]
  %v2335 = vld [vmem:[%s1 + $0x4708] sm:$0xff]
  %v2336 = vld [vmem:[%s1 + $0x4710] sm:$0xff]
  %v2337 = vld [vmem:[%s1 + $0x4718] sm:$0xff]
  %v2338 = vld [vmem:[%s1 + $0x4720] sm:$0xff]
  %v2339 = vld [vmem:[%s1 + $0x4728] sm:$0xff]
  %v2340 = vld [vmem:[%s1 + $0x4730] sm:$0xff]
  %v2341 = vld [vmem:[%s1 + $0x4738] sm:$0xff]
  %v2342 = vld [vmem:[%s1 + $0x4740] sm:$0xff]
  %v2343 = vld [vmem:[%s1 + $0x4748] sm:$0xff]
  %v2344 = vld [vmem:[%s1 + $0x4750] sm:$0xff]
  %v2345 = vld [vmem:[%s1 + $0x4758] sm:$0xff]
  %v2346 = vld [vmem:[%s1 + $0x4760] sm:$0xff]
  %v2347 = vld [vmem:[%s1 + $0x4768] sm:$0xff]
  %v2348 = vld [vmem:[%s1 + $0x4770] sm:$0xff]
  %v2349 = vld [vmem:[%s1 + $0x4778] sm:$0xff]
  %v2350 = vld [vmem:[%s1 + $0x4780] sm:$0xff]
  %v2351 = vld [vmem:[%s1 + $0x4788] sm:$0xff]
  %v2352 = vld [vmem:[%s1 + $0x4790] sm:$0xff]
  %v2353 = vld [vmem:[%s1 + $0x4798] sm:$0xff]
  %v2354 = vld [vmem:[%s1 + $0x47a0] sm:$0xff]
  %v2355 = vld [vmem:[%s1 + $0x47a8] sm:$0xff]
  %v2356 = vld [vmem:[%s1 + $0x47b0] sm:$0xff]
  %v2357 = vld [vmem:[%s1 + $0x47b8] sm:$0xff]
  %v2358 = vld [vmem:[%s1 + $0x47c0] sm:$0xff]
  %v2359 = vld [vmem:[%s1 + $0x47c8] sm:$0xff]
  %v2360 = vld [vmem:[%s1 + $0x47d0] sm:$0xff]
  %v2361 = vld [vmem:[%s1 + $0x47d8] sm:$0xff]
  %v2362 = vld [vmem:[%s1 + $0x47e0] sm:$0xff]
  %v2363 = vld [vmem:[%s1 + $0x47e8] sm:$0xff]
  %v2364 = vld [vmem:[%s1 + $0x47f0] sm:$0xff]
  %v2365 = vld [vmem:[%s1 + $0x47f8] sm:$0xff]
  %v2366 = vld [vmem:[%s1 + $0x4800] sm:$0xff]
  %v2367 = vld [vmem:[%s1 + $0x4808] sm:$0xff]
  %v2368 = vld [vmem:[%s1 + $0x4810] sm:$0xff]
  %v2369 = vld [vmem:[%s1 + $0x4818] sm:$0xff]
  %v2370 = vld [vmem:[%s1 + $0x4820] sm:$0xff]
  %v2371 = vld [vmem:[%s1 + $0x4828] sm:$0xff]
  %v2372 = vld [vmem:[%s1 + $0x4830] sm:$0xff]
  %v2373 = vld [vmem:[%s1 + $0x4838] sm:$0xff]
  %v2374 = vld [vmem:[%s1 + $0x4840] sm:$0xff]
  %v2375 = vld [vmem:[%s1 + $0x4848] sm:$0xff]
  %v2376 = vld [vmem:[%s1 + $0x4850] sm:$0xff]
  %v2377 = vld [vmem:[%s1 + $0x4858] sm:$0xff]
  %v2378 = vld [vmem:[%s1 + $0x4860] sm:$0xff]
  %v2379 = vld [vmem:[%s1 + $0x4868] sm:$0xff]
  %v2380 = vld [vmem:[%s1 + $0x4870] sm:$0xff]
  %v2381 = vld [vmem:[%s1 + $0x4878] sm:$0xff]
  %v2382 = vld [vmem:[%s1 + $0x4880] sm:$0xff]
  %v2383 = vld [vmem:[%s1 + $0x4888] sm:$0xff]
  %v2384 = vld [vmem:[%s1 + $0x4890] sm:$0xff]
  %v2385 = vld [vmem:[%s1 + $0x4898] sm:$0xff]
  %v2386 = vld [vmem:[%s1 + $0x48a0] sm:$0xff]
  %v2387 = vld [vmem:[%s1 + $0x48a8] sm:$0xff]
  %v2388 = vld [vmem:[%s1 + $0x48b0] sm:$0xff]
  %v2389 = vld [vmem:[%s1 + $0x48b8] sm:$0xff]
  %v2390 = vld [vmem:[%s1 + $0x48c0] sm:$0xff]
  %v2391 = vld [vmem:[%s1 + $0x48c8] sm:$0xff]
  %v2392 = vld [vmem:[%s1 + $0x48d0] sm:$0xff]
  %v2393 = vld [vmem:[%s1 + $0x48d8] sm:$0xff]
  %v2394 = vld [vmem:[%s1 + $0x48e0] sm:$0xff]
  %v2395 = vld [vmem:[%s1 + $0x48e8] sm:$0xff]
  %v2396 = vld [vmem:[%s1 + $0x48f0] sm:$0xff]
  %v2397 = vld [vmem:[%s1 + $0x48f8] sm:$0xff]
  %v2398 = vld [vmem:[%s1 + $0x4900] sm:$0xff]
  %v2399 = vld [vmem:[%s1 + $0x4908] sm:$0xff]
  %v2400 = vld [vmem:[%s1 + $0x4910] sm:$0xff]
  %v2401 = vld [vmem:[%s1 + $0x4918] sm:$0xff]
  %v2402 = vld [vmem:[%s1 + $0x4920] sm:$0xff]
  %v2403 = vld [vmem:[%s1 + $0x4928] sm:$0xff]
  %v2404 = vld [vmem:[%s1 + $0x4930] sm:$0xff]
  %v2405 = vld [vmem:[%s1 + $0x4938] sm:$0xff]
  %v2406 = vld [vmem:[%s1 + $0x4940] sm:$0xff]
  %v2407 = vld [vmem:[%s1 + $0x4948] sm:$0xff]
  %v2408 = vld [vmem:[%s1 + $0x4950] sm:$0xff]
  %v2409 = vld [vmem:[%s1 + $0x4958] sm:$0xff]
  %v2410 = vld [vmem:[%s1 + $0x4960] sm:$0xff]
  %v2411 = vld [vmem:[%s1 + $0x4968] sm:$0xff]
  %v2412 = vld [vmem:[%s1 + $0x4970] sm:$0xff]
  %v2413 = vld [vmem:[%s1 + $0x4978] sm:$0xff]
  %v2414 = vld [vmem:[%s1 + $0x4980] sm:$0xff]
  %v2415 = vld [vmem:[%s1 + $0x4988] sm:$0xff]
  %v2416 = vld [vmem:[%s1 + $0x4990] sm:$0xff]
  %v2417 = vld [vmem:[%s1 + $0x4998] sm:$0xff]
  %v2418 = vld [vmem:[%s1 + $0x49a0] sm:$0xff]
  %v2419 = vld [vmem:[%s1 + $0x49a8] sm:$0xff]
  %v2420 = vld [vmem:[%s1 + $0x49b0] sm:$0xff]
  %v2421 = vld [vmem:[%s1 + $0x49b8] sm:$0xff]
  %v2422 = vld [vmem:[%s1 + $0x49c0] sm:$0xff]
  %v2423 = vld [vmem:[%s1 + $0x49c8] sm:$0xff]
  %v2424 = vld [vmem:[%s1 + $0x49d0] sm:$0xff]
  %v2425 = vld [vmem:[%s1 + $0x49d8] sm:$0xff]
  %v2426 = vld [vmem:[%s1 + $0x49e0] sm:$0xff]
  %v2427 = vld [vmem:[%s1 + $0x49e8] sm:$0xff]
  %v2428 = vld [vmem:[%s1 + $0x49f0] sm:$0xff]
  %v2429 = vld [vmem:[%s1 + $0x49f8] sm:$0xff]
  %v2430 = vld [vmem:[%s1 + $0x4a00] sm:$0xff]
  %v2431 = vld [vmem:[%s1 + $0x4a08] sm:$0xff]
  %v2432 = vld [vmem:[%s1 + $0x4a10] sm:$0xff]
  %v2433 = vld [vmem:[%s1 + $0x4a18] sm:$0xff]
  %v2434 = vld [vmem:[%s1 + $0x4a20] sm:$0xff]
  %v2435 = vld [vmem:[%s1 + $0x4a28] sm:$0xff]
  %v2436 = vld [vmem:[%s1 + $0x4a30] sm:$0xff]
  %v2437 = vld [vmem:[%s1 + $0x4a38] sm:$0xff]
  %v2438 = vld [vmem:[%s1 + $0x4a40] sm:$0xff]
  %v2439 = vld [vmem:[%s1 + $0x4a48] sm:$0xff]
  %v2440 = vld [vmem:[%s1 + $0x4a50] sm:$0xff]
  %v2441 = vld [vmem:[%s1 + $0x4a58] sm:$0xff]
  %v2442 = vld [vmem:[%s1 + $0x4a60] sm:$0xff]
  %v2443 = vld [vmem:[%s1 + $0x4a68] sm:$0xff]
  %v2444 = vld [vmem:[%s1 + $0x4a70] sm:$0xff]
  %v2445 = vld [vmem:[%s1 + $0x4a78] sm:$0xff]
  %v2446 = vld [vmem:[%s1 + $0x4a80] sm:$0xff]
  %v2447 = vld [vmem:[%s1 + $0x4a88] sm:$0xff]
  %v2448 = vld [vmem:[%s1 + $0x4a90] sm:$0xff]
  %v2449 = vld [vmem:[%s1 + $0x4a98] sm:$0xff]
  %v2450 = vld [vmem:[%s1 + $0x4aa0] sm:$0xff]
  %v2451 = vld [vmem:[%s1 + $0x4aa8] sm:$0xff]
  %v2452 = vld [vmem:[%s1 + $0x4ab0] sm:$0xff]
  %v2453 = vld [vmem:[%s1 + $0x4ab8] sm:$0xff]
  %v2454 = vld [vmem:[%s1 + $0x4ac0] sm:$0xff]
  %v2455 = vld [vmem:[%s1 + $0x4ac8] sm:$0xff]
  %v2456 = vld [vmem:[%s1 + $0x4ad0] sm:$0xff]
  %v2457 = vld [vmem:[%s1 + $0x4ad8] sm:$0xff]
  %v2458 = vld [vmem:[%s1 + $0x4ae0] sm:$0xff]
  %v2459 = vld [vmem:[%s1 + $0x4ae8] sm:$0xff]
  %v2460 = vld [vmem:[%s1 + $0x4af0] sm:$0xff]
  %v2461 = vld [vmem:[%s1 + $0x4af8] sm:$0xff]
  %v2462 = vld [vmem:[%s1 + $0x4b00] sm:$0xff]
  %v2463 = vld [vmem:[%s1 + $0x4b08] sm:$0xff]
  %v2464 = vld [vmem:[%s1 + $0x4b10] sm:$0xff]
  %v2465 = vld [vmem:[%s1 + $0x4b18] sm:$0xff]
  %v2466 = vld [vmem:[%s1 + $0x4b20] sm:$0xff]
  %v2467 = vld [vmem:[%s1 + $0x4b28] sm:$0xff]
  %v2468 = vld [vmem:[%s1 + $0x4b30] sm:$0xff]
  %v2469 = vld [vmem:[%s1 + $0x4b38] sm:$0xff]
  %v2470 = vld [vmem:[%s1 + $0x4b40] sm:$0xff]
  %v2471 = vld [vmem:[%s1 + $0x4b48] sm:$0xff]
  %v2472 = vld [vmem:[%s1 + $0x4b50] sm:$0xff]
  %v2473 = vld [vmem:[%s1 + $0x4b58] sm:$0xff]
  %v2474 = vld [vmem:[%s1 + $0x4b60] sm:$0xff]
  %v2475 = vld [vmem:[%s1 + $0x4b68] sm:$0xff]
  %v2476 = vld [vmem:[%s1 + $0x4b70] sm:$0xff]
  %v2477 = vld [vmem:[%s1 + $0x4b78] sm:$0xff]
  %v2478 = vld [vmem:[%s1 + $0x4b80] sm:$0xff]
  %v2479 = vld [vmem:[%s1 + $0x4b88] sm:$0xff]
  %v2480 = vld [vmem:[%s1 + $0x4b90] sm:$0xff]
  %v2481 = vld [vmem:[%s1 + $0x4b98] sm:$0xff]
  %v2482 = vld [vmem:[%s1 + $0x4ba0] sm:$0xff]
  %v2483 = vld [vmem:[%s1 + $0x4ba8] sm:$0xff]
  %v2484 = vld [vmem:[%s1 + $0x4bb0] sm:$0xff]
  %v2485 = vld [vmem:[%s1 + $0x4bb8] sm:$0xff]
  %v2486 = vld [vmem:[%s1 + $0x4bc0] sm:$0xff]
  %v2487 = vld [vmem:[%s1 + $0x4bc8] sm:$0xff]
  %v2488 = vld [vmem:[%s1 + $0x4bd0] sm:$0xff]
  %v2489 = vld [vmem:[%s1 + $0x4bd8] sm:$0xff]
  %v2490 = vld [vmem:[%s1 + $0x4be0] sm:$0xff]
  %v2491 = vld [vmem:[%s1 + $0x4be8] sm:$0xff]
  %v2492 = vld [vmem:[%s1 + $0x4bf0] sm:$0xff]
  %v2493 = vld [vmem:[%s1 + $0x4bf8] sm:$0xff]
  %v2494 = vld [vmem:[%s1 + $0x4c00] sm:$0xff]
  %v2495 = vld [vmem:[%s1 + $0x4c08] sm:$0xff]
  %v2496 = vld [vmem:[%s1 + $0x4c10] sm:$0xff]
  %v2497 = vld [vmem:[%s1 + $0x4c18] sm:$0xff]
  %v2498 = vld [vmem:[%s1 + $0x4c20] sm:$0xff]
  %v2499 = vld [vmem:[%s1 + $0x4c28] sm:$0xff]
  %v2500 = vld [vmem:[%s1 + $0x4c30] sm:$0xff]
  %v2501 = vld [vmem:[%s1 + $0x4c38] sm:$0xff]
  %v2502 = vld [vmem:[%s1 + $0x4c40] sm:$0xff]
  %v2503 = vld [vmem:[%s1 + $0x4c48] sm:$0xff]
  %v2504 = vld [vmem:[%s1 + $0x4c50] sm:$0xff]
  %v2505 = vld [vmem:[%s1 + $0x4c58] sm:$0xff]
  %v2506 = vld [vmem:[%s1 + $0x4c60] sm:$0xff]
  %v2507 = vld [vmem:[%s1 + $0x4c68] sm:$0xff]
  %v2508 = vld [vmem:[%s1 + $0x4c70] sm:$0xff]
  %v2509 = vld [vmem:[%s1 + $0x4c78] sm:$0xff]
  %v2510 = vld [vmem:[%s1 + $0x4c80] sm:$0xff]
  %v2511 = vld [vmem:[%s1 + $0x4c88] sm:$0xff]
  %v2512 = vld [vmem:[%s1 + $0x4c90] sm:$0xff]
  %v2513 = vld [vmem:[%s1 + $0x4c98] sm:$0xff]
  %v2514 = vld [vmem:[%s1 + $0x4ca0] sm:$0xff]
  %v2515 = vld [vmem:[%s1 + $0x4ca8] sm:$0xff]
  %v2516 = vld [vmem:[%s1 + $0x4cb0] sm:$0xff]
  %v2517 = vld [vmem:[%s1 + $0x4cb8] sm:$0xff]
  %v2518 = vld [vmem:[%s1 + $0x4cc0] sm:$0xff]
  %v2519 = vld [vmem:[%s1 + $0x4cc8] sm:$0xff]
  %v2520 = vld [vmem:[%s1 + $0x4cd0] sm:$0xff]
  %v2521 = vld [vmem:[%s1 + $0x4cd8] sm:$0xff]
  %v2522 = vld [vmem:[%s1 + $0x4ce0] sm:$0xff]
  %v2523 = vld [vmem:[%s1 + $0x4ce8] sm:$0xff]
  %v2524 = vld [vmem:[%s1 + $0x4cf0] sm:$0xff]
  %v2525 = vld [vmem:[%s1 + $0x4cf8] sm:$0xff]
  %v2526 = vld [vmem:[%s1 + $0x4d00] sm:$0xff]
  %v2527 = vld [vmem:[%s1 + $0x4d08] sm:$0xff]
  %v2528 = vld [vmem:[%s1 + $0x4d10] sm:$0xff]
  %v2529 = vld [vmem:[%s1 + $0x4d18] sm:$0xff]
  %v2530 = vld [vmem:[%s1 + $0x4d20] sm:$0xff]
  %v2531 = vld [vmem:[%s1 + $0x4d28] sm:$0xff]
  %v2532 = vld [vmem:[%s1 + $0x4d30] sm:$0xff]
  %v2533 = vld [vmem:[%s1 + $0x4d38] sm:$0xff]
  %v2534 = vld [vmem:[%s1 + $0x4d40] sm:$0xff]
  %v2535 = vld [vmem:[%s1 + $0x4d48] sm:$0xff]
  %v2536 = vld [vmem:[%s1 + $0x4d50] sm:$0xff]
  %v2537 = vld [vmem:[%s1 + $0x4d58] sm:$0xff]
  %v2538 = vld [vmem:[%s1 + $0x4d60] sm:$0xff]
  %v2539 = vld [vmem:[%s1 + $0x4d68] sm:$0xff]
  %v2540 = vld [vmem:[%s1 + $0x4d70] sm:$0xff]
  %v2541 = vld [vmem:[%s1 + $0x4d78] sm:$0xff]
  %v2542 = vld [vmem:[%s1 + $0x4d80] sm:$0xff]
  %v2543 = vld [vmem:[%s1 + $0x4d88] sm:$0xff]
  %v2544 = vld [vmem:[%s1 + $0x4d90] sm:$0xff]
  %v2545 = vld [vmem:[%s1 + $0x4d98] sm:$0xff]
  %v2546 = vld [vmem:[%s1 + $0x4da0] sm:$0xff]
  %v2547 = vld [vmem:[%s1 + $0x4da8] sm:$0xff]
  %v2548 = vld [vmem:[%s1 + $0x4db0] sm:$0xff]
  %v2549 = vld [vmem:[%s1 + $0x4db8] sm:$0xff]
  %v2550 = vld [vmem:[%s1 + $0x4dc0] sm:$0xff]
  %v2551 = vld [vmem:[%s1 + $0x4dc8] sm:$0xff]
  %v2552 = vld [vmem:[%s1 + $0x4dd0] sm:$0xff]
  %v2553 = vld [vmem:[%s1 + $0x4dd8] sm:$0xff]
  %v2554 = vld [vmem:[%s1 + $0x4de0] sm:$0xff]
  %v2555 = vld [vmem:[%s1 + $0x4de8] sm:$0xff]
  %v2556 = vld [vmem:[%s1 + $0x4df0] sm:$0xff]
  %v2557 = vld [vmem:[%s1 + $0x4df8] sm:$0xff]
  %v2558 = vld [vmem:[%s1 + $0x4e00] sm:$0xff]
  %v2559 = vld [vmem:[%s1 + $0x4e08] sm:$0xff]
  %v2560 = vld [vmem:[%s1 + $0x4e10] sm:$0xff]
  %v2561 = vld [vmem:[%s1 + $0x4e18] sm:$0xff]
  %v2562 = vld [vmem:[%s1 + $0x4e20] sm:$0xff]
  %v2563 = vld [vmem:[%s1 + $0x4e28] sm:$0xff]
  %v2564 = vld [vmem:[%s1 + $0x4e30] sm:$0xff]
  %v2565 = vld [vmem:[%s1 + $0x4e38] sm:$0xff]
  %v2566 = vld [vmem:[%s1 + $0x4e40] sm:$0xff]
  %v2567 = vld [vmem:[%s1 + $0x4e48] sm:$0xff]
  %v2568 = vld [vmem:[%s1 + $0x4e50] sm:$0xff]
  %v2569 = vld [vmem:[%s1 + $0x4e58] sm:$0xff]
  %v2570 = vld [vmem:[%s1 + $0x4e60] sm:$0xff]
  %v2571 = vld [vmem:[%s1 + $0x4e68] sm:$0xff]
  %v2572 = vld [vmem:[%s1 + $0x4e70] sm:$0xff]
  %v2573 = vld [vmem:[%s1 + $0x4e78] sm:$0xff]
  %v2574 = vld [vmem:[%s1 + $0x4e80] sm:$0xff]
  %v2575 = vld [vmem:[%s1 + $0x4e88] sm:$0xff]
  %v2576 = vld [vmem:[%s1 + $0x4e90] sm:$0xff]
  %v2577 = vld [vmem:[%s1 + $0x4e98] sm:$0xff]
  %v2578 = vld [vmem:[%s1 + $0x4ea0] sm:$0xff]
  %v2579 = vld [vmem:[%s1 + $0x4ea8] sm:$0xff]
  %v2580 = vld [vmem:[%s1 + $0x4eb0] sm:$0xff]
  %v2581 = vld [vmem:[%s1 + $0x4eb8] sm:$0xff]
  %v2582 = vld [vmem:[%s1 + $0x4ec0] sm:$0xff]
  %v2583 = vld [vmem:[%s1 + $0x4ec8] sm:$0xff]
  %v2584 = vld [vmem:[%s1 + $0x4ed0] sm:$0xff]
  %v2585 = vld [vmem:[%s1 + $0x4ed8] sm:$0xff]
  %v2586 = vld [vmem:[%s1 + $0x4ee0] sm:$0xff]
  %v2587 = vld [vmem:[%s1 + $0x4ee8] sm:$0xff]
  %v2588 = vld [vmem:[%s1 + $0x4ef0] sm:$0xff]
  %v2589 = vld [vmem:[%s1 + $0x4ef8] sm:$0xff]
  %v2590 = vld [vmem:[%s1 + $0x4f00] sm:$0xff]
  %v2591 = vld [vmem:[%s1 + $0x4f08] sm:$0xff]
  %v2592 = vld [vmem:[%s1 + $0x4f10] sm:$0xff]
  %v2593 = vld [vmem:[%s1 + $0x4f18] sm:$0xff]
  %v2594 = vld [vmem:[%s1 + $0x4f20] sm:$0xff]
  %v2595 = vld [vmem:[%s1 + $0x4f28] sm:$0xff]
  %v2596 = vld [vmem:[%s1 + $0x4f30] sm:$0xff]
  %v2597 = vld [vmem:[%s1 + $0x4f38] sm:$0xff]
  %v2598 = vld [vmem:[%s1 + $0x4f40] sm:$0xff]
  %v2599 = vld [vmem:[%s1 + $0x4f48] sm:$0xff]
  %v2600 = vld [vmem:[%s1 + $0x4f50] sm:$0xff]
  %v2601 = vld [vmem:[%s1 + $0x4f58] sm:$0xff]
  %v2602 = vld [vmem:[%s1 + $0x4f60] sm:$0xff]
  %v2603 = vld [vmem:[%s1 + $0x4f68] sm:$0xff]
  %v2604 = vld [vmem:[%s1 + $0x4f70] sm:$0xff]
  %v2605 = vld [vmem:[%s1 + $0x4f78] sm:$0xff]
  %v2606 = vld [vmem:[%s1 + $0x4f80] sm:$0xff]
  %v2607 = vld [vmem:[%s1 + $0x4f88] sm:$0xff]
  %v2608 = vld [vmem:[%s1 + $0x4f90] sm:$0xff]
  %v2609 = vld [vmem:[%s1 + $0x4f98] sm:$0xff]
  %v2610 = vld [vmem:[%s1 + $0x4fa0] sm:$0xff]
  %v2611 = vld [vmem:[%s1 + $0x4fa8] sm:$0xff]
  %v2612 = vld [vmem:[%s1 + $0x4fb0] sm:$0xff]
  %v2613 = vld [vmem:[%s1 + $0x4fb8] sm:$0xff]
  %v2614 = vld [vmem:[%s1 + $0x4fc0] sm:$0xff]
  %v2615 = vld [vmem:[%s1 + $0x4fc8] sm:$0xff]
  %v2616 = vld [vmem:[%s1 + $0x4fd0] sm:$0xff]
  %v2617 = vld [vmem:[%s1 + $0x4fd8] sm:$0xff]
  %v2618 = vld [vmem:[%s1 + $0x4fe0] sm:$0xff]
  %v2619 = vld [vmem:[%s1 + $0x4fe8] sm:$0xff]
  %v2620 = vld [vmem:[%s1 + $0x4ff0] sm:$0xff]
  %v2621 = vld [vmem:[%s1 + $0x4ff8] sm:$0xff]
  %v2622 = vld [vmem:[%s1 + $0x5000] sm:$0xff]
  %v2623 = vld [vmem:[%s1 + $0x5008] sm:$0xff]
  %v2624 = vld [vmem:[%s1 + $0x5010] sm:$0xff]
  %v2625 = vld [vmem:[%s1 + $0x5018] sm:$0xff]
  %v2626 = vld [vmem:[%s1 + $0x5020] sm:$0xff]
  %v2627 = vld [vmem:[%s1 + $0x5028] sm:$0xff]
  %v2628 = vld [vmem:[%s1 + $0x5030] sm:$0xff]
  %v2629 = vld [vmem:[%s1 + $0x5038] sm:$0xff]
  %v2630 = vld [vmem:[%s1 + $0x5040] sm:$0xff]
  %v2631 = vld [vmem:[%s1 + $0x5048] sm:$0xff]
  %v2632 = vld [vmem:[%s1 + $0x5050] sm:$0xff]
  %v2633 = vld [vmem:[%s1 + $0x5058] sm:$0xff]
  %v2634 = vld [vmem:[%s1 + $0x5060] sm:$0xff]
  %v2635 = vld [vmem:[%s1 + $0x5068] sm:$0xff]
  %v2636 = vld [vmem:[%s1 + $0x5070] sm:$0xff]
  %v2637 = vld [vmem:[%s1 + $0x5078] sm:$0xff]
  %v2638 = vld [vmem:[%s1 + $0x5080] sm:$0xff]
  %v2639 = vld [vmem:[%s1 + $0x5088] sm:$0xff]
  %v2640 = vld [vmem:[%s1 + $0x5090] sm:$0xff]
  %v2641 = vld [vmem:[%s1 + $0x5098] sm:$0xff]
  %v2642 = vld [vmem:[%s1 + $0x50a0] sm:$0xff]
  %v2643 = vld [vmem:[%s1 + $0x50a8] sm:$0xff]
  %v2644 = vld [vmem:[%s1 + $0x50b0] sm:$0xff]
  %v2645 = vld [vmem:[%s1 + $0x50b8] sm:$0xff]
  %v2646 = vld [vmem:[%s1 + $0x50c0] sm:$0xff]
  %v2647 = vld [vmem:[%s1 + $0x50c8] sm:$0xff]
  %v2648 = vld [vmem:[%s1 + $0x50d0] sm:$0xff]
  %v2649 = vld [vmem:[%s1 + $0x50d8] sm:$0xff]
  %v2650 = vld [vmem:[%s1 + $0x50e0] sm:$0xff]
  %v2651 = vld [vmem:[%s1 + $0x50e8] sm:$0xff]
  %v2652 = vld [vmem:[%s1 + $0x50f0] sm:$0xff]
  %v2653 = vld [vmem:[%s1 + $0x50f8] sm:$0xff]
  %v2654 = vld [vmem:[%s1 + $0x5100] sm:$0xff]
  %v2655 = vld [vmem:[%s1 + $0x5108] sm:$0xff]
  %v2656 = vld [vmem:[%s1 + $0x5110] sm:$0xff]
  %v2657 = vld [vmem:[%s1 + $0x5118] sm:$0xff]
  %v2658 = vld [vmem:[%s1 + $0x5120] sm:$0xff]
  %v2659 = vld [vmem:[%s1 + $0x5128] sm:$0xff]
  %v2660 = vld [vmem:[%s1 + $0x5130] sm:$0xff]
  %v2661 = vld [vmem:[%s1 + $0x5138] sm:$0xff]
  %v2662 = vld [vmem:[%s1 + $0x5140] sm:$0xff]
  %v2663 = vld [vmem:[%s1 + $0x5148] sm:$0xff]
  %v2664 = vld [vmem:[%s1 + $0x5150] sm:$0xff]
  %v2665 = vld [vmem:[%s1 + $0x5158] sm:$0xff]
  %v2666 = vld [vmem:[%s1 + $0x5160] sm:$0xff]
  %v2667 = vld [vmem:[%s1 + $0x5168] sm:$0xff]
  %v2668 = vld [vmem:[%s1 + $0x5170] sm:$0xff]
  %v2669 = vld [vmem:[%s1 + $0x5178] sm:$0xff]
  %v2670 = vld [vmem:[%s1 + $0x5180] sm:$0xff]
  %v2671 = vld [vmem:[%s1 + $0x5188] sm:$0xff]
  %v2672 = vld [vmem:[%s1 + $0x5190] sm:$0xff]
  %v2673 = vld [vmem:[%s1 + $0x5198] sm:$0xff]
  %v2674 = vld [vmem:[%s1 + $0x51a0] sm:$0xff]
  %v2675 = vld [vmem:[%s1 + $0x51a8] sm:$0xff]
  %v2676 = vld [vmem:[%s1 + $0x51b0] sm:$0xff]
  %v2677 = vld [vmem:[%s1 + $0x51b8] sm:$0xff]
  %v2678 = vld [vmem:[%s1 + $0x51c0] sm:$0xff]
  %v2679 = vld [vmem:[%s1 + $0x51c8] sm:$0xff]
  %v2680 = vld [vmem:[%s1 + $0x51d0] sm:$0xff]
  %v2681 = vld [vmem:[%s1 + $0x51d8] sm:$0xff]
  %v2682 = vld [vmem:[%s1 + $0x51e0] sm:$0xff]
  %v2683 = vld [vmem:[%s1 + $0x51e8] sm:$0xff]
  %v2684 = vld [vmem:[%s1 + $0x51f0] sm:$0xff]
  %v2685 = vld [vmem:[%s1 + $0x51f8] sm:$0xff]
  %v2686 = vld [vmem:[%s1 + $0x5200] sm:$0xff]
  %v2687 = vld [vmem:[%s1 + $0x5208] sm:$0xff]
  %v2688 = vld [vmem:[%s1 + $0x5210] sm:$0xff]
  %v2689 = vld [vmem:[%s1 + $0x5218] sm:$0xff]
  %v2690 = vld [vmem:[%s1 + $0x5220] sm:$0xff]
  %v2691 = vld [vmem:[%s1 + $0x5228] sm:$0xff]
  %v2692 = vld [vmem:[%s1 + $0x5230] sm:$0xff]
  %v2693 = vld [vmem:[%s1 + $0x5238] sm:$0xff]
  %v2694 = vld [vmem:[%s1 + $0x5240] sm:$0xff]
  %v2695 = vld [vmem:[%s1 + $0x5248] sm:$0xff]
  %v2696 = vld [vmem:[%s1 + $0x5250] sm:$0xff]
  %v2697 = vld [vmem:[%s1 + $0x5258] sm:$0xff]
  %v2698 = vld [vmem:[%s1 + $0x5260] sm:$0xff]
  %v2699 = vld [vmem:[%s1 + $0x5268] sm:$0xff]
  %v2700 = vld [vmem:[%s1 + $0x5270] sm:$0xff]
  %v2701 = vld [vmem:[%s1 + $0x5278] sm:$0xff]
  %v2702 = vld [vmem:[%s1 + $0x5280] sm:$0xff]
  %v2703 = vld [vmem:[%s1 + $0x5288] sm:$0xff]
  %v2704 = vld [vmem:[%s1 + $0x5290] sm:$0xff]
  %v2705 = vld [vmem:[%s1 + $0x5298] sm:$0xff]
  %v2706 = vld [vmem:[%s1 + $0x52a0] sm:$0xff]
  %v2707 = vld [vmem:[%s1 + $0x52a8] sm:$0xff]
  %v2708 = vld [vmem:[%s1 + $0x52b0] sm:$0xff]
  %v2709 = vld [vmem:[%s1 + $0x52b8] sm:$0xff]
  %v2710 = vld [vmem:[%s1 + $0x52c0] sm:$0xff]
  %v2711 = vld [vmem:[%s1 + $0x52c8] sm:$0xff]
  %v2712 = vld [vmem:[%s1 + $0x52d0] sm:$0xff]
  %v2713 = vld [vmem:[%s1 + $0x52d8] sm:$0xff]
  %v2714 = vld [vmem:[%s1 + $0x52e0] sm:$0xff]
  %v2715 = vld [vmem:[%s1 + $0x52e8] sm:$0xff]
  %v2716 = vld [vmem:[%s1 + $0x52f0] sm:$0xff]
  %v2717 = vld [vmem:[%s1 + $0x52f8] sm:$0xff]
  %v2718 = vld [vmem:[%s1 + $0x5300] sm:$0xff]
  %v2719 = vld [vmem:[%s1 + $0x5308] sm:$0xff]
  %v2720 = vld [vmem:[%s1 + $0x5310] sm:$0xff]
  %v2721 = vld [vmem:[%s1 + $0x5318] sm:$0xff]
  %v2722 = vld [vmem:[%s1 + $0x5320] sm:$0xff]
  %v2723 = vld [vmem:[%s1 + $0x5328] sm:$0xff]
  %v2724 = vld [vmem:[%s1 + $0x5330] sm:$0xff]
  %v2725 = vld [vmem:[%s1 + $0x5338] sm:$0xff]
  %v2726 = vld [vmem:[%s1 + $0x5340] sm:$0xff]
  %v2727 = vld [vmem:[%s1 + $0x5348] sm:$0xff]
  %v2728 = vld [vmem:[%s1 + $0x5350] sm:$0xff]
  %v2729 = vld [vmem:[%s1 + $0x5358] sm:$0xff]
  %v2730 = vld [vmem:[%s1 + $0x5360] sm:$0xff]
  %v2731 = vld [vmem:[%s1 + $0x5368] sm:$0xff]
  %v2732 = vld [vmem:[%s1 + $0x5370] sm:$0xff]
  %v2733 = vld [vmem:[%s1 + $0x5378] sm:$0xff]
  %v2734 = vld [vmem:[%s1 + $0x5380] sm:$0xff]
  %v2735 = vld [vmem:[%s1 + $0x5388] sm:$0xff]
  %v2736 = vld [vmem:[%s1 + $0x5390] sm:$0xff]
  %v2737 = vld [vmem:[%s1 + $0x5398] sm:$0xff]
  %v2738 = vld [vmem:[%s1 + $0x53a0] sm:$0xff]
  %v2739 = vld [vmem:[%s1 + $0x53a8] sm:$0xff]
  %v2740 = vld [vmem:[%s1 + $0x53b0] sm:$0xff]
  %v2741 = vld [vmem:[%s1 + $0x53b8] sm:$0xff]
  %v2742 = vld [vmem:[%s1 + $0x53c0] sm:$0xff]
  %v2743 = vld [vmem:[%s1 + $0x53c8] sm:$0xff]
  %v2744 = vld [vmem:[%s1 + $0x53d0] sm:$0xff]
  %v2745 = vld [vmem:[%s1 + $0x53d8] sm:$0xff]
  %v2746 = vld [vmem:[%s1 + $0x53e0] sm:$0xff]
  %v2747 = vld [vmem:[%s1 + $0x53e8] sm:$0xff]
  %v2748 = vld [vmem:[%s1 + $0x53f0] sm:$0xff]
  %v2749 = vld [vmem:[%s1 + $0x53f8] sm:$0xff]
  %v2750 = vld [vmem:[%s2] sm:$0xf]
  %v2752 = vperm.slane %v2750, 0
  %v2753 = vperm.slane %v2750, 1
  %v2754 = vperm.slane %v2750, 2
  %v2755 = vperm.slane %v2750, 3
  %2760 = vmatpush.msra.mxu0 %v122
  %2761 = vmatpush.msra.mxu0 %v118
  %2762 = vmatpush.msra.mxu0 %v114
  %2763 = vmatpush.msra.mxu0 %v110
  %2764 = vmatpush.msra.mxu0 %v106
  %2765 = vmatpush.msra.mxu0 %v102
  %2766 = vmatpush.msra.mxu0 %v98
  %2767 = vmatpush.msra.mxu0 %v94
  %2768 = vmatpush.msra.mxu0 %v90
  %2769 = vmatpush.msra.mxu0 %v86
  %2770 = vmatpush.msra.mxu0 %v82
  %2771 = vmatpush.msra.mxu0 %v78
  %2772 = vmatpush.msra.mxu0 %v74
  %2773 = vmatpush.msra.mxu0 %v70
  %2774 = vmatpush.msra.mxu0 %v66
  %2775 = vmatpush.msra.mxu0 %v62
  %2776 = vmatmul.f32.gmra.mxu0 %v20
  %v2777 = vpop.f32.mrf.mxu0
  %v2778 = vadd.f32 %v2752, %v2777
  %2779 = vdwg.mxu0
  %2780 = vmatpush.msra.mxu0 %v186
  %2781 = vmatpush.msra.mxu0 %v182
  %2782 = vmatpush.msra.mxu0 %v178
  %2783 = vmatpush.msra.mxu0 %v174
  %2784 = vmatpush.msra.mxu0 %v170
  %2785 = vmatpush.msra.mxu0 %v166
  %2786 = vmatpush.msra.mxu0 %v162
  %2787 = vmatpush.msra.mxu0 %v158
  %2788 = vmatpush.msra.mxu0 %v154
  %2789 = vmatpush.msra.mxu0 %v150
  %2790 = vmatpush.msra.mxu0 %v146
  %2791 = vmatpush.msra.mxu0 %v142
  %2792 = vmatpush.msra.mxu0 %v138
  %2793 = vmatpush.msra.mxu0 %v134
  %2794 = vmatpush.msra.mxu0 %v130
  %2795 = vmatpush.msra.mxu0 %v126
  %2796 = vmatmul.f32.gmra.mxu0 %v21
  %v2797 = vpop.f32.mrf.mxu0
  %v2798 = vadd.f32 %v2778, %v2797
  %2799 = vdwg.mxu0
  %2800 = vmatpush.msra.mxu0 %v250
  %2801 = vmatpush.msra.mxu0 %v246
  %2802 = vmatpush.msra.mxu0 %v242
  %2803 = vmatpush.msra.mxu0 %v238
  %2804 = vmatpush.msra.mxu0 %v234
  %2805 = vmatpush.msra.mxu0 %v230
  %2806 = vmatpush.msra.mxu0 %v226
  %2807 = vmatpush.msra.mxu0 %v222
  %2808 = vmatpush.msra.mxu0 %v218
  %2809 = vmatpush.msra.mxu0 %v214
  %2810 = vmatpush.msra.mxu0 %v210
  %2811 = vmatpush.msra.mxu0 %v206
  %2812 = vmatpush.msra.mxu0 %v202
  %2813 = vmatpush.msra.mxu0 %v198
  %2814 = vmatpush.msra.mxu0 %v194
  %2815 = vmatpush.msra.mxu0 %v190
  %2816 = vmatmul.f32.gmra.mxu0 %v22
  %v2817 = vpop.f32.mrf.mxu0
  %v2818 = vadd.f32 %v2798, %v2817
  %2819 = vdwg.mxu0
  %2820 = vmatpush.msra.mxu0 %v314
  %2821 = vmatpush.msra.mxu0 %v310
  %2822 = vmatpush.msra.mxu0 %v306
  %2823 = vmatpush.msra.mxu0 %v302
  %2824 = vmatpush.msra.mxu0 %v298
  %2825 = vmatpush.msra.mxu0 %v294
  %2826 = vmatpush.msra.mxu0 %v290
  %2827 = vmatpush.msra.mxu0 %v286
  %2828 = vmatpush.msra.mxu0 %v282
  %2829 = vmatpush.msra.mxu0 %v278
  %2830 = vmatpush.msra.mxu0 %v274
  %2831 = vmatpush.msra.mxu0 %v270
  %2832 = vmatpush.msra.mxu0 %v266
  %2833 = vmatpush.msra.mxu0 %v262
  %2834 = vmatpush.msra.mxu0 %v258
  %2835 = vmatpush.msra.mxu0 %v254
  %2836 = vmatmul.f32.gmra.mxu0 %v23
  %v2837 = vpop.f32.mrf.mxu0
  %v2838 = vadd.f32 %v2818, %v2837
  %2839 = vdwg.mxu0
  %2840 = vmatpush.msra.mxu0 %v378
  %2841 = vmatpush.msra.mxu0 %v374
  %2842 = vmatpush.msra.mxu0 %v370
  %2843 = vmatpush.msra.mxu0 %v366
  %2844 = vmatpush.msra.mxu0 %v362
  %2845 = vmatpush.msra.mxu0 %v358
  %2846 = vmatpush.msra.mxu0 %v354
  %2847 = vmatpush.msra.mxu0 %v350
  %2848 = vmatpush.msra.mxu0 %v346
  %2849 = vmatpush.msra.mxu0 %v342
  %2850 = vmatpush.msra.mxu0 %v338
  %2851 = vmatpush.msra.mxu0 %v334
  %2852 = vmatpush.msra.mxu0 %v330
  %2853 = vmatpush.msra.mxu0 %v326
  %2854 = vmatpush.msra.mxu0 %v322
  %2855 = vmatpush.msra.mxu0 %v318
  %2856 = vmatmul.f32.gmra.mxu0 %v24
  %v2857 = vpop.f32.mrf.mxu0
  %v2858 = vadd.f32 %v2838, %v2857
  %2859 = vdwg.mxu0
  %2860 = vmatpush.msra.mxu0 %v442
  %2861 = vmatpush.msra.mxu0 %v438
  %2862 = vmatpush.msra.mxu0 %v434
  %2863 = vmatpush.msra.mxu0 %v430
  %2864 = vmatpush.msra.mxu0 %v426
  %2865 = vmatpush.msra.mxu0 %v422
  %2866 = vmatpush.msra.mxu0 %v418
  %2867 = vmatpush.msra.mxu0 %v414
  %2868 = vmatpush.msra.mxu0 %v410
  %2869 = vmatpush.msra.mxu0 %v406
  %2870 = vmatpush.msra.mxu0 %v402
  %2871 = vmatpush.msra.mxu0 %v398
  %2872 = vmatpush.msra.mxu0 %v394
  %2873 = vmatpush.msra.mxu0 %v390
  %2874 = vmatpush.msra.mxu0 %v386
  %2875 = vmatpush.msra.mxu0 %v382
  %2876 = vmatmul.f32.gmra.mxu0 %v25
  %v2877 = vpop.f32.mrf.mxu0
  %v2878 = vadd.f32 %v2858, %v2877
  %2879 = vdwg.mxu0
  %2880 = vmatpush.msra.mxu0 %v506
  %2881 = vmatpush.msra.mxu0 %v502
  %2882 = vmatpush.msra.mxu0 %v498
  %2883 = vmatpush.msra.mxu0 %v494
  %2884 = vmatpush.msra.mxu0 %v490
  %2885 = vmatpush.msra.mxu0 %v486
  %2886 = vmatpush.msra.mxu0 %v482
  %2887 = vmatpush.msra.mxu0 %v478
  %2888 = vmatpush.msra.mxu0 %v474
  %2889 = vmatpush.msra.mxu0 %v470
  %2890 = vmatpush.msra.mxu0 %v466
  %2891 = vmatpush.msra.mxu0 %v462
  %2892 = vmatpush.msra.mxu0 %v458
  %2893 = vmatpush.msra.mxu0 %v454
  %2894 = vmatpush.msra.mxu0 %v450
  %2895 = vmatpush.msra.mxu0 %v446
  %2896 = vmatmul.f32.gmra.mxu0 %v26
  %v2897 = vpop.f32.mrf.mxu0
  %v2898 = vadd.f32 %v2878, %v2897
  %2899 = vdwg.mxu0
  %2900 = vmatpush.msra.mxu0 %v570
  %2901 = vmatpush.msra.mxu0 %v566
  %2902 = vmatpush.msra.mxu0 %v562
  %2903 = vmatpush.msra.mxu0 %v558
  %2904 = vmatpush.msra.mxu0 %v554
  %2905 = vmatpush.msra.mxu0 %v550
  %2906 = vmatpush.msra.mxu0 %v546
  %2907 = vmatpush.msra.mxu0 %v542
  %2908 = vmatpush.msra.mxu0 %v538
  %2909 = vmatpush.msra.mxu0 %v534
  %2910 = vmatpush.msra.mxu0 %v530
  %2911 = vmatpush.msra.mxu0 %v526
  %2912 = vmatpush.msra.mxu0 %v522
  %2913 = vmatpush.msra.mxu0 %v518
  %2914 = vmatpush.msra.mxu0 %v514
  %2915 = vmatpush.msra.mxu0 %v510
  %2916 = vmatmul.f32.gmra.mxu0 %v27
  %v2917 = vpop.f32.mrf.mxu0
  %v2918 = vadd.f32 %v2898, %v2917
  %2919 = vdwg.mxu0
  %2920 = vmatpush.msra.mxu0 %v634
  %2921 = vmatpush.msra.mxu0 %v630
  %2922 = vmatpush.msra.mxu0 %v626
  %2923 = vmatpush.msra.mxu0 %v622
  %2924 = vmatpush.msra.mxu0 %v618
  %2925 = vmatpush.msra.mxu0 %v614
  %2926 = vmatpush.msra.mxu0 %v610
  %2927 = vmatpush.msra.mxu0 %v606
  %2928 = vmatpush.msra.mxu0 %v602
  %2929 = vmatpush.msra.mxu0 %v598
  %2930 = vmatpush.msra.mxu0 %v594
  %2931 = vmatpush.msra.mxu0 %v590
  %2932 = vmatpush.msra.mxu0 %v586
  %2933 = vmatpush.msra.mxu0 %v582
  %2934 = vmatpush.msra.mxu0 %v578
  %2935 = vmatpush.msra.mxu0 %v574
  %2936 = vmatmul.f32.gmra.mxu0 %v28
  %v2937 = vpop.f32.mrf.mxu0
  %v2938 = vadd.f32 %v2918, %v2937
  %2939 = vdwg.mxu0
  %2940 = vmatpush.msra.mxu0 %v698
  %2941 = vmatpush.msra.mxu0 %v694
  %2942 = vmatpush.msra.mxu0 %v690
  %2943 = vmatpush.msra.mxu0 %v686
  %2944 = vmatpush.msra.mxu0 %v682
  %2945 = vmatpush.msra.mxu0 %v678
  %2946 = vmatpush.msra.mxu0 %v674
  %2947 = vmatpush.msra.mxu0 %v670
  %2948 = vmatpush.msra.mxu0 %v666
  %2949 = vmatpush.msra.mxu0 %v662
  %2950 = vmatpush.msra.mxu0 %v658
  %2951 = vmatpush.msra.mxu0 %v654
  %2952 = vmatpush.msra.mxu0 %v650
  %2953 = vmatpush.msra.mxu0 %v646
  %2954 = vmatpush.msra.mxu0 %v642
  %2955 = vmatpush.msra.mxu0 %v638
  %2956 = vmatmul.f32.gmra.mxu0 %v29
  %v2957 = vpop.f32.mrf.mxu0
  %v2958 = vadd.f32 %v2938, %v2957
  %2959 = vdwg.mxu0
  %2960 = vmatpush.msra.mxu0 %v762
  %2961 = vmatpush.msra.mxu0 %v758
  %2962 = vmatpush.msra.mxu0 %v754
  %2963 = vmatpush.msra.mxu0 %v750
  %2964 = vmatpush.msra.mxu0 %v746
  %2965 = vmatpush.msra.mxu0 %v742
  %2966 = vmatpush.msra.mxu0 %v738
  %2967 = vmatpush.msra.mxu0 %v734
  %2968 = vmatpush.msra.mxu0 %v730
  %2969 = vmatpush.msra.mxu0 %v726
  %2970 = vmatpush.msra.mxu0 %v722
  %2971 = vmatpush.msra.mxu0 %v718
  %2972 = vmatpush.msra.mxu0 %v714
  %2973 = vmatpush.msra.mxu0 %v710
  %2974 = vmatpush.msra.mxu0 %v706
  %2975 = vmatpush.msra.mxu0 %v702
  %2976 = vmatmul.f32.gmra.mxu0 %v30
  %v2977 = vpop.f32.mrf.mxu0
  %v2978 = vadd.f32 %v2958, %v2977
  %2979 = vdwg.mxu0
  %2980 = vmatpush.msra.mxu0 %v826
  %2981 = vmatpush.msra.mxu0 %v822
  %2982 = vmatpush.msra.mxu0 %v818
  %2983 = vmatpush.msra.mxu0 %v814
  %2984 = vmatpush.msra.mxu0 %v810
  %2985 = vmatpush.msra.mxu0 %v806
  %2986 = vmatpush.msra.mxu0 %v802
  %2987 = vmatpush.msra.mxu0 %v798
  %2988 = vmatpush.msra.mxu0 %v794
  %2989 = vmatpush.msra.mxu0 %v790
  %2990 = vmatpush.msra.mxu0 %v786
  %2991 = vmatpush.msra.mxu0 %v782
  %2992 = vmatpush.msra.mxu0 %v778
  %2993 = vmatpush.msra.mxu0 %v774
  %2994 = vmatpush.msra.mxu0 %v770
  %2995 = vmatpush.msra.mxu0 %v766
  %2996 = vmatmul.f32.gmra.mxu0 %v31
  %v2997 = vpop.f32.mrf.mxu0
  %v2998 = vadd.f32 %v2978, %v2997
  %2999 = vdwg.mxu0
  %3000 = vmatpush.msra.mxu0 %v890
  %3001 = vmatpush.msra.mxu0 %v886
  %3002 = vmatpush.msra.mxu0 %v882
  %3003 = vmatpush.msra.mxu0 %v878
  %3004 = vmatpush.msra.mxu0 %v874
  %3005 = vmatpush.msra.mxu0 %v870
  %3006 = vmatpush.msra.mxu0 %v866
  %3007 = vmatpush.msra.mxu0 %v862
  %3008 = vmatpush.msra.mxu0 %v858
  %3009 = vmatpush.msra.mxu0 %v854
  %3010 = vmatpush.msra.mxu0 %v850
  %3011 = vmatpush.msra.mxu0 %v846
  %3012 = vmatpush.msra.mxu0 %v842
  %3013 = vmatpush.msra.mxu0 %v838
  %3014 = vmatpush.msra.mxu0 %v834
  %3015 = vmatpush.msra.mxu0 %v830
  %3016 = vmatmul.f32.gmra.mxu0 %v32
  %v3017 = vpop.f32.mrf.mxu0
  %v3018 = vadd.f32 %v2998, %v3017
  %3019 = vdwg.mxu0
  %3020 = vmatpush.msra.mxu0 %v954
  %3021 = vmatpush.msra.mxu0 %v950
  %3022 = vmatpush.msra.mxu0 %v946
  %3023 = vmatpush.msra.mxu0 %v942
  %3024 = vmatpush.msra.mxu0 %v938
  %3025 = vmatpush.msra.mxu0 %v934
  %3026 = vmatpush.msra.mxu0 %v930
  %3027 = vmatpush.msra.mxu0 %v926
  %3028 = vmatpush.msra.mxu0 %v922
  %3029 = vmatpush.msra.mxu0 %v918
  %3030 = vmatpush.msra.mxu0 %v914
  %3031 = vmatpush.msra.mxu0 %v910
  %3032 = vmatpush.msra.mxu0 %v906
  %3033 = vmatpush.msra.mxu0 %v902
  %3034 = vmatpush.msra.mxu0 %v898
  %3035 = vmatpush.msra.mxu0 %v894
  %3036 = vmatmul.f32.gmra.mxu0 %v33
  %v3037 = vpop.f32.mrf.mxu0
  %v3038 = vadd.f32 %v3018, %v3037
  %3039 = vdwg.mxu0
  %3040 = vmatpush.msra.mxu0 %v1018
  %3041 = vmatpush.msra.mxu0 %v1014
  %3042 = vmatpush.msra.mxu0 %v1010
  %3043 = vmatpush.msra.mxu0 %v1006
  %3044 = vmatpush.msra.mxu0 %v1002
  %3045 = vmatpush.msra.mxu0 %v998
  %3046 = vmatpush.msra.mxu0 %v994
  %3047 = vmatpush.msra.mxu0 %v990
  %3048 = vmatpush.msra.mxu0 %v986
  %3049 = vmatpush.msra.mxu0 %v982
  %3050 = vmatpush.msra.mxu0 %v978
  %3051 = vmatpush.msra.mxu0 %v974
  %3052 = vmatpush.msra.mxu0 %v970
  %3053 = vmatpush.msra.mxu0 %v966
  %3054 = vmatpush.msra.mxu0 %v962
  %3055 = vmatpush.msra.mxu0 %v958
  %3056 = vmatmul.f32.gmra.mxu0 %v34
  %v3057 = vpop.f32.mrf.mxu0
  %v3058 = vadd.f32 %v3038, %v3057
  %3059 = vdwg.mxu0
  %3060 = vmatpush.msra.mxu0 %v1082
  %3061 = vmatpush.msra.mxu0 %v1078
  %3062 = vmatpush.msra.mxu0 %v1074
  %3063 = vmatpush.msra.mxu0 %v1070
  %3064 = vmatpush.msra.mxu0 %v1066
  %3065 = vmatpush.msra.mxu0 %v1062
  %3066 = vmatpush.msra.mxu0 %v1058
  %3067 = vmatpush.msra.mxu0 %v1054
  %3068 = vmatpush.msra.mxu0 %v1050
  %3069 = vmatpush.msra.mxu0 %v1046
  %3070 = vmatpush.msra.mxu0 %v1042
  %3071 = vmatpush.msra.mxu0 %v1038
  %3072 = vmatpush.msra.mxu0 %v1034
  %3073 = vmatpush.msra.mxu0 %v1030
  %3074 = vmatpush.msra.mxu0 %v1026
  %3075 = vmatpush.msra.mxu0 %v1022
  %3076 = vmatmul.f32.gmra.mxu0 %v35
  %v3077 = vpop.f32.mrf.mxu0
  %v3078 = vadd.f32 %v3058, %v3077
  %3079 = vdwg.mxu0
  %3080 = vmatpush.msra.mxu0 %v1146
  %3081 = vmatpush.msra.mxu0 %v1142
  %3082 = vmatpush.msra.mxu0 %v1138
  %3083 = vmatpush.msra.mxu0 %v1134
  %3084 = vmatpush.msra.mxu0 %v1130
  %3085 = vmatpush.msra.mxu0 %v1126
  %3086 = vmatpush.msra.mxu0 %v1122
  %3087 = vmatpush.msra.mxu0 %v1118
  %3088 = vmatpush.msra.mxu0 %v1114
  %3089 = vmatpush.msra.mxu0 %v1110
  %3090 = vmatpush.msra.mxu0 %v1106
  %3091 = vmatpush.msra.mxu0 %v1102
  %3092 = vmatpush.msra.mxu0 %v1098
  %3093 = vmatpush.msra.mxu0 %v1094
  %3094 = vmatpush.msra.mxu0 %v1090
  %3095 = vmatpush.msra.mxu0 %v1086
  %3096 = vmatmul.f32.gmra.mxu0 %v36
  %v3097 = vpop.f32.mrf.mxu0
  %v3098 = vadd.f32 %v3078, %v3097
  %3099 = vdwg.mxu0
  %3100 = vmatpush.msra.mxu0 %v1210
  %3101 = vmatpush.msra.mxu0 %v1206
  %3102 = vmatpush.msra.mxu0 %v1202
  %3103 = vmatpush.msra.mxu0 %v1198
  %3104 = vmatpush.msra.mxu0 %v1194
  %3105 = vmatpush.msra.mxu0 %v1190
  %3106 = vmatpush.msra.mxu0 %v1186
  %3107 = vmatpush.msra.mxu0 %v1182
  %3108 = vmatpush.msra.mxu0 %v1178
  %3109 = vmatpush.msra.mxu0 %v1174
  %3110 = vmatpush.msra.mxu0 %v1170
  %3111 = vmatpush.msra.mxu0 %v1166
  %3112 = vmatpush.msra.mxu0 %v1162
  %3113 = vmatpush.msra.mxu0 %v1158
  %3114 = vmatpush.msra.mxu0 %v1154
  %3115 = vmatpush.msra.mxu0 %v1150
  %3116 = vmatmul.f32.gmra.mxu0 %v37
  %v3117 = vpop.f32.mrf.mxu0
  %v3118 = vadd.f32 %v3098, %v3117
  %3119 = vdwg.mxu0
  %3120 = vmatpush.msra.mxu0 %v1274
  %3121 = vmatpush.msra.mxu0 %v1270
  %3122 = vmatpush.msra.mxu0 %v1266
  %3123 = vmatpush.msra.mxu0 %v1262
  %3124 = vmatpush.msra.mxu0 %v1258
  %3125 = vmatpush.msra.mxu0 %v1254
  %3126 = vmatpush.msra.mxu0 %v1250
  %3127 = vmatpush.msra.mxu0 %v1246
  %3128 = vmatpush.msra.mxu0 %v1242
  %3129 = vmatpush.msra.mxu0 %v1238
  %3130 = vmatpush.msra.mxu0 %v1234
  %3131 = vmatpush.msra.mxu0 %v1230
  %3132 = vmatpush.msra.mxu0 %v1226
  %3133 = vmatpush.msra.mxu0 %v1222
  %3134 = vmatpush.msra.mxu0 %v1218
  %3135 = vmatpush.msra.mxu0 %v1214
  %3136 = vmatmul.f32.gmra.mxu0 %v38
  %v3137 = vpop.f32.mrf.mxu0
  %v3138 = vadd.f32 %v3118, %v3137
  %3139 = vdwg.mxu0
  %3140 = vmatpush.msra.mxu0 %v1338
  %3141 = vmatpush.msra.mxu0 %v1334
  %3142 = vmatpush.msra.mxu0 %v1330
  %3143 = vmatpush.msra.mxu0 %v1326
  %3144 = vmatpush.msra.mxu0 %v1322
  %3145 = vmatpush.msra.mxu0 %v1318
  %3146 = vmatpush.msra.mxu0 %v1314
  %3147 = vmatpush.msra.mxu0 %v1310
  %3148 = vmatpush.msra.mxu0 %v1306
  %3149 = vmatpush.msra.mxu0 %v1302
  %3150 = vmatpush.msra.mxu0 %v1298
  %3151 = vmatpush.msra.mxu0 %v1294
  %3152 = vmatpush.msra.mxu0 %v1290
  %3153 = vmatpush.msra.mxu0 %v1286
  %3154 = vmatpush.msra.mxu0 %v1282
  %3155 = vmatpush.msra.mxu0 %v1278
  %3156 = vmatmul.f32.gmra.mxu0 %v39
  %v3157 = vpop.f32.mrf.mxu0
  %v3158 = vadd.f32 %v3138, %v3157
  %3159 = vdwg.mxu0
  %3160 = vmatpush.msra.mxu0 %v1402
  %3161 = vmatpush.msra.mxu0 %v1398
  %3162 = vmatpush.msra.mxu0 %v1394
  %3163 = vmatpush.msra.mxu0 %v1390
  %3164 = vmatpush.msra.mxu0 %v1386
  %3165 = vmatpush.msra.mxu0 %v1382
  %3166 = vmatpush.msra.mxu0 %v1378
  %3167 = vmatpush.msra.mxu0 %v1374
  %3168 = vmatpush.msra.mxu0 %v1370
  %3169 = vmatpush.msra.mxu0 %v1366
  %3170 = vmatpush.msra.mxu0 %v1362
  %3171 = vmatpush.msra.mxu0 %v1358
  %3172 = vmatpush.msra.mxu0 %v1354
  %3173 = vmatpush.msra.mxu0 %v1350
  %3174 = vmatpush.msra.mxu0 %v1346
  %3175 = vmatpush.msra.mxu0 %v1342
  %3176 = vmatmul.f32.gmra.mxu0 %v40
  %v3177 = vpop.f32.mrf.mxu0
  %v3178 = vadd.f32 %v3158, %v3177
  %3179 = vdwg.mxu0
  %3180 = vmatpush.msra.mxu0 %v1466
  %3181 = vmatpush.msra.mxu0 %v1462
  %3182 = vmatpush.msra.mxu0 %v1458
  %3183 = vmatpush.msra.mxu0 %v1454
  %3184 = vmatpush.msra.mxu0 %v1450
  %3185 = vmatpush.msra.mxu0 %v1446
  %3186 = vmatpush.msra.mxu0 %v1442
  %3187 = vmatpush.msra.mxu0 %v1438
  %3188 = vmatpush.msra.mxu0 %v1434
  %3189 = vmatpush.msra.mxu0 %v1430
  %3190 = vmatpush.msra.mxu0 %v1426
  %3191 = vmatpush.msra.mxu0 %v1422
  %3192 = vmatpush.msra.mxu0 %v1418
  %3193 = vmatpush.msra.mxu0 %v1414
  %3194 = vmatpush.msra.mxu0 %v1410
  %3195 = vmatpush.msra.mxu0 %v1406
  %3196 = vmatmul.f32.gmra.mxu0 %v41
  %v3197 = vpop.f32.mrf.mxu0
  %v3198 = vadd.f32 %v3178, %v3197
  %3199 = vdwg.mxu0
  %3200 = vmatpush.msra.mxu0 %v1530
  %3201 = vmatpush.msra.mxu0 %v1526
  %3202 = vmatpush.msra.mxu0 %v1522
  %3203 = vmatpush.msra.mxu0 %v1518
  %3204 = vmatpush.msra.mxu0 %v1514
  %3205 = vmatpush.msra.mxu0 %v1510
  %3206 = vmatpush.msra.mxu0 %v1506
  %3207 = vmatpush.msra.mxu0 %v1502
  %3208 = vmatpush.msra.mxu0 %v1498
  %3209 = vmatpush.msra.mxu0 %v1494
  %3210 = vmatpush.msra.mxu0 %v1490
  %3211 = vmatpush.msra.mxu0 %v1486
  %3212 = vmatpush.msra.mxu0 %v1482
  %3213 = vmatpush.msra.mxu0 %v1478
  %3214 = vmatpush.msra.mxu0 %v1474
  %3215 = vmatpush.msra.mxu0 %v1470
  %3216 = vmatmul.f32.gmra.mxu0 %v42
  %v3217 = vpop.f32.mrf.mxu0
  %v3218 = vadd.f32 %v3198, %v3217
  %3219 = vdwg.mxu0
  %3220 = vmatpush.msra.mxu0 %v1594
  %3221 = vmatpush.msra.mxu0 %v1590
  %3222 = vmatpush.msra.mxu0 %v1586
  %3223 = vmatpush.msra.mxu0 %v1582
  %3224 = vmatpush.msra.mxu0 %v1578
  %3225 = vmatpush.msra.mxu0 %v1574
  %3226 = vmatpush.msra.mxu0 %v1570
  %3227 = vmatpush.msra.mxu0 %v1566
  %3228 = vmatpush.msra.mxu0 %v1562
  %3229 = vmatpush.msra.mxu0 %v1558
  %3230 = vmatpush.msra.mxu0 %v1554
  %3231 = vmatpush.msra.mxu0 %v1550
  %3232 = vmatpush.msra.mxu0 %v1546
  %3233 = vmatpush.msra.mxu0 %v1542
  %3234 = vmatpush.msra.mxu0 %v1538
  %3235 = vmatpush.msra.mxu0 %v1534
  %3236 = vmatmul.f32.gmra.mxu0 %v43
  %v3237 = vpop.f32.mrf.mxu0
  %v3238 = vadd.f32 %v3218, %v3237
  %3239 = vdwg.mxu0
  %3240 = vmatpush.msra.mxu0 %v1658
  %3241 = vmatpush.msra.mxu0 %v1654
  %3242 = vmatpush.msra.mxu0 %v1650
  %3243 = vmatpush.msra.mxu0 %v1646
  %3244 = vmatpush.msra.mxu0 %v1642
  %3245 = vmatpush.msra.mxu0 %v1638
  %3246 = vmatpush.msra.mxu0 %v1634
  %3247 = vmatpush.msra.mxu0 %v1630
  %3248 = vmatpush.msra.mxu0 %v1626
  %3249 = vmatpush.msra.mxu0 %v1622
  %3250 = vmatpush.msra.mxu0 %v1618
  %3251 = vmatpush.msra.mxu0 %v1614
  %3252 = vmatpush.msra.mxu0 %v1610
  %3253 = vmatpush.msra.mxu0 %v1606
  %3254 = vmatpush.msra.mxu0 %v1602
  %3255 = vmatpush.msra.mxu0 %v1598
  %3256 = vmatmul.f32.gmra.mxu0 %v44
  %v3257 = vpop.f32.mrf.mxu0
  %v3258 = vadd.f32 %v3238, %v3257
  %3259 = vdwg.mxu0
  %3260 = vmatpush.msra.mxu0 %v1722
  %3261 = vmatpush.msra.mxu0 %v1718
  %3262 = vmatpush.msra.mxu0 %v1714
  %3263 = vmatpush.msra.mxu0 %v1710
  %3264 = vmatpush.msra.mxu0 %v1706
  %3265 = vmatpush.msra.mxu0 %v1702
  %3266 = vmatpush.msra.mxu0 %v1698
  %3267 = vmatpush.msra.mxu0 %v1694
  %3268 = vmatpush.msra.mxu0 %v1690
  %3269 = vmatpush.msra.mxu0 %v1686
  %3270 = vmatpush.msra.mxu0 %v1682
  %3271 = vmatpush.msra.mxu0 %v1678
  %3272 = vmatpush.msra.mxu0 %v1674
  %3273 = vmatpush.msra.mxu0 %v1670
  %3274 = vmatpush.msra.mxu0 %v1666
  %3275 = vmatpush.msra.mxu0 %v1662
  %3276 = vmatmul.f32.gmra.mxu0 %v45
  %v3277 = vpop.f32.mrf.mxu0
  %v3278 = vadd.f32 %v3258, %v3277
  %3279 = vdwg.mxu0
  %3280 = vmatpush.msra.mxu0 %v1786
  %3281 = vmatpush.msra.mxu0 %v1782
  %3282 = vmatpush.msra.mxu0 %v1778
  %3283 = vmatpush.msra.mxu0 %v1774
  %3284 = vmatpush.msra.mxu0 %v1770
  %3285 = vmatpush.msra.mxu0 %v1766
  %3286 = vmatpush.msra.mxu0 %v1762
  %3287 = vmatpush.msra.mxu0 %v1758
  %3288 = vmatpush.msra.mxu0 %v1754
  %3289 = vmatpush.msra.mxu0 %v1750
  %3290 = vmatpush.msra.mxu0 %v1746
  %3291 = vmatpush.msra.mxu0 %v1742
  %3292 = vmatpush.msra.mxu0 %v1738
  %3293 = vmatpush.msra.mxu0 %v1734
  %3294 = vmatpush.msra.mxu0 %v1730
  %3295 = vmatpush.msra.mxu0 %v1726
  %3296 = vmatmul.f32.gmra.mxu0 %v46
  %v3297 = vpop.f32.mrf.mxu0
  %v3298 = vadd.f32 %v3278, %v3297
  %3299 = vdwg.mxu0
  %3300 = vmatpush.msra.mxu0 %v1850
  %3301 = vmatpush.msra.mxu0 %v1846
  %3302 = vmatpush.msra.mxu0 %v1842
  %3303 = vmatpush.msra.mxu0 %v1838
  %3304 = vmatpush.msra.mxu0 %v1834
  %3305 = vmatpush.msra.mxu0 %v1830
  %3306 = vmatpush.msra.mxu0 %v1826
  %3307 = vmatpush.msra.mxu0 %v1822
  %3308 = vmatpush.msra.mxu0 %v1818
  %3309 = vmatpush.msra.mxu0 %v1814
  %3310 = vmatpush.msra.mxu0 %v1810
  %3311 = vmatpush.msra.mxu0 %v1806
  %3312 = vmatpush.msra.mxu0 %v1802
  %3313 = vmatpush.msra.mxu0 %v1798
  %3314 = vmatpush.msra.mxu0 %v1794
  %3315 = vmatpush.msra.mxu0 %v1790
  %3316 = vmatmul.f32.gmra.mxu0 %v47
  %v3317 = vpop.f32.mrf.mxu0
  %v3318 = vadd.f32 %v3298, %v3317
  %3319 = vdwg.mxu0
  %3320 = vmatpush.msra.mxu0 %v1914
  %3321 = vmatpush.msra.mxu0 %v1910
  %3322 = vmatpush.msra.mxu0 %v1906
  %3323 = vmatpush.msra.mxu0 %v1902
  %3324 = vmatpush.msra.mxu0 %v1898
  %3325 = vmatpush.msra.mxu0 %v1894
  %3326 = vmatpush.msra.mxu0 %v1890
  %3327 = vmatpush.msra.mxu0 %v1886
  %3328 = vmatpush.msra.mxu0 %v1882
  %3329 = vmatpush.msra.mxu0 %v1878
  %3330 = vmatpush.msra.mxu0 %v1874
  %3331 = vmatpush.msra.mxu0 %v1870
  %3332 = vmatpush.msra.mxu0 %v1866
  %3333 = vmatpush.msra.mxu0 %v1862
  %3334 = vmatpush.msra.mxu0 %v1858
  %3335 = vmatpush.msra.mxu0 %v1854
  %3336 = vmatmul.f32.gmra.mxu0 %v48
  %v3337 = vpop.f32.mrf.mxu0
  %v3338 = vadd.f32 %v3318, %v3337
  %3339 = vdwg.mxu0
  %3340 = vmatpush.msra.mxu0 %v1978
  %3341 = vmatpush.msra.mxu0 %v1974
  %3342 = vmatpush.msra.mxu0 %v1970
  %3343 = vmatpush.msra.mxu0 %v1966
  %3344 = vmatpush.msra.mxu0 %v1962
  %3345 = vmatpush.msra.mxu0 %v1958
  %3346 = vmatpush.msra.mxu0 %v1954
  %3347 = vmatpush.msra.mxu0 %v1950
  %3348 = vmatpush.msra.mxu0 %v1946
  %3349 = vmatpush.msra.mxu0 %v1942
  %3350 = vmatpush.msra.mxu0 %v1938
  %3351 = vmatpush.msra.mxu0 %v1934
  %3352 = vmatpush.msra.mxu0 %v1930
  %3353 = vmatpush.msra.mxu0 %v1926
  %3354 = vmatpush.msra.mxu0 %v1922
  %3355 = vmatpush.msra.mxu0 %v1918
  %3356 = vmatmul.f32.gmra.mxu0 %v49
  %v3357 = vpop.f32.mrf.mxu0
  %v3358 = vadd.f32 %v3338, %v3357
  %3359 = vdwg.mxu0
  %3360 = vmatpush.msra.mxu0 %v2042
  %3361 = vmatpush.msra.mxu0 %v2038
  %3362 = vmatpush.msra.mxu0 %v2034
  %3363 = vmatpush.msra.mxu0 %v2030
  %3364 = vmatpush.msra.mxu0 %v2026
  %3365 = vmatpush.msra.mxu0 %v2022
  %3366 = vmatpush.msra.mxu0 %v2018
  %3367 = vmatpush.msra.mxu0 %v2014
  %3368 = vmatpush.msra.mxu0 %v2010
  %3369 = vmatpush.msra.mxu0 %v2006
  %3370 = vmatpush.msra.mxu0 %v2002
  %3371 = vmatpush.msra.mxu0 %v1998
  %3372 = vmatpush.msra.mxu0 %v1994
  %3373 = vmatpush.msra.mxu0 %v1990
  %3374 = vmatpush.msra.mxu0 %v1986
  %3375 = vmatpush.msra.mxu0 %v1982
  %3376 = vmatmul.f32.gmra.mxu0 %v50
  %v3377 = vpop.f32.mrf.mxu0
  %v3378 = vadd.f32 %v3358, %v3377
  %3379 = vdwg.mxu0
  %3380 = vmatpush.msra.mxu0 %v2106
  %3381 = vmatpush.msra.mxu0 %v2102
  %3382 = vmatpush.msra.mxu0 %v2098
  %3383 = vmatpush.msra.mxu0 %v2094
  %3384 = vmatpush.msra.mxu0 %v2090
  %3385 = vmatpush.msra.mxu0 %v2086
  %3386 = vmatpush.msra.mxu0 %v2082
  %3387 = vmatpush.msra.mxu0 %v2078
  %3388 = vmatpush.msra.mxu0 %v2074
  %3389 = vmatpush.msra.mxu0 %v2070
  %3390 = vmatpush.msra.mxu0 %v2066
  %3391 = vmatpush.msra.mxu0 %v2062
  %3392 = vmatpush.msra.mxu0 %v2058
  %3393 = vmatpush.msra.mxu0 %v2054
  %3394 = vmatpush.msra.mxu0 %v2050
  %3395 = vmatpush.msra.mxu0 %v2046
  %3396 = vmatmul.f32.gmra.mxu0 %v51
  %v3397 = vpop.f32.mrf.mxu0
  %v3398 = vadd.f32 %v3378, %v3397
  %3399 = vdwg.mxu0
  %3400 = vmatpush.msra.mxu0 %v2170
  %3401 = vmatpush.msra.mxu0 %v2166
  %3402 = vmatpush.msra.mxu0 %v2162
  %3403 = vmatpush.msra.mxu0 %v2158
  %3404 = vmatpush.msra.mxu0 %v2154
  %3405 = vmatpush.msra.mxu0 %v2150
  %3406 = vmatpush.msra.mxu0 %v2146
  %3407 = vmatpush.msra.mxu0 %v2142
  %3408 = vmatpush.msra.mxu0 %v2138
  %3409 = vmatpush.msra.mxu0 %v2134
  %3410 = vmatpush.msra.mxu0 %v2130
  %3411 = vmatpush.msra.mxu0 %v2126
  %3412 = vmatpush.msra.mxu0 %v2122
  %3413 = vmatpush.msra.mxu0 %v2118
  %3414 = vmatpush.msra.mxu0 %v2114
  %3415 = vmatpush.msra.mxu0 %v2110
  %3416 = vmatmul.f32.gmra.mxu0 %v52
  %v3417 = vpop.f32.mrf.mxu0
  %v3418 = vadd.f32 %v3398, %v3417
  %3419 = vdwg.mxu0
  %3420 = vmatpush.msra.mxu0 %v2234
  %3421 = vmatpush.msra.mxu0 %v2230
  %3422 = vmatpush.msra.mxu0 %v2226
  %3423 = vmatpush.msra.mxu0 %v2222
  %3424 = vmatpush.msra.mxu0 %v2218
  %3425 = vmatpush.msra.mxu0 %v2214
  %3426 = vmatpush.msra.mxu0 %v2210
  %3427 = vmatpush.msra.mxu0 %v2206
  %3428 = vmatpush.msra.mxu0 %v2202
  %3429 = vmatpush.msra.mxu0 %v2198
  %3430 = vmatpush.msra.mxu0 %v2194
  %3431 = vmatpush.msra.mxu0 %v2190
  %3432 = vmatpush.msra.mxu0 %v2186
  %3433 = vmatpush.msra.mxu0 %v2182
  %3434 = vmatpush.msra.mxu0 %v2178
  %3435 = vmatpush.msra.mxu0 %v2174
  %3436 = vmatmul.f32.gmra.mxu0 %v53
  %v3437 = vpop.f32.mrf.mxu0
  %v3438 = vadd.f32 %v3418, %v3437
  %3439 = vdwg.mxu0
  %3440 = vmatpush.msra.mxu0 %v2298
  %3441 = vmatpush.msra.mxu0 %v2294
  %3442 = vmatpush.msra.mxu0 %v2290
  %3443 = vmatpush.msra.mxu0 %v2286
  %3444 = vmatpush.msra.mxu0 %v2282
  %3445 = vmatpush.msra.mxu0 %v2278
  %3446 = vmatpush.msra.mxu0 %v2274
  %3447 = vmatpush.msra.mxu0 %v2270
  %3448 = vmatpush.msra.mxu0 %v2266
  %3449 = vmatpush.msra.mxu0 %v2262
  %3450 = vmatpush.msra.mxu0 %v2258
  %3451 = vmatpush.msra.mxu0 %v2254
  %3452 = vmatpush.msra.mxu0 %v2250
  %3453 = vmatpush.msra.mxu0 %v2246
  %3454 = vmatpush.msra.mxu0 %v2242
  %3455 = vmatpush.msra.mxu0 %v2238
  %3456 = vmatmul.f32.gmra.mxu0 %v54
  %v3457 = vpop.f32.mrf.mxu0
  %v3458 = vadd.f32 %v3438, %v3457
  %3459 = vdwg.mxu0
  %3460 = vmatpush.msra.mxu0 %v2362
  %3461 = vmatpush.msra.mxu0 %v2358
  %3462 = vmatpush.msra.mxu0 %v2354
  %3463 = vmatpush.msra.mxu0 %v2350
  %3464 = vmatpush.msra.mxu0 %v2346
  %3465 = vmatpush.msra.mxu0 %v2342
  %3466 = vmatpush.msra.mxu0 %v2338
  %3467 = vmatpush.msra.mxu0 %v2334
  %3468 = vmatpush.msra.mxu0 %v2330
  %3469 = vmatpush.msra.mxu0 %v2326
  %3470 = vmatpush.msra.mxu0 %v2322
  %3471 = vmatpush.msra.mxu0 %v2318
  %3472 = vmatpush.msra.mxu0 %v2314
  %3473 = vmatpush.msra.mxu0 %v2310
  %3474 = vmatpush.msra.mxu0 %v2306
  %3475 = vmatpush.msra.mxu0 %v2302
  %3476 = vmatmul.f32.gmra.mxu0 %v55
  %v3477 = vpop.f32.mrf.mxu0
  %v3478 = vadd.f32 %v3458, %v3477
  %3479 = vdwg.mxu0
  %3480 = vmatpush.msra.mxu0 %v2426
  %3481 = vmatpush.msra.mxu0 %v2422
  %3482 = vmatpush.msra.mxu0 %v2418
  %3483 = vmatpush.msra.mxu0 %v2414
  %3484 = vmatpush.msra.mxu0 %v2410
  %3485 = vmatpush.msra.mxu0 %v2406
  %3486 = vmatpush.msra.mxu0 %v2402
  %3487 = vmatpush.msra.mxu0 %v2398
  %3488 = vmatpush.msra.mxu0 %v2394
  %3489 = vmatpush.msra.mxu0 %v2390
  %3490 = vmatpush.msra.mxu0 %v2386
  %3491 = vmatpush.msra.mxu0 %v2382
  %3492 = vmatpush.msra.mxu0 %v2378
  %3493 = vmatpush.msra.mxu0 %v2374
  %3494 = vmatpush.msra.mxu0 %v2370
  %3495 = vmatpush.msra.mxu0 %v2366
  %3496 = vmatmul.f32.gmra.mxu0 %v56
  %v3497 = vpop.f32.mrf.mxu0
  %v3498 = vadd.f32 %v3478, %v3497
  %3499 = vdwg.mxu0
  %3500 = vmatpush.msra.mxu0 %v2490
  %3501 = vmatpush.msra.mxu0 %v2486
  %3502 = vmatpush.msra.mxu0 %v2482
  %3503 = vmatpush.msra.mxu0 %v2478
  %3504 = vmatpush.msra.mxu0 %v2474
  %3505 = vmatpush.msra.mxu0 %v2470
  %3506 = vmatpush.msra.mxu0 %v2466
  %3507 = vmatpush.msra.mxu0 %v2462
  %3508 = vmatpush.msra.mxu0 %v2458
  %3509 = vmatpush.msra.mxu0 %v2454
  %3510 = vmatpush.msra.mxu0 %v2450
  %3511 = vmatpush.msra.mxu0 %v2446
  %3512 = vmatpush.msra.mxu0 %v2442
  %3513 = vmatpush.msra.mxu0 %v2438
  %3514 = vmatpush.msra.mxu0 %v2434
  %3515 = vmatpush.msra.mxu0 %v2430
  %3516 = vmatmul.f32.gmra.mxu0 %v57
  %v3517 = vpop.f32.mrf.mxu0
  %v3518 = vadd.f32 %v3498, %v3517
  %3519 = vdwg.mxu0
  %3520 = vmatpush.msra.mxu0 %v2554
  %3521 = vmatpush.msra.mxu0 %v2550
  %3522 = vmatpush.msra.mxu0 %v2546
  %3523 = vmatpush.msra.mxu0 %v2542
  %3524 = vmatpush.msra.mxu0 %v2538
  %3525 = vmatpush.msra.mxu0 %v2534
  %3526 = vmatpush.msra.mxu0 %v2530
  %3527 = vmatpush.msra.mxu0 %v2526
  %3528 = vmatpush.msra.mxu0 %v2522
  %3529 = vmatpush.msra.mxu0 %v2518
  %3530 = vmatpush.msra.mxu0 %v2514
  %3531 = vmatpush.msra.mxu0 %v2510
  %3532 = vmatpush.msra.mxu0 %v2506
  %3533 = vmatpush.msra.mxu0 %v2502
  %3534 = vmatpush.msra.mxu0 %v2498
  %3535 = vmatpush.msra.mxu0 %v2494
  %3536 = vmatmul.f32.gmra.mxu0 %v58
  %v3537 = vpop.f32.mrf.mxu0
  %v3538 = vadd.f32 %v3518, %v3537
  %3539 = vdwg.mxu0
  %3540 = vmatpush.msra.mxu0 %v2618
  %3541 = vmatpush.msra.mxu0 %v2614
  %3542 = vmatpush.msra.mxu0 %v2610
  %3543 = vmatpush.msra.mxu0 %v2606
  %3544 = vmatpush.msra.mxu0 %v2602
  %3545 = vmatpush.msra.mxu0 %v2598
  %3546 = vmatpush.msra.mxu0 %v2594
  %3547 = vmatpush.msra.mxu0 %v2590
  %3548 = vmatpush.msra.mxu0 %v2586
  %3549 = vmatpush.msra.mxu0 %v2582
  %3550 = vmatpush.msra.mxu0 %v2578
  %3551 = vmatpush.msra.mxu0 %v2574
  %3552 = vmatpush.msra.mxu0 %v2570
  %3553 = vmatpush.msra.mxu0 %v2566
  %3554 = vmatpush.msra.mxu0 %v2562
  %3555 = vmatpush.msra.mxu0 %v2558
  %3556 = vmatmul.f32.gmra.mxu0 %v59
  %v3557 = vpop.f32.mrf.mxu0
  %v3558 = vadd.f32 %v3538, %v3557
  %3559 = vdwg.mxu0
  %3560 = vmatpush.msra.mxu0 %v2682
  %3561 = vmatpush.msra.mxu0 %v2678
  %3562 = vmatpush.msra.mxu0 %v2674
  %3563 = vmatpush.msra.mxu0 %v2670
  %3564 = vmatpush.msra.mxu0 %v2666
  %3565 = vmatpush.msra.mxu0 %v2662
  %3566 = vmatpush.msra.mxu0 %v2658
  %3567 = vmatpush.msra.mxu0 %v2654
  %3568 = vmatpush.msra.mxu0 %v2650
  %3569 = vmatpush.msra.mxu0 %v2646
  %3570 = vmatpush.msra.mxu0 %v2642
  %3571 = vmatpush.msra.mxu0 %v2638
  %3572 = vmatpush.msra.mxu0 %v2634
  %3573 = vmatpush.msra.mxu0 %v2630
  %3574 = vmatpush.msra.mxu0 %v2626
  %3575 = vmatpush.msra.mxu0 %v2622
  %3576 = vmatmul.f32.gmra.mxu0 %v60
  %v3577 = vpop.f32.mrf.mxu0
  %v3578 = vadd.f32 %v3558, %v3577
  %3579 = vdwg.mxu0
  %3580 = vmatpush.msra.mxu0 %v2746
  %3581 = vmatpush.msra.mxu0 %v2742
  %3582 = vmatpush.msra.mxu0 %v2738
  %3583 = vmatpush.msra.mxu0 %v2734
  %3584 = vmatpush.msra.mxu0 %v2730
  %3585 = vmatpush.msra.mxu0 %v2726
  %3586 = vmatpush.msra.mxu0 %v2722
  %3587 = vmatpush.msra.mxu0 %v2718
  %3588 = vmatpush.msra.mxu0 %v2714
  %3589 = vmatpush.msra.mxu0 %v2710
  %3590 = vmatpush.msra.mxu0 %v2706
  %3591 = vmatpush.msra.mxu0 %v2702
  %3592 = vmatpush.msra.mxu0 %v2698
  %3593 = vmatpush.msra.mxu0 %v2694
  %3594 = vmatpush.msra.mxu0 %v2690
  %3595 = vmatpush.msra.mxu0 %v2686
  %3596 = vmatmul.f32.gmra.mxu0 %v61
  %v3597 = vpop.f32.mrf.mxu0
  %v3598 = vadd.f32 %v3578, %v3597
  %3599 = vdwg.mxu0
  %3600 = vmatpush.msra.mxu0 %v123
  %3601 = vmatpush.msra.mxu0 %v119
  %3602 = vmatpush.msra.mxu0 %v115
  %3603 = vmatpush.msra.mxu0 %v111
  %3604 = vmatpush.msra.mxu0 %v107
  %3605 = vmatpush.msra.mxu0 %v103
  %3606 = vmatpush.msra.mxu0 %v99
  %3607 = vmatpush.msra.mxu0 %v95
  %3608 = vmatpush.msra.mxu0 %v91
  %3609 = vmatpush.msra.mxu0 %v87
  %3610 = vmatpush.msra.mxu0 %v83
  %3611 = vmatpush.msra.mxu0 %v79
  %3612 = vmatpush.msra.mxu0 %v75
  %3613 = vmatpush.msra.mxu0 %v71
  %3614 = vmatpush.msra.mxu0 %v67
  %3615 = vmatpush.msra.mxu0 %v63
  %3616 = vmatmul.f32.gmra.mxu0 %v20
  %v3617 = vpop.f32.mrf.mxu0
  %v3618 = vadd.f32 %v2753, %v3617
  %3619 = vdwg.mxu0
  %3620 = vmatpush.msra.mxu0 %v187
  %3621 = vmatpush.msra.mxu0 %v183
  %3622 = vmatpush.msra.mxu0 %v179
  %3623 = vmatpush.msra.mxu0 %v175
  %3624 = vmatpush.msra.mxu0 %v171
  %3625 = vmatpush.msra.mxu0 %v167
  %3626 = vmatpush.msra.mxu0 %v163
  %3627 = vmatpush.msra.mxu0 %v159
  %3628 = vmatpush.msra.mxu0 %v155
  %3629 = vmatpush.msra.mxu0 %v151
  %3630 = vmatpush.msra.mxu0 %v147
  %3631 = vmatpush.msra.mxu0 %v143
  %3632 = vmatpush.msra.mxu0 %v139
  %3633 = vmatpush.msra.mxu0 %v135
  %3634 = vmatpush.msra.mxu0 %v131
  %3635 = vmatpush.msra.mxu0 %v127
  %3636 = vmatmul.f32.gmra.mxu0 %v21
  %v3637 = vpop.f32.mrf.mxu0
  %v3638 = vadd.f32 %v3618, %v3637
  %3639 = vdwg.mxu0
  %3640 = vmatpush.msra.mxu0 %v251
  %3641 = vmatpush.msra.mxu0 %v247
  %3642 = vmatpush.msra.mxu0 %v243
  %3643 = vmatpush.msra.mxu0 %v239
  %3644 = vmatpush.msra.mxu0 %v235
  %3645 = vmatpush.msra.mxu0 %v231
  %3646 = vmatpush.msra.mxu0 %v227
  %3647 = vmatpush.msra.mxu0 %v223
  %3648 = vmatpush.msra.mxu0 %v219
  %3649 = vmatpush.msra.mxu0 %v215
  %3650 = vmatpush.msra.mxu0 %v211
  %3651 = vmatpush.msra.mxu0 %v207
  %3652 = vmatpush.msra.mxu0 %v203
  %3653 = vmatpush.msra.mxu0 %v199
  %3654 = vmatpush.msra.mxu0 %v195
  %3655 = vmatpush.msra.mxu0 %v191
  %3656 = vmatmul.f32.gmra.mxu0 %v22
  %v3657 = vpop.f32.mrf.mxu0
  %v3658 = vadd.f32 %v3638, %v3657
  %3659 = vdwg.mxu0
  %3660 = vmatpush.msra.mxu0 %v315
  %3661 = vmatpush.msra.mxu0 %v311
  %3662 = vmatpush.msra.mxu0 %v307
  %3663 = vmatpush.msra.mxu0 %v303
  %3664 = vmatpush.msra.mxu0 %v299
  %3665 = vmatpush.msra.mxu0 %v295
  %3666 = vmatpush.msra.mxu0 %v291
  %3667 = vmatpush.msra.mxu0 %v287
  %3668 = vmatpush.msra.mxu0 %v283
  %3669 = vmatpush.msra.mxu0 %v279
  %3670 = vmatpush.msra.mxu0 %v275
  %3671 = vmatpush.msra.mxu0 %v271
  %3672 = vmatpush.msra.mxu0 %v267
  %3673 = vmatpush.msra.mxu0 %v263
  %3674 = vmatpush.msra.mxu0 %v259
  %3675 = vmatpush.msra.mxu0 %v255
  %3676 = vmatmul.f32.gmra.mxu0 %v23
  %v3677 = vpop.f32.mrf.mxu0
  %v3678 = vadd.f32 %v3658, %v3677
  %3679 = vdwg.mxu0
  %3680 = vmatpush.msra.mxu0 %v379
  %3681 = vmatpush.msra.mxu0 %v375
  %3682 = vmatpush.msra.mxu0 %v371
  %3683 = vmatpush.msra.mxu0 %v367
  %3684 = vmatpush.msra.mxu0 %v363
  %3685 = vmatpush.msra.mxu0 %v359
  %3686 = vmatpush.msra.mxu0 %v355
  %3687 = vmatpush.msra.mxu0 %v351
  %3688 = vmatpush.msra.mxu0 %v347
  %3689 = vmatpush.msra.mxu0 %v343
  %3690 = vmatpush.msra.mxu0 %v339
  %3691 = vmatpush.msra.mxu0 %v335
  %3692 = vmatpush.msra.mxu0 %v331
  %3693 = vmatpush.msra.mxu0 %v327
  %3694 = vmatpush.msra.mxu0 %v323
  %3695 = vmatpush.msra.mxu0 %v319
  %3696 = vmatmul.f32.gmra.mxu0 %v24
  %v3697 = vpop.f32.mrf.mxu0
  %v3698 = vadd.f32 %v3678, %v3697
  %3699 = vdwg.mxu0
  %3700 = vmatpush.msra.mxu0 %v443
  %3701 = vmatpush.msra.mxu0 %v439
  %3702 = vmatpush.msra.mxu0 %v435
  %3703 = vmatpush.msra.mxu0 %v431
  %3704 = vmatpush.msra.mxu0 %v427
  %3705 = vmatpush.msra.mxu0 %v423
  %3706 = vmatpush.msra.mxu0 %v419
  %3707 = vmatpush.msra.mxu0 %v415
  %3708 = vmatpush.msra.mxu0 %v411
  %3709 = vmatpush.msra.mxu0 %v407
  %3710 = vmatpush.msra.mxu0 %v403
  %3711 = vmatpush.msra.mxu0 %v399
  %3712 = vmatpush.msra.mxu0 %v395
  %3713 = vmatpush.msra.mxu0 %v391
  %3714 = vmatpush.msra.mxu0 %v387
  %3715 = vmatpush.msra.mxu0 %v383
  %3716 = vmatmul.f32.gmra.mxu0 %v25
  %v3717 = vpop.f32.mrf.mxu0
  %v3718 = vadd.f32 %v3698, %v3717
  %3719 = vdwg.mxu0
  %3720 = vmatpush.msra.mxu0 %v507
  %3721 = vmatpush.msra.mxu0 %v503
  %3722 = vmatpush.msra.mxu0 %v499
  %3723 = vmatpush.msra.mxu0 %v495
  %3724 = vmatpush.msra.mxu0 %v491
  %3725 = vmatpush.msra.mxu0 %v487
  %3726 = vmatpush.msra.mxu0 %v483
  %3727 = vmatpush.msra.mxu0 %v479
  %3728 = vmatpush.msra.mxu0 %v475
  %3729 = vmatpush.msra.mxu0 %v471
  %3730 = vmatpush.msra.mxu0 %v467
  %3731 = vmatpush.msra.mxu0 %v463
  %3732 = vmatpush.msra.mxu0 %v459
  %3733 = vmatpush.msra.mxu0 %v455
  %3734 = vmatpush.msra.mxu0 %v451
  %3735 = vmatpush.msra.mxu0 %v447
  %3736 = vmatmul.f32.gmra.mxu0 %v26
  %v3737 = vpop.f32.mrf.mxu0
  %v3738 = vadd.f32 %v3718, %v3737
  %3739 = vdwg.mxu0
  %3740 = vmatpush.msra.mxu0 %v571
  %3741 = vmatpush.msra.mxu0 %v567
  %3742 = vmatpush.msra.mxu0 %v563
  %3743 = vmatpush.msra.mxu0 %v559
  %3744 = vmatpush.msra.mxu0 %v555
  %3745 = vmatpush.msra.mxu0 %v551
  %3746 = vmatpush.msra.mxu0 %v547
  %3747 = vmatpush.msra.mxu0 %v543
  %3748 = vmatpush.msra.mxu0 %v539
  %3749 = vmatpush.msra.mxu0 %v535
  %3750 = vmatpush.msra.mxu0 %v531
  %3751 = vmatpush.msra.mxu0 %v527
  %3752 = vmatpush.msra.mxu0 %v523
  %3753 = vmatpush.msra.mxu0 %v519
  %3754 = vmatpush.msra.mxu0 %v515
  %3755 = vmatpush.msra.mxu0 %v511
  %3756 = vmatmul.f32.gmra.mxu0 %v27
  %v3757 = vpop.f32.mrf.mxu0
  %v3758 = vadd.f32 %v3738, %v3757
  %3759 = vdwg.mxu0
  %3760 = vmatpush.msra.mxu0 %v635
  %3761 = vmatpush.msra.mxu0 %v631
  %3762 = vmatpush.msra.mxu0 %v627
  %3763 = vmatpush.msra.mxu0 %v623
  %3764 = vmatpush.msra.mxu0 %v619
  %3765 = vmatpush.msra.mxu0 %v615
  %3766 = vmatpush.msra.mxu0 %v611
  %3767 = vmatpush.msra.mxu0 %v607
  %3768 = vmatpush.msra.mxu0 %v603
  %3769 = vmatpush.msra.mxu0 %v599
  %3770 = vmatpush.msra.mxu0 %v595
  %3771 = vmatpush.msra.mxu0 %v591
  %3772 = vmatpush.msra.mxu0 %v587
  %3773 = vmatpush.msra.mxu0 %v583
  %3774 = vmatpush.msra.mxu0 %v579
  %3775 = vmatpush.msra.mxu0 %v575
  %3776 = vmatmul.f32.gmra.mxu0 %v28
  %v3777 = vpop.f32.mrf.mxu0
  %v3778 = vadd.f32 %v3758, %v3777
  %3779 = vdwg.mxu0
  %3780 = vmatpush.msra.mxu0 %v699
  %3781 = vmatpush.msra.mxu0 %v695
  %3782 = vmatpush.msra.mxu0 %v691
  %3783 = vmatpush.msra.mxu0 %v687
  %3784 = vmatpush.msra.mxu0 %v683
  %3785 = vmatpush.msra.mxu0 %v679
  %3786 = vmatpush.msra.mxu0 %v675
  %3787 = vmatpush.msra.mxu0 %v671
  %3788 = vmatpush.msra.mxu0 %v667
  %3789 = vmatpush.msra.mxu0 %v663
  %3790 = vmatpush.msra.mxu0 %v659
  %3791 = vmatpush.msra.mxu0 %v655
  %3792 = vmatpush.msra.mxu0 %v651
  %3793 = vmatpush.msra.mxu0 %v647
  %3794 = vmatpush.msra.mxu0 %v643
  %3795 = vmatpush.msra.mxu0 %v639
  %3796 = vmatmul.f32.gmra.mxu0 %v29
  %v3797 = vpop.f32.mrf.mxu0
  %v3798 = vadd.f32 %v3778, %v3797
  %3799 = vdwg.mxu0
  %3800 = vmatpush.msra.mxu0 %v763
  %3801 = vmatpush.msra.mxu0 %v759
  %3802 = vmatpush.msra.mxu0 %v755
  %3803 = vmatpush.msra.mxu0 %v751
  %3804 = vmatpush.msra.mxu0 %v747
  %3805 = vmatpush.msra.mxu0 %v743
  %3806 = vmatpush.msra.mxu0 %v739
  %3807 = vmatpush.msra.mxu0 %v735
  %3808 = vmatpush.msra.mxu0 %v731
  %3809 = vmatpush.msra.mxu0 %v727
  %3810 = vmatpush.msra.mxu0 %v723
  %3811 = vmatpush.msra.mxu0 %v719
  %3812 = vmatpush.msra.mxu0 %v715
  %3813 = vmatpush.msra.mxu0 %v711
  %3814 = vmatpush.msra.mxu0 %v707
  %3815 = vmatpush.msra.mxu0 %v703
  %3816 = vmatmul.f32.gmra.mxu0 %v30
  %v3817 = vpop.f32.mrf.mxu0
  %v3818 = vadd.f32 %v3798, %v3817
  %3819 = vdwg.mxu0
  %3820 = vmatpush.msra.mxu0 %v827
  %3821 = vmatpush.msra.mxu0 %v823
  %3822 = vmatpush.msra.mxu0 %v819
  %3823 = vmatpush.msra.mxu0 %v815
  %3824 = vmatpush.msra.mxu0 %v811
  %3825 = vmatpush.msra.mxu0 %v807
  %3826 = vmatpush.msra.mxu0 %v803
  %3827 = vmatpush.msra.mxu0 %v799
  %3828 = vmatpush.msra.mxu0 %v795
  %3829 = vmatpush.msra.mxu0 %v791
  %3830 = vmatpush.msra.mxu0 %v787
  %3831 = vmatpush.msra.mxu0 %v783
  %3832 = vmatpush.msra.mxu0 %v779
  %3833 = vmatpush.msra.mxu0 %v775
  %3834 = vmatpush.msra.mxu0 %v771
  %3835 = vmatpush.msra.mxu0 %v767
  %3836 = vmatmul.f32.gmra.mxu0 %v31
  %v3837 = vpop.f32.mrf.mxu0
  %v3838 = vadd.f32 %v3818, %v3837
  %3839 = vdwg.mxu0
  %3840 = vmatpush.msra.mxu0 %v891
  %3841 = vmatpush.msra.mxu0 %v887
  %3842 = vmatpush.msra.mxu0 %v883
  %3843 = vmatpush.msra.mxu0 %v879
  %3844 = vmatpush.msra.mxu0 %v875
  %3845 = vmatpush.msra.mxu0 %v871
  %3846 = vmatpush.msra.mxu0 %v867
  %3847 = vmatpush.msra.mxu0 %v863
  %3848 = vmatpush.msra.mxu0 %v859
  %3849 = vmatpush.msra.mxu0 %v855
  %3850 = vmatpush.msra.mxu0 %v851
  %3851 = vmatpush.msra.mxu0 %v847
  %3852 = vmatpush.msra.mxu0 %v843
  %3853 = vmatpush.msra.mxu0 %v839
  %3854 = vmatpush.msra.mxu0 %v835
  %3855 = vmatpush.msra.mxu0 %v831
  %3856 = vmatmul.f32.gmra.mxu0 %v32
  %v3857 = vpop.f32.mrf.mxu0
  %v3858 = vadd.f32 %v3838, %v3857
  %3859 = vdwg.mxu0
  %3860 = vmatpush.msra.mxu0 %v955
  %3861 = vmatpush.msra.mxu0 %v951
  %3862 = vmatpush.msra.mxu0 %v947
  %3863 = vmatpush.msra.mxu0 %v943
  %3864 = vmatpush.msra.mxu0 %v939
  %3865 = vmatpush.msra.mxu0 %v935
  %3866 = vmatpush.msra.mxu0 %v931
  %3867 = vmatpush.msra.mxu0 %v927
  %3868 = vmatpush.msra.mxu0 %v923
  %3869 = vmatpush.msra.mxu0 %v919
  %3870 = vmatpush.msra.mxu0 %v915
  %3871 = vmatpush.msra.mxu0 %v911
  %3872 = vmatpush.msra.mxu0 %v907
  %3873 = vmatpush.msra.mxu0 %v903
  %3874 = vmatpush.msra.mxu0 %v899
  %3875 = vmatpush.msra.mxu0 %v895
  %3876 = vmatmul.f32.gmra.mxu0 %v33
  %v3877 = vpop.f32.mrf.mxu0
  %v3878 = vadd.f32 %v3858, %v3877
  %3879 = vdwg.mxu0
  %3880 = vmatpush.msra.mxu0 %v1019
  %3881 = vmatpush.msra.mxu0 %v1015
  %3882 = vmatpush.msra.mxu0 %v1011
  %3883 = vmatpush.msra.mxu0 %v1007
  %3884 = vmatpush.msra.mxu0 %v1003
  %3885 = vmatpush.msra.mxu0 %v999
  %3886 = vmatpush.msra.mxu0 %v995
  %3887 = vmatpush.msra.mxu0 %v991
  %3888 = vmatpush.msra.mxu0 %v987
  %3889 = vmatpush.msra.mxu0 %v983
  %3890 = vmatpush.msra.mxu0 %v979
  %3891 = vmatpush.msra.mxu0 %v975
  %3892 = vmatpush.msra.mxu0 %v971
  %3893 = vmatpush.msra.mxu0 %v967
  %3894 = vmatpush.msra.mxu0 %v963
  %3895 = vmatpush.msra.mxu0 %v959
  %3896 = vmatmul.f32.gmra.mxu0 %v34
  %v3897 = vpop.f32.mrf.mxu0
  %v3898 = vadd.f32 %v3878, %v3897
  %3899 = vdwg.mxu0
  %3900 = vmatpush.msra.mxu0 %v1083
  %3901 = vmatpush.msra.mxu0 %v1079
  %3902 = vmatpush.msra.mxu0 %v1075
  %3903 = vmatpush.msra.mxu0 %v1071
  %3904 = vmatpush.msra.mxu0 %v1067
  %3905 = vmatpush.msra.mxu0 %v1063
  %3906 = vmatpush.msra.mxu0 %v1059
  %3907 = vmatpush.msra.mxu0 %v1055
  %3908 = vmatpush.msra.mxu0 %v1051
  %3909 = vmatpush.msra.mxu0 %v1047
  %3910 = vmatpush.msra.mxu0 %v1043
  %3911 = vmatpush.msra.mxu0 %v1039
  %3912 = vmatpush.msra.mxu0 %v1035
  %3913 = vmatpush.msra.mxu0 %v1031
  %3914 = vmatpush.msra.mxu0 %v1027
  %3915 = vmatpush.msra.mxu0 %v1023
  %3916 = vmatmul.f32.gmra.mxu0 %v35
  %v3917 = vpop.f32.mrf.mxu0
  %v3918 = vadd.f32 %v3898, %v3917
  %3919 = vdwg.mxu0
  %3920 = vmatpush.msra.mxu0 %v1147
  %3921 = vmatpush.msra.mxu0 %v1143
  %3922 = vmatpush.msra.mxu0 %v1139
  %3923 = vmatpush.msra.mxu0 %v1135
  %3924 = vmatpush.msra.mxu0 %v1131
  %3925 = vmatpush.msra.mxu0 %v1127
  %3926 = vmatpush.msra.mxu0 %v1123
  %3927 = vmatpush.msra.mxu0 %v1119
  %3928 = vmatpush.msra.mxu0 %v1115
  %3929 = vmatpush.msra.mxu0 %v1111
  %3930 = vmatpush.msra.mxu0 %v1107
  %3931 = vmatpush.msra.mxu0 %v1103
  %3932 = vmatpush.msra.mxu0 %v1099
  %3933 = vmatpush.msra.mxu0 %v1095
  %3934 = vmatpush.msra.mxu0 %v1091
  %3935 = vmatpush.msra.mxu0 %v1087
  %3936 = vmatmul.f32.gmra.mxu0 %v36
  %v3937 = vpop.f32.mrf.mxu0
  %v3938 = vadd.f32 %v3918, %v3937
  %3939 = vdwg.mxu0
  %3940 = vmatpush.msra.mxu0 %v1211
  %3941 = vmatpush.msra.mxu0 %v1207
  %3942 = vmatpush.msra.mxu0 %v1203
  %3943 = vmatpush.msra.mxu0 %v1199
  %3944 = vmatpush.msra.mxu0 %v1195
  %3945 = vmatpush.msra.mxu0 %v1191
  %3946 = vmatpush.msra.mxu0 %v1187
  %3947 = vmatpush.msra.mxu0 %v1183
  %3948 = vmatpush.msra.mxu0 %v1179
  %3949 = vmatpush.msra.mxu0 %v1175
  %3950 = vmatpush.msra.mxu0 %v1171
  %3951 = vmatpush.msra.mxu0 %v1167
  %3952 = vmatpush.msra.mxu0 %v1163
  %3953 = vmatpush.msra.mxu0 %v1159
  %3954 = vmatpush.msra.mxu0 %v1155
  %3955 = vmatpush.msra.mxu0 %v1151
  %3956 = vmatmul.f32.gmra.mxu0 %v37
  %v3957 = vpop.f32.mrf.mxu0
  %v3958 = vadd.f32 %v3938, %v3957
  %3959 = vdwg.mxu0
  %3960 = vmatpush.msra.mxu0 %v1275
  %3961 = vmatpush.msra.mxu0 %v1271
  %3962 = vmatpush.msra.mxu0 %v1267
  %3963 = vmatpush.msra.mxu0 %v1263
  %3964 = vmatpush.msra.mxu0 %v1259
  %3965 = vmatpush.msra.mxu0 %v1255
  %3966 = vmatpush.msra.mxu0 %v1251
  %3967 = vmatpush.msra.mxu0 %v1247
  %3968 = vmatpush.msra.mxu0 %v1243
  %3969 = vmatpush.msra.mxu0 %v1239
  %3970 = vmatpush.msra.mxu0 %v1235
  %3971 = vmatpush.msra.mxu0 %v1231
  %3972 = vmatpush.msra.mxu0 %v1227
  %3973 = vmatpush.msra.mxu0 %v1223
  %3974 = vmatpush.msra.mxu0 %v1219
  %3975 = vmatpush.msra.mxu0 %v1215
  %3976 = vmatmul.f32.gmra.mxu0 %v38
  %v3977 = vpop.f32.mrf.mxu0
  %v3978 = vadd.f32 %v3958, %v3977
  %3979 = vdwg.mxu0
  %3980 = vmatpush.msra.mxu0 %v1339
  %3981 = vmatpush.msra.mxu0 %v1335
  %3982 = vmatpush.msra.mxu0 %v1331
  %3983 = vmatpush.msra.mxu0 %v1327
  %3984 = vmatpush.msra.mxu0 %v1323
  %3985 = vmatpush.msra.mxu0 %v1319
  %3986 = vmatpush.msra.mxu0 %v1315
  %3987 = vmatpush.msra.mxu0 %v1311
  %3988 = vmatpush.msra.mxu0 %v1307
  %3989 = vmatpush.msra.mxu0 %v1303
  %3990 = vmatpush.msra.mxu0 %v1299
  %3991 = vmatpush.msra.mxu0 %v1295
  %3992 = vmatpush.msra.mxu0 %v1291
  %3993 = vmatpush.msra.mxu0 %v1287
  %3994 = vmatpush.msra.mxu0 %v1283
  %3995 = vmatpush.msra.mxu0 %v1279
  %3996 = vmatmul.f32.gmra.mxu0 %v39
  %v3997 = vpop.f32.mrf.mxu0
  %v3998 = vadd.f32 %v3978, %v3997
  %3999 = vdwg.mxu0
  %4000 = vmatpush.msra.mxu0 %v1403
  %4001 = vmatpush.msra.mxu0 %v1399
  %4002 = vmatpush.msra.mxu0 %v1395
  %4003 = vmatpush.msra.mxu0 %v1391
  %4004 = vmatpush.msra.mxu0 %v1387
  %4005 = vmatpush.msra.mxu0 %v1383
  %4006 = vmatpush.msra.mxu0 %v1379
  %4007 = vmatpush.msra.mxu0 %v1375
  %4008 = vmatpush.msra.mxu0 %v1371
  %4009 = vmatpush.msra.mxu0 %v1367
  %4010 = vmatpush.msra.mxu0 %v1363
  %4011 = vmatpush.msra.mxu0 %v1359
  %4012 = vmatpush.msra.mxu0 %v1355
  %4013 = vmatpush.msra.mxu0 %v1351
  %4014 = vmatpush.msra.mxu0 %v1347
  %4015 = vmatpush.msra.mxu0 %v1343
  %4016 = vmatmul.f32.gmra.mxu0 %v40
  %v4017 = vpop.f32.mrf.mxu0
  %v4018 = vadd.f32 %v3998, %v4017
  %4019 = vdwg.mxu0
  %4020 = vmatpush.msra.mxu0 %v1467
  %4021 = vmatpush.msra.mxu0 %v1463
  %4022 = vmatpush.msra.mxu0 %v1459
  %4023 = vmatpush.msra.mxu0 %v1455
  %4024 = vmatpush.msra.mxu0 %v1451
  %4025 = vmatpush.msra.mxu0 %v1447
  %4026 = vmatpush.msra.mxu0 %v1443
  %4027 = vmatpush.msra.mxu0 %v1439
  %4028 = vmatpush.msra.mxu0 %v1435
  %4029 = vmatpush.msra.mxu0 %v1431
  %4030 = vmatpush.msra.mxu0 %v1427
  %4031 = vmatpush.msra.mxu0 %v1423
  %4032 = vmatpush.msra.mxu0 %v1419
  %4033 = vmatpush.msra.mxu0 %v1415
  %4034 = vmatpush.msra.mxu0 %v1411
  %4035 = vmatpush.msra.mxu0 %v1407
  %4036 = vmatmul.f32.gmra.mxu0 %v41
  %v4037 = vpop.f32.mrf.mxu0
  %v4038 = vadd.f32 %v4018, %v4037
  %4039 = vdwg.mxu0
  %4040 = vmatpush.msra.mxu0 %v1531
  %4041 = vmatpush.msra.mxu0 %v1527
  %4042 = vmatpush.msra.mxu0 %v1523
  %4043 = vmatpush.msra.mxu0 %v1519
  %4044 = vmatpush.msra.mxu0 %v1515
  %4045 = vmatpush.msra.mxu0 %v1511
  %4046 = vmatpush.msra.mxu0 %v1507
  %4047 = vmatpush.msra.mxu0 %v1503
  %4048 = vmatpush.msra.mxu0 %v1499
  %4049 = vmatpush.msra.mxu0 %v1495
  %4050 = vmatpush.msra.mxu0 %v1491
  %4051 = vmatpush.msra.mxu0 %v1487
  %4052 = vmatpush.msra.mxu0 %v1483
  %4053 = vmatpush.msra.mxu0 %v1479
  %4054 = vmatpush.msra.mxu0 %v1475
  %4055 = vmatpush.msra.mxu0 %v1471
  %4056 = vmatmul.f32.gmra.mxu0 %v42
  %v4057 = vpop.f32.mrf.mxu0
  %v4058 = vadd.f32 %v4038, %v4057
  %4059 = vdwg.mxu0
  %4060 = vmatpush.msra.mxu0 %v1595
  %4061 = vmatpush.msra.mxu0 %v1591
  %4062 = vmatpush.msra.mxu0 %v1587
  %4063 = vmatpush.msra.mxu0 %v1583
  %4064 = vmatpush.msra.mxu0 %v1579
  %4065 = vmatpush.msra.mxu0 %v1575
  %4066 = vmatpush.msra.mxu0 %v1571
  %4067 = vmatpush.msra.mxu0 %v1567
  %4068 = vmatpush.msra.mxu0 %v1563
  %4069 = vmatpush.msra.mxu0 %v1559
  %4070 = vmatpush.msra.mxu0 %v1555
  %4071 = vmatpush.msra.mxu0 %v1551
  %4072 = vmatpush.msra.mxu0 %v1547
  %4073 = vmatpush.msra.mxu0 %v1543
  %4074 = vmatpush.msra.mxu0 %v1539
  %4075 = vmatpush.msra.mxu0 %v1535
  %4076 = vmatmul.f32.gmra.mxu0 %v43
  %v4077 = vpop.f32.mrf.mxu0
  %v4078 = vadd.f32 %v4058, %v4077
  %4079 = vdwg.mxu0
  %4080 = vmatpush.msra.mxu0 %v1659
  %4081 = vmatpush.msra.mxu0 %v1655
  %4082 = vmatpush.msra.mxu0 %v1651
  %4083 = vmatpush.msra.mxu0 %v1647
  %4084 = vmatpush.msra.mxu0 %v1643
  %4085 = vmatpush.msra.mxu0 %v1639
  %4086 = vmatpush.msra.mxu0 %v1635
  %4087 = vmatpush.msra.mxu0 %v1631
  %4088 = vmatpush.msra.mxu0 %v1627
  %4089 = vmatpush.msra.mxu0 %v1623
  %4090 = vmatpush.msra.mxu0 %v1619
  %4091 = vmatpush.msra.mxu0 %v1615
  %4092 = vmatpush.msra.mxu0 %v1611
  %4093 = vmatpush.msra.mxu0 %v1607
  %4094 = vmatpush.msra.mxu0 %v1603
  %4095 = vmatpush.msra.mxu0 %v1599
  %4096 = vmatmul.f32.gmra.mxu0 %v44
  %v4097 = vpop.f32.mrf.mxu0
  %v4098 = vadd.f32 %v4078, %v4097
  %4099 = vdwg.mxu0
  %4100 = vmatpush.msra.mxu0 %v1723
  %4101 = vmatpush.msra.mxu0 %v1719
  %4102 = vmatpush.msra.mxu0 %v1715
  %4103 = vmatpush.msra.mxu0 %v1711
  %4104 = vmatpush.msra.mxu0 %v1707
  %4105 = vmatpush.msra.mxu0 %v1703
  %4106 = vmatpush.msra.mxu0 %v1699
  %4107 = vmatpush.msra.mxu0 %v1695
  %4108 = vmatpush.msra.mxu0 %v1691
  %4109 = vmatpush.msra.mxu0 %v1687
  %4110 = vmatpush.msra.mxu0 %v1683
  %4111 = vmatpush.msra.mxu0 %v1679
  %4112 = vmatpush.msra.mxu0 %v1675
  %4113 = vmatpush.msra.mxu0 %v1671
  %4114 = vmatpush.msra.mxu0 %v1667
  %4115 = vmatpush.msra.mxu0 %v1663
  %4116 = vmatmul.f32.gmra.mxu0 %v45
  %v4117 = vpop.f32.mrf.mxu0
  %v4118 = vadd.f32 %v4098, %v4117
  %4119 = vdwg.mxu0
  %4120 = vmatpush.msra.mxu0 %v1787
  %4121 = vmatpush.msra.mxu0 %v1783
  %4122 = vmatpush.msra.mxu0 %v1779
  %4123 = vmatpush.msra.mxu0 %v1775
  %4124 = vmatpush.msra.mxu0 %v1771
  %4125 = vmatpush.msra.mxu0 %v1767
  %4126 = vmatpush.msra.mxu0 %v1763
  %4127 = vmatpush.msra.mxu0 %v1759
  %4128 = vmatpush.msra.mxu0 %v1755
  %4129 = vmatpush.msra.mxu0 %v1751
  %4130 = vmatpush.msra.mxu0 %v1747
  %4131 = vmatpush.msra.mxu0 %v1743
  %4132 = vmatpush.msra.mxu0 %v1739
  %4133 = vmatpush.msra.mxu0 %v1735
  %4134 = vmatpush.msra.mxu0 %v1731
  %4135 = vmatpush.msra.mxu0 %v1727
  %4136 = vmatmul.f32.gmra.mxu0 %v46
  %v4137 = vpop.f32.mrf.mxu0
  %v4138 = vadd.f32 %v4118, %v4137
  %4139 = vdwg.mxu0
  %4140 = vmatpush.msra.mxu0 %v1851
  %4141 = vmatpush.msra.mxu0 %v1847
  %4142 = vmatpush.msra.mxu0 %v1843
  %4143 = vmatpush.msra.mxu0 %v1839
  %4144 = vmatpush.msra.mxu0 %v1835
  %4145 = vmatpush.msra.mxu0 %v1831
  %4146 = vmatpush.msra.mxu0 %v1827
  %4147 = vmatpush.msra.mxu0 %v1823
  %4148 = vmatpush.msra.mxu0 %v1819
  %4149 = vmatpush.msra.mxu0 %v1815
  %4150 = vmatpush.msra.mxu0 %v1811
  %4151 = vmatpush.msra.mxu0 %v1807
  %4152 = vmatpush.msra.mxu0 %v1803
  %4153 = vmatpush.msra.mxu0 %v1799
  %4154 = vmatpush.msra.mxu0 %v1795
  %4155 = vmatpush.msra.mxu0 %v1791
  %4156 = vmatmul.f32.gmra.mxu0 %v47
  %v4157 = vpop.f32.mrf.mxu0
  %v4158 = vadd.f32 %v4138, %v4157
  %4159 = vdwg.mxu0
  %4160 = vmatpush.msra.mxu0 %v1915
  %4161 = vmatpush.msra.mxu0 %v1911
  %4162 = vmatpush.msra.mxu0 %v1907
  %4163 = vmatpush.msra.mxu0 %v1903
  %4164 = vmatpush.msra.mxu0 %v1899
  %4165 = vmatpush.msra.mxu0 %v1895
  %4166 = vmatpush.msra.mxu0 %v1891
  %4167 = vmatpush.msra.mxu0 %v1887
  %4168 = vmatpush.msra.mxu0 %v1883
  %4169 = vmatpush.msra.mxu0 %v1879
  %4170 = vmatpush.msra.mxu0 %v1875
  %4171 = vmatpush.msra.mxu0 %v1871
  %4172 = vmatpush.msra.mxu0 %v1867
  %4173 = vmatpush.msra.mxu0 %v1863
  %4174 = vmatpush.msra.mxu0 %v1859
  %4175 = vmatpush.msra.mxu0 %v1855
  %4176 = vmatmul.f32.gmra.mxu0 %v48
  %v4177 = vpop.f32.mrf.mxu0
  %v4178 = vadd.f32 %v4158, %v4177
  %4179 = vdwg.mxu0
  %4180 = vmatpush.msra.mxu0 %v1979
  %4181 = vmatpush.msra.mxu0 %v1975
  %4182 = vmatpush.msra.mxu0 %v1971
  %4183 = vmatpush.msra.mxu0 %v1967
  %4184 = vmatpush.msra.mxu0 %v1963
  %4185 = vmatpush.msra.mxu0 %v1959
  %4186 = vmatpush.msra.mxu0 %v1955
  %4187 = vmatpush.msra.mxu0 %v1951
  %4188 = vmatpush.msra.mxu0 %v1947
  %4189 = vmatpush.msra.mxu0 %v1943
  %4190 = vmatpush.msra.mxu0 %v1939
  %4191 = vmatpush.msra.mxu0 %v1935
  %4192 = vmatpush.msra.mxu0 %v1931
  %4193 = vmatpush.msra.mxu0 %v1927
  %4194 = vmatpush.msra.mxu0 %v1923
  %4195 = vmatpush.msra.mxu0 %v1919
  %4196 = vmatmul.f32.gmra.mxu0 %v49
  %v4197 = vpop.f32.mrf.mxu0
  %v4198 = vadd.f32 %v4178, %v4197
  %4199 = vdwg.mxu0
  %4200 = vmatpush.msra.mxu0 %v2043
  %4201 = vmatpush.msra.mxu0 %v2039
  %4202 = vmatpush.msra.mxu0 %v2035
  %4203 = vmatpush.msra.mxu0 %v2031
  %4204 = vmatpush.msra.mxu0 %v2027
  %4205 = vmatpush.msra.mxu0 %v2023
  %4206 = vmatpush.msra.mxu0 %v2019
  %4207 = vmatpush.msra.mxu0 %v2015
  %4208 = vmatpush.msra.mxu0 %v2011
  %4209 = vmatpush.msra.mxu0 %v2007
  %4210 = vmatpush.msra.mxu0 %v2003
  %4211 = vmatpush.msra.mxu0 %v1999
  %4212 = vmatpush.msra.mxu0 %v1995
  %4213 = vmatpush.msra.mxu0 %v1991
  %4214 = vmatpush.msra.mxu0 %v1987
  %4215 = vmatpush.msra.mxu0 %v1983
  %4216 = vmatmul.f32.gmra.mxu0 %v50
  %v4217 = vpop.f32.mrf.mxu0
  %v4218 = vadd.f32 %v4198, %v4217
  %4219 = vdwg.mxu0
  %4220 = vmatpush.msra.mxu0 %v2107
  %4221 = vmatpush.msra.mxu0 %v2103
  %4222 = vmatpush.msra.mxu0 %v2099
  %4223 = vmatpush.msra.mxu0 %v2095
  %4224 = vmatpush.msra.mxu0 %v2091
  %4225 = vmatpush.msra.mxu0 %v2087
  %4226 = vmatpush.msra.mxu0 %v2083
  %4227 = vmatpush.msra.mxu0 %v2079
  %4228 = vmatpush.msra.mxu0 %v2075
  %4229 = vmatpush.msra.mxu0 %v2071
  %4230 = vmatpush.msra.mxu0 %v2067
  %4231 = vmatpush.msra.mxu0 %v2063
  %4232 = vmatpush.msra.mxu0 %v2059
  %4233 = vmatpush.msra.mxu0 %v2055
  %4234 = vmatpush.msra.mxu0 %v2051
  %4235 = vmatpush.msra.mxu0 %v2047
  %4236 = vmatmul.f32.gmra.mxu0 %v51
  %v4237 = vpop.f32.mrf.mxu0
  %v4238 = vadd.f32 %v4218, %v4237
  %4239 = vdwg.mxu0
  %4240 = vmatpush.msra.mxu0 %v2171
  %4241 = vmatpush.msra.mxu0 %v2167
  %4242 = vmatpush.msra.mxu0 %v2163
  %4243 = vmatpush.msra.mxu0 %v2159
  %4244 = vmatpush.msra.mxu0 %v2155
  %4245 = vmatpush.msra.mxu0 %v2151
  %4246 = vmatpush.msra.mxu0 %v2147
  %4247 = vmatpush.msra.mxu0 %v2143
  %4248 = vmatpush.msra.mxu0 %v2139
  %4249 = vmatpush.msra.mxu0 %v2135
  %4250 = vmatpush.msra.mxu0 %v2131
  %4251 = vmatpush.msra.mxu0 %v2127
  %4252 = vmatpush.msra.mxu0 %v2123
  %4253 = vmatpush.msra.mxu0 %v2119
  %4254 = vmatpush.msra.mxu0 %v2115
  %4255 = vmatpush.msra.mxu0 %v2111
  %4256 = vmatmul.f32.gmra.mxu0 %v52
  %v4257 = vpop.f32.mrf.mxu0
  %v4258 = vadd.f32 %v4238, %v4257
  %4259 = vdwg.mxu0
  %4260 = vmatpush.msra.mxu0 %v2235
  %4261 = vmatpush.msra.mxu0 %v2231
  %4262 = vmatpush.msra.mxu0 %v2227
  %4263 = vmatpush.msra.mxu0 %v2223
  %4264 = vmatpush.msra.mxu0 %v2219
  %4265 = vmatpush.msra.mxu0 %v2215
  %4266 = vmatpush.msra.mxu0 %v2211
  %4267 = vmatpush.msra.mxu0 %v2207
  %4268 = vmatpush.msra.mxu0 %v2203
  %4269 = vmatpush.msra.mxu0 %v2199
  %4270 = vmatpush.msra.mxu0 %v2195
  %4271 = vmatpush.msra.mxu0 %v2191
  %4272 = vmatpush.msra.mxu0 %v2187
  %4273 = vmatpush.msra.mxu0 %v2183
  %4274 = vmatpush.msra.mxu0 %v2179
  %4275 = vmatpush.msra.mxu0 %v2175
  %4276 = vmatmul.f32.gmra.mxu0 %v53
  %v4277 = vpop.f32.mrf.mxu0
  %v4278 = vadd.f32 %v4258, %v4277
  %4279 = vdwg.mxu0
  %4280 = vmatpush.msra.mxu0 %v2299
  %4281 = vmatpush.msra.mxu0 %v2295
  %4282 = vmatpush.msra.mxu0 %v2291
  %4283 = vmatpush.msra.mxu0 %v2287
  %4284 = vmatpush.msra.mxu0 %v2283
  %4285 = vmatpush.msra.mxu0 %v2279
  %4286 = vmatpush.msra.mxu0 %v2275
  %4287 = vmatpush.msra.mxu0 %v2271
  %4288 = vmatpush.msra.mxu0 %v2267
  %4289 = vmatpush.msra.mxu0 %v2263
  %4290 = vmatpush.msra.mxu0 %v2259
  %4291 = vmatpush.msra.mxu0 %v2255
  %4292 = vmatpush.msra.mxu0 %v2251
  %4293 = vmatpush.msra.mxu0 %v2247
  %4294 = vmatpush.msra.mxu0 %v2243
  %4295 = vmatpush.msra.mxu0 %v2239
  %4296 = vmatmul.f32.gmra.mxu0 %v54
  %v4297 = vpop.f32.mrf.mxu0
  %v4298 = vadd.f32 %v4278, %v4297
  %4299 = vdwg.mxu0
  %4300 = vmatpush.msra.mxu0 %v2363
  %4301 = vmatpush.msra.mxu0 %v2359
  %4302 = vmatpush.msra.mxu0 %v2355
  %4303 = vmatpush.msra.mxu0 %v2351
  %4304 = vmatpush.msra.mxu0 %v2347
  %4305 = vmatpush.msra.mxu0 %v2343
  %4306 = vmatpush.msra.mxu0 %v2339
  %4307 = vmatpush.msra.mxu0 %v2335
  %4308 = vmatpush.msra.mxu0 %v2331
  %4309 = vmatpush.msra.mxu0 %v2327
  %4310 = vmatpush.msra.mxu0 %v2323
  %4311 = vmatpush.msra.mxu0 %v2319
  %4312 = vmatpush.msra.mxu0 %v2315
  %4313 = vmatpush.msra.mxu0 %v2311
  %4314 = vmatpush.msra.mxu0 %v2307
  %4315 = vmatpush.msra.mxu0 %v2303
  %4316 = vmatmul.f32.gmra.mxu0 %v55
  %v4317 = vpop.f32.mrf.mxu0
  %v4318 = vadd.f32 %v4298, %v4317
  %4319 = vdwg.mxu0
  %4320 = vmatpush.msra.mxu0 %v2427
  %4321 = vmatpush.msra.mxu0 %v2423
  %4322 = vmatpush.msra.mxu0 %v2419
  %4323 = vmatpush.msra.mxu0 %v2415
  %4324 = vmatpush.msra.mxu0 %v2411
  %4325 = vmatpush.msra.mxu0 %v2407
  %4326 = vmatpush.msra.mxu0 %v2403
  %4327 = vmatpush.msra.mxu0 %v2399
  %4328 = vmatpush.msra.mxu0 %v2395
  %4329 = vmatpush.msra.mxu0 %v2391
  %4330 = vmatpush.msra.mxu0 %v2387
  %4331 = vmatpush.msra.mxu0 %v2383
  %4332 = vmatpush.msra.mxu0 %v2379
  %4333 = vmatpush.msra.mxu0 %v2375
  %4334 = vmatpush.msra.mxu0 %v2371
  %4335 = vmatpush.msra.mxu0 %v2367
  %4336 = vmatmul.f32.gmra.mxu0 %v56
  %v4337 = vpop.f32.mrf.mxu0
  %v4338 = vadd.f32 %v4318, %v4337
  %4339 = vdwg.mxu0
  %4340 = vmatpush.msra.mxu0 %v2491
  %4341 = vmatpush.msra.mxu0 %v2487
  %4342 = vmatpush.msra.mxu0 %v2483
  %4343 = vmatpush.msra.mxu0 %v2479
  %4344 = vmatpush.msra.mxu0 %v2475
  %4345 = vmatpush.msra.mxu0 %v2471
  %4346 = vmatpush.msra.mxu0 %v2467
  %4347 = vmatpush.msra.mxu0 %v2463
  %4348 = vmatpush.msra.mxu0 %v2459
  %4349 = vmatpush.msra.mxu0 %v2455
  %4350 = vmatpush.msra.mxu0 %v2451
  %4351 = vmatpush.msra.mxu0 %v2447
  %4352 = vmatpush.msra.mxu0 %v2443
  %4353 = vmatpush.msra.mxu0 %v2439
  %4354 = vmatpush.msra.mxu0 %v2435
  %4355 = vmatpush.msra.mxu0 %v2431
  %4356 = vmatmul.f32.gmra.mxu0 %v57
  %v4357 = vpop.f32.mrf.mxu0
  %v4358 = vadd.f32 %v4338, %v4357
  %4359 = vdwg.mxu0
  %4360 = vmatpush.msra.mxu0 %v2555
  %4361 = vmatpush.msra.mxu0 %v2551
  %4362 = vmatpush.msra.mxu0 %v2547
  %4363 = vmatpush.msra.mxu0 %v2543
  %4364 = vmatpush.msra.mxu0 %v2539
  %4365 = vmatpush.msra.mxu0 %v2535
  %4366 = vmatpush.msra.mxu0 %v2531
  %4367 = vmatpush.msra.mxu0 %v2527
  %4368 = vmatpush.msra.mxu0 %v2523
  %4369 = vmatpush.msra.mxu0 %v2519
  %4370 = vmatpush.msra.mxu0 %v2515
  %4371 = vmatpush.msra.mxu0 %v2511
  %4372 = vmatpush.msra.mxu0 %v2507
  %4373 = vmatpush.msra.mxu0 %v2503
  %4374 = vmatpush.msra.mxu0 %v2499
  %4375 = vmatpush.msra.mxu0 %v2495
  %4376 = vmatmul.f32.gmra.mxu0 %v58
  %v4377 = vpop.f32.mrf.mxu0
  %v4378 = vadd.f32 %v4358, %v4377
  %4379 = vdwg.mxu0
  %4380 = vmatpush.msra.mxu0 %v2619
  %4381 = vmatpush.msra.mxu0 %v2615
  %4382 = vmatpush.msra.mxu0 %v2611
  %4383 = vmatpush.msra.mxu0 %v2607
  %4384 = vmatpush.msra.mxu0 %v2603
  %4385 = vmatpush.msra.mxu0 %v2599
  %4386 = vmatpush.msra.mxu0 %v2595
  %4387 = vmatpush.msra.mxu0 %v2591
  %4388 = vmatpush.msra.mxu0 %v2587
  %4389 = vmatpush.msra.mxu0 %v2583
  %4390 = vmatpush.msra.mxu0 %v2579
  %4391 = vmatpush.msra.mxu0 %v2575
  %4392 = vmatpush.msra.mxu0 %v2571
  %4393 = vmatpush.msra.mxu0 %v2567
  %4394 = vmatpush.msra.mxu0 %v2563
  %4395 = vmatpush.msra.mxu0 %v2559
  %4396 = vmatmul.f32.gmra.mxu0 %v59
  %v4397 = vpop.f32.mrf.mxu0
  %v4398 = vadd.f32 %v4378, %v4397
  %4399 = vdwg.mxu0
  %4400 = vmatpush.msra.mxu0 %v2683
  %4401 = vmatpush.msra.mxu0 %v2679
  %4402 = vmatpush.msra.mxu0 %v2675
  %4403 = vmatpush.msra.mxu0 %v2671
  %4404 = vmatpush.msra.mxu0 %v2667
  %4405 = vmatpush.msra.mxu0 %v2663
  %4406 = vmatpush.msra.mxu0 %v2659
  %4407 = vmatpush.msra.mxu0 %v2655
  %4408 = vmatpush.msra.mxu0 %v2651
  %4409 = vmatpush.msra.mxu0 %v2647
  %4410 = vmatpush.msra.mxu0 %v2643
  %4411 = vmatpush.msra.mxu0 %v2639
  %4412 = vmatpush.msra.mxu0 %v2635
  %4413 = vmatpush.msra.mxu0 %v2631
  %4414 = vmatpush.msra.mxu0 %v2627
  %4415 = vmatpush.msra.mxu0 %v2623
  %4416 = vmatmul.f32.gmra.mxu0 %v60
  %v4417 = vpop.f32.mrf.mxu0
  %v4418 = vadd.f32 %v4398, %v4417
  %4419 = vdwg.mxu0
  %4420 = vmatpush.msra.mxu0 %v2747
  %4421 = vmatpush.msra.mxu0 %v2743
  %4422 = vmatpush.msra.mxu0 %v2739
  %4423 = vmatpush.msra.mxu0 %v2735
  %4424 = vmatpush.msra.mxu0 %v2731
  %4425 = vmatpush.msra.mxu0 %v2727
  %4426 = vmatpush.msra.mxu0 %v2723
  %4427 = vmatpush.msra.mxu0 %v2719
  %4428 = vmatpush.msra.mxu0 %v2715
  %4429 = vmatpush.msra.mxu0 %v2711
  %4430 = vmatpush.msra.mxu0 %v2707
  %4431 = vmatpush.msra.mxu0 %v2703
  %4432 = vmatpush.msra.mxu0 %v2699
  %4433 = vmatpush.msra.mxu0 %v2695
  %4434 = vmatpush.msra.mxu0 %v2691
  %4435 = vmatpush.msra.mxu0 %v2687
  %4436 = vmatmul.f32.gmra.mxu0 %v61
  %v4437 = vpop.f32.mrf.mxu0
  %v4438 = vadd.f32 %v4418, %v4437
  %4439 = vdwg.mxu0
  %4440 = vmatpush.msra.mxu0 %v124
  %4441 = vmatpush.msra.mxu0 %v120
  %4442 = vmatpush.msra.mxu0 %v116
  %4443 = vmatpush.msra.mxu0 %v112
  %4444 = vmatpush.msra.mxu0 %v108
  %4445 = vmatpush.msra.mxu0 %v104
  %4446 = vmatpush.msra.mxu0 %v100
  %4447 = vmatpush.msra.mxu0 %v96
  %4448 = vmatpush.msra.mxu0 %v92
  %4449 = vmatpush.msra.mxu0 %v88
  %4450 = vmatpush.msra.mxu0 %v84
  %4451 = vmatpush.msra.mxu0 %v80
  %4452 = vmatpush.msra.mxu0 %v76
  %4453 = vmatpush.msra.mxu0 %v72
  %4454 = vmatpush.msra.mxu0 %v68
  %4455 = vmatpush.msra.mxu0 %v64
  %4456 = vmatmul.f32.gmra.mxu0 %v20
  %v4457 = vpop.f32.mrf.mxu0
  %v4458 = vadd.f32 %v2754, %v4457
  %4459 = vdwg.mxu0
  %4460 = vmatpush.msra.mxu0 %v188
  %4461 = vmatpush.msra.mxu0 %v184
  %4462 = vmatpush.msra.mxu0 %v180
  %4463 = vmatpush.msra.mxu0 %v176
  %4464 = vmatpush.msra.mxu0 %v172
  %4465 = vmatpush.msra.mxu0 %v168
  %4466 = vmatpush.msra.mxu0 %v164
  %4467 = vmatpush.msra.mxu0 %v160
  %4468 = vmatpush.msra.mxu0 %v156
  %4469 = vmatpush.msra.mxu0 %v152
  %4470 = vmatpush.msra.mxu0 %v148
  %4471 = vmatpush.msra.mxu0 %v144
  %4472 = vmatpush.msra.mxu0 %v140
  %4473 = vmatpush.msra.mxu0 %v136
  %4474 = vmatpush.msra.mxu0 %v132
  %4475 = vmatpush.msra.mxu0 %v128
  %4476 = vmatmul.f32.gmra.mxu0 %v21
  %v4477 = vpop.f32.mrf.mxu0
  %v4478 = vadd.f32 %v4458, %v4477
  %4479 = vdwg.mxu0
  %4480 = vmatpush.msra.mxu0 %v252
  %4481 = vmatpush.msra.mxu0 %v248
  %4482 = vmatpush.msra.mxu0 %v244
  %4483 = vmatpush.msra.mxu0 %v240
  %4484 = vmatpush.msra.mxu0 %v236
  %4485 = vmatpush.msra.mxu0 %v232
  %4486 = vmatpush.msra.mxu0 %v228
  %4487 = vmatpush.msra.mxu0 %v224
  %4488 = vmatpush.msra.mxu0 %v220
  %4489 = vmatpush.msra.mxu0 %v216
  %4490 = vmatpush.msra.mxu0 %v212
  %4491 = vmatpush.msra.mxu0 %v208
  %4492 = vmatpush.msra.mxu0 %v204
  %4493 = vmatpush.msra.mxu0 %v200
  %4494 = vmatpush.msra.mxu0 %v196
  %4495 = vmatpush.msra.mxu0 %v192
  %4496 = vmatmul.f32.gmra.mxu0 %v22
  %v4497 = vpop.f32.mrf.mxu0
  %v4498 = vadd.f32 %v4478, %v4497
  %4499 = vdwg.mxu0
  %4500 = vmatpush.msra.mxu0 %v316
  %4501 = vmatpush.msra.mxu0 %v312
  %4502 = vmatpush.msra.mxu0 %v308
  %4503 = vmatpush.msra.mxu0 %v304
  %4504 = vmatpush.msra.mxu0 %v300
  %4505 = vmatpush.msra.mxu0 %v296
  %4506 = vmatpush.msra.mxu0 %v292
  %4507 = vmatpush.msra.mxu0 %v288
  %4508 = vmatpush.msra.mxu0 %v284
  %4509 = vmatpush.msra.mxu0 %v280
  %4510 = vmatpush.msra.mxu0 %v276
  %4511 = vmatpush.msra.mxu0 %v272
  %4512 = vmatpush.msra.mxu0 %v268
  %4513 = vmatpush.msra.mxu0 %v264
  %4514 = vmatpush.msra.mxu0 %v260
  %4515 = vmatpush.msra.mxu0 %v256
  %4516 = vmatmul.f32.gmra.mxu0 %v23
  %v4517 = vpop.f32.mrf.mxu0
  %v4518 = vadd.f32 %v4498, %v4517
  %4519 = vdwg.mxu0
  %4520 = vmatpush.msra.mxu0 %v380
  %4521 = vmatpush.msra.mxu0 %v376
  %4522 = vmatpush.msra.mxu0 %v372
  %4523 = vmatpush.msra.mxu0 %v368
  %4524 = vmatpush.msra.mxu0 %v364
  %4525 = vmatpush.msra.mxu0 %v360
  %4526 = vmatpush.msra.mxu0 %v356
  %4527 = vmatpush.msra.mxu0 %v352
  %4528 = vmatpush.msra.mxu0 %v348
  %4529 = vmatpush.msra.mxu0 %v344
  %4530 = vmatpush.msra.mxu0 %v340
  %4531 = vmatpush.msra.mxu0 %v336
  %4532 = vmatpush.msra.mxu0 %v332
  %4533 = vmatpush.msra.mxu0 %v328
  %4534 = vmatpush.msra.mxu0 %v324
  %4535 = vmatpush.msra.mxu0 %v320
  %4536 = vmatmul.f32.gmra.mxu0 %v24
  %v4537 = vpop.f32.mrf.mxu0
  %v4538 = vadd.f32 %v4518, %v4537
  %4539 = vdwg.mxu0
  %4540 = vmatpush.msra.mxu0 %v444
  %4541 = vmatpush.msra.mxu0 %v440
  %4542 = vmatpush.msra.mxu0 %v436
  %4543 = vmatpush.msra.mxu0 %v432
  %4544 = vmatpush.msra.mxu0 %v428
  %4545 = vmatpush.msra.mxu0 %v424
  %4546 = vmatpush.msra.mxu0 %v420
  %4547 = vmatpush.msra.mxu0 %v416
  %4548 = vmatpush.msra.mxu0 %v412
  %4549 = vmatpush.msra.mxu0 %v408
  %4550 = vmatpush.msra.mxu0 %v404
  %4551 = vmatpush.msra.mxu0 %v400
  %4552 = vmatpush.msra.mxu0 %v396
  %4553 = vmatpush.msra.mxu0 %v392
  %4554 = vmatpush.msra.mxu0 %v388
  %4555 = vmatpush.msra.mxu0 %v384
  %4556 = vmatmul.f32.gmra.mxu0 %v25
  %v4557 = vpop.f32.mrf.mxu0
  %v4558 = vadd.f32 %v4538, %v4557
  %4559 = vdwg.mxu0
  %4560 = vmatpush.msra.mxu0 %v508
  %4561 = vmatpush.msra.mxu0 %v504
  %4562 = vmatpush.msra.mxu0 %v500
  %4563 = vmatpush.msra.mxu0 %v496
  %4564 = vmatpush.msra.mxu0 %v492
  %4565 = vmatpush.msra.mxu0 %v488
  %4566 = vmatpush.msra.mxu0 %v484
  %4567 = vmatpush.msra.mxu0 %v480
  %4568 = vmatpush.msra.mxu0 %v476
  %4569 = vmatpush.msra.mxu0 %v472
  %4570 = vmatpush.msra.mxu0 %v468
  %4571 = vmatpush.msra.mxu0 %v464
  %4572 = vmatpush.msra.mxu0 %v460
  %4573 = vmatpush.msra.mxu0 %v456
  %4574 = vmatpush.msra.mxu0 %v452
  %4575 = vmatpush.msra.mxu0 %v448
  %4576 = vmatmul.f32.gmra.mxu0 %v26
  %v4577 = vpop.f32.mrf.mxu0
  %v4578 = vadd.f32 %v4558, %v4577
  %4579 = vdwg.mxu0
  %4580 = vmatpush.msra.mxu0 %v572
  %4581 = vmatpush.msra.mxu0 %v568
  %4582 = vmatpush.msra.mxu0 %v564
  %4583 = vmatpush.msra.mxu0 %v560
  %4584 = vmatpush.msra.mxu0 %v556
  %4585 = vmatpush.msra.mxu0 %v552
  %4586 = vmatpush.msra.mxu0 %v548
  %4587 = vmatpush.msra.mxu0 %v544
  %4588 = vmatpush.msra.mxu0 %v540
  %4589 = vmatpush.msra.mxu0 %v536
  %4590 = vmatpush.msra.mxu0 %v532
  %4591 = vmatpush.msra.mxu0 %v528
  %4592 = vmatpush.msra.mxu0 %v524
  %4593 = vmatpush.msra.mxu0 %v520
  %4594 = vmatpush.msra.mxu0 %v516
  %4595 = vmatpush.msra.mxu0 %v512
  %4596 = vmatmul.f32.gmra.mxu0 %v27
  %v4597 = vpop.f32.mrf.mxu0
  %v4598 = vadd.f32 %v4578, %v4597
  %4599 = vdwg.mxu0
  %4600 = vmatpush.msra.mxu0 %v636
  %4601 = vmatpush.msra.mxu0 %v632
  %4602 = vmatpush.msra.mxu0 %v628
  %4603 = vmatpush.msra.mxu0 %v624
  %4604 = vmatpush.msra.mxu0 %v620
  %4605 = vmatpush.msra.mxu0 %v616
  %4606 = vmatpush.msra.mxu0 %v612
  %4607 = vmatpush.msra.mxu0 %v608
  %4608 = vmatpush.msra.mxu0 %v604
  %4609 = vmatpush.msra.mxu0 %v600
  %4610 = vmatpush.msra.mxu0 %v596
  %4611 = vmatpush.msra.mxu0 %v592
  %4612 = vmatpush.msra.mxu0 %v588
  %4613 = vmatpush.msra.mxu0 %v584
  %4614 = vmatpush.msra.mxu0 %v580
  %4615 = vmatpush.msra.mxu0 %v576
  %4616 = vmatmul.f32.gmra.mxu0 %v28
  %v4617 = vpop.f32.mrf.mxu0
  %v4618 = vadd.f32 %v4598, %v4617
  %4619 = vdwg.mxu0
  %4620 = vmatpush.msra.mxu0 %v700
  %4621 = vmatpush.msra.mxu0 %v696
  %4622 = vmatpush.msra.mxu0 %v692
  %4623 = vmatpush.msra.mxu0 %v688
  %4624 = vmatpush.msra.mxu0 %v684
  %4625 = vmatpush.msra.mxu0 %v680
  %4626 = vmatpush.msra.mxu0 %v676
  %4627 = vmatpush.msra.mxu0 %v672
  %4628 = vmatpush.msra.mxu0 %v668
  %4629 = vmatpush.msra.mxu0 %v664
  %4630 = vmatpush.msra.mxu0 %v660
  %4631 = vmatpush.msra.mxu0 %v656
  %4632 = vmatpush.msra.mxu0 %v652
  %4633 = vmatpush.msra.mxu0 %v648
  %4634 = vmatpush.msra.mxu0 %v644
  %4635 = vmatpush.msra.mxu0 %v640
  %4636 = vmatmul.f32.gmra.mxu0 %v29
  %v4637 = vpop.f32.mrf.mxu0
  %v4638 = vadd.f32 %v4618, %v4637
  %4639 = vdwg.mxu0
  %4640 = vmatpush.msra.mxu0 %v764
  %4641 = vmatpush.msra.mxu0 %v760
  %4642 = vmatpush.msra.mxu0 %v756
  %4643 = vmatpush.msra.mxu0 %v752
  %4644 = vmatpush.msra.mxu0 %v748
  %4645 = vmatpush.msra.mxu0 %v744
  %4646 = vmatpush.msra.mxu0 %v740
  %4647 = vmatpush.msra.mxu0 %v736
  %4648 = vmatpush.msra.mxu0 %v732
  %4649 = vmatpush.msra.mxu0 %v728
  %4650 = vmatpush.msra.mxu0 %v724
  %4651 = vmatpush.msra.mxu0 %v720
  %4652 = vmatpush.msra.mxu0 %v716
  %4653 = vmatpush.msra.mxu0 %v712
  %4654 = vmatpush.msra.mxu0 %v708
  %4655 = vmatpush.msra.mxu0 %v704
  %4656 = vmatmul.f32.gmra.mxu0 %v30
  %v4657 = vpop.f32.mrf.mxu0
  %v4658 = vadd.f32 %v4638, %v4657
  %4659 = vdwg.mxu0
  %4660 = vmatpush.msra.mxu0 %v828
  %4661 = vmatpush.msra.mxu0 %v824
  %4662 = vmatpush.msra.mxu0 %v820
  %4663 = vmatpush.msra.mxu0 %v816
  %4664 = vmatpush.msra.mxu0 %v812
  %4665 = vmatpush.msra.mxu0 %v808
  %4666 = vmatpush.msra.mxu0 %v804
  %4667 = vmatpush.msra.mxu0 %v800
  %4668 = vmatpush.msra.mxu0 %v796
  %4669 = vmatpush.msra.mxu0 %v792
  %4670 = vmatpush.msra.mxu0 %v788
  %4671 = vmatpush.msra.mxu0 %v784
  %4672 = vmatpush.msra.mxu0 %v780
  %4673 = vmatpush.msra.mxu0 %v776
  %4674 = vmatpush.msra.mxu0 %v772
  %4675 = vmatpush.msra.mxu0 %v768
  %4676 = vmatmul.f32.gmra.mxu0 %v31
  %v4677 = vpop.f32.mrf.mxu0
  %v4678 = vadd.f32 %v4658, %v4677
  %4679 = vdwg.mxu0
  %4680 = vmatpush.msra.mxu0 %v892
  %4681 = vmatpush.msra.mxu0 %v888
  %4682 = vmatpush.msra.mxu0 %v884
  %4683 = vmatpush.msra.mxu0 %v880
  %4684 = vmatpush.msra.mxu0 %v876
  %4685 = vmatpush.msra.mxu0 %v872
  %4686 = vmatpush.msra.mxu0 %v868
  %4687 = vmatpush.msra.mxu0 %v864
  %4688 = vmatpush.msra.mxu0 %v860
  %4689 = vmatpush.msra.mxu0 %v856
  %4690 = vmatpush.msra.mxu0 %v852
  %4691 = vmatpush.msra.mxu0 %v848
  %4692 = vmatpush.msra.mxu0 %v844
  %4693 = vmatpush.msra.mxu0 %v840
  %4694 = vmatpush.msra.mxu0 %v836
  %4695 = vmatpush.msra.mxu0 %v832
  %4696 = vmatmul.f32.gmra.mxu0 %v32
  %v4697 = vpop.f32.mrf.mxu0
  %v4698 = vadd.f32 %v4678, %v4697
  %4699 = vdwg.mxu0
  %4700 = vmatpush.msra.mxu0 %v956
  %4701 = vmatpush.msra.mxu0 %v952
  %4702 = vmatpush.msra.mxu0 %v948
  %4703 = vmatpush.msra.mxu0 %v944
  %4704 = vmatpush.msra.mxu0 %v940
  %4705 = vmatpush.msra.mxu0 %v936
  %4706 = vmatpush.msra.mxu0 %v932
  %4707 = vmatpush.msra.mxu0 %v928
  %4708 = vmatpush.msra.mxu0 %v924
  %4709 = vmatpush.msra.mxu0 %v920
  %4710 = vmatpush.msra.mxu0 %v916
  %4711 = vmatpush.msra.mxu0 %v912
  %4712 = vmatpush.msra.mxu0 %v908
  %4713 = vmatpush.msra.mxu0 %v904
  %4714 = vmatpush.msra.mxu0 %v900
  %4715 = vmatpush.msra.mxu0 %v896
  %4716 = vmatmul.f32.gmra.mxu0 %v33
  %v4717 = vpop.f32.mrf.mxu0
  %v4718 = vadd.f32 %v4698, %v4717
  %4719 = vdwg.mxu0
  %4720 = vmatpush.msra.mxu0 %v1020
  %4721 = vmatpush.msra.mxu0 %v1016
  %4722 = vmatpush.msra.mxu0 %v1012
  %4723 = vmatpush.msra.mxu0 %v1008
  %4724 = vmatpush.msra.mxu0 %v1004
  %4725 = vmatpush.msra.mxu0 %v1000
  %4726 = vmatpush.msra.mxu0 %v996
  %4727 = vmatpush.msra.mxu0 %v992
  %4728 = vmatpush.msra.mxu0 %v988
  %4729 = vmatpush.msra.mxu0 %v984
  %4730 = vmatpush.msra.mxu0 %v980
  %4731 = vmatpush.msra.mxu0 %v976
  %4732 = vmatpush.msra.mxu0 %v972
  %4733 = vmatpush.msra.mxu0 %v968
  %4734 = vmatpush.msra.mxu0 %v964
  %4735 = vmatpush.msra.mxu0 %v960
  %4736 = vmatmul.f32.gmra.mxu0 %v34
  %v4737 = vpop.f32.mrf.mxu0
  %v4738 = vadd.f32 %v4718, %v4737
  %4739 = vdwg.mxu0
  %4740 = vmatpush.msra.mxu0 %v1084
  %4741 = vmatpush.msra.mxu0 %v1080
  %4742 = vmatpush.msra.mxu0 %v1076
  %4743 = vmatpush.msra.mxu0 %v1072
  %4744 = vmatpush.msra.mxu0 %v1068
  %4745 = vmatpush.msra.mxu0 %v1064
  %4746 = vmatpush.msra.mxu0 %v1060
  %4747 = vmatpush.msra.mxu0 %v1056
  %4748 = vmatpush.msra.mxu0 %v1052
  %4749 = vmatpush.msra.mxu0 %v1048
  %4750 = vmatpush.msra.mxu0 %v1044
  %4751 = vmatpush.msra.mxu0 %v1040
  %4752 = vmatpush.msra.mxu0 %v1036
  %4753 = vmatpush.msra.mxu0 %v1032
  %4754 = vmatpush.msra.mxu0 %v1028
  %4755 = vmatpush.msra.mxu0 %v1024
  %4756 = vmatmul.f32.gmra.mxu0 %v35
  %v4757 = vpop.f32.mrf.mxu0
  %v4758 = vadd.f32 %v4738, %v4757
  %4759 = vdwg.mxu0
  %4760 = vmatpush.msra.mxu0 %v1148
  %4761 = vmatpush.msra.mxu0 %v1144
  %4762 = vmatpush.msra.mxu0 %v1140
  %4763 = vmatpush.msra.mxu0 %v1136
  %4764 = vmatpush.msra.mxu0 %v1132
  %4765 = vmatpush.msra.mxu0 %v1128
  %4766 = vmatpush.msra.mxu0 %v1124
  %4767 = vmatpush.msra.mxu0 %v1120
  %4768 = vmatpush.msra.mxu0 %v1116
  %4769 = vmatpush.msra.mxu0 %v1112
  %4770 = vmatpush.msra.mxu0 %v1108
  %4771 = vmatpush.msra.mxu0 %v1104
  %4772 = vmatpush.msra.mxu0 %v1100
  %4773 = vmatpush.msra.mxu0 %v1096
  %4774 = vmatpush.msra.mxu0 %v1092
  %4775 = vmatpush.msra.mxu0 %v1088
  %4776 = vmatmul.f32.gmra.mxu0 %v36
  %v4777 = vpop.f32.mrf.mxu0
  %v4778 = vadd.f32 %v4758, %v4777
  %4779 = vdwg.mxu0
  %4780 = vmatpush.msra.mxu0 %v1212
  %4781 = vmatpush.msra.mxu0 %v1208
  %4782 = vmatpush.msra.mxu0 %v1204
  %4783 = vmatpush.msra.mxu0 %v1200
  %4784 = vmatpush.msra.mxu0 %v1196
  %4785 = vmatpush.msra.mxu0 %v1192
  %4786 = vmatpush.msra.mxu0 %v1188
  %4787 = vmatpush.msra.mxu0 %v1184
  %4788 = vmatpush.msra.mxu0 %v1180
  %4789 = vmatpush.msra.mxu0 %v1176
  %4790 = vmatpush.msra.mxu0 %v1172
  %4791 = vmatpush.msra.mxu0 %v1168
  %4792 = vmatpush.msra.mxu0 %v1164
  %4793 = vmatpush.msra.mxu0 %v1160
  %4794 = vmatpush.msra.mxu0 %v1156
  %4795 = vmatpush.msra.mxu0 %v1152
  %4796 = vmatmul.f32.gmra.mxu0 %v37
  %v4797 = vpop.f32.mrf.mxu0
  %v4798 = vadd.f32 %v4778, %v4797
  %4799 = vdwg.mxu0
  %4800 = vmatpush.msra.mxu0 %v1276
  %4801 = vmatpush.msra.mxu0 %v1272
  %4802 = vmatpush.msra.mxu0 %v1268
  %4803 = vmatpush.msra.mxu0 %v1264
  %4804 = vmatpush.msra.mxu0 %v1260
  %4805 = vmatpush.msra.mxu0 %v1256
  %4806 = vmatpush.msra.mxu0 %v1252
  %4807 = vmatpush.msra.mxu0 %v1248
  %4808 = vmatpush.msra.mxu0 %v1244
  %4809 = vmatpush.msra.mxu0 %v1240
  %4810 = vmatpush.msra.mxu0 %v1236
  %4811 = vmatpush.msra.mxu0 %v1232
  %4812 = vmatpush.msra.mxu0 %v1228
  %4813 = vmatpush.msra.mxu0 %v1224
  %4814 = vmatpush.msra.mxu0 %v1220
  %4815 = vmatpush.msra.mxu0 %v1216
  %4816 = vmatmul.f32.gmra.mxu0 %v38
  %v4817 = vpop.f32.mrf.mxu0
  %v4818 = vadd.f32 %v4798, %v4817
  %4819 = vdwg.mxu0
  %4820 = vmatpush.msra.mxu0 %v1340
  %4821 = vmatpush.msra.mxu0 %v1336
  %4822 = vmatpush.msra.mxu0 %v1332
  %4823 = vmatpush.msra.mxu0 %v1328
  %4824 = vmatpush.msra.mxu0 %v1324
  %4825 = vmatpush.msra.mxu0 %v1320
  %4826 = vmatpush.msra.mxu0 %v1316
  %4827 = vmatpush.msra.mxu0 %v1312
  %4828 = vmatpush.msra.mxu0 %v1308
  %4829 = vmatpush.msra.mxu0 %v1304
  %4830 = vmatpush.msra.mxu0 %v1300
  %4831 = vmatpush.msra.mxu0 %v1296
  %4832 = vmatpush.msra.mxu0 %v1292
  %4833 = vmatpush.msra.mxu0 %v1288
  %4834 = vmatpush.msra.mxu0 %v1284
  %4835 = vmatpush.msra.mxu0 %v1280
  %4836 = vmatmul.f32.gmra.mxu0 %v39
  %v4837 = vpop.f32.mrf.mxu0
  %v4838 = vadd.f32 %v4818, %v4837
  %4839 = vdwg.mxu0
  %4840 = vmatpush.msra.mxu0 %v1404
  %4841 = vmatpush.msra.mxu0 %v1400
  %4842 = vmatpush.msra.mxu0 %v1396
  %4843 = vmatpush.msra.mxu0 %v1392
  %4844 = vmatpush.msra.mxu0 %v1388
  %4845 = vmatpush.msra.mxu0 %v1384
  %4846 = vmatpush.msra.mxu0 %v1380
  %4847 = vmatpush.msra.mxu0 %v1376
  %4848 = vmatpush.msra.mxu0 %v1372
  %4849 = vmatpush.msra.mxu0 %v1368
  %4850 = vmatpush.msra.mxu0 %v1364
  %4851 = vmatpush.msra.mxu0 %v1360
  %4852 = vmatpush.msra.mxu0 %v1356
  %4853 = vmatpush.msra.mxu0 %v1352
  %4854 = vmatpush.msra.mxu0 %v1348
  %4855 = vmatpush.msra.mxu0 %v1344
  %4856 = vmatmul.f32.gmra.mxu0 %v40
  %v4857 = vpop.f32.mrf.mxu0
  %v4858 = vadd.f32 %v4838, %v4857
  %4859 = vdwg.mxu0
  %4860 = vmatpush.msra.mxu0 %v1468
  %4861 = vmatpush.msra.mxu0 %v1464
  %4862 = vmatpush.msra.mxu0 %v1460
  %4863 = vmatpush.msra.mxu0 %v1456
  %4864 = vmatpush.msra.mxu0 %v1452
  %4865 = vmatpush.msra.mxu0 %v1448
  %4866 = vmatpush.msra.mxu0 %v1444
  %4867 = vmatpush.msra.mxu0 %v1440
  %4868 = vmatpush.msra.mxu0 %v1436
  %4869 = vmatpush.msra.mxu0 %v1432
  %4870 = vmatpush.msra.mxu0 %v1428
  %4871 = vmatpush.msra.mxu0 %v1424
  %4872 = vmatpush.msra.mxu0 %v1420
  %4873 = vmatpush.msra.mxu0 %v1416
  %4874 = vmatpush.msra.mxu0 %v1412
  %4875 = vmatpush.msra.mxu0 %v1408
  %4876 = vmatmul.f32.gmra.mxu0 %v41
  %v4877 = vpop.f32.mrf.mxu0
  %v4878 = vadd.f32 %v4858, %v4877
  %4879 = vdwg.mxu0
  %4880 = vmatpush.msra.mxu0 %v1532
  %4881 = vmatpush.msra.mxu0 %v1528
  %4882 = vmatpush.msra.mxu0 %v1524
  %4883 = vmatpush.msra.mxu0 %v1520
  %4884 = vmatpush.msra.mxu0 %v1516
  %4885 = vmatpush.msra.mxu0 %v1512
  %4886 = vmatpush.msra.mxu0 %v1508
  %4887 = vmatpush.msra.mxu0 %v1504
  %4888 = vmatpush.msra.mxu0 %v1500
  %4889 = vmatpush.msra.mxu0 %v1496
  %4890 = vmatpush.msra.mxu0 %v1492
  %4891 = vmatpush.msra.mxu0 %v1488
  %4892 = vmatpush.msra.mxu0 %v1484
  %4893 = vmatpush.msra.mxu0 %v1480
  %4894 = vmatpush.msra.mxu0 %v1476
  %4895 = vmatpush.msra.mxu0 %v1472
  %4896 = vmatmul.f32.gmra.mxu0 %v42
  %v4897 = vpop.f32.mrf.mxu0
  %v4898 = vadd.f32 %v4878, %v4897
  %4899 = vdwg.mxu0
  %4900 = vmatpush.msra.mxu0 %v1596
  %4901 = vmatpush.msra.mxu0 %v1592
  %4902 = vmatpush.msra.mxu0 %v1588
  %4903 = vmatpush.msra.mxu0 %v1584
  %4904 = vmatpush.msra.mxu0 %v1580
  %4905 = vmatpush.msra.mxu0 %v1576
  %4906 = vmatpush.msra.mxu0 %v1572
  %4907 = vmatpush.msra.mxu0 %v1568
  %4908 = vmatpush.msra.mxu0 %v1564
  %4909 = vmatpush.msra.mxu0 %v1560
  %4910 = vmatpush.msra.mxu0 %v1556
  %4911 = vmatpush.msra.mxu0 %v1552
  %4912 = vmatpush.msra.mxu0 %v1548
  %4913 = vmatpush.msra.mxu0 %v1544
  %4914 = vmatpush.msra.mxu0 %v1540
  %4915 = vmatpush.msra.mxu0 %v1536
  %4916 = vmatmul.f32.gmra.mxu0 %v43
  %v4917 = vpop.f32.mrf.mxu0
  %v4918 = vadd.f32 %v4898, %v4917
  %4919 = vdwg.mxu0
  %4920 = vmatpush.msra.mxu0 %v1660
  %4921 = vmatpush.msra.mxu0 %v1656
  %4922 = vmatpush.msra.mxu0 %v1652
  %4923 = vmatpush.msra.mxu0 %v1648
  %4924 = vmatpush.msra.mxu0 %v1644
  %4925 = vmatpush.msra.mxu0 %v1640
  %4926 = vmatpush.msra.mxu0 %v1636
  %4927 = vmatpush.msra.mxu0 %v1632
  %4928 = vmatpush.msra.mxu0 %v1628
  %4929 = vmatpush.msra.mxu0 %v1624
  %4930 = vmatpush.msra.mxu0 %v1620
  %4931 = vmatpush.msra.mxu0 %v1616
  %4932 = vmatpush.msra.mxu0 %v1612
  %4933 = vmatpush.msra.mxu0 %v1608
  %4934 = vmatpush.msra.mxu0 %v1604
  %4935 = vmatpush.msra.mxu0 %v1600
  %4936 = vmatmul.f32.gmra.mxu0 %v44
  %v4937 = vpop.f32.mrf.mxu0
  %v4938 = vadd.f32 %v4918, %v4937
  %4939 = vdwg.mxu0
  %4940 = vmatpush.msra.mxu0 %v1724
  %4941 = vmatpush.msra.mxu0 %v1720
  %4942 = vmatpush.msra.mxu0 %v1716
  %4943 = vmatpush.msra.mxu0 %v1712
  %4944 = vmatpush.msra.mxu0 %v1708
  %4945 = vmatpush.msra.mxu0 %v1704
  %4946 = vmatpush.msra.mxu0 %v1700
  %4947 = vmatpush.msra.mxu0 %v1696
  %4948 = vmatpush.msra.mxu0 %v1692
  %4949 = vmatpush.msra.mxu0 %v1688
  %4950 = vmatpush.msra.mxu0 %v1684
  %4951 = vmatpush.msra.mxu0 %v1680
  %4952 = vmatpush.msra.mxu0 %v1676
  %4953 = vmatpush.msra.mxu0 %v1672
  %4954 = vmatpush.msra.mxu0 %v1668
  %4955 = vmatpush.msra.mxu0 %v1664
  %4956 = vmatmul.f32.gmra.mxu0 %v45
  %v4957 = vpop.f32.mrf.mxu0
  %v4958 = vadd.f32 %v4938, %v4957
  %4959 = vdwg.mxu0
  %4960 = vmatpush.msra.mxu0 %v1788
  %4961 = vmatpush.msra.mxu0 %v1784
  %4962 = vmatpush.msra.mxu0 %v1780
  %4963 = vmatpush.msra.mxu0 %v1776
  %4964 = vmatpush.msra.mxu0 %v1772
  %4965 = vmatpush.msra.mxu0 %v1768
  %4966 = vmatpush.msra.mxu0 %v1764
  %4967 = vmatpush.msra.mxu0 %v1760
  %4968 = vmatpush.msra.mxu0 %v1756
  %4969 = vmatpush.msra.mxu0 %v1752
  %4970 = vmatpush.msra.mxu0 %v1748
  %4971 = vmatpush.msra.mxu0 %v1744
  %4972 = vmatpush.msra.mxu0 %v1740
  %4973 = vmatpush.msra.mxu0 %v1736
  %4974 = vmatpush.msra.mxu0 %v1732
  %4975 = vmatpush.msra.mxu0 %v1728
  %4976 = vmatmul.f32.gmra.mxu0 %v46
  %v4977 = vpop.f32.mrf.mxu0
  %v4978 = vadd.f32 %v4958, %v4977
  %4979 = vdwg.mxu0
  %4980 = vmatpush.msra.mxu0 %v1852
  %4981 = vmatpush.msra.mxu0 %v1848
  %4982 = vmatpush.msra.mxu0 %v1844
  %4983 = vmatpush.msra.mxu0 %v1840
  %4984 = vmatpush.msra.mxu0 %v1836
  %4985 = vmatpush.msra.mxu0 %v1832
  %4986 = vmatpush.msra.mxu0 %v1828
  %4987 = vmatpush.msra.mxu0 %v1824
  %4988 = vmatpush.msra.mxu0 %v1820
  %4989 = vmatpush.msra.mxu0 %v1816
  %4990 = vmatpush.msra.mxu0 %v1812
  %4991 = vmatpush.msra.mxu0 %v1808
  %4992 = vmatpush.msra.mxu0 %v1804
  %4993 = vmatpush.msra.mxu0 %v1800
  %4994 = vmatpush.msra.mxu0 %v1796
  %4995 = vmatpush.msra.mxu0 %v1792
  %4996 = vmatmul.f32.gmra.mxu0 %v47
  %v4997 = vpop.f32.mrf.mxu0
  %v4998 = vadd.f32 %v4978, %v4997
  %4999 = vdwg.mxu0
  %5000 = vmatpush.msra.mxu0 %v1916
  %5001 = vmatpush.msra.mxu0 %v1912
  %5002 = vmatpush.msra.mxu0 %v1908
  %5003 = vmatpush.msra.mxu0 %v1904
  %5004 = vmatpush.msra.mxu0 %v1900
  %5005 = vmatpush.msra.mxu0 %v1896
  %5006 = vmatpush.msra.mxu0 %v1892
  %5007 = vmatpush.msra.mxu0 %v1888
  %5008 = vmatpush.msra.mxu0 %v1884
  %5009 = vmatpush.msra.mxu0 %v1880
  %5010 = vmatpush.msra.mxu0 %v1876
  %5011 = vmatpush.msra.mxu0 %v1872
  %5012 = vmatpush.msra.mxu0 %v1868
  %5013 = vmatpush.msra.mxu0 %v1864
  %5014 = vmatpush.msra.mxu0 %v1860
  %5015 = vmatpush.msra.mxu0 %v1856
  %5016 = vmatmul.f32.gmra.mxu0 %v48
  %v5017 = vpop.f32.mrf.mxu0
  %v5018 = vadd.f32 %v4998, %v5017
  %5019 = vdwg.mxu0
  %5020 = vmatpush.msra.mxu0 %v1980
  %5021 = vmatpush.msra.mxu0 %v1976
  %5022 = vmatpush.msra.mxu0 %v1972
  %5023 = vmatpush.msra.mxu0 %v1968
  %5024 = vmatpush.msra.mxu0 %v1964
  %5025 = vmatpush.msra.mxu0 %v1960
  %5026 = vmatpush.msra.mxu0 %v1956
  %5027 = vmatpush.msra.mxu0 %v1952
  %5028 = vmatpush.msra.mxu0 %v1948
  %5029 = vmatpush.msra.mxu0 %v1944
  %5030 = vmatpush.msra.mxu0 %v1940
  %5031 = vmatpush.msra.mxu0 %v1936
  %5032 = vmatpush.msra.mxu0 %v1932
  %5033 = vmatpush.msra.mxu0 %v1928
  %5034 = vmatpush.msra.mxu0 %v1924
  %5035 = vmatpush.msra.mxu0 %v1920
  %5036 = vmatmul.f32.gmra.mxu0 %v49
  %v5037 = vpop.f32.mrf.mxu0
  %v5038 = vadd.f32 %v5018, %v5037
  %5039 = vdwg.mxu0
  %5040 = vmatpush.msra.mxu0 %v2044
  %5041 = vmatpush.msra.mxu0 %v2040
  %5042 = vmatpush.msra.mxu0 %v2036
  %5043 = vmatpush.msra.mxu0 %v2032
  %5044 = vmatpush.msra.mxu0 %v2028
  %5045 = vmatpush.msra.mxu0 %v2024
  %5046 = vmatpush.msra.mxu0 %v2020
  %5047 = vmatpush.msra.mxu0 %v2016
  %5048 = vmatpush.msra.mxu0 %v2012
  %5049 = vmatpush.msra.mxu0 %v2008
  %5050 = vmatpush.msra.mxu0 %v2004
  %5051 = vmatpush.msra.mxu0 %v2000
  %5052 = vmatpush.msra.mxu0 %v1996
  %5053 = vmatpush.msra.mxu0 %v1992
  %5054 = vmatpush.msra.mxu0 %v1988
  %5055 = vmatpush.msra.mxu0 %v1984
  %5056 = vmatmul.f32.gmra.mxu0 %v50
  %v5057 = vpop.f32.mrf.mxu0
  %v5058 = vadd.f32 %v5038, %v5057
  %5059 = vdwg.mxu0
  %5060 = vmatpush.msra.mxu0 %v2108
  %5061 = vmatpush.msra.mxu0 %v2104
  %5062 = vmatpush.msra.mxu0 %v2100
  %5063 = vmatpush.msra.mxu0 %v2096
  %5064 = vmatpush.msra.mxu0 %v2092
  %5065 = vmatpush.msra.mxu0 %v2088
  %5066 = vmatpush.msra.mxu0 %v2084
  %5067 = vmatpush.msra.mxu0 %v2080
  %5068 = vmatpush.msra.mxu0 %v2076
  %5069 = vmatpush.msra.mxu0 %v2072
  %5070 = vmatpush.msra.mxu0 %v2068
  %5071 = vmatpush.msra.mxu0 %v2064
  %5072 = vmatpush.msra.mxu0 %v2060
  %5073 = vmatpush.msra.mxu0 %v2056
  %5074 = vmatpush.msra.mxu0 %v2052
  %5075 = vmatpush.msra.mxu0 %v2048
  %5076 = vmatmul.f32.gmra.mxu0 %v51
  %v5077 = vpop.f32.mrf.mxu0
  %v5078 = vadd.f32 %v5058, %v5077
  %5079 = vdwg.mxu0
  %5080 = vmatpush.msra.mxu0 %v2172
  %5081 = vmatpush.msra.mxu0 %v2168
  %5082 = vmatpush.msra.mxu0 %v2164
  %5083 = vmatpush.msra.mxu0 %v2160
  %5084 = vmatpush.msra.mxu0 %v2156
  %5085 = vmatpush.msra.mxu0 %v2152
  %5086 = vmatpush.msra.mxu0 %v2148
  %5087 = vmatpush.msra.mxu0 %v2144
  %5088 = vmatpush.msra.mxu0 %v2140
  %5089 = vmatpush.msra.mxu0 %v2136
  %5090 = vmatpush.msra.mxu0 %v2132
  %5091 = vmatpush.msra.mxu0 %v2128
  %5092 = vmatpush.msra.mxu0 %v2124
  %5093 = vmatpush.msra.mxu0 %v2120
  %5094 = vmatpush.msra.mxu0 %v2116
  %5095 = vmatpush.msra.mxu0 %v2112
  %5096 = vmatmul.f32.gmra.mxu0 %v52
  %v5097 = vpop.f32.mrf.mxu0
  %v5098 = vadd.f32 %v5078, %v5097
  %5099 = vdwg.mxu0
  %5100 = vmatpush.msra.mxu0 %v2236
  %5101 = vmatpush.msra.mxu0 %v2232
  %5102 = vmatpush.msra.mxu0 %v2228
  %5103 = vmatpush.msra.mxu0 %v2224
  %5104 = vmatpush.msra.mxu0 %v2220
  %5105 = vmatpush.msra.mxu0 %v2216
  %5106 = vmatpush.msra.mxu0 %v2212
  %5107 = vmatpush.msra.mxu0 %v2208
  %5108 = vmatpush.msra.mxu0 %v2204
  %5109 = vmatpush.msra.mxu0 %v2200
  %5110 = vmatpush.msra.mxu0 %v2196
  %5111 = vmatpush.msra.mxu0 %v2192
  %5112 = vmatpush.msra.mxu0 %v2188
  %5113 = vmatpush.msra.mxu0 %v2184
  %5114 = vmatpush.msra.mxu0 %v2180
  %5115 = vmatpush.msra.mxu0 %v2176
  %5116 = vmatmul.f32.gmra.mxu0 %v53
  %v5117 = vpop.f32.mrf.mxu0
  %v5118 = vadd.f32 %v5098, %v5117
  %5119 = vdwg.mxu0
  %5120 = vmatpush.msra.mxu0 %v2300
  %5121 = vmatpush.msra.mxu0 %v2296
  %5122 = vmatpush.msra.mxu0 %v2292
  %5123 = vmatpush.msra.mxu0 %v2288
  %5124 = vmatpush.msra.mxu0 %v2284
  %5125 = vmatpush.msra.mxu0 %v2280
  %5126 = vmatpush.msra.mxu0 %v2276
  %5127 = vmatpush.msra.mxu0 %v2272
  %5128 = vmatpush.msra.mxu0 %v2268
  %5129 = vmatpush.msra.mxu0 %v2264
  %5130 = vmatpush.msra.mxu0 %v2260
  %5131 = vmatpush.msra.mxu0 %v2256
  %5132 = vmatpush.msra.mxu0 %v2252
  %5133 = vmatpush.msra.mxu0 %v2248
  %5134 = vmatpush.msra.mxu0 %v2244
  %5135 = vmatpush.msra.mxu0 %v2240
  %5136 = vmatmul.f32.gmra.mxu0 %v54
  %v5137 = vpop.f32.mrf.mxu0
  %v5138 = vadd.f32 %v5118, %v5137
  %5139 = vdwg.mxu0
  %5140 = vmatpush.msra.mxu0 %v2364
  %5141 = vmatpush.msra.mxu0 %v2360
  %5142 = vmatpush.msra.mxu0 %v2356
  %5143 = vmatpush.msra.mxu0 %v2352
  %5144 = vmatpush.msra.mxu0 %v2348
  %5145 = vmatpush.msra.mxu0 %v2344
  %5146 = vmatpush.msra.mxu0 %v2340
  %5147 = vmatpush.msra.mxu0 %v2336
  %5148 = vmatpush.msra.mxu0 %v2332
  %5149 = vmatpush.msra.mxu0 %v2328
  %5150 = vmatpush.msra.mxu0 %v2324
  %5151 = vmatpush.msra.mxu0 %v2320
  %5152 = vmatpush.msra.mxu0 %v2316
  %5153 = vmatpush.msra.mxu0 %v2312
  %5154 = vmatpush.msra.mxu0 %v2308
  %5155 = vmatpush.msra.mxu0 %v2304
  %5156 = vmatmul.f32.gmra.mxu0 %v55
  %v5157 = vpop.f32.mrf.mxu0
  %v5158 = vadd.f32 %v5138, %v5157
  %5159 = vdwg.mxu0
  %5160 = vmatpush.msra.mxu0 %v2428
  %5161 = vmatpush.msra.mxu0 %v2424
  %5162 = vmatpush.msra.mxu0 %v2420
  %5163 = vmatpush.msra.mxu0 %v2416
  %5164 = vmatpush.msra.mxu0 %v2412
  %5165 = vmatpush.msra.mxu0 %v2408
  %5166 = vmatpush.msra.mxu0 %v2404
  %5167 = vmatpush.msra.mxu0 %v2400
  %5168 = vmatpush.msra.mxu0 %v2396
  %5169 = vmatpush.msra.mxu0 %v2392
  %5170 = vmatpush.msra.mxu0 %v2388
  %5171 = vmatpush.msra.mxu0 %v2384
  %5172 = vmatpush.msra.mxu0 %v2380
  %5173 = vmatpush.msra.mxu0 %v2376
  %5174 = vmatpush.msra.mxu0 %v2372
  %5175 = vmatpush.msra.mxu0 %v2368
  %5176 = vmatmul.f32.gmra.mxu0 %v56
  %v5177 = vpop.f32.mrf.mxu0
  %v5178 = vadd.f32 %v5158, %v5177
  %5179 = vdwg.mxu0
  %5180 = vmatpush.msra.mxu0 %v2492
  %5181 = vmatpush.msra.mxu0 %v2488
  %5182 = vmatpush.msra.mxu0 %v2484
  %5183 = vmatpush.msra.mxu0 %v2480
  %5184 = vmatpush.msra.mxu0 %v2476
  %5185 = vmatpush.msra.mxu0 %v2472
  %5186 = vmatpush.msra.mxu0 %v2468
  %5187 = vmatpush.msra.mxu0 %v2464
  %5188 = vmatpush.msra.mxu0 %v2460
  %5189 = vmatpush.msra.mxu0 %v2456
  %5190 = vmatpush.msra.mxu0 %v2452
  %5191 = vmatpush.msra.mxu0 %v2448
  %5192 = vmatpush.msra.mxu0 %v2444
  %5193 = vmatpush.msra.mxu0 %v2440
  %5194 = vmatpush.msra.mxu0 %v2436
  %5195 = vmatpush.msra.mxu0 %v2432
  %5196 = vmatmul.f32.gmra.mxu0 %v57
  %v5197 = vpop.f32.mrf.mxu0
  %v5198 = vadd.f32 %v5178, %v5197
  %5199 = vdwg.mxu0
  %5200 = vmatpush.msra.mxu0 %v2556
  %5201 = vmatpush.msra.mxu0 %v2552
  %5202 = vmatpush.msra.mxu0 %v2548
  %5203 = vmatpush.msra.mxu0 %v2544
  %5204 = vmatpush.msra.mxu0 %v2540
  %5205 = vmatpush.msra.mxu0 %v2536
  %5206 = vmatpush.msra.mxu0 %v2532
  %5207 = vmatpush.msra.mxu0 %v2528
  %5208 = vmatpush.msra.mxu0 %v2524
  %5209 = vmatpush.msra.mxu0 %v2520
  %5210 = vmatpush.msra.mxu0 %v2516
  %5211 = vmatpush.msra.mxu0 %v2512
  %5212 = vmatpush.msra.mxu0 %v2508
  %5213 = vmatpush.msra.mxu0 %v2504
  %5214 = vmatpush.msra.mxu0 %v2500
  %5215 = vmatpush.msra.mxu0 %v2496
  %5216 = vmatmul.f32.gmra.mxu0 %v58
  %v5217 = vpop.f32.mrf.mxu0
  %v5218 = vadd.f32 %v5198, %v5217
  %5219 = vdwg.mxu0
  %5220 = vmatpush.msra.mxu0 %v2620
  %5221 = vmatpush.msra.mxu0 %v2616
  %5222 = vmatpush.msra.mxu0 %v2612
  %5223 = vmatpush.msra.mxu0 %v2608
  %5224 = vmatpush.msra.mxu0 %v2604
  %5225 = vmatpush.msra.mxu0 %v2600
  %5226 = vmatpush.msra.mxu0 %v2596
  %5227 = vmatpush.msra.mxu0 %v2592
  %5228 = vmatpush.msra.mxu0 %v2588
  %5229 = vmatpush.msra.mxu0 %v2584
  %5230 = vmatpush.msra.mxu0 %v2580
  %5231 = vmatpush.msra.mxu0 %v2576
  %5232 = vmatpush.msra.mxu0 %v2572
  %5233 = vmatpush.msra.mxu0 %v2568
  %5234 = vmatpush.msra.mxu0 %v2564
  %5235 = vmatpush.msra.mxu0 %v2560
  %5236 = vmatmul.f32.gmra.mxu0 %v59
  %v5237 = vpop.f32.mrf.mxu0
  %v5238 = vadd.f32 %v5218, %v5237
  %5239 = vdwg.mxu0
  %5240 = vmatpush.msra.mxu0 %v2684
  %5241 = vmatpush.msra.mxu0 %v2680
  %5242 = vmatpush.msra.mxu0 %v2676
  %5243 = vmatpush.msra.mxu0 %v2672
  %5244 = vmatpush.msra.mxu0 %v2668
  %5245 = vmatpush.msra.mxu0 %v2664
  %5246 = vmatpush.msra.mxu0 %v2660
  %5247 = vmatpush.msra.mxu0 %v2656
  %5248 = vmatpush.msra.mxu0 %v2652
  %5249 = vmatpush.msra.mxu0 %v2648
  %5250 = vmatpush.msra.mxu0 %v2644
  %5251 = vmatpush.msra.mxu0 %v2640
  %5252 = vmatpush.msra.mxu0 %v2636
  %5253 = vmatpush.msra.mxu0 %v2632
  %5254 = vmatpush.msra.mxu0 %v2628
  %5255 = vmatpush.msra.mxu0 %v2624
  %5256 = vmatmul.f32.gmra.mxu0 %v60
  %v5257 = vpop.f32.mrf.mxu0
  %v5258 = vadd.f32 %v5238, %v5257
  %5259 = vdwg.mxu0
  %5260 = vmatpush.msra.mxu0 %v2748
  %5261 = vmatpush.msra.mxu0 %v2744
  %5262 = vmatpush.msra.mxu0 %v2740
  %5263 = vmatpush.msra.mxu0 %v2736
  %5264 = vmatpush.msra.mxu0 %v2732
  %5265 = vmatpush.msra.mxu0 %v2728
  %5266 = vmatpush.msra.mxu0 %v2724
  %5267 = vmatpush.msra.mxu0 %v2720
  %5268 = vmatpush.msra.mxu0 %v2716
  %5269 = vmatpush.msra.mxu0 %v2712
  %5270 = vmatpush.msra.mxu0 %v2708
  %5271 = vmatpush.msra.mxu0 %v2704
  %5272 = vmatpush.msra.mxu0 %v2700
  %5273 = vmatpush.msra.mxu0 %v2696
  %5274 = vmatpush.msra.mxu0 %v2692
  %5275 = vmatpush.msra.mxu0 %v2688
  %5276 = vmatmul.f32.gmra.mxu0 %v61
  %v5277 = vpop.f32.mrf.mxu0
  %v5278 = vadd.f32 %v5258, %v5277
  %5279 = vdwg.mxu0
  %5280 = vmatpush.msra.mxu0 %v125
  %5281 = vmatpush.msra.mxu0 %v121
  %5282 = vmatpush.msra.mxu0 %v117
  %5283 = vmatpush.msra.mxu0 %v113
  %5284 = vmatpush.msra.mxu0 %v109
  %5285 = vmatpush.msra.mxu0 %v105
  %5286 = vmatpush.msra.mxu0 %v101
  %5287 = vmatpush.msra.mxu0 %v97
  %5288 = vmatpush.msra.mxu0 %v93
  %5289 = vmatpush.msra.mxu0 %v89
  %5290 = vmatpush.msra.mxu0 %v85
  %5291 = vmatpush.msra.mxu0 %v81
  %5292 = vmatpush.msra.mxu0 %v77
  %5293 = vmatpush.msra.mxu0 %v73
  %5294 = vmatpush.msra.mxu0 %v69
  %5295 = vmatpush.msra.mxu0 %v65
  %5296 = vmatmul.f32.gmra.mxu0 %v20
  %v5297 = vpop.f32.mrf.mxu0
  %v5298 = vadd.f32 %v2755, %v5297
  %5299 = vdwg.mxu0
  %5300 = vmatpush.msra.mxu0 %v189
  %5301 = vmatpush.msra.mxu0 %v185
  %5302 = vmatpush.msra.mxu0 %v181
  %5303 = vmatpush.msra.mxu0 %v177
  %5304 = vmatpush.msra.mxu0 %v173
  %5305 = vmatpush.msra.mxu0 %v169
  %5306 = vmatpush.msra.mxu0 %v165
  %5307 = vmatpush.msra.mxu0 %v161
  %5308 = vmatpush.msra.mxu0 %v157
  %5309 = vmatpush.msra.mxu0 %v153
  %5310 = vmatpush.msra.mxu0 %v149
  %5311 = vmatpush.msra.mxu0 %v145
  %5312 = vmatpush.msra.mxu0 %v141
  %5313 = vmatpush.msra.mxu0 %v137
  %5314 = vmatpush.msra.mxu0 %v133
  %5315 = vmatpush.msra.mxu0 %v129
  %5316 = vmatmul.f32.gmra.mxu0 %v21
  %v5317 = vpop.f32.mrf.mxu0
  %v5318 = vadd.f32 %v5298, %v5317
  %5319 = vdwg.mxu0
  %5320 = vmatpush.msra.mxu0 %v253
  %5321 = vmatpush.msra.mxu0 %v249
  %5322 = vmatpush.msra.mxu0 %v245
  %5323 = vmatpush.msra.mxu0 %v241
  %5324 = vmatpush.msra.mxu0 %v237
  %5325 = vmatpush.msra.mxu0 %v233
  %5326 = vmatpush.msra.mxu0 %v229
  %5327 = vmatpush.msra.mxu0 %v225
  %5328 = vmatpush.msra.mxu0 %v221
  %5329 = vmatpush.msra.mxu0 %v217
  %5330 = vmatpush.msra.mxu0 %v213
  %5331 = vmatpush.msra.mxu0 %v209
  %5332 = vmatpush.msra.mxu0 %v205
  %5333 = vmatpush.msra.mxu0 %v201
  %5334 = vmatpush.msra.mxu0 %v197
  %5335 = vmatpush.msra.mxu0 %v193
  %5336 = vmatmul.f32.gmra.mxu0 %v22
  %v5337 = vpop.f32.mrf.mxu0
  %v5338 = vadd.f32 %v5318, %v5337
  %5339 = vdwg.mxu0
  %5340 = vmatpush.msra.mxu0 %v317
  %5341 = vmatpush.msra.mxu0 %v313
  %5342 = vmatpush.msra.mxu0 %v309
  %5343 = vmatpush.msra.mxu0 %v305
  %5344 = vmatpush.msra.mxu0 %v301
  %5345 = vmatpush.msra.mxu0 %v297
  %5346 = vmatpush.msra.mxu0 %v293
  %5347 = vmatpush.msra.mxu0 %v289
  %5348 = vmatpush.msra.mxu0 %v285
  %5349 = vmatpush.msra.mxu0 %v281
  %5350 = vmatpush.msra.mxu0 %v277
  %5351 = vmatpush.msra.mxu0 %v273
  %5352 = vmatpush.msra.mxu0 %v269
  %5353 = vmatpush.msra.mxu0 %v265
  %5354 = vmatpush.msra.mxu0 %v261
  %5355 = vmatpush.msra.mxu0 %v257
  %5356 = vmatmul.f32.gmra.mxu0 %v23
  %v5357 = vpop.f32.mrf.mxu0
  %v5358 = vadd.f32 %v5338, %v5357
  %5359 = vdwg.mxu0
  %5360 = vmatpush.msra.mxu0 %v381
  %5361 = vmatpush.msra.mxu0 %v377
  %5362 = vmatpush.msra.mxu0 %v373
  %5363 = vmatpush.msra.mxu0 %v369
  %5364 = vmatpush.msra.mxu0 %v365
  %5365 = vmatpush.msra.mxu0 %v361
  %5366 = vmatpush.msra.mxu0 %v357
  %5367 = vmatpush.msra.mxu0 %v353
  %5368 = vmatpush.msra.mxu0 %v349
  %5369 = vmatpush.msra.mxu0 %v345
  %5370 = vmatpush.msra.mxu0 %v341
  %5371 = vmatpush.msra.mxu0 %v337
  %5372 = vmatpush.msra.mxu0 %v333
  %5373 = vmatpush.msra.mxu0 %v329
  %5374 = vmatpush.msra.mxu0 %v325
  %5375 = vmatpush.msra.mxu0 %v321
  %5376 = vmatmul.f32.gmra.mxu0 %v24
  %v5377 = vpop.f32.mrf.mxu0
  %v5378 = vadd.f32 %v5358, %v5377
  %5379 = vdwg.mxu0
  %5380 = vmatpush.msra.mxu0 %v445
  %5381 = vmatpush.msra.mxu0 %v441
  %5382 = vmatpush.msra.mxu0 %v437
  %5383 = vmatpush.msra.mxu0 %v433
  %5384 = vmatpush.msra.mxu0 %v429
  %5385 = vmatpush.msra.mxu0 %v425
  %5386 = vmatpush.msra.mxu0 %v421
  %5387 = vmatpush.msra.mxu0 %v417
  %5388 = vmatpush.msra.mxu0 %v413
  %5389 = vmatpush.msra.mxu0 %v409
  %5390 = vmatpush.msra.mxu0 %v405
  %5391 = vmatpush.msra.mxu0 %v401
  %5392 = vmatpush.msra.mxu0 %v397
  %5393 = vmatpush.msra.mxu0 %v393
  %5394 = vmatpush.msra.mxu0 %v389
  %5395 = vmatpush.msra.mxu0 %v385
  %5396 = vmatmul.f32.gmra.mxu0 %v25
  %v5397 = vpop.f32.mrf.mxu0
  %v5398 = vadd.f32 %v5378, %v5397
  %5399 = vdwg.mxu0
  %5400 = vmatpush.msra.mxu0 %v509
  %5401 = vmatpush.msra.mxu0 %v505
  %5402 = vmatpush.msra.mxu0 %v501
  %5403 = vmatpush.msra.mxu0 %v497
  %5404 = vmatpush.msra.mxu0 %v493
  %5405 = vmatpush.msra.mxu0 %v489
  %5406 = vmatpush.msra.mxu0 %v485
  %5407 = vmatpush.msra.mxu0 %v481
  %5408 = vmatpush.msra.mxu0 %v477
  %5409 = vmatpush.msra.mxu0 %v473
  %5410 = vmatpush.msra.mxu0 %v469
  %5411 = vmatpush.msra.mxu0 %v465
  %5412 = vmatpush.msra.mxu0 %v461
  %5413 = vmatpush.msra.mxu0 %v457
  %5414 = vmatpush.msra.mxu0 %v453
  %5415 = vmatpush.msra.mxu0 %v449
  %5416 = vmatmul.f32.gmra.mxu0 %v26
  %v5417 = vpop.f32.mrf.mxu0
  %v5418 = vadd.f32 %v5398, %v5417
  %5419 = vdwg.mxu0
  %5420 = vmatpush.msra.mxu0 %v573
  %5421 = vmatpush.msra.mxu0 %v569
  %5422 = vmatpush.msra.mxu0 %v565
  %5423 = vmatpush.msra.mxu0 %v561
  %5424 = vmatpush.msra.mxu0 %v557
  %5425 = vmatpush.msra.mxu0 %v553
  %5426 = vmatpush.msra.mxu0 %v549
  %5427 = vmatpush.msra.mxu0 %v545
  %5428 = vmatpush.msra.mxu0 %v541
  %5429 = vmatpush.msra.mxu0 %v537
  %5430 = vmatpush.msra.mxu0 %v533
  %5431 = vmatpush.msra.mxu0 %v529
  %5432 = vmatpush.msra.mxu0 %v525
  %5433 = vmatpush.msra.mxu0 %v521
  %5434 = vmatpush.msra.mxu0 %v517
  %5435 = vmatpush.msra.mxu0 %v513
  %5436 = vmatmul.f32.gmra.mxu0 %v27
  %v5437 = vpop.f32.mrf.mxu0
  %v5438 = vadd.f32 %v5418, %v5437
  %5439 = vdwg.mxu0
  %5440 = vmatpush.msra.mxu0 %v637
  %5441 = vmatpush.msra.mxu0 %v633
  %5442 = vmatpush.msra.mxu0 %v629
  %5443 = vmatpush.msra.mxu0 %v625
  %5444 = vmatpush.msra.mxu0 %v621
  %5445 = vmatpush.msra.mxu0 %v617
  %5446 = vmatpush.msra.mxu0 %v613
  %5447 = vmatpush.msra.mxu0 %v609
  %5448 = vmatpush.msra.mxu0 %v605
  %5449 = vmatpush.msra.mxu0 %v601
  %5450 = vmatpush.msra.mxu0 %v597
  %5451 = vmatpush.msra.mxu0 %v593
  %5452 = vmatpush.msra.mxu0 %v589
  %5453 = vmatpush.msra.mxu0 %v585
  %5454 = vmatpush.msra.mxu0 %v581
  %5455 = vmatpush.msra.mxu0 %v577
  %5456 = vmatmul.f32.gmra.mxu0 %v28
  %v5457 = vpop.f32.mrf.mxu0
  %v5458 = vadd.f32 %v5438, %v5457
  %5459 = vdwg.mxu0
  %5460 = vmatpush.msra.mxu0 %v701
  %5461 = vmatpush.msra.mxu0 %v697
  %5462 = vmatpush.msra.mxu0 %v693
  %5463 = vmatpush.msra.mxu0 %v689
  %5464 = vmatpush.msra.mxu0 %v685
  %5465 = vmatpush.msra.mxu0 %v681
  %5466 = vmatpush.msra.mxu0 %v677
  %5467 = vmatpush.msra.mxu0 %v673
  %5468 = vmatpush.msra.mxu0 %v669
  %5469 = vmatpush.msra.mxu0 %v665
  %5470 = vmatpush.msra.mxu0 %v661
  %5471 = vmatpush.msra.mxu0 %v657
  %5472 = vmatpush.msra.mxu0 %v653
  %5473 = vmatpush.msra.mxu0 %v649
  %5474 = vmatpush.msra.mxu0 %v645
  %5475 = vmatpush.msra.mxu0 %v641
  %5476 = vmatmul.f32.gmra.mxu0 %v29
  %v5477 = vpop.f32.mrf.mxu0
  %v5478 = vadd.f32 %v5458, %v5477
  %5479 = vdwg.mxu0
  %5480 = vmatpush.msra.mxu0 %v765
  %5481 = vmatpush.msra.mxu0 %v761
  %5482 = vmatpush.msra.mxu0 %v757
  %5483 = vmatpush.msra.mxu0 %v753
  %5484 = vmatpush.msra.mxu0 %v749
  %5485 = vmatpush.msra.mxu0 %v745
  %5486 = vmatpush.msra.mxu0 %v741
  %5487 = vmatpush.msra.mxu0 %v737
  %5488 = vmatpush.msra.mxu0 %v733
  %5489 = vmatpush.msra.mxu0 %v729
  %5490 = vmatpush.msra.mxu0 %v725
  %5491 = vmatpush.msra.mxu0 %v721
  %5492 = vmatpush.msra.mxu0 %v717
  %5493 = vmatpush.msra.mxu0 %v713
  %5494 = vmatpush.msra.mxu0 %v709
  %5495 = vmatpush.msra.mxu0 %v705
  %5496 = vmatmul.f32.gmra.mxu0 %v30
  %v5497 = vpop.f32.mrf.mxu0
  %v5498 = vadd.f32 %v5478, %v5497
  %5499 = vdwg.mxu0
  %5500 = vmatpush.msra.mxu0 %v829
  %5501 = vmatpush.msra.mxu0 %v825
  %5502 = vmatpush.msra.mxu0 %v821
  %5503 = vmatpush.msra.mxu0 %v817
  %5504 = vmatpush.msra.mxu0 %v813
  %5505 = vmatpush.msra.mxu0 %v809
  %5506 = vmatpush.msra.mxu0 %v805
  %5507 = vmatpush.msra.mxu0 %v801
  %5508 = vmatpush.msra.mxu0 %v797
  %5509 = vmatpush.msra.mxu0 %v793
  %5510 = vmatpush.msra.mxu0 %v789
  %5511 = vmatpush.msra.mxu0 %v785
  %5512 = vmatpush.msra.mxu0 %v781
  %5513 = vmatpush.msra.mxu0 %v777
  %5514 = vmatpush.msra.mxu0 %v773
  %5515 = vmatpush.msra.mxu0 %v769
  %5516 = vmatmul.f32.gmra.mxu0 %v31
  %v5517 = vpop.f32.mrf.mxu0
  %v5518 = vadd.f32 %v5498, %v5517
  %5519 = vdwg.mxu0
  %5520 = vmatpush.msra.mxu0 %v893
  %5521 = vmatpush.msra.mxu0 %v889
  %5522 = vmatpush.msra.mxu0 %v885
  %5523 = vmatpush.msra.mxu0 %v881
  %5524 = vmatpush.msra.mxu0 %v877
  %5525 = vmatpush.msra.mxu0 %v873
  %5526 = vmatpush.msra.mxu0 %v869
  %5527 = vmatpush.msra.mxu0 %v865
  %5528 = vmatpush.msra.mxu0 %v861
  %5529 = vmatpush.msra.mxu0 %v857
  %5530 = vmatpush.msra.mxu0 %v853
  %5531 = vmatpush.msra.mxu0 %v849
  %5532 = vmatpush.msra.mxu0 %v845
  %5533 = vmatpush.msra.mxu0 %v841
  %5534 = vmatpush.msra.mxu0 %v837
  %5535 = vmatpush.msra.mxu0 %v833
  %5536 = vmatmul.f32.gmra.mxu0 %v32
  %v5537 = vpop.f32.mrf.mxu0
  %v5538 = vadd.f32 %v5518, %v5537
  %5539 = vdwg.mxu0
  %5540 = vmatpush.msra.mxu0 %v957
  %5541 = vmatpush.msra.mxu0 %v953
  %5542 = vmatpush.msra.mxu0 %v949
  %5543 = vmatpush.msra.mxu0 %v945
  %5544 = vmatpush.msra.mxu0 %v941
  %5545 = vmatpush.msra.mxu0 %v937
  %5546 = vmatpush.msra.mxu0 %v933
  %5547 = vmatpush.msra.mxu0 %v929
  %5548 = vmatpush.msra.mxu0 %v925
  %5549 = vmatpush.msra.mxu0 %v921
  %5550 = vmatpush.msra.mxu0 %v917
  %5551 = vmatpush.msra.mxu0 %v913
  %5552 = vmatpush.msra.mxu0 %v909
  %5553 = vmatpush.msra.mxu0 %v905
  %5554 = vmatpush.msra.mxu0 %v901
  %5555 = vmatpush.msra.mxu0 %v897
  %5556 = vmatmul.f32.gmra.mxu0 %v33
  %v5557 = vpop.f32.mrf.mxu0
  %v5558 = vadd.f32 %v5538, %v5557
  %5559 = vdwg.mxu0
  %5560 = vmatpush.msra.mxu0 %v1021
  %5561 = vmatpush.msra.mxu0 %v1017
  %5562 = vmatpush.msra.mxu0 %v1013
  %5563 = vmatpush.msra.mxu0 %v1009
  %5564 = vmatpush.msra.mxu0 %v1005
  %5565 = vmatpush.msra.mxu0 %v1001
  %5566 = vmatpush.msra.mxu0 %v997
  %5567 = vmatpush.msra.mxu0 %v993
  %5568 = vmatpush.msra.mxu0 %v989
  %5569 = vmatpush.msra.mxu0 %v985
  %5570 = vmatpush.msra.mxu0 %v981
  %5571 = vmatpush.msra.mxu0 %v977
  %5572 = vmatpush.msra.mxu0 %v973
  %5573 = vmatpush.msra.mxu0 %v969
  %5574 = vmatpush.msra.mxu0 %v965
  %5575 = vmatpush.msra.mxu0 %v961
  %5576 = vmatmul.f32.gmra.mxu0 %v34
  %v5577 = vpop.f32.mrf.mxu0
  %v5578 = vadd.f32 %v5558, %v5577
  %5579 = vdwg.mxu0
  %5580 = vmatpush.msra.mxu0 %v1085
  %5581 = vmatpush.msra.mxu0 %v1081
  %5582 = vmatpush.msra.mxu0 %v1077
  %5583 = vmatpush.msra.mxu0 %v1073
  %5584 = vmatpush.msra.mxu0 %v1069
  %5585 = vmatpush.msra.mxu0 %v1065
  %5586 = vmatpush.msra.mxu0 %v1061
  %5587 = vmatpush.msra.mxu0 %v1057
  %5588 = vmatpush.msra.mxu0 %v1053
  %5589 = vmatpush.msra.mxu0 %v1049
  %5590 = vmatpush.msra.mxu0 %v1045
  %5591 = vmatpush.msra.mxu0 %v1041
  %5592 = vmatpush.msra.mxu0 %v1037
  %5593 = vmatpush.msra.mxu0 %v1033
  %5594 = vmatpush.msra.mxu0 %v1029
  %5595 = vmatpush.msra.mxu0 %v1025
  %5596 = vmatmul.f32.gmra.mxu0 %v35
  %v5597 = vpop.f32.mrf.mxu0
  %v5598 = vadd.f32 %v5578, %v5597
  %5599 = vdwg.mxu0
  %5600 = vmatpush.msra.mxu0 %v1149
  %5601 = vmatpush.msra.mxu0 %v1145
  %5602 = vmatpush.msra.mxu0 %v1141
  %5603 = vmatpush.msra.mxu0 %v1137
  %5604 = vmatpush.msra.mxu0 %v1133
  %5605 = vmatpush.msra.mxu0 %v1129
  %5606 = vmatpush.msra.mxu0 %v1125
  %5607 = vmatpush.msra.mxu0 %v1121
  %5608 = vmatpush.msra.mxu0 %v1117
  %5609 = vmatpush.msra.mxu0 %v1113
  %5610 = vmatpush.msra.mxu0 %v1109
  %5611 = vmatpush.msra.mxu0 %v1105
  %5612 = vmatpush.msra.mxu0 %v1101
  %5613 = vmatpush.msra.mxu0 %v1097
  %5614 = vmatpush.msra.mxu0 %v1093
  %5615 = vmatpush.msra.mxu0 %v1089
  %5616 = vmatmul.f32.gmra.mxu0 %v36
  %v5617 = vpop.f32.mrf.mxu0
  %v5618 = vadd.f32 %v5598, %v5617
  %5619 = vdwg.mxu0
  %5620 = vmatpush.msra.mxu0 %v1213
  %5621 = vmatpush.msra.mxu0 %v1209
  %5622 = vmatpush.msra.mxu0 %v1205
  %5623 = vmatpush.msra.mxu0 %v1201
  %5624 = vmatpush.msra.mxu0 %v1197
  %5625 = vmatpush.msra.mxu0 %v1193
  %5626 = vmatpush.msra.mxu0 %v1189
  %5627 = vmatpush.msra.mxu0 %v1185
  %5628 = vmatpush.msra.mxu0 %v1181
  %5629 = vmatpush.msra.mxu0 %v1177
  %5630 = vmatpush.msra.mxu0 %v1173
  %5631 = vmatpush.msra.mxu0 %v1169
  %5632 = vmatpush.msra.mxu0 %v1165
  %5633 = vmatpush.msra.mxu0 %v1161
  %5634 = vmatpush.msra.mxu0 %v1157
  %5635 = vmatpush.msra.mxu0 %v1153
  %5636 = vmatmul.f32.gmra.mxu0 %v37
  %v5637 = vpop.f32.mrf.mxu0
  %v5638 = vadd.f32 %v5618, %v5637
  %5639 = vdwg.mxu0
  %5640 = vmatpush.msra.mxu0 %v1277
  %5641 = vmatpush.msra.mxu0 %v1273
  %5642 = vmatpush.msra.mxu0 %v1269
  %5643 = vmatpush.msra.mxu0 %v1265
  %5644 = vmatpush.msra.mxu0 %v1261
  %5645 = vmatpush.msra.mxu0 %v1257
  %5646 = vmatpush.msra.mxu0 %v1253
  %5647 = vmatpush.msra.mxu0 %v1249
  %5648 = vmatpush.msra.mxu0 %v1245
  %5649 = vmatpush.msra.mxu0 %v1241
  %5650 = vmatpush.msra.mxu0 %v1237
  %5651 = vmatpush.msra.mxu0 %v1233
  %5652 = vmatpush.msra.mxu0 %v1229
  %5653 = vmatpush.msra.mxu0 %v1225
  %5654 = vmatpush.msra.mxu0 %v1221
  %5655 = vmatpush.msra.mxu0 %v1217
  %5656 = vmatmul.f32.gmra.mxu0 %v38
  %v5657 = vpop.f32.mrf.mxu0
  %v5658 = vadd.f32 %v5638, %v5657
  %5659 = vdwg.mxu0
  %5660 = vmatpush.msra.mxu0 %v1341
  %5661 = vmatpush.msra.mxu0 %v1337
  %5662 = vmatpush.msra.mxu0 %v1333
  %5663 = vmatpush.msra.mxu0 %v1329
  %5664 = vmatpush.msra.mxu0 %v1325
  %5665 = vmatpush.msra.mxu0 %v1321
  %5666 = vmatpush.msra.mxu0 %v1317
  %5667 = vmatpush.msra.mxu0 %v1313
  %5668 = vmatpush.msra.mxu0 %v1309
  %5669 = vmatpush.msra.mxu0 %v1305
  %5670 = vmatpush.msra.mxu0 %v1301
  %5671 = vmatpush.msra.mxu0 %v1297
  %5672 = vmatpush.msra.mxu0 %v1293
  %5673 = vmatpush.msra.mxu0 %v1289
  %5674 = vmatpush.msra.mxu0 %v1285
  %5675 = vmatpush.msra.mxu0 %v1281
  %5676 = vmatmul.f32.gmra.mxu0 %v39
  %v5677 = vpop.f32.mrf.mxu0
  %v5678 = vadd.f32 %v5658, %v5677
  %5679 = vdwg.mxu0
  %5680 = vmatpush.msra.mxu0 %v1405
  %5681 = vmatpush.msra.mxu0 %v1401
  %5682 = vmatpush.msra.mxu0 %v1397
  %5683 = vmatpush.msra.mxu0 %v1393
  %5684 = vmatpush.msra.mxu0 %v1389
  %5685 = vmatpush.msra.mxu0 %v1385
  %5686 = vmatpush.msra.mxu0 %v1381
  %5687 = vmatpush.msra.mxu0 %v1377
  %5688 = vmatpush.msra.mxu0 %v1373
  %5689 = vmatpush.msra.mxu0 %v1369
  %5690 = vmatpush.msra.mxu0 %v1365
  %5691 = vmatpush.msra.mxu0 %v1361
  %5692 = vmatpush.msra.mxu0 %v1357
  %5693 = vmatpush.msra.mxu0 %v1353
  %5694 = vmatpush.msra.mxu0 %v1349
  %5695 = vmatpush.msra.mxu0 %v1345
  %5696 = vmatmul.f32.gmra.mxu0 %v40
  %v5697 = vpop.f32.mrf.mxu0
  %v5698 = vadd.f32 %v5678, %v5697
  %5699 = vdwg.mxu0
  %5700 = vmatpush.msra.mxu0 %v1469
  %5701 = vmatpush.msra.mxu0 %v1465
  %5702 = vmatpush.msra.mxu0 %v1461
  %5703 = vmatpush.msra.mxu0 %v1457
  %5704 = vmatpush.msra.mxu0 %v1453
  %5705 = vmatpush.msra.mxu0 %v1449
  %5706 = vmatpush.msra.mxu0 %v1445
  %5707 = vmatpush.msra.mxu0 %v1441
  %5708 = vmatpush.msra.mxu0 %v1437
  %5709 = vmatpush.msra.mxu0 %v1433
  %5710 = vmatpush.msra.mxu0 %v1429
  %5711 = vmatpush.msra.mxu0 %v1425
  %5712 = vmatpush.msra.mxu0 %v1421
  %5713 = vmatpush.msra.mxu0 %v1417
  %5714 = vmatpush.msra.mxu0 %v1413
  %5715 = vmatpush.msra.mxu0 %v1409
  %5716 = vmatmul.f32.gmra.mxu0 %v41
  %v5717 = vpop.f32.mrf.mxu0
  %v5718 = vadd.f32 %v5698, %v5717
  %5719 = vdwg.mxu0
  %5720 = vmatpush.msra.mxu0 %v1533
  %5721 = vmatpush.msra.mxu0 %v1529
  %5722 = vmatpush.msra.mxu0 %v1525
  %5723 = vmatpush.msra.mxu0 %v1521
  %5724 = vmatpush.msra.mxu0 %v1517
  %5725 = vmatpush.msra.mxu0 %v1513
  %5726 = vmatpush.msra.mxu0 %v1509
  %5727 = vmatpush.msra.mxu0 %v1505
  %5728 = vmatpush.msra.mxu0 %v1501
  %5729 = vmatpush.msra.mxu0 %v1497
  %5730 = vmatpush.msra.mxu0 %v1493
  %5731 = vmatpush.msra.mxu0 %v1489
  %5732 = vmatpush.msra.mxu0 %v1485
  %5733 = vmatpush.msra.mxu0 %v1481
  %5734 = vmatpush.msra.mxu0 %v1477
  %5735 = vmatpush.msra.mxu0 %v1473
  %5736 = vmatmul.f32.gmra.mxu0 %v42
  %v5737 = vpop.f32.mrf.mxu0
  %v5738 = vadd.f32 %v5718, %v5737
  %5739 = vdwg.mxu0
  %5740 = vmatpush.msra.mxu0 %v1597
  %5741 = vmatpush.msra.mxu0 %v1593
  %5742 = vmatpush.msra.mxu0 %v1589
  %5743 = vmatpush.msra.mxu0 %v1585
  %5744 = vmatpush.msra.mxu0 %v1581
  %5745 = vmatpush.msra.mxu0 %v1577
  %5746 = vmatpush.msra.mxu0 %v1573
  %5747 = vmatpush.msra.mxu0 %v1569
  %5748 = vmatpush.msra.mxu0 %v1565
  %5749 = vmatpush.msra.mxu0 %v1561
  %5750 = vmatpush.msra.mxu0 %v1557
  %5751 = vmatpush.msra.mxu0 %v1553
  %5752 = vmatpush.msra.mxu0 %v1549
  %5753 = vmatpush.msra.mxu0 %v1545
  %5754 = vmatpush.msra.mxu0 %v1541
  %5755 = vmatpush.msra.mxu0 %v1537
  %5756 = vmatmul.f32.gmra.mxu0 %v43
  %v5757 = vpop.f32.mrf.mxu0
  %v5758 = vadd.f32 %v5738, %v5757
  %5759 = vdwg.mxu0
  %5760 = vmatpush.msra.mxu0 %v1661
  %5761 = vmatpush.msra.mxu0 %v1657
  %5762 = vmatpush.msra.mxu0 %v1653
  %5763 = vmatpush.msra.mxu0 %v1649
  %5764 = vmatpush.msra.mxu0 %v1645
  %5765 = vmatpush.msra.mxu0 %v1641
  %5766 = vmatpush.msra.mxu0 %v1637
  %5767 = vmatpush.msra.mxu0 %v1633
  %5768 = vmatpush.msra.mxu0 %v1629
  %5769 = vmatpush.msra.mxu0 %v1625
  %5770 = vmatpush.msra.mxu0 %v1621
  %5771 = vmatpush.msra.mxu0 %v1617
  %5772 = vmatpush.msra.mxu0 %v1613
  %5773 = vmatpush.msra.mxu0 %v1609
  %5774 = vmatpush.msra.mxu0 %v1605
  %5775 = vmatpush.msra.mxu0 %v1601
  %5776 = vmatmul.f32.gmra.mxu0 %v44
  %v5777 = vpop.f32.mrf.mxu0
  %v5778 = vadd.f32 %v5758, %v5777
  %5779 = vdwg.mxu0
  %5780 = vmatpush.msra.mxu0 %v1725
  %5781 = vmatpush.msra.mxu0 %v1721
  %5782 = vmatpush.msra.mxu0 %v1717
  %5783 = vmatpush.msra.mxu0 %v1713
  %5784 = vmatpush.msra.mxu0 %v1709
  %5785 = vmatpush.msra.mxu0 %v1705
  %5786 = vmatpush.msra.mxu0 %v1701
  %5787 = vmatpush.msra.mxu0 %v1697
  %5788 = vmatpush.msra.mxu0 %v1693
  %5789 = vmatpush.msra.mxu0 %v1689
  %5790 = vmatpush.msra.mxu0 %v1685
  %5791 = vmatpush.msra.mxu0 %v1681
  %5792 = vmatpush.msra.mxu0 %v1677
  %5793 = vmatpush.msra.mxu0 %v1673
  %5794 = vmatpush.msra.mxu0 %v1669
  %5795 = vmatpush.msra.mxu0 %v1665
  %5796 = vmatmul.f32.gmra.mxu0 %v45
  %v5797 = vpop.f32.mrf.mxu0
  %v5798 = vadd.f32 %v5778, %v5797
  %5799 = vdwg.mxu0
  %5800 = vmatpush.msra.mxu0 %v1789
  %5801 = vmatpush.msra.mxu0 %v1785
  %5802 = vmatpush.msra.mxu0 %v1781
  %5803 = vmatpush.msra.mxu0 %v1777
  %5804 = vmatpush.msra.mxu0 %v1773
  %5805 = vmatpush.msra.mxu0 %v1769
  %5806 = vmatpush.msra.mxu0 %v1765
  %5807 = vmatpush.msra.mxu0 %v1761
  %5808 = vmatpush.msra.mxu0 %v1757
  %5809 = vmatpush.msra.mxu0 %v1753
  %5810 = vmatpush.msra.mxu0 %v1749
  %5811 = vmatpush.msra.mxu0 %v1745
  %5812 = vmatpush.msra.mxu0 %v1741
  %5813 = vmatpush.msra.mxu0 %v1737
  %5814 = vmatpush.msra.mxu0 %v1733
  %5815 = vmatpush.msra.mxu0 %v1729
  %5816 = vmatmul.f32.gmra.mxu0 %v46
  %v5817 = vpop.f32.mrf.mxu0
  %v5818 = vadd.f32 %v5798, %v5817
  %5819 = vdwg.mxu0
  %5820 = vmatpush.msra.mxu0 %v1853
  %5821 = vmatpush.msra.mxu0 %v1849
  %5822 = vmatpush.msra.mxu0 %v1845
  %5823 = vmatpush.msra.mxu0 %v1841
  %5824 = vmatpush.msra.mxu0 %v1837
  %5825 = vmatpush.msra.mxu0 %v1833
  %5826 = vmatpush.msra.mxu0 %v1829
  %5827 = vmatpush.msra.mxu0 %v1825
  %5828 = vmatpush.msra.mxu0 %v1821
  %5829 = vmatpush.msra.mxu0 %v1817
  %5830 = vmatpush.msra.mxu0 %v1813
  %5831 = vmatpush.msra.mxu0 %v1809
  %5832 = vmatpush.msra.mxu0 %v1805
  %5833 = vmatpush.msra.mxu0 %v1801
  %5834 = vmatpush.msra.mxu0 %v1797
  %5835 = vmatpush.msra.mxu0 %v1793
  %5836 = vmatmul.f32.gmra.mxu0 %v47
  %v5837 = vpop.f32.mrf.mxu0
  %v5838 = vadd.f32 %v5818, %v5837
  %5839 = vdwg.mxu0
  %5840 = vmatpush.msra.mxu0 %v1917
  %5841 = vmatpush.msra.mxu0 %v1913
  %5842 = vmatpush.msra.mxu0 %v1909
  %5843 = vmatpush.msra.mxu0 %v1905
  %5844 = vmatpush.msra.mxu0 %v1901
  %5845 = vmatpush.msra.mxu0 %v1897
  %5846 = vmatpush.msra.mxu0 %v1893
  %5847 = vmatpush.msra.mxu0 %v1889
  %5848 = vmatpush.msra.mxu0 %v1885
  %5849 = vmatpush.msra.mxu0 %v1881
  %5850 = vmatpush.msra.mxu0 %v1877
  %5851 = vmatpush.msra.mxu0 %v1873
  %5852 = vmatpush.msra.mxu0 %v1869
  %5853 = vmatpush.msra.mxu0 %v1865
  %5854 = vmatpush.msra.mxu0 %v1861
  %5855 = vmatpush.msra.mxu0 %v1857
  %5856 = vmatmul.f32.gmra.mxu0 %v48
  %v5857 = vpop.f32.mrf.mxu0
  %v5858 = vadd.f32 %v5838, %v5857
  %5859 = vdwg.mxu0
  %5860 = vmatpush.msra.mxu0 %v1981
  %5861 = vmatpush.msra.mxu0 %v1977
  %5862 = vmatpush.msra.mxu0 %v1973
  %5863 = vmatpush.msra.mxu0 %v1969
  %5864 = vmatpush.msra.mxu0 %v1965
  %5865 = vmatpush.msra.mxu0 %v1961
  %5866 = vmatpush.msra.mxu0 %v1957
  %5867 = vmatpush.msra.mxu0 %v1953
  %5868 = vmatpush.msra.mxu0 %v1949
  %5869 = vmatpush.msra.mxu0 %v1945
  %5870 = vmatpush.msra.mxu0 %v1941
  %5871 = vmatpush.msra.mxu0 %v1937
  %5872 = vmatpush.msra.mxu0 %v1933
  %5873 = vmatpush.msra.mxu0 %v1929
  %5874 = vmatpush.msra.mxu0 %v1925
  %5875 = vmatpush.msra.mxu0 %v1921
  %5876 = vmatmul.f32.gmra.mxu0 %v49
  %v5877 = vpop.f32.mrf.mxu0
  %v5878 = vadd.f32 %v5858, %v5877
  %5879 = vdwg.mxu0
  %5880 = vmatpush.msra.mxu0 %v2045
  %5881 = vmatpush.msra.mxu0 %v2041
  %5882 = vmatpush.msra.mxu0 %v2037
  %5883 = vmatpush.msra.mxu0 %v2033
  %5884 = vmatpush.msra.mxu0 %v2029
  %5885 = vmatpush.msra.mxu0 %v2025
  %5886 = vmatpush.msra.mxu0 %v2021
  %5887 = vmatpush.msra.mxu0 %v2017
  %5888 = vmatpush.msra.mxu0 %v2013
  %5889 = vmatpush.msra.mxu0 %v2009
  %5890 = vmatpush.msra.mxu0 %v2005
  %5891 = vmatpush.msra.mxu0 %v2001
  %5892 = vmatpush.msra.mxu0 %v1997
  %5893 = vmatpush.msra.mxu0 %v1993
  %5894 = vmatpush.msra.mxu0 %v1989
  %5895 = vmatpush.msra.mxu0 %v1985
  %5896 = vmatmul.f32.gmra.mxu0 %v50
  %v5897 = vpop.f32.mrf.mxu0
  %v5898 = vadd.f32 %v5878, %v5897
  %5899 = vdwg.mxu0
  %5900 = vmatpush.msra.mxu0 %v2109
  %5901 = vmatpush.msra.mxu0 %v2105
  %5902 = vmatpush.msra.mxu0 %v2101
  %5903 = vmatpush.msra.mxu0 %v2097
  %5904 = vmatpush.msra.mxu0 %v2093
  %5905 = vmatpush.msra.mxu0 %v2089
  %5906 = vmatpush.msra.mxu0 %v2085
  %5907 = vmatpush.msra.mxu0 %v2081
  %5908 = vmatpush.msra.mxu0 %v2077
  %5909 = vmatpush.msra.mxu0 %v2073
  %5910 = vmatpush.msra.mxu0 %v2069
  %5911 = vmatpush.msra.mxu0 %v2065
  %5912 = vmatpush.msra.mxu0 %v2061
  %5913 = vmatpush.msra.mxu0 %v2057
  %5914 = vmatpush.msra.mxu0 %v2053
  %5915 = vmatpush.msra.mxu0 %v2049
  %5916 = vmatmul.f32.gmra.mxu0 %v51
  %v5917 = vpop.f32.mrf.mxu0
  %v5918 = vadd.f32 %v5898, %v5917
  %5919 = vdwg.mxu0
  %5920 = vmatpush.msra.mxu0 %v2173
  %5921 = vmatpush.msra.mxu0 %v2169
  %5922 = vmatpush.msra.mxu0 %v2165
  %5923 = vmatpush.msra.mxu0 %v2161
  %5924 = vmatpush.msra.mxu0 %v2157
  %5925 = vmatpush.msra.mxu0 %v2153
  %5926 = vmatpush.msra.mxu0 %v2149
  %5927 = vmatpush.msra.mxu0 %v2145
  %5928 = vmatpush.msra.mxu0 %v2141
  %5929 = vmatpush.msra.mxu0 %v2137
  %5930 = vmatpush.msra.mxu0 %v2133
  %5931 = vmatpush.msra.mxu0 %v2129
  %5932 = vmatpush.msra.mxu0 %v2125
  %5933 = vmatpush.msra.mxu0 %v2121
  %5934 = vmatpush.msra.mxu0 %v2117
  %5935 = vmatpush.msra.mxu0 %v2113
  %5936 = vmatmul.f32.gmra.mxu0 %v52
  %v5937 = vpop.f32.mrf.mxu0
  %v5938 = vadd.f32 %v5918, %v5937
  %5939 = vdwg.mxu0
  %5940 = vmatpush.msra.mxu0 %v2237
  %5941 = vmatpush.msra.mxu0 %v2233
  %5942 = vmatpush.msra.mxu0 %v2229
  %5943 = vmatpush.msra.mxu0 %v2225
  %5944 = vmatpush.msra.mxu0 %v2221
  %5945 = vmatpush.msra.mxu0 %v2217
  %5946 = vmatpush.msra.mxu0 %v2213
  %5947 = vmatpush.msra.mxu0 %v2209
  %5948 = vmatpush.msra.mxu0 %v2205
  %5949 = vmatpush.msra.mxu0 %v2201
  %5950 = vmatpush.msra.mxu0 %v2197
  %5951 = vmatpush.msra.mxu0 %v2193
  %5952 = vmatpush.msra.mxu0 %v2189
  %5953 = vmatpush.msra.mxu0 %v2185
  %5954 = vmatpush.msra.mxu0 %v2181
  %5955 = vmatpush.msra.mxu0 %v2177
  %5956 = vmatmul.f32.gmra.mxu0 %v53
  %v5957 = vpop.f32.mrf.mxu0
  %v5958 = vadd.f32 %v5938, %v5957
  %5959 = vdwg.mxu0
  %5960 = vmatpush.msra.mxu0 %v2301
  %5961 = vmatpush.msra.mxu0 %v2297
  %5962 = vmatpush.msra.mxu0 %v2293
  %5963 = vmatpush.msra.mxu0 %v2289
  %5964 = vmatpush.msra.mxu0 %v2285
  %5965 = vmatpush.msra.mxu0 %v2281
  %5966 = vmatpush.msra.mxu0 %v2277
  %5967 = vmatpush.msra.mxu0 %v2273
  %5968 = vmatpush.msra.mxu0 %v2269
  %5969 = vmatpush.msra.mxu0 %v2265
  %5970 = vmatpush.msra.mxu0 %v2261
  %5971 = vmatpush.msra.mxu0 %v2257
  %5972 = vmatpush.msra.mxu0 %v2253
  %5973 = vmatpush.msra.mxu0 %v2249
  %5974 = vmatpush.msra.mxu0 %v2245
  %5975 = vmatpush.msra.mxu0 %v2241
  %5976 = vmatmul.f32.gmra.mxu0 %v54
  %v5977 = vpop.f32.mrf.mxu0
  %v5978 = vadd.f32 %v5958, %v5977
  %5979 = vdwg.mxu0
  %5980 = vmatpush.msra.mxu0 %v2365
  %5981 = vmatpush.msra.mxu0 %v2361
  %5982 = vmatpush.msra.mxu0 %v2357
  %5983 = vmatpush.msra.mxu0 %v2353
  %5984 = vmatpush.msra.mxu0 %v2349
  %5985 = vmatpush.msra.mxu0 %v2345
  %5986 = vmatpush.msra.mxu0 %v2341
  %5987 = vmatpush.msra.mxu0 %v2337
  %5988 = vmatpush.msra.mxu0 %v2333
  %5989 = vmatpush.msra.mxu0 %v2329
  %5990 = vmatpush.msra.mxu0 %v2325
  %5991 = vmatpush.msra.mxu0 %v2321
  %5992 = vmatpush.msra.mxu0 %v2317
  %5993 = vmatpush.msra.mxu0 %v2313
  %5994 = vmatpush.msra.mxu0 %v2309
  %5995 = vmatpush.msra.mxu0 %v2305
  %5996 = vmatmul.f32.gmra.mxu0 %v55
  %v5997 = vpop.f32.mrf.mxu0
  %v5998 = vadd.f32 %v5978, %v5997
  %5999 = vdwg.mxu0
  %6000 = vmatpush.msra.mxu0 %v2429
  %6001 = vmatpush.msra.mxu0 %v2425
  %6002 = vmatpush.msra.mxu0 %v2421
  %6003 = vmatpush.msra.mxu0 %v2417
  %6004 = vmatpush.msra.mxu0 %v2413
  %6005 = vmatpush.msra.mxu0 %v2409
  %6006 = vmatpush.msra.mxu0 %v2405
  %6007 = vmatpush.msra.mxu0 %v2401
  %6008 = vmatpush.msra.mxu0 %v2397
  %6009 = vmatpush.msra.mxu0 %v2393
  %6010 = vmatpush.msra.mxu0 %v2389
  %6011 = vmatpush.msra.mxu0 %v2385
  %6012 = vmatpush.msra.mxu0 %v2381
  %6013 = vmatpush.msra.mxu0 %v2377
  %6014 = vmatpush.msra.mxu0 %v2373
  %6015 = vmatpush.msra.mxu0 %v2369
  %6016 = vmatmul.f32.gmra.mxu0 %v56
  %v6017 = vpop.f32.mrf.mxu0
  %v6018 = vadd.f32 %v5998, %v6017
  %6019 = vdwg.mxu0
  %6020 = vmatpush.msra.mxu0 %v2493
  %6021 = vmatpush.msra.mxu0 %v2489
  %6022 = vmatpush.msra.mxu0 %v2485
  %6023 = vmatpush.msra.mxu0 %v2481
  %6024 = vmatpush.msra.mxu0 %v2477
  %6025 = vmatpush.msra.mxu0 %v2473
  %6026 = vmatpush.msra.mxu0 %v2469
  %6027 = vmatpush.msra.mxu0 %v2465
  %6028 = vmatpush.msra.mxu0 %v2461
  %6029 = vmatpush.msra.mxu0 %v2457
  %6030 = vmatpush.msra.mxu0 %v2453
  %6031 = vmatpush.msra.mxu0 %v2449
  %6032 = vmatpush.msra.mxu0 %v2445
  %6033 = vmatpush.msra.mxu0 %v2441
  %6034 = vmatpush.msra.mxu0 %v2437
  %6035 = vmatpush.msra.mxu0 %v2433
  %6036 = vmatmul.f32.gmra.mxu0 %v57
  %v6037 = vpop.f32.mrf.mxu0
  %v6038 = vadd.f32 %v6018, %v6037
  %6039 = vdwg.mxu0
  %6040 = vmatpush.msra.mxu0 %v2557
  %6041 = vmatpush.msra.mxu0 %v2553
  %6042 = vmatpush.msra.mxu0 %v2549
  %6043 = vmatpush.msra.mxu0 %v2545
  %6044 = vmatpush.msra.mxu0 %v2541
  %6045 = vmatpush.msra.mxu0 %v2537
  %6046 = vmatpush.msra.mxu0 %v2533
  %6047 = vmatpush.msra.mxu0 %v2529
  %6048 = vmatpush.msra.mxu0 %v2525
  %6049 = vmatpush.msra.mxu0 %v2521
  %6050 = vmatpush.msra.mxu0 %v2517
  %6051 = vmatpush.msra.mxu0 %v2513
  %6052 = vmatpush.msra.mxu0 %v2509
  %6053 = vmatpush.msra.mxu0 %v2505
  %6054 = vmatpush.msra.mxu0 %v2501
  %6055 = vmatpush.msra.mxu0 %v2497
  %6056 = vmatmul.f32.gmra.mxu0 %v58
  %v6057 = vpop.f32.mrf.mxu0
  %v6058 = vadd.f32 %v6038, %v6057
  %6059 = vdwg.mxu0
  %6060 = vmatpush.msra.mxu0 %v2621
  %6061 = vmatpush.msra.mxu0 %v2617
  %6062 = vmatpush.msra.mxu0 %v2613
  %6063 = vmatpush.msra.mxu0 %v2609
  %6064 = vmatpush.msra.mxu0 %v2605
  %6065 = vmatpush.msra.mxu0 %v2601
  %6066 = vmatpush.msra.mxu0 %v2597
  %6067 = vmatpush.msra.mxu0 %v2593
  %6068 = vmatpush.msra.mxu0 %v2589
  %6069 = vmatpush.msra.mxu0 %v2585
  %6070 = vmatpush.msra.mxu0 %v2581
  %6071 = vmatpush.msra.mxu0 %v2577
  %6072 = vmatpush.msra.mxu0 %v2573
  %6073 = vmatpush.msra.mxu0 %v2569
  %6074 = vmatpush.msra.mxu0 %v2565
  %6075 = vmatpush.msra.mxu0 %v2561
  %6076 = vmatmul.f32.gmra.mxu0 %v59
  %v6077 = vpop.f32.mrf.mxu0
  %v6078 = vadd.f32 %v6058, %v6077
  %6079 = vdwg.mxu0
  %6080 = vmatpush.msra.mxu0 %v2685
  %6081 = vmatpush.msra.mxu0 %v2681
  %6082 = vmatpush.msra.mxu0 %v2677
  %6083 = vmatpush.msra.mxu0 %v2673
  %6084 = vmatpush.msra.mxu0 %v2669
  %6085 = vmatpush.msra.mxu0 %v2665
  %6086 = vmatpush.msra.mxu0 %v2661
  %6087 = vmatpush.msra.mxu0 %v2657
  %6088 = vmatpush.msra.mxu0 %v2653
  %6089 = vmatpush.msra.mxu0 %v2649
  %6090 = vmatpush.msra.mxu0 %v2645
  %6091 = vmatpush.msra.mxu0 %v2641
  %6092 = vmatpush.msra.mxu0 %v2637
  %6093 = vmatpush.msra.mxu0 %v2633
  %6094 = vmatpush.msra.mxu0 %v2629
  %6095 = vmatpush.msra.mxu0 %v2625
  %6096 = vmatmul.f32.gmra.mxu0 %v60
  %v6097 = vpop.f32.mrf.mxu0
  %v6098 = vadd.f32 %v6078, %v6097
  %6099 = vdwg.mxu0
  %6100 = vmatpush.msra.mxu0 %v2749
  %6101 = vmatpush.msra.mxu0 %v2745
  %6102 = vmatpush.msra.mxu0 %v2741
  %6103 = vmatpush.msra.mxu0 %v2737
  %6104 = vmatpush.msra.mxu0 %v2733
  %6105 = vmatpush.msra.mxu0 %v2729
  %6106 = vmatpush.msra.mxu0 %v2725
  %6107 = vmatpush.msra.mxu0 %v2721
  %6108 = vmatpush.msra.mxu0 %v2717
  %6109 = vmatpush.msra.mxu0 %v2713
  %6110 = vmatpush.msra.mxu0 %v2709
  %6111 = vmatpush.msra.mxu0 %v2705
  %6112 = vmatpush.msra.mxu0 %v2701
  %6113 = vmatpush.msra.mxu0 %v2697
  %6114 = vmatpush.msra.mxu0 %v2693
  %6115 = vmatpush.msra.mxu0 %v2689
  %6116 = vmatmul.f32.gmra.mxu0 %v61
  %v6117 = vpop.f32.mrf.mxu0
  %v6118 = vadd.f32 %v6098, %v6117
  %6119 = vdwg.mxu0
  %v6120 = vmax.f32 %v3598, 0.0
  %v6121 = vmax.f32 %v4438, 0.0
  %v6122 = vmax.f32 %v5278, 0.0
  %v6123 = vmax.f32 %v6118, 0.0
  %v6124 = vld [vmem:[%s3] sm:$0xff]
  %v6125 = vld [vmem:[%s3 + $0x8] sm:$0xff]
  %v6126 = vld [vmem:[%s3 + $0x10] sm:$0xff]
  %v6127 = vld [vmem:[%s3 + $0x18] sm:$0xff]
  %v6128 = vld [vmem:[%s3 + $0x20] sm:$0xff]
  %v6129 = vld [vmem:[%s3 + $0x28] sm:$0xff]
  %v6130 = vld [vmem:[%s3 + $0x30] sm:$0xff]
  %v6131 = vld [vmem:[%s3 + $0x38] sm:$0xff]
  %v6132 = vld [vmem:[%s3 + $0x40] sm:$0xff]
  %v6133 = vld [vmem:[%s3 + $0x48] sm:$0xff]
  %v6134 = vld [vmem:[%s3 + $0x50] sm:$0xff]
  %v6135 = vld [vmem:[%s3 + $0x58] sm:$0xff]
  %v6136 = vld [vmem:[%s3 + $0x60] sm:$0xff]
  %v6137 = vld [vmem:[%s3 + $0x68] sm:$0xff]
  %v6138 = vld [vmem:[%s3 + $0x70] sm:$0xff]
  %v6139 = vld [vmem:[%s3 + $0x78] sm:$0xff]
  %v6140 = vld [vmem:[%s3 + $0x80] sm:$0xff]
  %v6141 = vld [vmem:[%s3 + $0x88] sm:$0xff]
  %v6142 = vld [vmem:[%s3 + $0x90] sm:$0xff]
  %v6143 = vld [vmem:[%s3 + $0x98] sm:$0xff]
  %v6144 = vld [vmem:[%s3 + $0xa0] sm:$0xff]
  %v6145 = vld [vmem:[%s3 + $0xa8] sm:$0xff]
  %v6146 = vld [vmem:[%s3 + $0xb0] sm:$0xff]
  %v6147 = vld [vmem:[%s3 + $0xb8] sm:$0xff]
  %v6148 = vld [vmem:[%s3 + $0xc0] sm:$0xff]
  %v6149 = vld [vmem:[%s3 + $0xc8] sm:$0xff]
  %v6150 = vld [vmem:[%s3 + $0xd0] sm:$0xff]
  %v6151 = vld [vmem:[%s3 + $0xd8] sm:$0xff]
  %v6152 = vld [vmem:[%s3 + $0xe0] sm:$0xff]
  %v6153 = vld [vmem:[%s3 + $0xe8] sm:$0xff]
  %v6154 = vld [vmem:[%s3 + $0xf0] sm:$0xff]
  %v6155 = vld [vmem:[%s3 + $0xf8] sm:$0xff]
  %v6156 = vld [vmem:[%s3 + $0x100] sm:$0xff]
  %v6157 = vld [vmem:[%s3 + $0x108] sm:$0xff]
  %v6158 = vld [vmem:[%s3 + $0x110] sm:$0xff]
  %v6159 = vld [vmem:[%s3 + $0x118] sm:$0xff]
  %v6160 = vld [vmem:[%s3 + $0x120] sm:$0xff]
  %v6161 = vld [vmem:[%s3 + $0x128] sm:$0xff]
  %v6162 = vld [vmem:[%s3 + $0x130] sm:$0xff]
  %v6163 = vld [vmem:[%s3 + $0x138] sm:$0xff]
  %v6164 = vld [vmem:[%s3 + $0x140] sm:$0xff]
  %v6165 = vld [vmem:[%s3 + $0x148] sm:$0xff]
  %v6166 = vld [vmem:[%s3 + $0x150] sm:$0xff]
  %v6167 = vld [vmem:[%s3 + $0x158] sm:$0xff]
  %v6168 = vld [vmem:[%s3 + $0x160] sm:$0xff]
  %v6169 = vld [vmem:[%s3 + $0x168] sm:$0xff]
  %v6170 = vld [vmem:[%s3 + $0x170] sm:$0xff]
  %v6171 = vld [vmem:[%s3 + $0x178] sm:$0xff]
  %v6172 = vld [vmem:[%s3 + $0x180] sm:$0xff]
  %v6173 = vld [vmem:[%s3 + $0x188] sm:$0xff]
  %v6174 = vld [vmem:[%s3 + $0x190] sm:$0xff]
  %v6175 = vld [vmem:[%s3 + $0x198] sm:$0xff]
  %v6176 = vld [vmem:[%s3 + $0x1a0] sm:$0xff]
  %v6177 = vld [vmem:[%s3 + $0x1a8] sm:$0xff]
  %v6178 = vld [vmem:[%s3 + $0x1b0] sm:$0xff]
  %v6179 = vld [vmem:[%s3 + $0x1b8] sm:$0xff]
  %v6180 = vld [vmem:[%s3 + $0x1c0] sm:$0xff]
  %v6181 = vld [vmem:[%s3 + $0x1c8] sm:$0xff]
  %v6182 = vld [vmem:[%s3 + $0x1d0] sm:$0xff]
  %v6183 = vld [vmem:[%s3 + $0x1d8] sm:$0xff]
  %v6184 = vld [vmem:[%s3 + $0x1e0] sm:$0xff]
  %v6185 = vld [vmem:[%s3 + $0x1e8] sm:$0xff]
  %v6186 = vld [vmem:[%s3 + $0x1f0] sm:$0xff]
  %v6187 = vld [vmem:[%s3 + $0x1f8] sm:$0xff]
  %p6188 = scmp.eq.s32.totalorder 0, 0
  %s6189 = scalar_select %p6188, 1.0, 0.0
  %v6190 = vld [vmem:[%s4] sm:$0x1]
  %v6191 = vstv %s6189
  %v6192 = vmul.f32 %v6191, %v6190
  %v6194 = vperm.slane %v6192, 0
  %6196 = vmatpush.msra.mxu0 %v6139
  %6197 = vmatpush.msra.mxu0 %v6138
  %6198 = vmatpush.msra.mxu0 %v6137
  %6199 = vmatpush.msra.mxu0 %v6136
  %6200 = vmatpush.msra.mxu0 %v6135
  %6201 = vmatpush.msra.mxu0 %v6134
  %6202 = vmatpush.msra.mxu0 %v6133
  %6203 = vmatpush.msra.mxu0 %v6132
  %6204 = vmatpush.msra.mxu0 %v6131
  %6205 = vmatpush.msra.mxu0 %v6130
  %6206 = vmatpush.msra.mxu0 %v6129
  %6207 = vmatpush.msra.mxu0 %v6128
  %6208 = vmatpush.msra.mxu0 %v6127
  %6209 = vmatpush.msra.mxu0 %v6126
  %6210 = vmatpush.msra.mxu0 %v6125
  %6211 = vmatpush.msra.mxu0 %v6124
  %6212 = vmatmul.f32.gmra.mxu0 %v6120
  %v6213 = vpop.f32.mrf.mxu0
  %v6214 = vadd.f32 %v6194, %v6213
  %6215 = vdwg.mxu0
  %6216 = vmatpush.msra.mxu0 %v6155
  %6217 = vmatpush.msra.mxu0 %v6154
  %6218 = vmatpush.msra.mxu0 %v6153
  %6219 = vmatpush.msra.mxu0 %v6152
  %6220 = vmatpush.msra.mxu0 %v6151
  %6221 = vmatpush.msra.mxu0 %v6150
  %6222 = vmatpush.msra.mxu0 %v6149
  %6223 = vmatpush.msra.mxu0 %v6148
  %6224 = vmatpush.msra.mxu0 %v6147
  %6225 = vmatpush.msra.mxu0 %v6146
  %6226 = vmatpush.msra.mxu0 %v6145
  %6227 = vmatpush.msra.mxu0 %v6144
  %6228 = vmatpush.msra.mxu0 %v6143
  %6229 = vmatpush.msra.mxu0 %v6142
  %6230 = vmatpush.msra.mxu0 %v6141
  %6231 = vmatpush.msra.mxu0 %v6140
  %6232 = vmatmul.f32.gmra.mxu0 %v6121
  %v6233 = vpop.f32.mrf.mxu0
  %v6234 = vadd.f32 %v6214, %v6233
  %6235 = vdwg.mxu0
  %6236 = vmatpush.msra.mxu0 %v6171
  %6237 = vmatpush.msra.mxu0 %v6170
  %6238 = vmatpush.msra.mxu0 %v6169
  %6239 = vmatpush.msra.mxu0 %v6168
  %6240 = vmatpush.msra.mxu0 %v6167
  %6241 = vmatpush.msra.mxu0 %v6166
  %6242 = vmatpush.msra.mxu0 %v6165
  %6243 = vmatpush.msra.mxu0 %v6164
  %6244 = vmatpush.msra.mxu0 %v6163
  %6245 = vmatpush.msra.mxu0 %v6162
  %6246 = vmatpush.msra.mxu0 %v6161
  %6247 = vmatpush.msra.mxu0 %v6160
  %6248 = vmatpush.msra.mxu0 %v6159
  %6249 = vmatpush.msra.mxu0 %v6158
  %6250 = vmatpush.msra.mxu0 %v6157
  %6251 = vmatpush.msra.mxu0 %v6156
  %6252 = vmatmul.f32.gmra.mxu0 %v6122
  %v6253 = vpop.f32.mrf.mxu0
  %v6254 = vadd.f32 %v6234, %v6253
  %6255 = vdwg.mxu0
  %6256 = vmatpush.msra.mxu0 %v6187
  %6257 = vmatpush.msra.mxu0 %v6186
  %6258 = vmatpush.msra.mxu0 %v6185
  %6259 = vmatpush.msra.mxu0 %v6184
  %6260 = vmatpush.msra.mxu0 %v6183
  %6261 = vmatpush.msra.mxu0 %v6182
  %6262 = vmatpush.msra.mxu0 %v6181
  %6263 = vmatpush.msra.mxu0 %v6180
  %6264 = vmatpush.msra.mxu0 %v6179
  %6265 = vmatpush.msra.mxu0 %v6178
  %6266 = vmatpush.msra.mxu0 %v6177
  %6267 = vmatpush.msra.mxu0 %v6176
  %6268 = vmatpush.msra.mxu0 %v6175
  %6269 = vmatpush.msra.mxu0 %v6174
  %6270 = vmatpush.msra.mxu0 %v6173
  %6271 = vmatpush.msra.mxu0 %v6172
  %6272 = vmatmul.f32.gmra.mxu0 %v6123
  %v6273 = vpop.f32.mrf.mxu0
  %v6274 = vadd.f32 %v6254, %v6273
  %6275 = vdwg.mxu0
  %6276 = vst [vmem:[%s5] sm:$0xff] %v6274
  // Predicated region
  $region22: #{dqn_forward.7} parent=0 // pred_check
    _
  $region23: #{dqn_forward.7} parent=0 // pred_check_branch
    %6278 = sbr.rel (0) target = $region25
  $region24: #{dqn_forward.7} parent=0 // pred_region
    _
  $region25: #{dqn_forward.7} parent=0 // pred_fallthru
    _
  // Predicated region
  $region26: #{dqn_forward.7} parent=0 // pred_check
    _
  $region27: #{dqn_forward.7} parent=0 // pred_check_branch
    %6280 = sbr.rel (0) target = $region29
  $region28: #{dqn_forward.7} parent=0 // pred_region
    _
  $region29: #{dqn_forward.7} parent=0 // pred_fallthru
    _

</llo_original>
